<compile_context>
chip_gen: v7x
topology: tpu7x:2x2x1
jax: 0.10.0
libtpu: 0.0.40
codegen_flags: <defaults>
</compile_context>

<pallas_src>
import functools

import jax
import jax.numpy as jnp
import numpy as np
from jax.experimental import pallas as pl
from jax.experimental.pallas import tpu as pltpu

BN_EPS = 1e-5
HIGHEST = jax.lax.Precision.HIGHEST  # reference path only
K = 4  # every ConvTranspose2d in the module uses kernel_size=4


def _taps(rh, p):
    """(kh, ah) pairs feeding output H-phase rh of a stride-2, K=4 deconv.

    out[2*bh+rh] += x_pad[bh+ah] @ M[kh], where x_pad has one zero row on each
    side of the un-dilated input (handles the ih<0 / ih>=Hin crop exactly).
    """
    out = []
    for kh in range(K):
        if (kh - rh - p) % 2 == 0:
            out.append((kh, 1 + (rh + p - kh) // 2))
    return out


# --------------------------- the single fused kernel ---------------------------
def generator_kernel(z_ref, mw0_ref, mwr_ref, mb_ref,
                     w0_ref, r0_ref, rt0_ref, g0_ref, b0_ref,
                     m1_ref, s1_ref, r1_ref, rt1_ref, g1_ref, b1_ref,
                     m2_ref, s2_ref, r2_ref, rt2_ref, g2_ref, b2_ref,
                     m3_ref, s3_ref, e3_ref,
                     o_ref, *, B, chans, hs, pads, n_map):
    f32 = jnp.float32
    bf16 = jnp.bfloat16

    def bn_relu(rows, r_rd, rt_rd, g_rd, b_rd, count):
        # One-pass BatchNorm (training stats) + ReLU over a list of f32
        # (rows_i, Wo*Cout) arrays whose lanes are (ow, c)-interleaved.
        s1 = rows[0].sum(axis=0, keepdims=True)
        s2 = (rows[0] * rows[0]).sum(axis=0, keepdims=True)
        for r in rows[1:]:
            s1 = s1 + r.sum(axis=0, keepdims=True)
            s2 = s2 + (r * r).sum(axis=0, keepdims=True)
        c1 = jnp.dot(s1, r_rd[...], preferred_element_type=f32)   # (1, Cout)
        c2 = jnp.dot(s2, r_rd[...], preferred_element_type=f32)
        inv = 1.0 / float(count)
        mean = c1 * inv
        var = jnp.maximum(c2 * inv - mean * mean, 0.0)
        scale = g_rd[...] * jax.lax.rsqrt(var + BN_EPS)
        shift = b_rd[...] - mean * scale
        # exact 0/1 matmul broadcasts (1,Cout) back onto the (ow,c) lane layout
        scale_l = jnp.dot(scale, rt_rd[...], preferred_element_type=f32)
        shift_l = jnp.dot(shift, rt_rd[...], preferred_element_type=f32)
        return [jnp.maximum(r * scale_l + shift_l, 0.0) for r in rows]

    def deconv_s2(xpads, m_rd, s_rd, hin, p):
        """Stride-2 K=4 transposed conv via sub-pixel phase decomposition."""
        ho = (hin - 1) * 2 - 2 * p + K
        lh = ho // 2
        taps = (_taps(0, p), _taps(1, p))
        merged = []
        for b in range(B):
            xpb = xpads[b].astype(bf16)          # single bf16 cast per layer/sample
            # 4 matmuls on the full padded rows; H windows are sliced from the
            # f32 results (dot is row-linear), so no per-tap casts or copies.
            full = [jnp.dot(xpb, m_rd[kh], preferred_element_type=f32)
                    for kh in range(K)]
            ph = []
            for rh in range(2):
                acc = None
                for kh, ah in taps[rh]:
                    t = full[kh][ah:ah + lh, :]
                    acc = t if acc is None else acc + t
                ph.append(acc)                   # (lh, wo*Cout) f32
            # exact 0/1 row-scatter matmuls interleave the two H phases
            merged.append(jnp.dot(s_rd[0], ph[0], preferred_element_type=f32)
                          + jnp.dot(s_rd[1], ph[1], preferred_element_type=f32))
        return merged                            # per-sample (ho, wo*Cout) f32

    def pad_h(rows_f32):
        lane_w = rows_f32[0].shape[1]
        z = jnp.zeros((1, lane_w), f32)
        return [jnp.concatenate([z, r, z], axis=0) for r in rows_f32]

    # ---------------- mapping: 9 x (Linear + ReLU) ----------------
    h = jnp.maximum(jnp.dot(z_ref[...].astype(bf16), mw0_ref[...],
                            preferred_element_type=f32) + mb_ref[0:1, :], 0.0)
    for i in range(n_map - 1):
        h = jnp.maximum(jnp.dot(h.astype(bf16), mwr_ref[i],
                                preferred_element_type=f32)
                        + mb_ref[i + 1:i + 2, :], 0.0)

    # ---- layer 0: ConvT(h8 -> 4h, k4, s1, p0) on a 1x1 input == one matmul ----
    c1 = chans[1]
    y0 = jnp.dot(h.astype(bf16), w0_ref[...], preferred_element_type=f32)  # (B, K*K*c1)
    (y0,) = bn_relu([y0], r0_ref, rt0_ref, g0_ref, b0_ref, B * K * K)

    # rows of the 4x4 output are the kh index; lanes are (kw, cout) -- already
    # the (H, W*C) layout the next layer consumes.  (hs[1] == K here.)
    lane1 = K * c1
    z1 = jnp.zeros((1, lane1), f32)
    xp1 = []
    for b in range(B):
        rows = [y0[b:b + 1, kh * lane1:(kh + 1) * lane1] for kh in range(K)]
        xp1.append(jnp.concatenate([z1] + rows + [z1], axis=0))     # (K+2, lane1)

    # ---------------- layer 1: ConvT(4h -> 2h, k4, s2, p0) + BN + ReLU ----------------
    m1 = deconv_s2(xp1, m1_ref, s1_ref, hs[1], pads[1])
    m1 = bn_relu(m1, r1_ref, rt1_ref, g1_ref, b1_ref, B * hs[2] * hs[2])
    xp2 = pad_h(m1)

    # ---------------- layer 2: ConvT(2h -> h, k4, s2, p1) + BN + ReLU ----------------
    m2 = deconv_s2(xp2, m2_ref, s2_ref, hs[2], pads[2])
    m2 = bn_relu(m2, r2_ref, rt2_ref, g2_ref, b2_ref, B * hs[3] * hs[3])
    xp3 = pad_h(m2)

    # ---------------- layer 3: ConvT(h -> C, k4, s2, p1) + Tanh, NCHW out ----------------
    m3 = deconv_s2(xp3, m3_ref, s3_ref, hs[3], pads[3])
    n_img_c = o_ref.shape[1]
    for b in range(B):
        t = jnp.tanh(m3[b])                                   # (Ho, Wo*C) f32
        for c in range(n_img_c):
            # exact 0/1 column extraction of channel c -> (Ho, Wo), stored NCHW
            o_ref[b, c, :, :] = jnp.dot(t, e3_ref[c], preferred_element_type=f32)


# ------------------------- one-time weight preparation -------------------------
def _build_tap_mats(w_pt, win, p):
    """Per-kh weight matrices folding the W axis + kw taps into one matmul.

    M[kh][iw*Cin+ci, ow*Cout+co] = W[ci, co, kh, kw] where ow = 2*iw - p + kw
    (out-of-range ow cropped), matching PyTorch ConvTranspose2d semantics.
    """
    w = np.asarray(w_pt, dtype=np.float32)
    cin, cout = w.shape[0], w.shape[1]
    wo = (win - 1) * 2 - 2 * p + K
    mats = np.zeros((K, win * cin, wo * cout), np.float32)
    for kh in range(K):
        for iw in range(win):
            for kw in range(K):
                ow = 2 * iw - p + kw
                if 0 <= ow < wo:
                    mats[kh, iw * cin:(iw + 1) * cin,
                         ow * cout:(ow + 1) * cout] = w[:, :, kh, kw]
    return jnp.asarray(mats, dtype=jnp.bfloat16)


def _build_row_scatter(hin, p):
    """0/1 matrices S[rh] with S[rh][2*bh+rh, bh] = 1 (H-phase interleave)."""
    ho = (hin - 1) * 2 - 2 * p + K
    lh = ho // 2
    s = np.zeros((2, ho, lh), np.float32)
    for rh in range(2):
        for bh in range(lh):
            s[rh, 2 * bh + rh, bh] = 1.0
    return jnp.asarray(s)


def _chan_reduce_mats(n_rep, cout):
    """R[j, c] = [j % cout == c] and its transpose (lane<->channel maps)."""
    r = np.tile(np.eye(cout, dtype=np.float32), (n_rep, 1))
    return jnp.asarray(r), jnp.asarray(np.ascontiguousarray(r.T))


def _build_chw_extract(wo, cout):
    """E[c][ow*cout + c, ow] = 1 : extracts channel c into an (Ho, Wo) plane."""
    e = np.zeros((cout, wo * cout, wo), np.float32)
    for c in range(cout):
        for ow in range(wo):
            e[c, ow * cout + c, ow] = 1.0
    return jnp.asarray(e)


def prepare_generator(params, image_channels, hidden_dim):
    """One-time (outside jit) repack of PyTorch-layout weights into the
    matmul-friendly forms the fused kernel consumes (all static index math)."""
    h8 = hidden_dim * 8
    chans = (h8, hidden_dim * 4, hidden_dim * 2, hidden_dim, image_channels)
    strides, pads = (1, 2, 2, 2), (0, 0, 1, 1)
    hs = [1]
    for s, p in zip(strides, pads):
        hs.append((hs[-1] - 1) * s - 2 * p + K)

    prep = {
        "map_w0": params["map_ws"][0].astype(jnp.bfloat16),
        "map_wr": jnp.stack([w.astype(jnp.bfloat16) for w in params["map_ws"][1:]]),
        "map_b": jnp.stack(params["map_bs"]).astype(jnp.float32),
    }
    # layer 0 (1x1 input): ConvT == (B,Cin)@(Cin,K*K*Cout); columns (kh, kw, co)
    w0 = params["convs"][0]
    prep["w0big"] = (w0.transpose(0, 2, 3, 1)
                     .reshape(chans[0], K * K * chans[1]).astype(jnp.bfloat16))
    prep["r0"], prep["rt0"] = _chan_reduce_mats(K * K, chans[1])
    prep["g0"] = params["bn_g"][0].reshape(1, chans[1]).astype(jnp.float32)
    prep["b0"] = params["bn_b"][0].reshape(1, chans[1]).astype(jnp.float32)

    for i in (1, 2, 3):
        cout = chans[i + 1]
        hin, ho, p = hs[i], hs[i + 1], pads[i]
        prep[f"m{i}"] = _build_tap_mats(params["convs"][i], hin, p)
        prep[f"s{i}"] = _build_row_scatter(hin, p)
        if i < 3:
            prep[f"r{i}"], prep[f"rt{i}"] = _chan_reduce_mats(ho, cout)
            prep[f"g{i}"] = params["bn_g"][i].reshape(1, cout).astype(jnp.float32)
            prep[f"b{i}"] = params["bn_b"][i].reshape(1, cout).astype(jnp.float32)
    prep["e3"] = _build_chw_extract(hs[4], image_channels)
    return prep


# ------------------------------- forward wrapper -------------------------------
def generator_forward(z, prep, image_channels, hidden_dim):
    B = z.shape[0]
    h8 = hidden_dim * 8
    chans = (h8, hidden_dim * 4, hidden_dim * 2, hidden_dim, image_channels)
    strides, pads = (1, 2, 2, 2), (0, 0, 1, 1)   # static architecture constants
    hs = [1]
    for s, p in zip(strides, pads):
        hs.append((hs[-1] - 1) * s - 2 * p + K)
    hs = tuple(hs)

    # TODO(synk): the PyTorch forward feeds the (B, h8) mapping output straight
    # into ConvTranspose2d (shape-invalid as written); we use the implied
    # (B, h8, 1, 1) view.  BatchNorm running-stat buffer updates (a training-
    # mode side effect that does not affect the output) are not materialized.
    args = [z,
            prep["map_w0"], prep["map_wr"], prep["map_b"],
            prep["w0big"], prep["r0"], prep["rt0"], prep["g0"], prep["b0"],
            prep["m1"], prep["s1"], prep["r1"], prep["rt1"], prep["g1"], prep["b1"],
            prep["m2"], prep["s2"], prep["r2"], prep["rt2"], prep["g2"], prep["b2"],
            prep["m3"], prep["s3"], prep["e3"]]
    vspec = pl.BlockSpec(memory_space=pltpu.MemorySpace.VMEM)
    kern = functools.partial(generator_kernel, B=B, chans=chans, hs=hs, pads=pads,
                             n_map=9)
    return pl.pallas_call(
        kern,
        out_shape=jax.ShapeDtypeStruct((B, image_channels, hs[4], hs[4]),
                                       jnp.float32),
        in_specs=[vspec] * len(args),
        out_specs=vspec,
    )(*args)


# ----------------------------- params / reference ------------------------------
def make_params(key, latent_dim, image_channels, hidden_dim):
    h8 = hidden_dim * 8
    keys = iter(jax.random.split(key, 64))
    map_ws, map_bs = [], []
    in_dim = latent_dim
    for _ in range(9):
        map_ws.append(jax.random.normal(next(keys), (in_dim, h8), jnp.float32)
                      * (1.0 / np.sqrt(in_dim)))
        map_bs.append(0.1 * jax.random.normal(next(keys), (h8,), jnp.float32))
        in_dim = h8
    chans = [h8, hidden_dim * 4, hidden_dim * 2, hidden_dim, image_channels]
    convs = []
    for i in range(4):
        cin = chans[i]
        convs.append(jax.random.normal(next(keys), (cin, chans[i + 1], K, K),
                                       jnp.float32) * (1.0 / np.sqrt(cin * K * K)))
    bn_g, bn_b = [], []
    for i in range(3):
        c = chans[i + 1]
        bn_g.append(1.0 + 0.1 * jax.random.normal(next(keys), (c,), jnp.float32))
        bn_b.append(0.1 * jax.random.normal(next(keys), (c,), jnp.float32))
    return dict(map_ws=map_ws, map_bs=map_bs, convs=convs, bn_g=bn_g, bn_b=bn_b)


def reference_forward(z, params, hidden_dim):
    h8 = hidden_dim * 8
    B = z.shape[0]
    strides, pads = (1, 2, 2, 2), (0, 0, 1, 1)
    h = z
    for w, b in zip(params["map_ws"], params["map_bs"]):
        h = jnp.maximum(jnp.dot(h, w, precision=HIGHEST) + b, 0.0)
    x = h.reshape(B, 1, 1, h8)
    for i in range(4):
        w_pt = params["convs"][i]
        s, p = strides[i], pads[i]
        wf = jnp.flip(w_pt, axis=(2, 3)).transpose(2, 3, 0, 1)
        x = jax.lax.conv_general_dilated(
            x, wf, window_strides=(1, 1),
            padding=[(K - 1 - p, K - 1 - p)] * 2,
            lhs_dilation=(s, s),
            dimension_numbers=("NHWC", "HWIO", "NHWC"),
            precision=HIGHEST)
        if i < 3:
            g, b_ = params["bn_g"][i], params["bn_b"][i]
            m = x.mean(axis=(0, 1, 2), keepdims=True)
            v = jnp.mean(jnp.square(x - m), axis=(0, 1, 2), keepdims=True)
            x = jnp.maximum((x - m) * jax.lax.rsqrt(v + BN_EPS) * g + b_, 0.0)
        else:
            x = jnp.tanh(x)
    return x.transpose(0, 3, 1, 2)


if __name__ == "__main__":
    latent_dim, image_channels, hidden_dim, batch = 16, 3, 8, 2
    key = jax.random.PRNGKey(0)
    pkey, zkey = jax.random.split(key)
    params = make_params(pkey, latent_dim, image_channels, hidden_dim)
    z = jax.random.normal(zkey, (batch, latent_dim), jnp.float32)

    prep = prepare_generator(params, image_channels, hidden_dim)  # one-time repack
    fwd = jax.jit(lambda zz, pp: generator_forward(zz, pp, image_channels, hidden_dim))
    out = jax.block_until_ready(fwd(z, prep))

    ref = reference_forward(z, params, hidden_dim)
    assert out.shape == (batch, image_channels, 40, 40), out.shape
    # Kernel runs bf16 MXU matmuls with f32 accumulation vs. the f32/HIGHEST
    # reference: allow small slack (tanh outputs near zero dominated by atol).
    np.testing.assert_allclose(np.asarray(out), np.asarray(ref), rtol=2e-2, atol=5e-2)
    print("KERNEL_OK")
</pallas_src>

<mosaic_0001>
module attributes {stable_mosaic.version = 11 : i64} {
  func.func @generator_kernel(%arg0: memref<2x16xf32, #tpu.memory_space<vmem>>, %arg1: memref<16x64xbf16, #tpu.memory_space<vmem>>, %arg2: memref<8x64x64xbf16, #tpu.memory_space<vmem>>, %arg3: memref<9x64xf32, #tpu.memory_space<vmem>>, %arg4: memref<64x512xbf16, #tpu.memory_space<vmem>>, %arg5: memref<512x32xf32, #tpu.memory_space<vmem>>, %arg6: memref<32x512xf32, #tpu.memory_space<vmem>>, %arg7: memref<1x32xf32, #tpu.memory_space<vmem>>, %arg8: memref<1x32xf32, #tpu.memory_space<vmem>>, %arg9: memref<4x128x160xbf16, #tpu.memory_space<vmem>>, %arg10: memref<2x10x5xf32, #tpu.memory_space<vmem>>, %arg11: memref<160x16xf32, #tpu.memory_space<vmem>>, %arg12: memref<16x160xf32, #tpu.memory_space<vmem>>, %arg13: memref<1x16xf32, #tpu.memory_space<vmem>>, %arg14: memref<1x16xf32, #tpu.memory_space<vmem>>, %arg15: memref<4x160x160xbf16, #tpu.memory_space<vmem>>, %arg16: memref<2x20x10xf32, #tpu.memory_space<vmem>>, %arg17: memref<160x8xf32, #tpu.memory_space<vmem>>, %arg18: memref<8x160xf32, #tpu.memory_space<vmem>>, %arg19: memref<1x8xf32, #tpu.memory_space<vmem>>, %arg20: memref<1x8xf32, #tpu.memory_space<vmem>>, %arg21: memref<4x160x120xbf16, #tpu.memory_space<vmem>>, %arg22: memref<2x40x20xf32, #tpu.memory_space<vmem>>, %arg23: memref<3x120x40xf32, #tpu.memory_space<vmem>>, %arg24: memref<2x3x40x40xf32, #tpu.memory_space<vmem>>) attributes {dimension_semantics = [], scalar_prefetch = 0 : i64, scratch_operands = 0 : i64, tpu.core_type = #tpu.core_type<tc>} {
    %c0 = arith.constant 0 : index
    %c0_0 = arith.constant 0 : index
    %0 = vector.load %arg0[%c0, %c0_0] : memref<2x16xf32, #tpu.memory_space<vmem>>, vector<2x16xf32>
    %1 = arith.truncf %0 : vector<2x16xf32> to vector<2x16xbf16>
    %c0_1 = arith.constant 0 : index
    %c0_2 = arith.constant 0 : index
    %2 = vector.load %arg1[%c0_1, %c0_2] : memref<16x64xbf16, #tpu.memory_space<vmem>>, vector<16x64xbf16>
    %cst = arith.constant dense<0.000000e+00> : vector<2x64xf32>
    %3 = tpu.matmul %1, %2, %cst {dimension_numbers = #tpu.dot_dimension_numbers<[1], [0], [0], [1], [0, 0, 1, 1], [], []>} : vector<2x16xbf16>, vector<16x64xbf16>, vector<2x64xf32> -> vector<2x64xf32>
    %c0_3 = arith.constant 0 : index
    %c0_4 = arith.constant 0 : index
    %4 = vector.load %arg3[%c0_3, %c0_4] : memref<9x64xf32, #tpu.memory_space<vmem>>, vector<1x64xf32>
    %5 = vector.broadcast %4 : vector<1x64xf32> to vector<2x64xf32>
    %6 = arith.addf %3, %5 : vector<2x64xf32>
    %cst_5 = arith.constant 0.000000e+00 : f32
    %7 = vector.broadcast %cst_5 : f32 to vector<2x64xf32>
    %8 = arith.maximumf %6, %7 : vector<2x64xf32>
    %9 = arith.truncf %8 : vector<2x64xf32> to vector<2x64xbf16>
    %c0_6 = arith.constant 0 : index
    %c0_7 = arith.constant 0 : index
    %c0_8 = arith.constant 0 : index
    %10 = vector.load %arg2[%c0_6, %c0_7, %c0_8] : memref<8x64x64xbf16, #tpu.memory_space<vmem>>, vector<1x64x64xbf16>
    %11 = vector.shape_cast %10 : vector<1x64x64xbf16> to vector<64x64xbf16>
    %cst_9 = arith.constant dense<0.000000e+00> : vector<2x64xf32>
    %12 = tpu.matmul %9, %11, %cst_9 {dimension_numbers = #tpu.dot_dimension_numbers<[1], [0], [0], [1], [0, 0, 1, 1], [], []>} : vector<2x64xbf16>, vector<64x64xbf16>, vector<2x64xf32> -> vector<2x64xf32>
    %c1 = arith.constant 1 : index
    %c0_10 = arith.constant 0 : index
    %13 = vector.load %arg3[%c1, %c0_10] : memref<9x64xf32, #tpu.memory_space<vmem>>, vector<1x64xf32>
    %14 = vector.broadcast %13 : vector<1x64xf32> to vector<2x64xf32>
    %15 = arith.addf %12, %14 : vector<2x64xf32>
    %cst_11 = arith.constant 0.000000e+00 : f32
    %16 = vector.broadcast %cst_11 : f32 to vector<2x64xf32>
    %17 = arith.maximumf %15, %16 : vector<2x64xf32>
    %18 = arith.truncf %17 : vector<2x64xf32> to vector<2x64xbf16>
    %c1_12 = arith.constant 1 : index
    %c0_13 = arith.constant 0 : index
    %c0_14 = arith.constant 0 : index
    %19 = vector.load %arg2[%c1_12, %c0_13, %c0_14] : memref<8x64x64xbf16, #tpu.memory_space<vmem>>, vector<1x64x64xbf16>
    %20 = vector.shape_cast %19 : vector<1x64x64xbf16> to vector<64x64xbf16>
    %cst_15 = arith.constant dense<0.000000e+00> : vector<2x64xf32>
    %21 = tpu.matmul %18, %20, %cst_15 {dimension_numbers = #tpu.dot_dimension_numbers<[1], [0], [0], [1], [0, 0, 1, 1], [], []>} : vector<2x64xbf16>, vector<64x64xbf16>, vector<2x64xf32> -> vector<2x64xf32>
    %c2 = arith.constant 2 : index
    %c0_16 = arith.constant 0 : index
    %22 = vector.load %arg3[%c2, %c0_16] : memref<9x64xf32, #tpu.memory_space<vmem>>, vector<1x64xf32>
    %23 = vector.broadcast %22 : vector<1x64xf32> to vector<2x64xf32>
    %24 = arith.addf %21, %23 : vector<2x64xf32>
    %cst_17 = arith.constant 0.000000e+00 : f32
    %25 = vector.broadcast %cst_17 : f32 to vector<2x64xf32>
    %26 = arith.maximumf %24, %25 : vector<2x64xf32>
    %27 = arith.truncf %26 : vector<2x64xf32> to vector<2x64xbf16>
    %c2_18 = arith.constant 2 : index
    %c0_19 = arith.constant 0 : index
    %c0_20 = arith.constant 0 : index
    %28 = vector.load %arg2[%c2_18, %c0_19, %c0_20] : memref<8x64x64xbf16, #tpu.memory_space<vmem>>, vector<1x64x64xbf16>
    %29 = vector.shape_cast %28 : vector<1x64x64xbf16> to vector<64x64xbf16>
    %cst_21 = arith.constant dense<0.000000e+00> : vector<2x64xf32>
    %30 = tpu.matmul %27, %29, %cst_21 {dimension_numbers = #tpu.dot_dimension_numbers<[1], [0], [0], [1], [0, 0, 1, 1], [], []>} : vector<2x64xbf16>, vector<64x64xbf16>, vector<2x64xf32> -> vector<2x64xf32>
    %c3 = arith.constant 3 : index
    %c0_22 = arith.constant 0 : index
    %31 = vector.load %arg3[%c3, %c0_22] : memref<9x64xf32, #tpu.memory_space<vmem>>, vector<1x64xf32>
    %32 = vector.broadcast %31 : vector<1x64xf32> to vector<2x64xf32>
    %33 = arith.addf %30, %32 : vector<2x64xf32>
    %cst_23 = arith.constant 0.000000e+00 : f32
    %34 = vector.broadcast %cst_23 : f32 to vector<2x64xf32>
    %35 = arith.maximumf %33, %34 : vector<2x64xf32>
    %36 = arith.truncf %35 : vector<2x64xf32> to vector<2x64xbf16>
    %c3_24 = arith.constant 3 : index
    %c0_25 = arith.constant 0 : index
    %c0_26 = arith.constant 0 : index
    %37 = vector.load %arg2[%c3_24, %c0_25, %c0_26] : memref<8x64x64xbf16, #tpu.memory_space<vmem>>, vector<1x64x64xbf16>
    %38 = vector.shape_cast %37 : vector<1x64x64xbf16> to vector<64x64xbf16>
    %cst_27 = arith.constant dense<0.000000e+00> : vector<2x64xf32>
    %39 = tpu.matmul %36, %38, %cst_27 {dimension_numbers = #tpu.dot_dimension_numbers<[1], [0], [0], [1], [0, 0, 1, 1], [], []>} : vector<2x64xbf16>, vector<64x64xbf16>, vector<2x64xf32> -> vector<2x64xf32>
    %c4 = arith.constant 4 : index
    %c0_28 = arith.constant 0 : index
    %40 = vector.load %arg3[%c4, %c0_28] : memref<9x64xf32, #tpu.memory_space<vmem>>, vector<1x64xf32>
    %41 = vector.broadcast %40 : vector<1x64xf32> to vector<2x64xf32>
    %42 = arith.addf %39, %41 : vector<2x64xf32>
    %cst_29 = arith.constant 0.000000e+00 : f32
    %43 = vector.broadcast %cst_29 : f32 to vector<2x64xf32>
    %44 = arith.maximumf %42, %43 : vector<2x64xf32>
    %45 = arith.truncf %44 : vector<2x64xf32> to vector<2x64xbf16>
    %c4_30 = arith.constant 4 : index
    %c0_31 = arith.constant 0 : index
    %c0_32 = arith.constant 0 : index
    %46 = vector.load %arg2[%c4_30, %c0_31, %c0_32] : memref<8x64x64xbf16, #tpu.memory_space<vmem>>, vector<1x64x64xbf16>
    %47 = vector.shape_cast %46 : vector<1x64x64xbf16> to vector<64x64xbf16>
    %cst_33 = arith.constant dense<0.000000e+00> : vector<2x64xf32>
    %48 = tpu.matmul %45, %47, %cst_33 {dimension_numbers = #tpu.dot_dimension_numbers<[1], [0], [0], [1], [0, 0, 1, 1], [], []>} : vector<2x64xbf16>, vector<64x64xbf16>, vector<2x64xf32> -> vector<2x64xf32>
    %c5 = arith.constant 5 : index
    %c0_34 = arith.constant 0 : index
    %49 = vector.load %arg3[%c5, %c0_34] : memref<9x64xf32, #tpu.memory_space<vmem>>, vector<1x64xf32>
    %50 = vector.broadcast %49 : vector<1x64xf32> to vector<2x64xf32>
    %51 = arith.addf %48, %50 : vector<2x64xf32>
    %cst_35 = arith.constant 0.000000e+00 : f32
    %52 = vector.broadcast %cst_35 : f32 to vector<2x64xf32>
    %53 = arith.maximumf %51, %52 : vector<2x64xf32>
    %54 = arith.truncf %53 : vector<2x64xf32> to vector<2x64xbf16>
    %c5_36 = arith.constant 5 : index
    %c0_37 = arith.constant 0 : index
    %c0_38 = arith.constant 0 : index
    %55 = vector.load %arg2[%c5_36, %c0_37, %c0_38] : memref<8x64x64xbf16, #tpu.memory_space<vmem>>, vector<1x64x64xbf16>
    %56 = vector.shape_cast %55 : vector<1x64x64xbf16> to vector<64x64xbf16>
    %cst_39 = arith.constant dense<0.000000e+00> : vector<2x64xf32>
    %57 = tpu.matmul %54, %56, %cst_39 {dimension_numbers = #tpu.dot_dimension_numbers<[1], [0], [0], [1], [0, 0, 1, 1], [], []>} : vector<2x64xbf16>, vector<64x64xbf16>, vector<2x64xf32> -> vector<2x64xf32>
    %c6 = arith.constant 6 : index
    %c0_40 = arith.constant 0 : index
    %58 = vector.load %arg3[%c6, %c0_40] : memref<9x64xf32, #tpu.memory_space<vmem>>, vector<1x64xf32>
    %59 = vector.broadcast %58 : vector<1x64xf32> to vector<2x64xf32>
    %60 = arith.addf %57, %59 : vector<2x64xf32>
    %cst_41 = arith.constant 0.000000e+00 : f32
    %61 = vector.broadcast %cst_41 : f32 to vector<2x64xf32>
    %62 = arith.maximumf %60, %61 : vector<2x64xf32>
    %63 = arith.truncf %62 : vector<2x64xf32> to vector<2x64xbf16>
    %c6_42 = arith.constant 6 : index
    %c0_43 = arith.constant 0 : index
    %c0_44 = arith.constant 0 : index
    %64 = vector.load %arg2[%c6_42, %c0_43, %c0_44] : memref<8x64x64xbf16, #tpu.memory_space<vmem>>, vector<1x64x64xbf16>
    %65 = vector.shape_cast %64 : vector<1x64x64xbf16> to vector<64x64xbf16>
    %cst_45 = arith.constant dense<0.000000e+00> : vector<2x64xf32>
    %66 = tpu.matmul %63, %65, %cst_45 {dimension_numbers = #tpu.dot_dimension_numbers<[1], [0], [0], [1], [0, 0, 1, 1], [], []>} : vector<2x64xbf16>, vector<64x64xbf16>, vector<2x64xf32> -> vector<2x64xf32>
    %c7 = arith.constant 7 : index
    %c0_46 = arith.constant 0 : index
    %67 = vector.load %arg3[%c7, %c0_46] : memref<9x64xf32, #tpu.memory_space<vmem>>, vector<1x64xf32>
    %68 = vector.broadcast %67 : vector<1x64xf32> to vector<2x64xf32>
    %69 = arith.addf %66, %68 : vector<2x64xf32>
    %cst_47 = arith.constant 0.000000e+00 : f32
    %70 = vector.broadcast %cst_47 : f32 to vector<2x64xf32>
    %71 = arith.maximumf %69, %70 : vector<2x64xf32>
    %72 = arith.truncf %71 : vector<2x64xf32> to vector<2x64xbf16>
    %c7_48 = arith.constant 7 : index
    %c0_49 = arith.constant 0 : index
    %c0_50 = arith.constant 0 : index
    %73 = vector.load %arg2[%c7_48, %c0_49, %c0_50] : memref<8x64x64xbf16, #tpu.memory_space<vmem>>, vector<1x64x64xbf16>
    %74 = vector.shape_cast %73 : vector<1x64x64xbf16> to vector<64x64xbf16>
    %cst_51 = arith.constant dense<0.000000e+00> : vector<2x64xf32>
    %75 = tpu.matmul %72, %74, %cst_51 {dimension_numbers = #tpu.dot_dimension_numbers<[1], [0], [0], [1], [0, 0, 1, 1], [], []>} : vector<2x64xbf16>, vector<64x64xbf16>, vector<2x64xf32> -> vector<2x64xf32>
    %c8 = arith.constant 8 : index
    %c0_52 = arith.constant 0 : index
    %76 = vector.load %arg3[%c8, %c0_52] : memref<9x64xf32, #tpu.memory_space<vmem>>, vector<1x64xf32>
    %77 = vector.broadcast %76 : vector<1x64xf32> to vector<2x64xf32>
    %78 = arith.addf %75, %77 : vector<2x64xf32>
    %cst_53 = arith.constant 0.000000e+00 : f32
    %79 = vector.broadcast %cst_53 : f32 to vector<2x64xf32>
    %80 = arith.maximumf %78, %79 : vector<2x64xf32>
    %81 = arith.truncf %80 : vector<2x64xf32> to vector<2x64xbf16>
    %c0_54 = arith.constant 0 : index
    %c0_55 = arith.constant 0 : index
    %82 = vector.load %arg4[%c0_54, %c0_55] : memref<64x512xbf16, #tpu.memory_space<vmem>>, vector<64x512xbf16>
    %cst_56 = arith.constant dense<0.000000e+00> : vector<2x512xf32>
    %83 = tpu.matmul %81, %82, %cst_56 {dimension_numbers = #tpu.dot_dimension_numbers<[1], [0], [0], [1], [0, 0, 1, 1], [], []>} : vector<2x64xbf16>, vector<64x512xbf16>, vector<2x512xf32> -> vector<2x512xf32>
    %cst_57 = arith.constant dense<0.000000e+00> : vector<512xf32>
    %84 = vector.multi_reduction <add>, %83, %cst_57 [0] : vector<2x512xf32> to vector<512xf32>
    %85 = vector.shape_cast %84 : vector<512xf32> to vector<1x512xf32>
    %86 = arith.mulf %83, %83 : vector<2x512xf32>
    %cst_58 = arith.constant dense<0.000000e+00> : vector<512xf32>
    %87 = vector.multi_reduction <add>, %86, %cst_58 [0] : vector<2x512xf32> to vector<512xf32>
    %88 = vector.shape_cast %87 : vector<512xf32> to vector<1x512xf32>
    %c0_59 = arith.constant 0 : index
    %c0_60 = arith.constant 0 : index
    %89 = vector.load %arg5[%c0_59, %c0_60] : memref<512x32xf32, #tpu.memory_space<vmem>>, vector<512x32xf32>
    %cst_61 = arith.constant dense<0.000000e+00> : vector<1x32xf32>
    %90 = tpu.matmul %85, %89, %cst_61 {dimension_numbers = #tpu.dot_dimension_numbers<[1], [0], [0], [1], [0, 0, 1, 1], [], []>} : vector<1x512xf32>, vector<512x32xf32>, vector<1x32xf32> -> vector<1x32xf32>
    %c0_62 = arith.constant 0 : index
    %c0_63 = arith.constant 0 : index
    %91 = vector.load %arg5[%c0_62, %c0_63] : memref<512x32xf32, #tpu.memory_space<vmem>>, vector<512x32xf32>
    %cst_64 = arith.constant dense<0.000000e+00> : vector<1x32xf32>
    %92 = tpu.matmul %88, %91, %cst_64 {dimension_numbers = #tpu.dot_dimension_numbers<[1], [0], [0], [1], [0, 0, 1, 1], [], []>} : vector<1x512xf32>, vector<512x32xf32>, vector<1x32xf32> -> vector<1x32xf32>
    %cst_65 = arith.constant 3.125000e-02 : f32
    %93 = vector.broadcast %cst_65 : f32 to vector<1x32xf32>
    %94 = arith.mulf %90, %93 : vector<1x32xf32>
    %cst_66 = arith.constant 3.125000e-02 : f32
    %95 = vector.broadcast %cst_66 : f32 to vector<1x32xf32>
    %96 = arith.mulf %92, %95 : vector<1x32xf32>
    %97 = arith.mulf %94, %94 : vector<1x32xf32>
    %98 = arith.subf %96, %97 : vector<1x32xf32>
    %cst_67 = arith.constant 0.000000e+00 : f32
    %99 = vector.broadcast %cst_67 : f32 to vector<1x32xf32>
    %100 = arith.maximumf %98, %99 : vector<1x32xf32>
    %c0_68 = arith.constant 0 : index
    %c0_69 = arith.constant 0 : index
    %101 = vector.load %arg7[%c0_68, %c0_69] : memref<1x32xf32, #tpu.memory_space<vmem>>, vector<1x32xf32>
    %cst_70 = arith.constant 9.99999974E-6 : f32
    %102 = vector.broadcast %cst_70 : f32 to vector<1x32xf32>
    %103 = arith.addf %100, %102 : vector<1x32xf32>
    %104 = math.rsqrt %103 : vector<1x32xf32>
    %105 = arith.mulf %101, %104 : vector<1x32xf32>
    %c0_71 = arith.constant 0 : index
    %c0_72 = arith.constant 0 : index
    %106 = vector.load %arg8[%c0_71, %c0_72] : memref<1x32xf32, #tpu.memory_space<vmem>>, vector<1x32xf32>
    %107 = arith.mulf %94, %105 : vector<1x32xf32>
    %108 = arith.subf %106, %107 : vector<1x32xf32>
    %c0_73 = arith.constant 0 : index
    %c0_74 = arith.constant 0 : index
    %109 = vector.load %arg6[%c0_73, %c0_74] : memref<32x512xf32, #tpu.memory_space<vmem>>, vector<32x512xf32>
    %cst_75 = arith.constant dense<0.000000e+00> : vector<1x512xf32>
    %110 = tpu.matmul %105, %109, %cst_75 {dimension_numbers = #tpu.dot_dimension_numbers<[1], [0], [0], [1], [0, 0, 1, 1], [], []>} : vector<1x32xf32>, vector<32x512xf32>, vector<1x512xf32> -> vector<1x512xf32>
    %c0_76 = arith.constant 0 : index
    %c0_77 = arith.constant 0 : index
    %111 = vector.load %arg6[%c0_76, %c0_77] : memref<32x512xf32, #tpu.memory_space<vmem>>, vector<32x512xf32>
    %cst_78 = arith.constant dense<0.000000e+00> : vector<1x512xf32>
    %112 = tpu.matmul %108, %111, %cst_78 {dimension_numbers = #tpu.dot_dimension_numbers<[1], [0], [0], [1], [0, 0, 1, 1], [], []>} : vector<1x32xf32>, vector<32x512xf32>, vector<1x512xf32> -> vector<1x512xf32>
    %113 = vector.broadcast %110 : vector<1x512xf32> to vector<2x512xf32>
    %114 = arith.mulf %83, %113 : vector<2x512xf32>
    %115 = vector.broadcast %112 : vector<1x512xf32> to vector<2x512xf32>
    %116 = arith.addf %114, %115 : vector<2x512xf32>
    %cst_79 = arith.constant 0.000000e+00 : f32
    %117 = vector.broadcast %cst_79 : f32 to vector<2x512xf32>
    %118 = arith.maximumf %116, %117 : vector<2x512xf32>
    %cst_80 = arith.constant 0.000000e+00 : f32
    %119 = vector.broadcast %cst_80 : f32 to vector<1x128xf32>
    %120 = vector.extract_strided_slice %118 {offsets = [0, 0], sizes = [1, 128], strides = [1, 1]} : vector<2x512xf32> to vector<1x128xf32>
    %121 = vector.extract_strided_slice %118 {offsets = [0, 128], sizes = [1, 128], strides = [1, 1]} : vector<2x512xf32> to vector<1x128xf32>
    %122 = vector.extract_strided_slice %118 {offsets = [0, 256], sizes = [1, 128], strides = [1, 1]} : vector<2x512xf32> to vector<1x128xf32>
    %123 = vector.extract_strided_slice %118 {offsets = [0, 384], sizes = [1, 128], strides = [1, 1]} : vector<2x512xf32> to vector<1x128xf32>
    %124 = tpu.concatenate %119, %120, %121, %122, %123, %119 in 0 : vector<1x128xf32>, vector<1x128xf32>, vector<1x128xf32>, vector<1x128xf32>, vector<1x128xf32>, vector<1x128xf32> -> vector<6x128xf32>
    %125 = vector.extract_strided_slice %118 {offsets = [1, 0], sizes = [1, 128], strides = [1, 1]} : vector<2x512xf32> to vector<1x128xf32>
    %126 = vector.extract_strided_slice %118 {offsets = [1, 128], sizes = [1, 128], strides = [1, 1]} : vector<2x512xf32> to vector<1x128xf32>
    %127 = vector.extract_strided_slice %118 {offsets = [1, 256], sizes = [1, 128], strides = [1, 1]} : vector<2x512xf32> to vector<1x128xf32>
    %128 = vector.extract_strided_slice %118 {offsets = [1, 384], sizes = [1, 128], strides = [1, 1]} : vector<2x512xf32> to vector<1x128xf32>
    %129 = tpu.concatenate %119, %125, %126, %127, %128, %119 in 0 : vector<1x128xf32>, vector<1x128xf32>, vector<1x128xf32>, vector<1x128xf32>, vector<1x128xf32>, vector<1x128xf32> -> vector<6x128xf32>
    %130 = arith.truncf %124 : vector<6x128xf32> to vector<6x128xbf16>
    %c0_81 = arith.constant 0 : index
    %c0_82 = arith.constant 0 : index
    %c0_83 = arith.constant 0 : index
    %131 = vector.load %arg9[%c0_81, %c0_82, %c0_83] : memref<4x128x160xbf16, #tpu.memory_space<vmem>>, vector<1x128x160xbf16>
    %132 = vector.shape_cast %131 : vector<1x128x160xbf16> to vector<128x160xbf16>
    %cst_84 = arith.constant dense<0.000000e+00> : vector<6x160xf32>
    %133 = tpu.matmul %130, %132, %cst_84 {dimension_numbers = #tpu.dot_dimension_numbers<[1], [0], [0], [1], [0, 0, 1, 1], [], []>} : vector<6x128xbf16>, vector<128x160xbf16>, vector<6x160xf32> -> vector<6x160xf32>
    %c1_85 = arith.constant 1 : index
    %c0_86 = arith.constant 0 : index
    %c0_87 = arith.constant 0 : index
    %134 = vector.load %arg9[%c1_85, %c0_86, %c0_87] : memref<4x128x160xbf16, #tpu.memory_space<vmem>>, vector<1x128x160xbf16>
    %135 = vector.shape_cast %134 : vector<1x128x160xbf16> to vector<128x160xbf16>
    %cst_88 = arith.constant dense<0.000000e+00> : vector<6x160xf32>
    %136 = tpu.matmul %130, %135, %cst_88 {dimension_numbers = #tpu.dot_dimension_numbers<[1], [0], [0], [1], [0, 0, 1, 1], [], []>} : vector<6x128xbf16>, vector<128x160xbf16>, vector<6x160xf32> -> vector<6x160xf32>
    %c2_89 = arith.constant 2 : index
    %c0_90 = arith.constant 0 : index
    %c0_91 = arith.constant 0 : index
    %137 = vector.load %arg9[%c2_89, %c0_90, %c0_91] : memref<4x128x160xbf16, #tpu.memory_space<vmem>>, vector<1x128x160xbf16>
    %138 = vector.shape_cast %137 : vector<1x128x160xbf16> to vector<128x160xbf16>
    %cst_92 = arith.constant dense<0.000000e+00> : vector<6x160xf32>
    %139 = tpu.matmul %130, %138, %cst_92 {dimension_numbers = #tpu.dot_dimension_numbers<[1], [0], [0], [1], [0, 0, 1, 1], [], []>} : vector<6x128xbf16>, vector<128x160xbf16>, vector<6x160xf32> -> vector<6x160xf32>
    %c3_93 = arith.constant 3 : index
    %c0_94 = arith.constant 0 : index
    %c0_95 = arith.constant 0 : index
    %140 = vector.load %arg9[%c3_93, %c0_94, %c0_95] : memref<4x128x160xbf16, #tpu.memory_space<vmem>>, vector<1x128x160xbf16>
    %141 = vector.shape_cast %140 : vector<1x128x160xbf16> to vector<128x160xbf16>
    %cst_96 = arith.constant dense<0.000000e+00> : vector<6x160xf32>
    %142 = tpu.matmul %130, %141, %cst_96 {dimension_numbers = #tpu.dot_dimension_numbers<[1], [0], [0], [1], [0, 0, 1, 1], [], []>} : vector<6x128xbf16>, vector<128x160xbf16>, vector<6x160xf32> -> vector<6x160xf32>
    %143 = vector.extract_strided_slice %133 {offsets = [1, 0], sizes = [5, 160], strides = [1, 1]} : vector<6x160xf32> to vector<5x160xf32>
    %144 = vector.extract_strided_slice %139 {offsets = [0, 0], sizes = [5, 160], strides = [1, 1]} : vector<6x160xf32> to vector<5x160xf32>
    %145 = arith.addf %143, %144 : vector<5x160xf32>
    %146 = vector.extract_strided_slice %136 {offsets = [1, 0], sizes = [5, 160], strides = [1, 1]} : vector<6x160xf32> to vector<5x160xf32>
    %147 = vector.extract_strided_slice %142 {offsets = [0, 0], sizes = [5, 160], strides = [1, 1]} : vector<6x160xf32> to vector<5x160xf32>
    %148 = arith.addf %146, %147 : vector<5x160xf32>
    %c0_97 = arith.constant 0 : index
    %c0_98 = arith.constant 0 : index
    %c0_99 = arith.constant 0 : index
    %149 = vector.load %arg10[%c0_97, %c0_98, %c0_99] : memref<2x10x5xf32, #tpu.memory_space<vmem>>, vector<1x10x5xf32>
    %150 = vector.shape_cast %149 : vector<1x10x5xf32> to vector<10x5xf32>
    %cst_100 = arith.constant dense<0.000000e+00> : vector<10x160xf32>
    %151 = tpu.matmul %150, %145, %cst_100 {dimension_numbers = #tpu.dot_dimension_numbers<[1], [0], [0], [1], [0, 0, 1, 1], [], []>} : vector<10x5xf32>, vector<5x160xf32>, vector<10x160xf32> -> vector<10x160xf32>
    %c1_101 = arith.constant 1 : index
    %c0_102 = arith.constant 0 : index
    %c0_103 = arith.constant 0 : index
    %152 = vector.load %arg10[%c1_101, %c0_102, %c0_103] : memref<2x10x5xf32, #tpu.memory_space<vmem>>, vector<1x10x5xf32>
    %153 = vector.shape_cast %152 : vector<1x10x5xf32> to vector<10x5xf32>
    %cst_104 = arith.constant dense<0.000000e+00> : vector<10x160xf32>
    %154 = tpu.matmul %153, %148, %cst_104 {dimension_numbers = #tpu.dot_dimension_numbers<[1], [0], [0], [1], [0, 0, 1, 1], [], []>} : vector<10x5xf32>, vector<5x160xf32>, vector<10x160xf32> -> vector<10x160xf32>
    %155 = arith.addf %151, %154 : vector<10x160xf32>
    %156 = arith.truncf %129 : vector<6x128xf32> to vector<6x128xbf16>
    %c0_105 = arith.constant 0 : index
    %c0_106 = arith.constant 0 : index
    %c0_107 = arith.constant 0 : index
    %157 = vector.load %arg9[%c0_105, %c0_106, %c0_107] : memref<4x128x160xbf16, #tpu.memory_space<vmem>>, vector<1x128x160xbf16>
    %158 = vector.shape_cast %157 : vector<1x128x160xbf16> to vector<128x160xbf16>
    %cst_108 = arith.constant dense<0.000000e+00> : vector<6x160xf32>
    %159 = tpu.matmul %156, %158, %cst_108 {dimension_numbers = #tpu.dot_dimension_numbers<[1], [0], [0], [1], [0, 0, 1, 1], [], []>} : vector<6x128xbf16>, vector<128x160xbf16>, vector<6x160xf32> -> vector<6x160xf32>
    %c1_109 = arith.constant 1 : index
    %c0_110 = arith.constant 0 : index
    %c0_111 = arith.constant 0 : index
    %160 = vector.load %arg9[%c1_109, %c0_110, %c0_111] : memref<4x128x160xbf16, #tpu.memory_space<vmem>>, vector<1x128x160xbf16>
    %161 = vector.shape_cast %160 : vector<1x128x160xbf16> to vector<128x160xbf16>
    %cst_112 = arith.constant dense<0.000000e+00> : vector<6x160xf32>
    %162 = tpu.matmul %156, %161, %cst_112 {dimension_numbers = #tpu.dot_dimension_numbers<[1], [0], [0], [1], [0, 0, 1, 1], [], []>} : vector<6x128xbf16>, vector<128x160xbf16>, vector<6x160xf32> -> vector<6x160xf32>
    %c2_113 = arith.constant 2 : index
    %c0_114 = arith.constant 0 : index
    %c0_115 = arith.constant 0 : index
    %163 = vector.load %arg9[%c2_113, %c0_114, %c0_115] : memref<4x128x160xbf16, #tpu.memory_space<vmem>>, vector<1x128x160xbf16>
    %164 = vector.shape_cast %163 : vector<1x128x160xbf16> to vector<128x160xbf16>
    %cst_116 = arith.constant dense<0.000000e+00> : vector<6x160xf32>
    %165 = tpu.matmul %156, %164, %cst_116 {dimension_numbers = #tpu.dot_dimension_numbers<[1], [0], [0], [1], [0, 0, 1, 1], [], []>} : vector<6x128xbf16>, vector<128x160xbf16>, vector<6x160xf32> -> vector<6x160xf32>
    %c3_117 = arith.constant 3 : index
    %c0_118 = arith.constant 0 : index
    %c0_119 = arith.constant 0 : index
    %166 = vector.load %arg9[%c3_117, %c0_118, %c0_119] : memref<4x128x160xbf16, #tpu.memory_space<vmem>>, vector<1x128x160xbf16>
    %167 = vector.shape_cast %166 : vector<1x128x160xbf16> to vector<128x160xbf16>
    %cst_120 = arith.constant dense<0.000000e+00> : vector<6x160xf32>
    %168 = tpu.matmul %156, %167, %cst_120 {dimension_numbers = #tpu.dot_dimension_numbers<[1], [0], [0], [1], [0, 0, 1, 1], [], []>} : vector<6x128xbf16>, vector<128x160xbf16>, vector<6x160xf32> -> vector<6x160xf32>
    %169 = vector.extract_strided_slice %159 {offsets = [1, 0], sizes = [5, 160], strides = [1, 1]} : vector<6x160xf32> to vector<5x160xf32>
    %170 = vector.extract_strided_slice %165 {offsets = [0, 0], sizes = [5, 160], strides = [1, 1]} : vector<6x160xf32> to vector<5x160xf32>
    %171 = arith.addf %169, %170 : vector<5x160xf32>
    %172 = vector.extract_strided_slice %162 {offsets = [1, 0], sizes = [5, 160], strides = [1, 1]} : vector<6x160xf32> to vector<5x160xf32>
    %173 = vector.extract_strided_slice %168 {offsets = [0, 0], sizes = [5, 160], strides = [1, 1]} : vector<6x160xf32> to vector<5x160xf32>
    %174 = arith.addf %172, %173 : vector<5x160xf32>
    %c0_121 = arith.constant 0 : index
    %c0_122 = arith.constant 0 : index
    %c0_123 = arith.constant 0 : index
    %175 = vector.load %arg10[%c0_121, %c0_122, %c0_123] : memref<2x10x5xf32, #tpu.memory_space<vmem>>, vector<1x10x5xf32>
    %176 = vector.shape_cast %175 : vector<1x10x5xf32> to vector<10x5xf32>
    %cst_124 = arith.constant dense<0.000000e+00> : vector<10x160xf32>
    %177 = tpu.matmul %176, %171, %cst_124 {dimension_numbers = #tpu.dot_dimension_numbers<[1], [0], [0], [1], [0, 0, 1, 1], [], []>} : vector<10x5xf32>, vector<5x160xf32>, vector<10x160xf32> -> vector<10x160xf32>
    %c1_125 = arith.constant 1 : index
    %c0_126 = arith.constant 0 : index
    %c0_127 = arith.constant 0 : index
    %178 = vector.load %arg10[%c1_125, %c0_126, %c0_127] : memref<2x10x5xf32, #tpu.memory_space<vmem>>, vector<1x10x5xf32>
    %179 = vector.shape_cast %178 : vector<1x10x5xf32> to vector<10x5xf32>
    %cst_128 = arith.constant dense<0.000000e+00> : vector<10x160xf32>
    %180 = tpu.matmul %179, %174, %cst_128 {dimension_numbers = #tpu.dot_dimension_numbers<[1], [0], [0], [1], [0, 0, 1, 1], [], []>} : vector<10x5xf32>, vector<5x160xf32>, vector<10x160xf32> -> vector<10x160xf32>
    %181 = arith.addf %177, %180 : vector<10x160xf32>
    %cst_129 = arith.constant dense<0.000000e+00> : vector<160xf32>
    %182 = vector.multi_reduction <add>, %155, %cst_129 [0] : vector<10x160xf32> to vector<160xf32>
    %183 = vector.shape_cast %182 : vector<160xf32> to vector<1x160xf32>
    %184 = arith.mulf %155, %155 : vector<10x160xf32>
    %cst_130 = arith.constant dense<0.000000e+00> : vector<160xf32>
    %185 = vector.multi_reduction <add>, %184, %cst_130 [0] : vector<10x160xf32> to vector<160xf32>
    %186 = vector.shape_cast %185 : vector<160xf32> to vector<1x160xf32>
    %cst_131 = arith.constant dense<0.000000e+00> : vector<160xf32>
    %187 = vector.multi_reduction <add>, %181, %cst_131 [0] : vector<10x160xf32> to vector<160xf32>
    %188 = vector.shape_cast %187 : vector<160xf32> to vector<1x160xf32>
    %189 = arith.addf %183, %188 : vector<1x160xf32>
    %190 = arith.mulf %181, %181 : vector<10x160xf32>
    %cst_132 = arith.constant dense<0.000000e+00> : vector<160xf32>
    %191 = vector.multi_reduction <add>, %190, %cst_132 [0] : vector<10x160xf32> to vector<160xf32>
    %192 = vector.shape_cast %191 : vector<160xf32> to vector<1x160xf32>
    %193 = arith.addf %186, %192 : vector<1x160xf32>
    %c0_133 = arith.constant 0 : index
    %c0_134 = arith.constant 0 : index
    %194 = vector.load %arg11[%c0_133, %c0_134] : memref<160x16xf32, #tpu.memory_space<vmem>>, vector<160x16xf32>
    %cst_135 = arith.constant dense<0.000000e+00> : vector<1x16xf32>
    %195 = tpu.matmul %189, %194, %cst_135 {dimension_numbers = #tpu.dot_dimension_numbers<[1], [0], [0], [1], [0, 0, 1, 1], [], []>} : vector<1x160xf32>, vector<160x16xf32>, vector<1x16xf32> -> vector<1x16xf32>
    %c0_136 = arith.constant 0 : index
    %c0_137 = arith.constant 0 : index
    %196 = vector.load %arg11[%c0_136, %c0_137] : memref<160x16xf32, #tpu.memory_space<vmem>>, vector<160x16xf32>
    %cst_138 = arith.constant dense<0.000000e+00> : vector<1x16xf32>
    %197 = tpu.matmul %193, %196, %cst_138 {dimension_numbers = #tpu.dot_dimension_numbers<[1], [0], [0], [1], [0, 0, 1, 1], [], []>} : vector<1x160xf32>, vector<160x16xf32>, vector<1x16xf32> -> vector<1x16xf32>
    %cst_139 = arith.constant 5.000000e-03 : f32
    %198 = vector.broadcast %cst_139 : f32 to vector<1x16xf32>
    %199 = arith.mulf %195, %198 : vector<1x16xf32>
    %cst_140 = arith.constant 5.000000e-03 : f32
    %200 = vector.broadcast %cst_140 : f32 to vector<1x16xf32>
    %201 = arith.mulf %197, %200 : vector<1x16xf32>
    %202 = arith.mulf %199, %199 : vector<1x16xf32>
    %203 = arith.subf %201, %202 : vector<1x16xf32>
    %cst_141 = arith.constant 0.000000e+00 : f32
    %204 = vector.broadcast %cst_141 : f32 to vector<1x16xf32>
    %205 = arith.maximumf %203, %204 : vector<1x16xf32>
    %c0_142 = arith.constant 0 : index
    %c0_143 = arith.constant 0 : index
    %206 = vector.load %arg13[%c0_142, %c0_143] : memref<1x16xf32, #tpu.memory_space<vmem>>, vector<1x16xf32>
    %cst_144 = arith.constant 9.99999974E-6 : f32
    %207 = vector.broadcast %cst_144 : f32 to vector<1x16xf32>
    %208 = arith.addf %205, %207 : vector<1x16xf32>
    %209 = math.rsqrt %208 : vector<1x16xf32>
    %210 = arith.mulf %206, %209 : vector<1x16xf32>
    %c0_145 = arith.constant 0 : index
    %c0_146 = arith.constant 0 : index
    %211 = vector.load %arg14[%c0_145, %c0_146] : memref<1x16xf32, #tpu.memory_space<vmem>>, vector<1x16xf32>
    %212 = arith.mulf %199, %210 : vector<1x16xf32>
    %213 = arith.subf %211, %212 : vector<1x16xf32>
    %c0_147 = arith.constant 0 : index
    %c0_148 = arith.constant 0 : index
    %214 = vector.load %arg12[%c0_147, %c0_148] : memref<16x160xf32, #tpu.memory_space<vmem>>, vector<16x160xf32>
    %cst_149 = arith.constant dense<0.000000e+00> : vector<1x160xf32>
    %215 = tpu.matmul %210, %214, %cst_149 {dimension_numbers = #tpu.dot_dimension_numbers<[1], [0], [0], [1], [0, 0, 1, 1], [], []>} : vector<1x16xf32>, vector<16x160xf32>, vector<1x160xf32> -> vector<1x160xf32>
    %c0_150 = arith.constant 0 : index
    %c0_151 = arith.constant 0 : index
    %216 = vector.load %arg12[%c0_150, %c0_151] : memref<16x160xf32, #tpu.memory_space<vmem>>, vector<16x160xf32>
    %cst_152 = arith.constant dense<0.000000e+00> : vector<1x160xf32>
    %217 = tpu.matmul %213, %216, %cst_152 {dimension_numbers = #tpu.dot_dimension_numbers<[1], [0], [0], [1], [0, 0, 1, 1], [], []>} : vector<1x16xf32>, vector<16x160xf32>, vector<1x160xf32> -> vector<1x160xf32>
    %218 = vector.broadcast %215 : vector<1x160xf32> to vector<10x160xf32>
    %219 = arith.mulf %155, %218 : vector<10x160xf32>
    %220 = vector.broadcast %217 : vector<1x160xf32> to vector<10x160xf32>
    %221 = arith.addf %219, %220 : vector<10x160xf32>
    %cst_153 = arith.constant 0.000000e+00 : f32
    %222 = vector.broadcast %cst_153 : f32 to vector<10x160xf32>
    %223 = arith.maximumf %221, %222 : vector<10x160xf32>
    %224 = vector.broadcast %215 : vector<1x160xf32> to vector<10x160xf32>
    %225 = arith.mulf %181, %224 : vector<10x160xf32>
    %226 = vector.broadcast %217 : vector<1x160xf32> to vector<10x160xf32>
    %227 = arith.addf %225, %226 : vector<10x160xf32>
    %cst_154 = arith.constant 0.000000e+00 : f32
    %228 = vector.broadcast %cst_154 : f32 to vector<10x160xf32>
    %229 = arith.maximumf %227, %228 : vector<10x160xf32>
    %cst_155 = arith.constant 0.000000e+00 : f32
    %230 = vector.broadcast %cst_155 : f32 to vector<1x160xf32>
    %231 = tpu.concatenate %230, %223, %230 in 0 : vector<1x160xf32>, vector<10x160xf32>, vector<1x160xf32> -> vector<12x160xf32>
    %232 = tpu.concatenate %230, %229, %230 in 0 : vector<1x160xf32>, vector<10x160xf32>, vector<1x160xf32> -> vector<12x160xf32>
    %233 = arith.truncf %231 : vector<12x160xf32> to vector<12x160xbf16>
    %c0_156 = arith.constant 0 : index
    %c0_157 = arith.constant 0 : index
    %c0_158 = arith.constant 0 : index
    %234 = vector.load %arg15[%c0_156, %c0_157, %c0_158] : memref<4x160x160xbf16, #tpu.memory_space<vmem>>, vector<1x160x160xbf16>
    %235 = vector.shape_cast %234 : vector<1x160x160xbf16> to vector<160x160xbf16>
    %cst_159 = arith.constant dense<0.000000e+00> : vector<12x160xf32>
    %236 = tpu.matmul %233, %235, %cst_159 {dimension_numbers = #tpu.dot_dimension_numbers<[1], [0], [0], [1], [0, 0, 1, 1], [], []>} : vector<12x160xbf16>, vector<160x160xbf16>, vector<12x160xf32> -> vector<12x160xf32>
    %c1_160 = arith.constant 1 : index
    %c0_161 = arith.constant 0 : index
    %c0_162 = arith.constant 0 : index
    %237 = vector.load %arg15[%c1_160, %c0_161, %c0_162] : memref<4x160x160xbf16, #tpu.memory_space<vmem>>, vector<1x160x160xbf16>
    %238 = vector.shape_cast %237 : vector<1x160x160xbf16> to vector<160x160xbf16>
    %cst_163 = arith.constant dense<0.000000e+00> : vector<12x160xf32>
    %239 = tpu.matmul %233, %238, %cst_163 {dimension_numbers = #tpu.dot_dimension_numbers<[1], [0], [0], [1], [0, 0, 1, 1], [], []>} : vector<12x160xbf16>, vector<160x160xbf16>, vector<12x160xf32> -> vector<12x160xf32>
    %c2_164 = arith.constant 2 : index
    %c0_165 = arith.constant 0 : index
    %c0_166 = arith.constant 0 : index
    %240 = vector.load %arg15[%c2_164, %c0_165, %c0_166] : memref<4x160x160xbf16, #tpu.memory_space<vmem>>, vector<1x160x160xbf16>
    %241 = vector.shape_cast %240 : vector<1x160x160xbf16> to vector<160x160xbf16>
    %cst_167 = arith.constant dense<0.000000e+00> : vector<12x160xf32>
    %242 = tpu.matmul %233, %241, %cst_167 {dimension_numbers = #tpu.dot_dimension_numbers<[1], [0], [0], [1], [0, 0, 1, 1], [], []>} : vector<12x160xbf16>, vector<160x160xbf16>, vector<12x160xf32> -> vector<12x160xf32>
    %c3_168 = arith.constant 3 : index
    %c0_169 = arith.constant 0 : index
    %c0_170 = arith.constant 0 : index
    %243 = vector.load %arg15[%c3_168, %c0_169, %c0_170] : memref<4x160x160xbf16, #tpu.memory_space<vmem>>, vector<1x160x160xbf16>
    %244 = vector.shape_cast %243 : vector<1x160x160xbf16> to vector<160x160xbf16>
    %cst_171 = arith.constant dense<0.000000e+00> : vector<12x160xf32>
    %245 = tpu.matmul %233, %244, %cst_171 {dimension_numbers = #tpu.dot_dimension_numbers<[1], [0], [0], [1], [0, 0, 1, 1], [], []>} : vector<12x160xbf16>, vector<160x160xbf16>, vector<12x160xf32> -> vector<12x160xf32>
    %246 = vector.extract_strided_slice %239 {offsets = [1, 0], sizes = [10, 160], strides = [1, 1]} : vector<12x160xf32> to vector<10x160xf32>
    %247 = vector.extract_strided_slice %245 {offsets = [0, 0], sizes = [10, 160], strides = [1, 1]} : vector<12x160xf32> to vector<10x160xf32>
    %248 = arith.addf %246, %247 : vector<10x160xf32>
    %249 = vector.extract_strided_slice %236 {offsets = [2, 0], sizes = [10, 160], strides = [1, 1]} : vector<12x160xf32> to vector<10x160xf32>
    %250 = vector.extract_strided_slice %242 {offsets = [1, 0], sizes = [10, 160], strides = [1, 1]} : vector<12x160xf32> to vector<10x160xf32>
    %251 = arith.addf %249, %250 : vector<10x160xf32>
    %c0_172 = arith.constant 0 : index
    %c0_173 = arith.constant 0 : index
    %c0_174 = arith.constant 0 : index
    %252 = vector.load %arg16[%c0_172, %c0_173, %c0_174] : memref<2x20x10xf32, #tpu.memory_space<vmem>>, vector<1x20x10xf32>
    %253 = vector.shape_cast %252 : vector<1x20x10xf32> to vector<20x10xf32>
    %cst_175 = arith.constant dense<0.000000e+00> : vector<20x160xf32>
    %254 = tpu.matmul %253, %248, %cst_175 {dimension_numbers = #tpu.dot_dimension_numbers<[1], [0], [0], [1], [0, 0, 1, 1], [], []>} : vector<20x10xf32>, vector<10x160xf32>, vector<20x160xf32> -> vector<20x160xf32>
    %c1_176 = arith.constant 1 : index
    %c0_177 = arith.constant 0 : index
    %c0_178 = arith.constant 0 : index
    %255 = vector.load %arg16[%c1_176, %c0_177, %c0_178] : memref<2x20x10xf32, #tpu.memory_space<vmem>>, vector<1x20x10xf32>
    %256 = vector.shape_cast %255 : vector<1x20x10xf32> to vector<20x10xf32>
    %cst_179 = arith.constant dense<0.000000e+00> : vector<20x160xf32>
    %257 = tpu.matmul %256, %251, %cst_179 {dimension_numbers = #tpu.dot_dimension_numbers<[1], [0], [0], [1], [0, 0, 1, 1], [], []>} : vector<20x10xf32>, vector<10x160xf32>, vector<20x160xf32> -> vector<20x160xf32>
    %258 = arith.addf %254, %257 : vector<20x160xf32>
    %259 = arith.truncf %232 : vector<12x160xf32> to vector<12x160xbf16>
    %c0_180 = arith.constant 0 : index
    %c0_181 = arith.constant 0 : index
    %c0_182 = arith.constant 0 : index
    %260 = vector.load %arg15[%c0_180, %c0_181, %c0_182] : memref<4x160x160xbf16, #tpu.memory_space<vmem>>, vector<1x160x160xbf16>
    %261 = vector.shape_cast %260 : vector<1x160x160xbf16> to vector<160x160xbf16>
    %cst_183 = arith.constant dense<0.000000e+00> : vector<12x160xf32>
    %262 = tpu.matmul %259, %261, %cst_183 {dimension_numbers = #tpu.dot_dimension_numbers<[1], [0], [0], [1], [0, 0, 1, 1], [], []>} : vector<12x160xbf16>, vector<160x160xbf16>, vector<12x160xf32> -> vector<12x160xf32>
    %c1_184 = arith.constant 1 : index
    %c0_185 = arith.constant 0 : index
    %c0_186 = arith.constant 0 : index
    %263 = vector.load %arg15[%c1_184, %c0_185, %c0_186] : memref<4x160x160xbf16, #tpu.memory_space<vmem>>, vector<1x160x160xbf16>
    %264 = vector.shape_cast %263 : vector<1x160x160xbf16> to vector<160x160xbf16>
    %cst_187 = arith.constant dense<0.000000e+00> : vector<12x160xf32>
    %265 = tpu.matmul %259, %264, %cst_187 {dimension_numbers = #tpu.dot_dimension_numbers<[1], [0], [0], [1], [0, 0, 1, 1], [], []>} : vector<12x160xbf16>, vector<160x160xbf16>, vector<12x160xf32> -> vector<12x160xf32>
    %c2_188 = arith.constant 2 : index
    %c0_189 = arith.constant 0 : index
    %c0_190 = arith.constant 0 : index
    %266 = vector.load %arg15[%c2_188, %c0_189, %c0_190] : memref<4x160x160xbf16, #tpu.memory_space<vmem>>, vector<1x160x160xbf16>
    %267 = vector.shape_cast %266 : vector<1x160x160xbf16> to vector<160x160xbf16>
    %cst_191 = arith.constant dense<0.000000e+00> : vector<12x160xf32>
    %268 = tpu.matmul %259, %267, %cst_191 {dimension_numbers = #tpu.dot_dimension_numbers<[1], [0], [0], [1], [0, 0, 1, 1], [], []>} : vector<12x160xbf16>, vector<160x160xbf16>, vector<12x160xf32> -> vector<12x160xf32>
    %c3_192 = arith.constant 3 : index
    %c0_193 = arith.constant 0 : index
    %c0_194 = arith.constant 0 : index
    %269 = vector.load %arg15[%c3_192, %c0_193, %c0_194] : memref<4x160x160xbf16, #tpu.memory_space<vmem>>, vector<1x160x160xbf16>
    %270 = vector.shape_cast %269 : vector<1x160x160xbf16> to vector<160x160xbf16>
    %cst_195 = arith.constant dense<0.000000e+00> : vector<12x160xf32>
    %271 = tpu.matmul %259, %270, %cst_195 {dimension_numbers = #tpu.dot_dimension_numbers<[1], [0], [0], [1], [0, 0, 1, 1], [], []>} : vector<12x160xbf16>, vector<160x160xbf16>, vector<12x160xf32> -> vector<12x160xf32>
    %272 = vector.extract_strided_slice %265 {offsets = [1, 0], sizes = [10, 160], strides = [1, 1]} : vector<12x160xf32> to vector<10x160xf32>
    %273 = vector.extract_strided_slice %271 {offsets = [0, 0], sizes = [10, 160], strides = [1, 1]} : vector<12x160xf32> to vector<10x160xf32>
    %274 = arith.addf %272, %273 : vector<10x160xf32>
    %275 = vector.extract_strided_slice %262 {offsets = [2, 0], sizes = [10, 160], strides = [1, 1]} : vector<12x160xf32> to vector<10x160xf32>
    %276 = vector.extract_strided_slice %268 {offsets = [1, 0], sizes = [10, 160], strides = [1, 1]} : vector<12x160xf32> to vector<10x160xf32>
    %277 = arith.addf %275, %276 : vector<10x160xf32>
    %c0_196 = arith.constant 0 : index
    %c0_197 = arith.constant 0 : index
    %c0_198 = arith.constant 0 : index
    %278 = vector.load %arg16[%c0_196, %c0_197, %c0_198] : memref<2x20x10xf32, #tpu.memory_space<vmem>>, vector<1x20x10xf32>
    %279 = vector.shape_cast %278 : vector<1x20x10xf32> to vector<20x10xf32>
    %cst_199 = arith.constant dense<0.000000e+00> : vector<20x160xf32>
    %280 = tpu.matmul %279, %274, %cst_199 {dimension_numbers = #tpu.dot_dimension_numbers<[1], [0], [0], [1], [0, 0, 1, 1], [], []>} : vector<20x10xf32>, vector<10x160xf32>, vector<20x160xf32> -> vector<20x160xf32>
    %c1_200 = arith.constant 1 : index
    %c0_201 = arith.constant 0 : index
    %c0_202 = arith.constant 0 : index
    %281 = vector.load %arg16[%c1_200, %c0_201, %c0_202] : memref<2x20x10xf32, #tpu.memory_space<vmem>>, vector<1x20x10xf32>
    %282 = vector.shape_cast %281 : vector<1x20x10xf32> to vector<20x10xf32>
    %cst_203 = arith.constant dense<0.000000e+00> : vector<20x160xf32>
    %283 = tpu.matmul %282, %277, %cst_203 {dimension_numbers = #tpu.dot_dimension_numbers<[1], [0], [0], [1], [0, 0, 1, 1], [], []>} : vector<20x10xf32>, vector<10x160xf32>, vector<20x160xf32> -> vector<20x160xf32>
    %284 = arith.addf %280, %283 : vector<20x160xf32>
    %cst_204 = arith.constant dense<0.000000e+00> : vector<160xf32>
    %285 = vector.multi_reduction <add>, %258, %cst_204 [0] : vector<20x160xf32> to vector<160xf32>
    %286 = vector.shape_cast %285 : vector<160xf32> to vector<1x160xf32>
    %287 = arith.mulf %258, %258 : vector<20x160xf32>
    %cst_205 = arith.constant dense<0.000000e+00> : vector<160xf32>
    %288 = vector.multi_reduction <add>, %287, %cst_205 [0] : vector<20x160xf32> to vector<160xf32>
    %289 = vector.shape_cast %288 : vector<160xf32> to vector<1x160xf32>
    %cst_206 = arith.constant dense<0.000000e+00> : vector<160xf32>
    %290 = vector.multi_reduction <add>, %284, %cst_206 [0] : vector<20x160xf32> to vector<160xf32>
    %291 = vector.shape_cast %290 : vector<160xf32> to vector<1x160xf32>
    %292 = arith.addf %286, %291 : vector<1x160xf32>
    %293 = arith.mulf %284, %284 : vector<20x160xf32>
    %cst_207 = arith.constant dense<0.000000e+00> : vector<160xf32>
    %294 = vector.multi_reduction <add>, %293, %cst_207 [0] : vector<20x160xf32> to vector<160xf32>
    %295 = vector.shape_cast %294 : vector<160xf32> to vector<1x160xf32>
    %296 = arith.addf %289, %295 : vector<1x160xf32>
    %c0_208 = arith.constant 0 : index
    %c0_209 = arith.constant 0 : index
    %297 = vector.load %arg17[%c0_208, %c0_209] : memref<160x8xf32, #tpu.memory_space<vmem>>, vector<160x8xf32>
    %cst_210 = arith.constant dense<0.000000e+00> : vector<1x8xf32>
    %298 = tpu.matmul %292, %297, %cst_210 {dimension_numbers = #tpu.dot_dimension_numbers<[1], [0], [0], [1], [0, 0, 1, 1], [], []>} : vector<1x160xf32>, vector<160x8xf32>, vector<1x8xf32> -> vector<1x8xf32>
    %c0_211 = arith.constant 0 : index
    %c0_212 = arith.constant 0 : index
    %299 = vector.load %arg17[%c0_211, %c0_212] : memref<160x8xf32, #tpu.memory_space<vmem>>, vector<160x8xf32>
    %cst_213 = arith.constant dense<0.000000e+00> : vector<1x8xf32>
    %300 = tpu.matmul %296, %299, %cst_213 {dimension_numbers = #tpu.dot_dimension_numbers<[1], [0], [0], [1], [0, 0, 1, 1], [], []>} : vector<1x160xf32>, vector<160x8xf32>, vector<1x8xf32> -> vector<1x8xf32>
    %cst_214 = arith.constant 1.250000e-03 : f32
    %301 = vector.broadcast %cst_214 : f32 to vector<1x8xf32>
    %302 = arith.mulf %298, %301 : vector<1x8xf32>
    %cst_215 = arith.constant 1.250000e-03 : f32
    %303 = vector.broadcast %cst_215 : f32 to vector<1x8xf32>
    %304 = arith.mulf %300, %303 : vector<1x8xf32>
    %305 = arith.mulf %302, %302 : vector<1x8xf32>
    %306 = arith.subf %304, %305 : vector<1x8xf32>
    %cst_216 = arith.constant 0.000000e+00 : f32
    %307 = vector.broadcast %cst_216 : f32 to vector<1x8xf32>
    %308 = arith.maximumf %306, %307 : vector<1x8xf32>
    %c0_217 = arith.constant 0 : index
    %c0_218 = arith.constant 0 : index
    %309 = vector.load %arg19[%c0_217, %c0_218] : memref<1x8xf32, #tpu.memory_space<vmem>>, vector<1x8xf32>
    %cst_219 = arith.constant 9.99999974E-6 : f32
    %310 = vector.broadcast %cst_219 : f32 to vector<1x8xf32>
    %311 = arith.addf %308, %310 : vector<1x8xf32>
    %312 = math.rsqrt %311 : vector<1x8xf32>
    %313 = arith.mulf %309, %312 : vector<1x8xf32>
    %c0_220 = arith.constant 0 : index
    %c0_221 = arith.constant 0 : index
    %314 = vector.load %arg20[%c0_220, %c0_221] : memref<1x8xf32, #tpu.memory_space<vmem>>, vector<1x8xf32>
    %315 = arith.mulf %302, %313 : vector<1x8xf32>
    %316 = arith.subf %314, %315 : vector<1x8xf32>
    %c0_222 = arith.constant 0 : index
    %c0_223 = arith.constant 0 : index
    %317 = vector.load %arg18[%c0_222, %c0_223] : memref<8x160xf32, #tpu.memory_space<vmem>>, vector<8x160xf32>
    %cst_224 = arith.constant dense<0.000000e+00> : vector<1x160xf32>
    %318 = tpu.matmul %313, %317, %cst_224 {dimension_numbers = #tpu.dot_dimension_numbers<[1], [0], [0], [1], [0, 0, 1, 1], [], []>} : vector<1x8xf32>, vector<8x160xf32>, vector<1x160xf32> -> vector<1x160xf32>
    %c0_225 = arith.constant 0 : index
    %c0_226 = arith.constant 0 : index
    %319 = vector.load %arg18[%c0_225, %c0_226] : memref<8x160xf32, #tpu.memory_space<vmem>>, vector<8x160xf32>
    %cst_227 = arith.constant dense<0.000000e+00> : vector<1x160xf32>
    %320 = tpu.matmul %316, %319, %cst_227 {dimension_numbers = #tpu.dot_dimension_numbers<[1], [0], [0], [1], [0, 0, 1, 1], [], []>} : vector<1x8xf32>, vector<8x160xf32>, vector<1x160xf32> -> vector<1x160xf32>
    %321 = vector.broadcast %318 : vector<1x160xf32> to vector<20x160xf32>
    %322 = arith.mulf %258, %321 : vector<20x160xf32>
    %323 = vector.broadcast %320 : vector<1x160xf32> to vector<20x160xf32>
    %324 = arith.addf %322, %323 : vector<20x160xf32>
    %cst_228 = arith.constant 0.000000e+00 : f32
    %325 = vector.broadcast %cst_228 : f32 to vector<20x160xf32>
    %326 = arith.maximumf %324, %325 : vector<20x160xf32>
    %327 = vector.broadcast %318 : vector<1x160xf32> to vector<20x160xf32>
    %328 = arith.mulf %284, %327 : vector<20x160xf32>
    %329 = vector.broadcast %320 : vector<1x160xf32> to vector<20x160xf32>
    %330 = arith.addf %328, %329 : vector<20x160xf32>
    %cst_229 = arith.constant 0.000000e+00 : f32
    %331 = vector.broadcast %cst_229 : f32 to vector<20x160xf32>
    %332 = arith.maximumf %330, %331 : vector<20x160xf32>
    %cst_230 = arith.constant 0.000000e+00 : f32
    %333 = vector.broadcast %cst_230 : f32 to vector<1x160xf32>
    %334 = tpu.concatenate %333, %326, %333 in 0 : vector<1x160xf32>, vector<20x160xf32>, vector<1x160xf32> -> vector<22x160xf32>
    %335 = tpu.concatenate %333, %332, %333 in 0 : vector<1x160xf32>, vector<20x160xf32>, vector<1x160xf32> -> vector<22x160xf32>
    %336 = arith.truncf %334 : vector<22x160xf32> to vector<22x160xbf16>
    %c0_231 = arith.constant 0 : index
    %c0_232 = arith.constant 0 : index
    %c0_233 = arith.constant 0 : index
    %337 = vector.load %arg21[%c0_231, %c0_232, %c0_233] : memref<4x160x120xbf16, #tpu.memory_space<vmem>>, vector<1x160x120xbf16>
    %338 = vector.shape_cast %337 : vector<1x160x120xbf16> to vector<160x120xbf16>
    %cst_234 = arith.constant dense<0.000000e+00> : vector<22x120xf32>
    %339 = tpu.matmul %336, %338, %cst_234 {dimension_numbers = #tpu.dot_dimension_numbers<[1], [0], [0], [1], [0, 0, 1, 1], [], []>} : vector<22x160xbf16>, vector<160x120xbf16>, vector<22x120xf32> -> vector<22x120xf32>
    %c1_235 = arith.constant 1 : index
    %c0_236 = arith.constant 0 : index
    %c0_237 = arith.constant 0 : index
    %340 = vector.load %arg21[%c1_235, %c0_236, %c0_237] : memref<4x160x120xbf16, #tpu.memory_space<vmem>>, vector<1x160x120xbf16>
    %341 = vector.shape_cast %340 : vector<1x160x120xbf16> to vector<160x120xbf16>
    %cst_238 = arith.constant dense<0.000000e+00> : vector<22x120xf32>
    %342 = tpu.matmul %336, %341, %cst_238 {dimension_numbers = #tpu.dot_dimension_numbers<[1], [0], [0], [1], [0, 0, 1, 1], [], []>} : vector<22x160xbf16>, vector<160x120xbf16>, vector<22x120xf32> -> vector<22x120xf32>
    %c2_239 = arith.constant 2 : index
    %c0_240 = arith.constant 0 : index
    %c0_241 = arith.constant 0 : index
    %343 = vector.load %arg21[%c2_239, %c0_240, %c0_241] : memref<4x160x120xbf16, #tpu.memory_space<vmem>>, vector<1x160x120xbf16>
    %344 = vector.shape_cast %343 : vector<1x160x120xbf16> to vector<160x120xbf16>
    %cst_242 = arith.constant dense<0.000000e+00> : vector<22x120xf32>
    %345 = tpu.matmul %336, %344, %cst_242 {dimension_numbers = #tpu.dot_dimension_numbers<[1], [0], [0], [1], [0, 0, 1, 1], [], []>} : vector<22x160xbf16>, vector<160x120xbf16>, vector<22x120xf32> -> vector<22x120xf32>
    %c3_243 = arith.constant 3 : index
    %c0_244 = arith.constant 0 : index
    %c0_245 = arith.constant 0 : index
    %346 = vector.load %arg21[%c3_243, %c0_244, %c0_245] : memref<4x160x120xbf16, #tpu.memory_space<vmem>>, vector<1x160x120xbf16>
    %347 = vector.shape_cast %346 : vector<1x160x120xbf16> to vector<160x120xbf16>
    %cst_246 = arith.constant dense<0.000000e+00> : vector<22x120xf32>
    %348 = tpu.matmul %336, %347, %cst_246 {dimension_numbers = #tpu.dot_dimension_numbers<[1], [0], [0], [1], [0, 0, 1, 1], [], []>} : vector<22x160xbf16>, vector<160x120xbf16>, vector<22x120xf32> -> vector<22x120xf32>
    %349 = vector.extract_strided_slice %342 {offsets = [1, 0], sizes = [20, 120], strides = [1, 1]} : vector<22x120xf32> to vector<20x120xf32>
    %350 = vector.extract_strided_slice %348 {offsets = [0, 0], sizes = [20, 120], strides = [1, 1]} : vector<22x120xf32> to vector<20x120xf32>
    %351 = arith.addf %349, %350 : vector<20x120xf32>
    %352 = vector.extract_strided_slice %339 {offsets = [2, 0], sizes = [20, 120], strides = [1, 1]} : vector<22x120xf32> to vector<20x120xf32>
    %353 = vector.extract_strided_slice %345 {offsets = [1, 0], sizes = [20, 120], strides = [1, 1]} : vector<22x120xf32> to vector<20x120xf32>
    %354 = arith.addf %352, %353 : vector<20x120xf32>
    %c0_247 = arith.constant 0 : index
    %c0_248 = arith.constant 0 : index
    %c0_249 = arith.constant 0 : index
    %355 = vector.load %arg22[%c0_247, %c0_248, %c0_249] : memref<2x40x20xf32, #tpu.memory_space<vmem>>, vector<1x40x20xf32>
    %356 = vector.shape_cast %355 : vector<1x40x20xf32> to vector<40x20xf32>
    %cst_250 = arith.constant dense<0.000000e+00> : vector<40x120xf32>
    %357 = tpu.matmul %356, %351, %cst_250 {dimension_numbers = #tpu.dot_dimension_numbers<[1], [0], [0], [1], [0, 0, 1, 1], [], []>} : vector<40x20xf32>, vector<20x120xf32>, vector<40x120xf32> -> vector<40x120xf32>
    %c1_251 = arith.constant 1 : index
    %c0_252 = arith.constant 0 : index
    %c0_253 = arith.constant 0 : index
    %358 = vector.load %arg22[%c1_251, %c0_252, %c0_253] : memref<2x40x20xf32, #tpu.memory_space<vmem>>, vector<1x40x20xf32>
    %359 = vector.shape_cast %358 : vector<1x40x20xf32> to vector<40x20xf32>
    %cst_254 = arith.constant dense<0.000000e+00> : vector<40x120xf32>
    %360 = tpu.matmul %359, %354, %cst_254 {dimension_numbers = #tpu.dot_dimension_numbers<[1], [0], [0], [1], [0, 0, 1, 1], [], []>} : vector<40x20xf32>, vector<20x120xf32>, vector<40x120xf32> -> vector<40x120xf32>
    %361 = arith.addf %357, %360 : vector<40x120xf32>
    %362 = arith.truncf %335 : vector<22x160xf32> to vector<22x160xbf16>
    %c0_255 = arith.constant 0 : index
    %c0_256 = arith.constant 0 : index
    %c0_257 = arith.constant 0 : index
    %363 = vector.load %arg21[%c0_255, %c0_256, %c0_257] : memref<4x160x120xbf16, #tpu.memory_space<vmem>>, vector<1x160x120xbf16>
    %364 = vector.shape_cast %363 : vector<1x160x120xbf16> to vector<160x120xbf16>
    %cst_258 = arith.constant dense<0.000000e+00> : vector<22x120xf32>
    %365 = tpu.matmul %362, %364, %cst_258 {dimension_numbers = #tpu.dot_dimension_numbers<[1], [0], [0], [1], [0, 0, 1, 1], [], []>} : vector<22x160xbf16>, vector<160x120xbf16>, vector<22x120xf32> -> vector<22x120xf32>
    %c1_259 = arith.constant 1 : index
    %c0_260 = arith.constant 0 : index
    %c0_261 = arith.constant 0 : index
    %366 = vector.load %arg21[%c1_259, %c0_260, %c0_261] : memref<4x160x120xbf16, #tpu.memory_space<vmem>>, vector<1x160x120xbf16>
    %367 = vector.shape_cast %366 : vector<1x160x120xbf16> to vector<160x120xbf16>
    %cst_262 = arith.constant dense<0.000000e+00> : vector<22x120xf32>
    %368 = tpu.matmul %362, %367, %cst_262 {dimension_numbers = #tpu.dot_dimension_numbers<[1], [0], [0], [1], [0, 0, 1, 1], [], []>} : vector<22x160xbf16>, vector<160x120xbf16>, vector<22x120xf32> -> vector<22x120xf32>
    %c2_263 = arith.constant 2 : index
    %c0_264 = arith.constant 0 : index
    %c0_265 = arith.constant 0 : index
    %369 = vector.load %arg21[%c2_263, %c0_264, %c0_265] : memref<4x160x120xbf16, #tpu.memory_space<vmem>>, vector<1x160x120xbf16>
    %370 = vector.shape_cast %369 : vector<1x160x120xbf16> to vector<160x120xbf16>
    %cst_266 = arith.constant dense<0.000000e+00> : vector<22x120xf32>
    %371 = tpu.matmul %362, %370, %cst_266 {dimension_numbers = #tpu.dot_dimension_numbers<[1], [0], [0], [1], [0, 0, 1, 1], [], []>} : vector<22x160xbf16>, vector<160x120xbf16>, vector<22x120xf32> -> vector<22x120xf32>
    %c3_267 = arith.constant 3 : index
    %c0_268 = arith.constant 0 : index
    %c0_269 = arith.constant 0 : index
    %372 = vector.load %arg21[%c3_267, %c0_268, %c0_269] : memref<4x160x120xbf16, #tpu.memory_space<vmem>>, vector<1x160x120xbf16>
    %373 = vector.shape_cast %372 : vector<1x160x120xbf16> to vector<160x120xbf16>
    %cst_270 = arith.constant dense<0.000000e+00> : vector<22x120xf32>
    %374 = tpu.matmul %362, %373, %cst_270 {dimension_numbers = #tpu.dot_dimension_numbers<[1], [0], [0], [1], [0, 0, 1, 1], [], []>} : vector<22x160xbf16>, vector<160x120xbf16>, vector<22x120xf32> -> vector<22x120xf32>
    %375 = vector.extract_strided_slice %368 {offsets = [1, 0], sizes = [20, 120], strides = [1, 1]} : vector<22x120xf32> to vector<20x120xf32>
    %376 = vector.extract_strided_slice %374 {offsets = [0, 0], sizes = [20, 120], strides = [1, 1]} : vector<22x120xf32> to vector<20x120xf32>
    %377 = arith.addf %375, %376 : vector<20x120xf32>
    %378 = vector.extract_strided_slice %365 {offsets = [2, 0], sizes = [20, 120], strides = [1, 1]} : vector<22x120xf32> to vector<20x120xf32>
    %379 = vector.extract_strided_slice %371 {offsets = [1, 0], sizes = [20, 120], strides = [1, 1]} : vector<22x120xf32> to vector<20x120xf32>
    %380 = arith.addf %378, %379 : vector<20x120xf32>
    %c0_271 = arith.constant 0 : index
    %c0_272 = arith.constant 0 : index
    %c0_273 = arith.constant 0 : index
    %381 = vector.load %arg22[%c0_271, %c0_272, %c0_273] : memref<2x40x20xf32, #tpu.memory_space<vmem>>, vector<1x40x20xf32>
    %382 = vector.shape_cast %381 : vector<1x40x20xf32> to vector<40x20xf32>
    %cst_274 = arith.constant dense<0.000000e+00> : vector<40x120xf32>
    %383 = tpu.matmul %382, %377, %cst_274 {dimension_numbers = #tpu.dot_dimension_numbers<[1], [0], [0], [1], [0, 0, 1, 1], [], []>} : vector<40x20xf32>, vector<20x120xf32>, vector<40x120xf32> -> vector<40x120xf32>
    %c1_275 = arith.constant 1 : index
    %c0_276 = arith.constant 0 : index
    %c0_277 = arith.constant 0 : index
    %384 = vector.load %arg22[%c1_275, %c0_276, %c0_277] : memref<2x40x20xf32, #tpu.memory_space<vmem>>, vector<1x40x20xf32>
    %385 = vector.shape_cast %384 : vector<1x40x20xf32> to vector<40x20xf32>
    %cst_278 = arith.constant dense<0.000000e+00> : vector<40x120xf32>
    %386 = tpu.matmul %385, %380, %cst_278 {dimension_numbers = #tpu.dot_dimension_numbers<[1], [0], [0], [1], [0, 0, 1, 1], [], []>} : vector<40x20xf32>, vector<20x120xf32>, vector<40x120xf32> -> vector<40x120xf32>
    %387 = arith.addf %383, %386 : vector<40x120xf32>
    %388 = math.tanh %361 : vector<40x120xf32>
    %c0_279 = arith.constant 0 : index
    %c0_280 = arith.constant 0 : index
    %c0_281 = arith.constant 0 : index
    %389 = vector.load %arg23[%c0_279, %c0_280, %c0_281] : memref<3x120x40xf32, #tpu.memory_space<vmem>>, vector<1x120x40xf32>
    %390 = vector.shape_cast %389 : vector<1x120x40xf32> to vector<120x40xf32>
    %cst_282 = arith.constant dense<0.000000e+00> : vector<40x40xf32>
    %391 = tpu.matmul %388, %390, %cst_282 {dimension_numbers = #tpu.dot_dimension_numbers<[1], [0], [0], [1], [0, 0, 1, 1], [], []>} : vector<40x120xf32>, vector<120x40xf32>, vector<40x40xf32> -> vector<40x40xf32>
    %c0_283 = arith.constant 0 : index
    %c0_284 = arith.constant 0 : index
    %c0_285 = arith.constant 0 : index
    %c0_286 = arith.constant 0 : index
    %392 = vector.load %arg24[%c0_283, %c0_284, %c0_285, %c0_286] : memref<2x3x40x40xf32, #tpu.memory_space<vmem>>, vector<1x1x40x40xf32>
    %393 = vector.shape_cast %392 : vector<1x1x40x40xf32> to vector<40x40xf32>
    %394 = vector.shape_cast %391 : vector<40x40xf32> to vector<1x1x40x40xf32>
    tpu.vector_store %arg24[%c0_283, %c0_284, %c0_285, %c0_286], %394 {strides = array<i32>} : memref<2x3x40x40xf32, #tpu.memory_space<vmem>>, vector<1x1x40x40xf32>,
    %c1_287 = arith.constant 1 : index
    %c0_288 = arith.constant 0 : index
    %c0_289 = arith.constant 0 : index
    %395 = vector.load %arg23[%c1_287, %c0_288, %c0_289] : memref<3x120x40xf32, #tpu.memory_space<vmem>>, vector<1x120x40xf32>
    %396 = vector.shape_cast %395 : vector<1x120x40xf32> to vector<120x40xf32>
    %cst_290 = arith.constant dense<0.000000e+00> : vector<40x40xf32>
    %397 = tpu.matmul %388, %396, %cst_290 {dimension_numbers = #tpu.dot_dimension_numbers<[1], [0], [0], [1], [0, 0, 1, 1], [], []>} : vector<40x120xf32>, vector<120x40xf32>, vector<40x40xf32> -> vector<40x40xf32>
    %c0_291 = arith.constant 0 : index
    %c1_292 = arith.constant 1 : index
    %c0_293 = arith.constant 0 : index
    %c0_294 = arith.constant 0 : index
    %398 = vector.load %arg24[%c0_291, %c1_292, %c0_293, %c0_294] : memref<2x3x40x40xf32, #tpu.memory_space<vmem>>, vector<1x1x40x40xf32>
    %399 = vector.shape_cast %398 : vector<1x1x40x40xf32> to vector<40x40xf32>
    %400 = vector.shape_cast %397 : vector<40x40xf32> to vector<1x1x40x40xf32>
    tpu.vector_store %arg24[%c0_291, %c1_292, %c0_293, %c0_294], %400 {strides = array<i32>} : memref<2x3x40x40xf32, #tpu.memory_space<vmem>>, vector<1x1x40x40xf32>,
    %c2_295 = arith.constant 2 : index
    %c0_296 = arith.constant 0 : index
    %c0_297 = arith.constant 0 : index
    %401 = vector.load %arg23[%c2_295, %c0_296, %c0_297] : memref<3x120x40xf32, #tpu.memory_space<vmem>>, vector<1x120x40xf32>
    %402 = vector.shape_cast %401 : vector<1x120x40xf32> to vector<120x40xf32>
    %cst_298 = arith.constant dense<0.000000e+00> : vector<40x40xf32>
    %403 = tpu.matmul %388, %402, %cst_298 {dimension_numbers = #tpu.dot_dimension_numbers<[1], [0], [0], [1], [0, 0, 1, 1], [], []>} : vector<40x120xf32>, vector<120x40xf32>, vector<40x40xf32> -> vector<40x40xf32>
    %c0_299 = arith.constant 0 : index
    %c2_300 = arith.constant 2 : index
    %c0_301 = arith.constant 0 : index
    %c0_302 = arith.constant 0 : index
    %404 = vector.load %arg24[%c0_299, %c2_300, %c0_301, %c0_302] : memref<2x3x40x40xf32, #tpu.memory_space<vmem>>, vector<1x1x40x40xf32>
    %405 = vector.shape_cast %404 : vector<1x1x40x40xf32> to vector<40x40xf32>
    %406 = vector.shape_cast %403 : vector<40x40xf32> to vector<1x1x40x40xf32>
    tpu.vector_store %arg24[%c0_299, %c2_300, %c0_301, %c0_302], %406 {strides = array<i32>} : memref<2x3x40x40xf32, #tpu.memory_space<vmem>>, vector<1x1x40x40xf32>,
    %407 = math.tanh %387 : vector<40x120xf32>
    %c0_303 = arith.constant 0 : index
    %c0_304 = arith.constant 0 : index
    %c0_305 = arith.constant 0 : index
    %408 = vector.load %arg23[%c0_303, %c0_304, %c0_305] : memref<3x120x40xf32, #tpu.memory_space<vmem>>, vector<1x120x40xf32>
    %409 = vector.shape_cast %408 : vector<1x120x40xf32> to vector<120x40xf32>
    %cst_306 = arith.constant dense<0.000000e+00> : vector<40x40xf32>
    %410 = tpu.matmul %407, %409, %cst_306 {dimension_numbers = #tpu.dot_dimension_numbers<[1], [0], [0], [1], [0, 0, 1, 1], [], []>} : vector<40x120xf32>, vector<120x40xf32>, vector<40x40xf32> -> vector<40x40xf32>
    %c1_307 = arith.constant 1 : index
    %c0_308 = arith.constant 0 : index
    %c0_309 = arith.constant 0 : index
    %c0_310 = arith.constant 0 : index
    %411 = vector.load %arg24[%c1_307, %c0_308, %c0_309, %c0_310] : memref<2x3x40x40xf32, #tpu.memory_space<vmem>>, vector<1x1x40x40xf32>
    %412 = vector.shape_cast %411 : vector<1x1x40x40xf32> to vector<40x40xf32>
    %413 = vector.shape_cast %410 : vector<40x40xf32> to vector<1x1x40x40xf32>
    tpu.vector_store %arg24[%c1_307, %c0_308, %c0_309, %c0_310], %413 {strides = array<i32>} : memref<2x3x40x40xf32, #tpu.memory_space<vmem>>, vector<1x1x40x40xf32>,
    %c1_311 = arith.constant 1 : index
    %c0_312 = arith.constant 0 : index
    %c0_313 = arith.constant 0 : index
    %414 = vector.load %arg23[%c1_311, %c0_312, %c0_313] : memref<3x120x40xf32, #tpu.memory_space<vmem>>, vector<1x120x40xf32>
    %415 = vector.shape_cast %414 : vector<1x120x40xf32> to vector<120x40xf32>
    %cst_314 = arith.constant dense<0.000000e+00> : vector<40x40xf32>
    %416 = tpu.matmul %407, %415, %cst_314 {dimension_numbers = #tpu.dot_dimension_numbers<[1], [0], [0], [1], [0, 0, 1, 1], [], []>} : vector<40x120xf32>, vector<120x40xf32>, vector<40x40xf32> -> vector<40x40xf32>
    %c1_315 = arith.constant 1 : index
    %c1_316 = arith.constant 1 : index
    %c0_317 = arith.constant 0 : index
    %c0_318 = arith.constant 0 : index
    %417 = vector.load %arg24[%c1_315, %c1_316, %c0_317, %c0_318] : memref<2x3x40x40xf32, #tpu.memory_space<vmem>>, vector<1x1x40x40xf32>
    %418 = vector.shape_cast %417 : vector<1x1x40x40xf32> to vector<40x40xf32>
    %419 = vector.shape_cast %416 : vector<40x40xf32> to vector<1x1x40x40xf32>
    tpu.vector_store %arg24[%c1_315, %c1_316, %c0_317, %c0_318], %419 {strides = array<i32>} : memref<2x3x40x40xf32, #tpu.memory_space<vmem>>, vector<1x1x40x40xf32>,
    %c2_319 = arith.constant 2 : index
    %c0_320 = arith.constant 0 : index
    %c0_321 = arith.constant 0 : index
    %420 = vector.load %arg23[%c2_319, %c0_320, %c0_321] : memref<3x120x40xf32, #tpu.memory_space<vmem>>, vector<1x120x40xf32>
    %421 = vector.shape_cast %420 : vector<1x120x40xf32> to vector<120x40xf32>
    %cst_322 = arith.constant dense<0.000000e+00> : vector<40x40xf32>
    %422 = tpu.matmul %407, %421, %cst_322 {dimension_numbers = #tpu.dot_dimension_numbers<[1], [0], [0], [1], [0, 0, 1, 1], [], []>} : vector<40x120xf32>, vector<120x40xf32>, vector<40x40xf32> -> vector<40x40xf32>
    %c1_323 = arith.constant 1 : index
    %c2_324 = arith.constant 2 : index
    %c0_325 = arith.constant 0 : index
    %c0_326 = arith.constant 0 : index
    %423 = vector.load %arg24[%c1_323, %c2_324, %c0_325, %c0_326] : memref<2x3x40x40xf32, #tpu.memory_space<vmem>>, vector<1x1x40x40xf32>
    %424 = vector.shape_cast %423 : vector<1x1x40x40xf32> to vector<40x40xf32>
    %425 = vector.shape_cast %422 : vector<40x40xf32> to vector<1x1x40x40xf32>
    tpu.vector_store %arg24[%c1_323, %c2_324, %c0_325, %c0_326], %425 {strides = array<i32>} : memref<2x3x40x40xf32, #tpu.memory_space<vmem>>, vector<1x1x40x40xf32>,
    return
  }
}

</mosaic_0001>

<llo_original>
// kernel: _lambda_.1
$region0: #{_lambda_.1}
  #allocation0 [shape = 'u32[]', space=smem, size = 0x4, offset = 0x4, fixed_abs, tag = 'smem constant byte address 0x4 - core index']
  #allocation1 [shape = 'u32[144,128]{1,0:T(1,128)}', space=vmem, size = 0x12000, scoped, tag = 'internal scratch']
  %s0 = inlined_call_operand.vmem [shape: f32[2,16], index: 0, kind: input, shape index: {}]
  %s1 = inlined_call_operand.vmem [shape: bf16[16,64], index: 1, kind: input, shape index: {}]
  %s2 = inlined_call_operand.vmem [shape: bf16[8,64,64], index: 2, kind: input, shape index: {}]
  %s3 = inlined_call_operand.vmem [shape: f32[9,64], index: 3, kind: input, shape index: {}]
  %s4 = inlined_call_operand.vmem [shape: bf16[64,512], index: 4, kind: input, shape index: {}]
  %s5 = inlined_call_operand.vmem [shape: f32[512,32], index: 5, kind: input, shape index: {}]
  %s6 = inlined_call_operand.vmem [shape: f32[32,512], index: 6, kind: input, shape index: {}]
  %s7 = inlined_call_operand.vmem [shape: f32[1,32], index: 7, kind: input, shape index: {}]
  %s8 = inlined_call_operand.vmem [shape: f32[1,32], index: 8, kind: input, shape index: {}]
  %s9 = inlined_call_operand.vmem [shape: bf16[4,128,160], index: 9, kind: input, shape index: {}]
  %s10 = inlined_call_operand.vmem [shape: f32[2,10,5], index: 10, kind: input, shape index: {}]
  %s11 = inlined_call_operand.vmem [shape: f32[160,16], index: 11, kind: input, shape index: {}]
  %s12 = inlined_call_operand.vmem [shape: f32[16,160], index: 12, kind: input, shape index: {}]
  %s13 = inlined_call_operand.vmem [shape: f32[1,16], index: 13, kind: input, shape index: {}]
  %s14 = inlined_call_operand.vmem [shape: f32[1,16], index: 14, kind: input, shape index: {}]
  %s15 = inlined_call_operand.vmem [shape: bf16[4,160,160], index: 15, kind: input, shape index: {}]
  %s16 = inlined_call_operand.vmem [shape: f32[2,20,10], index: 16, kind: input, shape index: {}]
  %s17 = inlined_call_operand.vmem [shape: f32[160,8], index: 17, kind: input, shape index: {}]
  %s18 = inlined_call_operand.vmem [shape: f32[8,160], index: 18, kind: input, shape index: {}]
  %s19 = inlined_call_operand.vmem [shape: f32[1,8], index: 19, kind: input, shape index: {}]
  %s20 = inlined_call_operand.vmem [shape: f32[1,8], index: 20, kind: input, shape index: {}]
  %s21 = inlined_call_operand.vmem [shape: bf16[4,160,120], index: 21, kind: input, shape index: {}]
  %s22 = inlined_call_operand.vmem [shape: f32[2,40,20], index: 22, kind: input, shape index: {}]
  %s23 = inlined_call_operand.vmem [shape: f32[3,120,40], index: 23, kind: input, shape index: {}]
  %s24 = inlined_call_operand.hbm [shape: f32[2,3,40,40], index: 24, kind: output, shape index: {}]
  %s25 = sld [smem:[#allocation0]]
  $region106: #{_lambda_.1} parent=0
    _
  %s27 = ssub.s32 1, %s25
  %s28 = scalar_select 0, %s27, %s25
  $region1: #{_lambda_.1} parent=0
    #allocation2 [shape = 'u8[122880]{0}', space=vmem, size = 0x1e000, scoped, tag = 'output window, operand 0, single buffered']
    #allocation3 [shape = 's32[1]{0}', space=sflag, size = 0x4, scoped, tag = 'scoped memory for _lambda_.1']
    %29 = vsyncpa [#allocation3], 0
    // Predicated region
    $region2: #{_lambda_.1} parent=1 // pred_check
      _
    $region3: #{_lambda_.1} parent=1 // pred_check_branch
      %31 = sbr.rel (0) target = $region5
    $region4: #{_lambda_.1} parent=1 // pred_region
      _
    $region5: #{_lambda_.1} parent=1 // pred_fallthru
      _
    // Predicated region
    $region6: #{_lambda_.1} parent=1 // pred_check
      _
    $region7: #{_lambda_.1} parent=1 // pred_check_branch
      %33 = sbr.rel (0) target = $region9
    $region8: #{_lambda_.1} parent=1 // pred_region
      _
    $region9: #{_lambda_.1} parent=1 // pred_fallthru
      _
    // Predicated region
    $region10: #{_lambda_.1} parent=1 // pred_check
      _
    $region11: #{_lambda_.1} parent=1 // pred_check_branch
      %35 = sbr.rel (0) target = $region13
    $region12: #{_lambda_.1} parent=1 // pred_region
      _
    $region13: #{_lambda_.1} parent=1 // pred_fallthru
      _
    // Predicated region
    $region14: #{_lambda_.1} parent=1 // pred_check
      _
    $region15: #{_lambda_.1} parent=1 // pred_check_branch
      %37 = sbr.rel (0) target = $region17
    $region16: #{_lambda_.1} parent=1 // pred_region
      _
    $region17: #{_lambda_.1} parent=1 // pred_fallthru
      _
    // Predicated region
    $region18: #{_lambda_.1} parent=1 // pred_check
      _
    $region19: #{_lambda_.1} parent=1 // pred_check_branch
      %39 = sbr.rel (0) target = $region21
    $region20: #{_lambda_.1} parent=1 // pred_region
      _
    $region21: #{_lambda_.1} parent=1 // pred_fallthru
      _
    // Predicated region
    $region22: #{_lambda_.1} parent=1 // pred_check
      _
    $region23: #{_lambda_.1} parent=1 // pred_check_branch
      %41 = sbr.rel (0) target = $region25
    $region24: #{_lambda_.1} parent=1 // pred_region
      _
    $region25: #{_lambda_.1} parent=1 // pred_fallthru
      _
    // Predicated region
    $region26: #{_lambda_.1} parent=1 // pred_check
      _
    $region27: #{_lambda_.1} parent=1 // pred_check_branch
      %43 = sbr.rel (0) target = $region29
    $region28: #{_lambda_.1} parent=1 // pred_region
      _
    $region29: #{_lambda_.1} parent=1 // pred_fallthru
      _
    // Predicated region
    $region30: #{_lambda_.1} parent=1 // pred_check
      _
    $region31: #{_lambda_.1} parent=1 // pred_check_branch
      %45 = sbr.rel (0) target = $region33
    $region32: #{_lambda_.1} parent=1 // pred_region
      _
    $region33: #{_lambda_.1} parent=1 // pred_fallthru
      _
    // Predicated region
    $region34: #{_lambda_.1} parent=1 // pred_check
      _
    $region35: #{_lambda_.1} parent=1 // pred_check_branch
      %47 = sbr.rel (0) target = $region37
    $region36: #{_lambda_.1} parent=1 // pred_region
      _
    $region37: #{_lambda_.1} parent=1 // pred_fallthru
      _
    // Predicated region
    $region38: #{_lambda_.1} parent=1 // pred_check
      _
    $region39: #{_lambda_.1} parent=1 // pred_check_branch
      %49 = sbr.rel (0) target = $region41
    $region40: #{_lambda_.1} parent=1 // pred_region
      _
    $region41: #{_lambda_.1} parent=1 // pred_fallthru
      _
    // Predicated region
    $region42: #{_lambda_.1} parent=1 // pred_check
      _
    $region43: #{_lambda_.1} parent=1 // pred_check_branch
      %51 = sbr.rel (0) target = $region45
    $region44: #{_lambda_.1} parent=1 // pred_region
      _
    $region45: #{_lambda_.1} parent=1 // pred_fallthru
      _
    // Predicated region
    $region46: #{_lambda_.1} parent=1 // pred_check
      _
    $region47: #{_lambda_.1} parent=1 // pred_check_branch
      %53 = sbr.rel (0) target = $region49
    $region48: #{_lambda_.1} parent=1 // pred_region
      _
    $region49: #{_lambda_.1} parent=1 // pred_fallthru
      _
    // Predicated region
    $region50: #{_lambda_.1} parent=1 // pred_check
      _
    $region51: #{_lambda_.1} parent=1 // pred_check_branch
      %55 = sbr.rel (0) target = $region53
    $region52: #{_lambda_.1} parent=1 // pred_region
      _
    $region53: #{_lambda_.1} parent=1 // pred_fallthru
      _
    // Predicated region
    $region54: #{_lambda_.1} parent=1 // pred_check
      _
    $region55: #{_lambda_.1} parent=1 // pred_check_branch
      %57 = sbr.rel (0) target = $region57
    $region56: #{_lambda_.1} parent=1 // pred_region
      _
    $region57: #{_lambda_.1} parent=1 // pred_fallthru
      _
    // Predicated region
    $region58: #{_lambda_.1} parent=1 // pred_check
      _
    $region59: #{_lambda_.1} parent=1 // pred_check_branch
      %59 = sbr.rel (0) target = $region61
    $region60: #{_lambda_.1} parent=1 // pred_region
      _
    $region61: #{_lambda_.1} parent=1 // pred_fallthru
      _
    // Predicated region
    $region62: #{_lambda_.1} parent=1 // pred_check
      _
    $region63: #{_lambda_.1} parent=1 // pred_check_branch
      %61 = sbr.rel (0) target = $region65
    $region64: #{_lambda_.1} parent=1 // pred_region
      _
    $region65: #{_lambda_.1} parent=1 // pred_fallthru
      _
    // Predicated region
    $region66: #{_lambda_.1} parent=1 // pred_check
      _
    $region67: #{_lambda_.1} parent=1 // pred_check_branch
      %63 = sbr.rel (0) target = $region69
    $region68: #{_lambda_.1} parent=1 // pred_region
      _
    $region69: #{_lambda_.1} parent=1 // pred_fallthru
      _
    // Predicated region
    $region70: #{_lambda_.1} parent=1 // pred_check
      _
    $region71: #{_lambda_.1} parent=1 // pred_check_branch
      %65 = sbr.rel (0) target = $region73
    $region72: #{_lambda_.1} parent=1 // pred_region
      _
    $region73: #{_lambda_.1} parent=1 // pred_fallthru
      _
    // Predicated region
    $region74: #{_lambda_.1} parent=1 // pred_check
      _
    $region75: #{_lambda_.1} parent=1 // pred_check_branch
      %67 = sbr.rel (0) target = $region77
    $region76: #{_lambda_.1} parent=1 // pred_region
      _
    $region77: #{_lambda_.1} parent=1 // pred_fallthru
      _
    // Predicated region
    $region78: #{_lambda_.1} parent=1 // pred_check
      _
    $region79: #{_lambda_.1} parent=1 // pred_check_branch
      %69 = sbr.rel (0) target = $region81
    $region80: #{_lambda_.1} parent=1 // pred_region
      _
    $region81: #{_lambda_.1} parent=1 // pred_fallthru
      _
    // Predicated region
    $region82: #{_lambda_.1} parent=1 // pred_check
      _
    $region83: #{_lambda_.1} parent=1 // pred_check_branch
      %71 = sbr.rel (0) target = $region85
    $region84: #{_lambda_.1} parent=1 // pred_region
      _
    $region85: #{_lambda_.1} parent=1 // pred_fallthru
      _
    // Predicated region
    $region86: #{_lambda_.1} parent=1 // pred_check
      _
    $region87: #{_lambda_.1} parent=1 // pred_check_branch
      %73 = sbr.rel (0) target = $region89
    $region88: #{_lambda_.1} parent=1 // pred_region
      _
    $region89: #{_lambda_.1} parent=1 // pred_fallthru
      _
    // Predicated region
    $region90: #{_lambda_.1} parent=1 // pred_check
      _
    $region91: #{_lambda_.1} parent=1 // pred_check_branch
      %75 = sbr.rel (0) target = $region93
    $region92: #{_lambda_.1} parent=1 // pred_region
      _
    $region93: #{_lambda_.1} parent=1 // pred_fallthru
      _
    // Predicated region
    $region94: #{_lambda_.1} parent=1 // pred_check
      _
    $region95: #{_lambda_.1} parent=1 // pred_check_branch
      %77 = sbr.rel (0) target = $region97
    $region96: #{_lambda_.1} parent=1 // pred_region
      _
    $region97: #{_lambda_.1} parent=1 // pred_fallthru
      _
    %v79 = vld [vmem:[%s0] sm:$0x3]
    %v80 = vpack.c.bf16 %v79, %v79
    %v81 = vld [vmem:[%s1] sm:$0xf]
    %v82 = vld [vmem:[%s1 + $0x4] sm:$0xf]
    %v83 = vld [vmem:[%s3] sm:$0x1]
    %v84 = vlaneseq
    %v85 = vshrl.u32 %v84, 7
    %v86 = vsub.s32 0, %v85
    %v87 = vrot.slane %v83, %v86
    %v90 = vunpack.c.l.b16 %v81
    %v91 = vunpack.c.l.b16 %v82
    %v92 = vpack.c.b16 %v91, %v90
    %vm94 = vcmask 130048
    %v96 = vsel %vm94, %v80, 0
    %98 = vmatprep.subr.bf16.mxu0 0
    %99 = vmatpush1.bf16.msra.mxu0 %v92
    %100 = vmatprep.subr.bf16.mxu0 0
    %101 = vmatpush1.bf16.msra.mxu0 0
    %102 = vmatprep.subr.bf16.mxu0 0
    %103 = vmatpush1.bf16.msra.mxu0 0
    %104 = vmatprep.subr.bf16.mxu0 0
    %105 = vmatpush1.bf16.msra.mxu0 0
    %106 = vmatprep.subr.bf16.mxu0 0
    %107 = vmatpush1.bf16.msra.mxu0 0
    %108 = vmatprep.subr.bf16.mxu0 0
    %109 = vmatpush1.bf16.msra.mxu0 0
    %110 = vmatprep.subr.bf16.mxu0 0
    %111 = vmatpush1.bf16.msra.mxu0 0
    %112 = vmatprep.subr.bf16.mxu0 0
    %113 = vmatpush1.bf16.msra.mxu0 0
    %114 = vmatprep.subr.bf16.mxu0 0
    %115 = vmatpush1.bf16.msra.mxu0 0
    %116 = vmatprep.subr.bf16.mxu0 0
    %117 = vmatpush1.bf16.msra.mxu0 0
    %118 = vmatprep.subr.bf16.mxu0 0
    %119 = vmatpush1.bf16.msra.mxu0 0
    %120 = vmatprep.subr.bf16.mxu0 0
    %121 = vmatpush1.bf16.msra.mxu0 0
    %122 = vmatprep.subr.bf16.mxu0 0
    %123 = vmatpush1.bf16.msra.mxu0 0
    %124 = vmatprep.subr.bf16.mxu0 0
    %125 = vmatpush1.bf16.msra.mxu0 0
    %126 = vmatprep.subr.bf16.mxu0 0
    %127 = vmatpush1.bf16.msra.mxu0 0
    %128 = vmatprep.subr.bf16.mxu0 0
    %129 = vmatpush1.bf16.msra.mxu0 0
    %130 = vmatprep.mubr.bf16.mxu0 0
    %131 = vmatmul.mubr.bf16.gmra.mrb[0].mxu0 %v96
    %v132 = vpop.f32.mrb[0].mxu0
    %v133 = vadd.f32 %v87, %v132
    %v134 = vpop.f32.mrb[0].mxu0
    %v135 = vpop.f32.mrb[0].mxu0
    %v136 = vpop.f32.mrb[0].mxu0
    %137 = vdwg.mxu0
    %v138 = vmax.f32 %v133, 0.0
    %v139 = vpack.c.bf16 %v138, %v138
    %v140 = vld [vmem:[%s2] sm:$0xf]
    %v141 = vld [vmem:[%s2 + $0x4] sm:$0xf]
    %v142 = vld [vmem:[%s2 + $0x8] sm:$0xf]
    %v143 = vld [vmem:[%s2 + $0xc] sm:$0xf]
    %v144 = vld [vmem:[%s2 + $0x10] sm:$0xf]
    %v145 = vld [vmem:[%s2 + $0x14] sm:$0xf]
    %v146 = vld [vmem:[%s2 + $0x18] sm:$0xf]
    %v147 = vld [vmem:[%s2 + $0x1c] sm:$0xf]
    %v148 = vld [vmem:[%s3 + $0x1] sm:$0x1]
    %v149 = vlaneseq
    %v150 = vshrl.u32 %v149, 7
    %v151 = vsub.s32 0, %v150
    %v152 = vrot.slane %v148, %v151
    %v161 = vunpack.c.l.b16 %v140
    %v162 = vunpack.c.l.b16 %v141
    %v163 = vunpack.c.l.b16 %v142
    %v164 = vunpack.c.l.b16 %v143
    %v165 = vunpack.c.l.b16 %v144
    %v166 = vunpack.c.l.b16 %v145
    %v167 = vunpack.c.l.b16 %v146
    %v168 = vunpack.c.l.b16 %v147
    %v169 = vpack.c.b16 %v162, %v161
    %v170 = vpack.c.b16 %v164, %v163
    %v171 = vpack.c.b16 %v166, %v165
    %v172 = vpack.c.b16 %v168, %v167
    %vm177 = vcmask 523264
    %v179 = vsel %vm177, %v139, 0
    %181 = vmatprep.subr.bf16.mxu0 0
    %182 = vmatpush1.bf16.msra.mxu0 %v169
    %183 = vmatprep.subr.bf16.mxu0 0
    %184 = vmatpush1.bf16.msra.mxu0 %v170
    %185 = vmatprep.subr.bf16.mxu0 0
    %186 = vmatpush1.bf16.msra.mxu0 %v171
    %187 = vmatprep.subr.bf16.mxu0 0
    %188 = vmatpush1.bf16.msra.mxu0 %v172
    %189 = vmatprep.subr.bf16.mxu0 0
    %190 = vmatpush1.bf16.msra.mxu0 0
    %191 = vmatprep.subr.bf16.mxu0 0
    %192 = vmatpush1.bf16.msra.mxu0 0
    %193 = vmatprep.subr.bf16.mxu0 0
    %194 = vmatpush1.bf16.msra.mxu0 0
    %195 = vmatprep.subr.bf16.mxu0 0
    %196 = vmatpush1.bf16.msra.mxu0 0
    %197 = vmatprep.subr.bf16.mxu0 0
    %198 = vmatpush1.bf16.msra.mxu0 0
    %199 = vmatprep.subr.bf16.mxu0 0
    %200 = vmatpush1.bf16.msra.mxu0 0
    %201 = vmatprep.subr.bf16.mxu0 0
    %202 = vmatpush1.bf16.msra.mxu0 0
    %203 = vmatprep.subr.bf16.mxu0 0
    %204 = vmatpush1.bf16.msra.mxu0 0
    %205 = vmatprep.subr.bf16.mxu0 0
    %206 = vmatpush1.bf16.msra.mxu0 0
    %207 = vmatprep.subr.bf16.mxu0 0
    %208 = vmatpush1.bf16.msra.mxu0 0
    %209 = vmatprep.subr.bf16.mxu0 0
    %210 = vmatpush1.bf16.msra.mxu0 0
    %211 = vmatprep.subr.bf16.mxu0 0
    %212 = vmatpush1.bf16.msra.mxu0 0
    %213 = vmatprep.mubr.bf16.mxu0 0
    %214 = vmatmul.mubr.bf16.gmra.mrb[0].mxu0 %v179
    %v215 = vpop.f32.mrb[0].mxu0
    %v216 = vadd.f32 %v152, %v215
    %v217 = vpop.f32.mrb[0].mxu0
    %v218 = vpop.f32.mrb[0].mxu0
    %v219 = vpop.f32.mrb[0].mxu0
    %220 = vdwg.mxu0
    %v221 = vmax.f32 %v216, 0.0
    %v222 = vpack.c.bf16 %v221, %v221
    %s223 = scalar_lea.vmem %s2, 32
    %v224 = vld [vmem:[%s223] sm:$0xf]
    %v225 = vld [vmem:[%s223 + $0x4] sm:$0xf]
    %v226 = vld [vmem:[%s223 + $0x8] sm:$0xf]
    %v227 = vld [vmem:[%s223 + $0xc] sm:$0xf]
    %v228 = vld [vmem:[%s223 + $0x10] sm:$0xf]
    %v229 = vld [vmem:[%s223 + $0x14] sm:$0xf]
    %v230 = vld [vmem:[%s223 + $0x18] sm:$0xf]
    %v231 = vld [vmem:[%s223 + $0x1c] sm:$0xf]
    %v232 = vld [vmem:[%s3 + $0x2] sm:$0x1]
    %v233 = vlaneseq
    %v234 = vshrl.u32 %v233, 7
    %v235 = vsub.s32 0, %v234
    %v236 = vrot.slane %v232, %v235
    %v245 = vunpack.c.l.b16 %v224
    %v246 = vunpack.c.l.b16 %v225
    %v247 = vunpack.c.l.b16 %v226
    %v248 = vunpack.c.l.b16 %v227
    %v249 = vunpack.c.l.b16 %v228
    %v250 = vunpack.c.l.b16 %v229
    %v251 = vunpack.c.l.b16 %v230
    %v252 = vunpack.c.l.b16 %v231
    %v253 = vpack.c.b16 %v246, %v245
    %v254 = vpack.c.b16 %v248, %v247
    %v255 = vpack.c.b16 %v250, %v249
    %v256 = vpack.c.b16 %v252, %v251
    %v262 = vsel %vm177, %v222, 0
    %264 = vmatprep.subr.bf16.mxu0 0
    %265 = vmatpush1.bf16.msra.mxu0 %v253
    %266 = vmatprep.subr.bf16.mxu0 0
    %267 = vmatpush1.bf16.msra.mxu0 %v254
    %268 = vmatprep.subr.bf16.mxu0 0
    %269 = vmatpush1.bf16.msra.mxu0 %v255
    %270 = vmatprep.subr.bf16.mxu0 0
    %271 = vmatpush1.bf16.msra.mxu0 %v256
    %272 = vmatprep.subr.bf16.mxu0 0
    %273 = vmatpush1.bf16.msra.mxu0 0
    %274 = vmatprep.subr.bf16.mxu0 0
    %275 = vmatpush1.bf16.msra.mxu0 0
    %276 = vmatprep.subr.bf16.mxu0 0
    %277 = vmatpush1.bf16.msra.mxu0 0
    %278 = vmatprep.subr.bf16.mxu0 0
    %279 = vmatpush1.bf16.msra.mxu0 0
    %280 = vmatprep.subr.bf16.mxu0 0
    %281 = vmatpush1.bf16.msra.mxu0 0
    %282 = vmatprep.subr.bf16.mxu0 0
    %283 = vmatpush1.bf16.msra.mxu0 0
    %284 = vmatprep.subr.bf16.mxu0 0
    %285 = vmatpush1.bf16.msra.mxu0 0
    %286 = vmatprep.subr.bf16.mxu0 0
    %287 = vmatpush1.bf16.msra.mxu0 0
    %288 = vmatprep.subr.bf16.mxu0 0
    %289 = vmatpush1.bf16.msra.mxu0 0
    %290 = vmatprep.subr.bf16.mxu0 0
    %291 = vmatpush1.bf16.msra.mxu0 0
    %292 = vmatprep.subr.bf16.mxu0 0
    %293 = vmatpush1.bf16.msra.mxu0 0
    %294 = vmatprep.subr.bf16.mxu0 0
    %295 = vmatpush1.bf16.msra.mxu0 0
    %296 = vmatprep.mubr.bf16.mxu0 0
    %297 = vmatmul.mubr.bf16.gmra.mrb[0].mxu0 %v262
    %v298 = vpop.f32.mrb[0].mxu0
    %v299 = vadd.f32 %v236, %v298
    %v300 = vpop.f32.mrb[0].mxu0
    %v301 = vpop.f32.mrb[0].mxu0
    %v302 = vpop.f32.mrb[0].mxu0
    %303 = vdwg.mxu0
    %v304 = vmax.f32 %v299, 0.0
    %v305 = vpack.c.bf16 %v304, %v304
    %s306 = scalar_lea.vmem %s2, 64
    %v307 = vld [vmem:[%s306] sm:$0xf]
    %v308 = vld [vmem:[%s306 + $0x4] sm:$0xf]
    %v309 = vld [vmem:[%s306 + $0x8] sm:$0xf]
    %v310 = vld [vmem:[%s306 + $0xc] sm:$0xf]
    %v311 = vld [vmem:[%s306 + $0x10] sm:$0xf]
    %v312 = vld [vmem:[%s306 + $0x14] sm:$0xf]
    %v313 = vld [vmem:[%s306 + $0x18] sm:$0xf]
    %v314 = vld [vmem:[%s306 + $0x1c] sm:$0xf]
    %v315 = vld [vmem:[%s3 + $0x3] sm:$0x1]
    %v316 = vlaneseq
    %v317 = vshrl.u32 %v316, 7
    %v318 = vsub.s32 0, %v317
    %v319 = vrot.slane %v315, %v318
    %v328 = vunpack.c.l.b16 %v307
    %v329 = vunpack.c.l.b16 %v308
    %v330 = vunpack.c.l.b16 %v309
    %v331 = vunpack.c.l.b16 %v310
    %v332 = vunpack.c.l.b16 %v311
    %v333 = vunpack.c.l.b16 %v312
    %v334 = vunpack.c.l.b16 %v313
    %v335 = vunpack.c.l.b16 %v314
    %v336 = vpack.c.b16 %v329, %v328
    %v337 = vpack.c.b16 %v331, %v330
    %v338 = vpack.c.b16 %v333, %v332
    %v339 = vpack.c.b16 %v335, %v334
    %v345 = vsel %vm177, %v305, 0
    %347 = vmatprep.subr.bf16.mxu0 0
    %348 = vmatpush1.bf16.msra.mxu0 %v336
    %349 = vmatprep.subr.bf16.mxu0 0
    %350 = vmatpush1.bf16.msra.mxu0 %v337
    %351 = vmatprep.subr.bf16.mxu0 0
    %352 = vmatpush1.bf16.msra.mxu0 %v338
    %353 = vmatprep.subr.bf16.mxu0 0
    %354 = vmatpush1.bf16.msra.mxu0 %v339
    %355 = vmatprep.subr.bf16.mxu0 0
    %356 = vmatpush1.bf16.msra.mxu0 0
    %357 = vmatprep.subr.bf16.mxu0 0
    %358 = vmatpush1.bf16.msra.mxu0 0
    %359 = vmatprep.subr.bf16.mxu0 0
    %360 = vmatpush1.bf16.msra.mxu0 0
    %361 = vmatprep.subr.bf16.mxu0 0
    %362 = vmatpush1.bf16.msra.mxu0 0
    %363 = vmatprep.subr.bf16.mxu0 0
    %364 = vmatpush1.bf16.msra.mxu0 0
    %365 = vmatprep.subr.bf16.mxu0 0
    %366 = vmatpush1.bf16.msra.mxu0 0
    %367 = vmatprep.subr.bf16.mxu0 0
    %368 = vmatpush1.bf16.msra.mxu0 0
    %369 = vmatprep.subr.bf16.mxu0 0
    %370 = vmatpush1.bf16.msra.mxu0 0
    %371 = vmatprep.subr.bf16.mxu0 0
    %372 = vmatpush1.bf16.msra.mxu0 0
    %373 = vmatprep.subr.bf16.mxu0 0
    %374 = vmatpush1.bf16.msra.mxu0 0
    %375 = vmatprep.subr.bf16.mxu0 0
    %376 = vmatpush1.bf16.msra.mxu0 0
    %377 = vmatprep.subr.bf16.mxu0 0
    %378 = vmatpush1.bf16.msra.mxu0 0
    %379 = vmatprep.mubr.bf16.mxu0 0
    %380 = vmatmul.mubr.bf16.gmra.mrb[0].mxu0 %v345
    %v381 = vpop.f32.mrb[0].mxu0
    %v382 = vadd.f32 %v319, %v381
    %v383 = vpop.f32.mrb[0].mxu0
    %v384 = vpop.f32.mrb[0].mxu0
    %v385 = vpop.f32.mrb[0].mxu0
    %386 = vdwg.mxu0
    %v387 = vmax.f32 %v382, 0.0
    %v388 = vpack.c.bf16 %v387, %v387
    %s389 = scalar_lea.vmem %s2, 96
    %v390 = vld [vmem:[%s389] sm:$0xf]
    %v391 = vld [vmem:[%s389 + $0x4] sm:$0xf]
    %v392 = vld [vmem:[%s389 + $0x8] sm:$0xf]
    %v393 = vld [vmem:[%s389 + $0xc] sm:$0xf]
    %v394 = vld [vmem:[%s389 + $0x10] sm:$0xf]
    %v395 = vld [vmem:[%s389 + $0x14] sm:$0xf]
    %v396 = vld [vmem:[%s389 + $0x18] sm:$0xf]
    %v397 = vld [vmem:[%s389 + $0x1c] sm:$0xf]
    %v398 = vld [vmem:[%s3 + $0x4] sm:$0x1]
    %v399 = vlaneseq
    %v400 = vshrl.u32 %v399, 7
    %v401 = vsub.s32 0, %v400
    %v402 = vrot.slane %v398, %v401
    %v411 = vunpack.c.l.b16 %v390
    %v412 = vunpack.c.l.b16 %v391
    %v413 = vunpack.c.l.b16 %v392
    %v414 = vunpack.c.l.b16 %v393
    %v415 = vunpack.c.l.b16 %v394
    %v416 = vunpack.c.l.b16 %v395
    %v417 = vunpack.c.l.b16 %v396
    %v418 = vunpack.c.l.b16 %v397
    %v419 = vpack.c.b16 %v412, %v411
    %v420 = vpack.c.b16 %v414, %v413
    %v421 = vpack.c.b16 %v416, %v415
    %v422 = vpack.c.b16 %v418, %v417
    %v428 = vsel %vm177, %v388, 0
    %430 = vmatprep.subr.bf16.mxu0 0
    %431 = vmatpush1.bf16.msra.mxu0 %v419
    %432 = vmatprep.subr.bf16.mxu0 0
    %433 = vmatpush1.bf16.msra.mxu0 %v420
    %434 = vmatprep.subr.bf16.mxu0 0
    %435 = vmatpush1.bf16.msra.mxu0 %v421
    %436 = vmatprep.subr.bf16.mxu0 0
    %437 = vmatpush1.bf16.msra.mxu0 %v422
    %438 = vmatprep.subr.bf16.mxu0 0
    %439 = vmatpush1.bf16.msra.mxu0 0
    %440 = vmatprep.subr.bf16.mxu0 0
    %441 = vmatpush1.bf16.msra.mxu0 0
    %442 = vmatprep.subr.bf16.mxu0 0
    %443 = vmatpush1.bf16.msra.mxu0 0
    %444 = vmatprep.subr.bf16.mxu0 0
    %445 = vmatpush1.bf16.msra.mxu0 0
    %446 = vmatprep.subr.bf16.mxu0 0
    %447 = vmatpush1.bf16.msra.mxu0 0
    %448 = vmatprep.subr.bf16.mxu0 0
    %449 = vmatpush1.bf16.msra.mxu0 0
    %450 = vmatprep.subr.bf16.mxu0 0
    %451 = vmatpush1.bf16.msra.mxu0 0
    %452 = vmatprep.subr.bf16.mxu0 0
    %453 = vmatpush1.bf16.msra.mxu0 0
    %454 = vmatprep.subr.bf16.mxu0 0
    %455 = vmatpush1.bf16.msra.mxu0 0
    %456 = vmatprep.subr.bf16.mxu0 0
    %457 = vmatpush1.bf16.msra.mxu0 0
    %458 = vmatprep.subr.bf16.mxu0 0
    %459 = vmatpush1.bf16.msra.mxu0 0
    %460 = vmatprep.subr.bf16.mxu0 0
    %461 = vmatpush1.bf16.msra.mxu0 0
    %462 = vmatprep.mubr.bf16.mxu0 0
    %463 = vmatmul.mubr.bf16.gmra.mrb[0].mxu0 %v428
    %v464 = vpop.f32.mrb[0].mxu0
    %v465 = vadd.f32 %v402, %v464
    %v466 = vpop.f32.mrb[0].mxu0
    %v467 = vpop.f32.mrb[0].mxu0
    %v468 = vpop.f32.mrb[0].mxu0
    %469 = vdwg.mxu0
    %v470 = vmax.f32 %v465, 0.0
    %v471 = vpack.c.bf16 %v470, %v470
    %s472 = scalar_lea.vmem %s2, 128
    %v473 = vld [vmem:[%s472] sm:$0xf]
    %v474 = vld [vmem:[%s472 + $0x4] sm:$0xf]
    %v475 = vld [vmem:[%s472 + $0x8] sm:$0xf]
    %v476 = vld [vmem:[%s472 + $0xc] sm:$0xf]
    %v477 = vld [vmem:[%s472 + $0x10] sm:$0xf]
    %v478 = vld [vmem:[%s472 + $0x14] sm:$0xf]
    %v479 = vld [vmem:[%s472 + $0x18] sm:$0xf]
    %v480 = vld [vmem:[%s472 + $0x1c] sm:$0xf]
    %v481 = vld [vmem:[%s3 + $0x5] sm:$0x1]
    %v482 = vlaneseq
    %v483 = vshrl.u32 %v482, 7
    %v484 = vsub.s32 0, %v483
    %v485 = vrot.slane %v481, %v484
    %v494 = vunpack.c.l.b16 %v473
    %v495 = vunpack.c.l.b16 %v474
    %v496 = vunpack.c.l.b16 %v475
    %v497 = vunpack.c.l.b16 %v476
    %v498 = vunpack.c.l.b16 %v477
    %v499 = vunpack.c.l.b16 %v478
    %v500 = vunpack.c.l.b16 %v479
    %v501 = vunpack.c.l.b16 %v480
    %v502 = vpack.c.b16 %v495, %v494
    %v503 = vpack.c.b16 %v497, %v496
    %v504 = vpack.c.b16 %v499, %v498
    %v505 = vpack.c.b16 %v501, %v500
    %v511 = vsel %vm177, %v471, 0
    %513 = vmatprep.subr.bf16.mxu0 0
    %514 = vmatpush1.bf16.msra.mxu0 %v502
    %515 = vmatprep.subr.bf16.mxu0 0
    %516 = vmatpush1.bf16.msra.mxu0 %v503
    %517 = vmatprep.subr.bf16.mxu0 0
    %518 = vmatpush1.bf16.msra.mxu0 %v504
    %519 = vmatprep.subr.bf16.mxu0 0
    %520 = vmatpush1.bf16.msra.mxu0 %v505
    %521 = vmatprep.subr.bf16.mxu0 0
    %522 = vmatpush1.bf16.msra.mxu0 0
    %523 = vmatprep.subr.bf16.mxu0 0
    %524 = vmatpush1.bf16.msra.mxu0 0
    %525 = vmatprep.subr.bf16.mxu0 0
    %526 = vmatpush1.bf16.msra.mxu0 0
    %527 = vmatprep.subr.bf16.mxu0 0
    %528 = vmatpush1.bf16.msra.mxu0 0
    %529 = vmatprep.subr.bf16.mxu0 0
    %530 = vmatpush1.bf16.msra.mxu0 0
    %531 = vmatprep.subr.bf16.mxu0 0
    %532 = vmatpush1.bf16.msra.mxu0 0
    %533 = vmatprep.subr.bf16.mxu0 0
    %534 = vmatpush1.bf16.msra.mxu0 0
    %535 = vmatprep.subr.bf16.mxu0 0
    %536 = vmatpush1.bf16.msra.mxu0 0
    %537 = vmatprep.subr.bf16.mxu0 0
    %538 = vmatpush1.bf16.msra.mxu0 0
    %539 = vmatprep.subr.bf16.mxu0 0
    %540 = vmatpush1.bf16.msra.mxu0 0
    %541 = vmatprep.subr.bf16.mxu0 0
    %542 = vmatpush1.bf16.msra.mxu0 0
    %543 = vmatprep.subr.bf16.mxu0 0
    %544 = vmatpush1.bf16.msra.mxu0 0
    %545 = vmatprep.mubr.bf16.mxu0 0
    %546 = vmatmul.mubr.bf16.gmra.mrb[0].mxu0 %v511
    %v547 = vpop.f32.mrb[0].mxu0
    %v548 = vadd.f32 %v485, %v547
    %v549 = vpop.f32.mrb[0].mxu0
    %v550 = vpop.f32.mrb[0].mxu0
    %v551 = vpop.f32.mrb[0].mxu0
    %552 = vdwg.mxu0
    %v553 = vmax.f32 %v548, 0.0
    %v554 = vpack.c.bf16 %v553, %v553
    %s555 = scalar_lea.vmem %s2, 160
    %v556 = vld [vmem:[%s555] sm:$0xf]
    %v557 = vld [vmem:[%s555 + $0x4] sm:$0xf]
    %v558 = vld [vmem:[%s555 + $0x8] sm:$0xf]
    %v559 = vld [vmem:[%s555 + $0xc] sm:$0xf]
    %v560 = vld [vmem:[%s555 + $0x10] sm:$0xf]
    %v561 = vld [vmem:[%s555 + $0x14] sm:$0xf]
    %v562 = vld [vmem:[%s555 + $0x18] sm:$0xf]
    %v563 = vld [vmem:[%s555 + $0x1c] sm:$0xf]
    %v564 = vld [vmem:[%s3 + $0x6] sm:$0x1]
    %v565 = vlaneseq
    %v566 = vshrl.u32 %v565, 7
    %v567 = vsub.s32 0, %v566
    %v568 = vrot.slane %v564, %v567
    %v577 = vunpack.c.l.b16 %v556
    %v578 = vunpack.c.l.b16 %v557
    %v579 = vunpack.c.l.b16 %v558
    %v580 = vunpack.c.l.b16 %v559
    %v581 = vunpack.c.l.b16 %v560
    %v582 = vunpack.c.l.b16 %v561
    %v583 = vunpack.c.l.b16 %v562
    %v584 = vunpack.c.l.b16 %v563
    %v585 = vpack.c.b16 %v578, %v577
    %v586 = vpack.c.b16 %v580, %v579
    %v587 = vpack.c.b16 %v582, %v581
    %v588 = vpack.c.b16 %v584, %v583
    %v594 = vsel %vm177, %v554, 0
    %596 = vmatprep.subr.bf16.mxu0 0
    %597 = vmatpush1.bf16.msra.mxu0 %v585
    %598 = vmatprep.subr.bf16.mxu0 0
    %599 = vmatpush1.bf16.msra.mxu0 %v586
    %600 = vmatprep.subr.bf16.mxu0 0
    %601 = vmatpush1.bf16.msra.mxu0 %v587
    %602 = vmatprep.subr.bf16.mxu0 0
    %603 = vmatpush1.bf16.msra.mxu0 %v588
    %604 = vmatprep.subr.bf16.mxu0 0
    %605 = vmatpush1.bf16.msra.mxu0 0
    %606 = vmatprep.subr.bf16.mxu0 0
    %607 = vmatpush1.bf16.msra.mxu0 0
    %608 = vmatprep.subr.bf16.mxu0 0
    %609 = vmatpush1.bf16.msra.mxu0 0
    %610 = vmatprep.subr.bf16.mxu0 0
    %611 = vmatpush1.bf16.msra.mxu0 0
    %612 = vmatprep.subr.bf16.mxu0 0
    %613 = vmatpush1.bf16.msra.mxu0 0
    %614 = vmatprep.subr.bf16.mxu0 0
    %615 = vmatpush1.bf16.msra.mxu0 0
    %616 = vmatprep.subr.bf16.mxu0 0
    %617 = vmatpush1.bf16.msra.mxu0 0
    %618 = vmatprep.subr.bf16.mxu0 0
    %619 = vmatpush1.bf16.msra.mxu0 0
    %620 = vmatprep.subr.bf16.mxu0 0
    %621 = vmatpush1.bf16.msra.mxu0 0
    %622 = vmatprep.subr.bf16.mxu0 0
    %623 = vmatpush1.bf16.msra.mxu0 0
    %624 = vmatprep.subr.bf16.mxu0 0
    %625 = vmatpush1.bf16.msra.mxu0 0
    %626 = vmatprep.subr.bf16.mxu0 0
    %627 = vmatpush1.bf16.msra.mxu0 0
    %628 = vmatprep.mubr.bf16.mxu0 0
    %629 = vmatmul.mubr.bf16.gmra.mrb[0].mxu0 %v594
    %v630 = vpop.f32.mrb[0].mxu0
    %v631 = vadd.f32 %v568, %v630
    %v632 = vpop.f32.mrb[0].mxu0
    %v633 = vpop.f32.mrb[0].mxu0
    %v634 = vpop.f32.mrb[0].mxu0
    %635 = vdwg.mxu0
    %v636 = vmax.f32 %v631, 0.0
    %v637 = vpack.c.bf16 %v636, %v636
    %s638 = scalar_lea.vmem %s2, 192
    %v639 = vld [vmem:[%s638] sm:$0xf]
    %v640 = vld [vmem:[%s638 + $0x4] sm:$0xf]
    %v641 = vld [vmem:[%s638 + $0x8] sm:$0xf]
    %v642 = vld [vmem:[%s638 + $0xc] sm:$0xf]
    %v643 = vld [vmem:[%s638 + $0x10] sm:$0xf]
    %v644 = vld [vmem:[%s638 + $0x14] sm:$0xf]
    %v645 = vld [vmem:[%s638 + $0x18] sm:$0xf]
    %v646 = vld [vmem:[%s638 + $0x1c] sm:$0xf]
    %v647 = vld [vmem:[%s3 + $0x7] sm:$0x1]
    %v648 = vlaneseq
    %v649 = vshrl.u32 %v648, 7
    %v650 = vsub.s32 0, %v649
    %v651 = vrot.slane %v647, %v650
    %v660 = vunpack.c.l.b16 %v639
    %v661 = vunpack.c.l.b16 %v640
    %v662 = vunpack.c.l.b16 %v641
    %v663 = vunpack.c.l.b16 %v642
    %v664 = vunpack.c.l.b16 %v643
    %v665 = vunpack.c.l.b16 %v644
    %v666 = vunpack.c.l.b16 %v645
    %v667 = vunpack.c.l.b16 %v646
    %v668 = vpack.c.b16 %v661, %v660
    %v669 = vpack.c.b16 %v663, %v662
    %v670 = vpack.c.b16 %v665, %v664
    %v671 = vpack.c.b16 %v667, %v666
    %v677 = vsel %vm177, %v637, 0
    %679 = vmatprep.subr.bf16.mxu0 0
    %680 = vmatpush1.bf16.msra.mxu0 %v668
    %681 = vmatprep.subr.bf16.mxu0 0
    %682 = vmatpush1.bf16.msra.mxu0 %v669
    %683 = vmatprep.subr.bf16.mxu0 0
    %684 = vmatpush1.bf16.msra.mxu0 %v670
    %685 = vmatprep.subr.bf16.mxu0 0
    %686 = vmatpush1.bf16.msra.mxu0 %v671
    %687 = vmatprep.subr.bf16.mxu0 0
    %688 = vmatpush1.bf16.msra.mxu0 0
    %689 = vmatprep.subr.bf16.mxu0 0
    %690 = vmatpush1.bf16.msra.mxu0 0
    %691 = vmatprep.subr.bf16.mxu0 0
    %692 = vmatpush1.bf16.msra.mxu0 0
    %693 = vmatprep.subr.bf16.mxu0 0
    %694 = vmatpush1.bf16.msra.mxu0 0
    %695 = vmatprep.subr.bf16.mxu0 0
    %696 = vmatpush1.bf16.msra.mxu0 0
    %697 = vmatprep.subr.bf16.mxu0 0
    %698 = vmatpush1.bf16.msra.mxu0 0
    %699 = vmatprep.subr.bf16.mxu0 0
    %700 = vmatpush1.bf16.msra.mxu0 0
    %701 = vmatprep.subr.bf16.mxu0 0
    %702 = vmatpush1.bf16.msra.mxu0 0
    %703 = vmatprep.subr.bf16.mxu0 0
    %704 = vmatpush1.bf16.msra.mxu0 0
    %705 = vmatprep.subr.bf16.mxu0 0
    %706 = vmatpush1.bf16.msra.mxu0 0
    %707 = vmatprep.subr.bf16.mxu0 0
    %708 = vmatpush1.bf16.msra.mxu0 0
    %709 = vmatprep.subr.bf16.mxu0 0
    %710 = vmatpush1.bf16.msra.mxu0 0
    %711 = vmatprep.mubr.bf16.mxu0 0
    %712 = vmatmul.mubr.bf16.gmra.mrb[0].mxu0 %v677
    %v713 = vpop.f32.mrb[0].mxu0
    %v714 = vadd.f32 %v651, %v713
    %v715 = vpop.f32.mrb[0].mxu0
    %v716 = vpop.f32.mrb[0].mxu0
    %v717 = vpop.f32.mrb[0].mxu0
    %718 = vdwg.mxu0
    %v719 = vmax.f32 %v714, 0.0
    %v720 = vpack.c.bf16 %v719, %v719
    %s721 = scalar_lea.vmem %s2, 224
    %v722 = vld [vmem:[%s721] sm:$0xf]
    %v723 = vld [vmem:[%s721 + $0x4] sm:$0xf]
    %v724 = vld [vmem:[%s721 + $0x8] sm:$0xf]
    %v725 = vld [vmem:[%s721 + $0xc] sm:$0xf]
    %v726 = vld [vmem:[%s721 + $0x10] sm:$0xf]
    %v727 = vld [vmem:[%s721 + $0x14] sm:$0xf]
    %v728 = vld [vmem:[%s721 + $0x18] sm:$0xf]
    %v729 = vld [vmem:[%s721 + $0x1c] sm:$0xf]
    %v730 = vld [vmem:[%s3 + $0x8] sm:$0x1]
    %v731 = vlaneseq
    %v732 = vshrl.u32 %v731, 7
    %v733 = vsub.s32 0, %v732
    %v734 = vrot.slane %v730, %v733
    %v743 = vunpack.c.l.b16 %v722
    %v744 = vunpack.c.l.b16 %v723
    %v745 = vunpack.c.l.b16 %v724
    %v746 = vunpack.c.l.b16 %v725
    %v747 = vunpack.c.l.b16 %v726
    %v748 = vunpack.c.l.b16 %v727
    %v749 = vunpack.c.l.b16 %v728
    %v750 = vunpack.c.l.b16 %v729
    %v751 = vpack.c.b16 %v744, %v743
    %v752 = vpack.c.b16 %v746, %v745
    %v753 = vpack.c.b16 %v748, %v747
    %v754 = vpack.c.b16 %v750, %v749
    %v760 = vsel %vm177, %v720, 0
    %762 = vmatprep.subr.bf16.mxu0 0
    %763 = vmatpush1.bf16.msra.mxu0 %v751
    %764 = vmatprep.subr.bf16.mxu0 0
    %765 = vmatpush1.bf16.msra.mxu0 %v752
    %766 = vmatprep.subr.bf16.mxu0 0
    %767 = vmatpush1.bf16.msra.mxu0 %v753
    %768 = vmatprep.subr.bf16.mxu0 0
    %769 = vmatpush1.bf16.msra.mxu0 %v754
    %770 = vmatprep.subr.bf16.mxu0 0
    %771 = vmatpush1.bf16.msra.mxu0 0
    %772 = vmatprep.subr.bf16.mxu0 0
    %773 = vmatpush1.bf16.msra.mxu0 0
    %774 = vmatprep.subr.bf16.mxu0 0
    %775 = vmatpush1.bf16.msra.mxu0 0
    %776 = vmatprep.subr.bf16.mxu0 0
    %777 = vmatpush1.bf16.msra.mxu0 0
    %778 = vmatprep.subr.bf16.mxu0 0
    %779 = vmatpush1.bf16.msra.mxu0 0
    %780 = vmatprep.subr.bf16.mxu0 0
    %781 = vmatpush1.bf16.msra.mxu0 0
    %782 = vmatprep.subr.bf16.mxu0 0
    %783 = vmatpush1.bf16.msra.mxu0 0
    %784 = vmatprep.subr.bf16.mxu0 0
    %785 = vmatpush1.bf16.msra.mxu0 0
    %786 = vmatprep.subr.bf16.mxu0 0
    %787 = vmatpush1.bf16.msra.mxu0 0
    %788 = vmatprep.subr.bf16.mxu0 0
    %789 = vmatpush1.bf16.msra.mxu0 0
    %790 = vmatprep.subr.bf16.mxu0 0
    %791 = vmatpush1.bf16.msra.mxu0 0
    %792 = vmatprep.subr.bf16.mxu0 0
    %793 = vmatpush1.bf16.msra.mxu0 0
    %794 = vmatprep.mubr.bf16.mxu0 0
    %795 = vmatmul.mubr.bf16.gmra.mrb[0].mxu0 %v760
    %v796 = vpop.f32.mrb[0].mxu0
    %v797 = vadd.f32 %v734, %v796
    %v798 = vpop.f32.mrb[0].mxu0
    %v799 = vpop.f32.mrb[0].mxu0
    %v800 = vpop.f32.mrb[0].mxu0
    %801 = vdwg.mxu0
    %v802 = vmax.f32 %v797, 0.0
    %v803 = vpack.c.bf16 %v802, %v802
    %v804 = vld [vmem:[%s4] sm:$0xff]
    %v805 = vld [vmem:[%s4 + $0x8] sm:$0xff]
    %v806 = vld [vmem:[%s4 + $0x10] sm:$0xff]
    %v807 = vld [vmem:[%s4 + $0x18] sm:$0xff]
    %v808 = vld [vmem:[%s4 + $0x20] sm:$0xff]
    %v809 = vld [vmem:[%s4 + $0x28] sm:$0xff]
    %v810 = vld [vmem:[%s4 + $0x30] sm:$0xff]
    %v811 = vld [vmem:[%s4 + $0x38] sm:$0xff]
    %v812 = vld [vmem:[%s4 + $0x40] sm:$0xff]
    %v813 = vld [vmem:[%s4 + $0x48] sm:$0xff]
    %v814 = vld [vmem:[%s4 + $0x50] sm:$0xff]
    %v815 = vld [vmem:[%s4 + $0x58] sm:$0xff]
    %v816 = vld [vmem:[%s4 + $0x60] sm:$0xff]
    %v817 = vld [vmem:[%s4 + $0x68] sm:$0xff]
    %v818 = vld [vmem:[%s4 + $0x70] sm:$0xff]
    %v819 = vld [vmem:[%s4 + $0x78] sm:$0xff]
    %v836 = vunpack.c.l.b16 %v804
    %v837 = vunpack.c.h.b16 %v804
    %v838 = vunpack.c.l.b16 %v805
    %v839 = vunpack.c.h.b16 %v805
    %v840 = vunpack.c.l.b16 %v806
    %v841 = vunpack.c.h.b16 %v806
    %v842 = vunpack.c.l.b16 %v807
    %v843 = vunpack.c.h.b16 %v807
    %v844 = vunpack.c.l.b16 %v808
    %v845 = vunpack.c.h.b16 %v808
    %v846 = vunpack.c.l.b16 %v809
    %v847 = vunpack.c.h.b16 %v809
    %v848 = vunpack.c.l.b16 %v810
    %v849 = vunpack.c.h.b16 %v810
    %v850 = vunpack.c.l.b16 %v811
    %v851 = vunpack.c.h.b16 %v811
    %v852 = vunpack.c.l.b16 %v812
    %v853 = vunpack.c.h.b16 %v812
    %v854 = vunpack.c.l.b16 %v813
    %v855 = vunpack.c.h.b16 %v813
    %v856 = vunpack.c.l.b16 %v814
    %v857 = vunpack.c.h.b16 %v814
    %v858 = vunpack.c.l.b16 %v815
    %v859 = vunpack.c.h.b16 %v815
    %v860 = vunpack.c.l.b16 %v816
    %v861 = vunpack.c.h.b16 %v816
    %v862 = vunpack.c.l.b16 %v817
    %v863 = vunpack.c.h.b16 %v817
    %v864 = vunpack.c.l.b16 %v818
    %v865 = vunpack.c.h.b16 %v818
    %v866 = vunpack.c.l.b16 %v819
    %v867 = vunpack.c.h.b16 %v819
    %v868 = vpack.c.b16 %v840, %v836
    %v869 = vpack.c.b16 %v841, %v837
    %v870 = vpack.c.b16 %v842, %v838
    %v871 = vpack.c.b16 %v843, %v839
    %v872 = vpack.c.b16 %v848, %v844
    %v873 = vpack.c.b16 %v849, %v845
    %v874 = vpack.c.b16 %v850, %v846
    %v875 = vpack.c.b16 %v851, %v847
    %v876 = vpack.c.b16 %v856, %v852
    %v877 = vpack.c.b16 %v857, %v853
    %v878 = vpack.c.b16 %v858, %v854
    %v879 = vpack.c.b16 %v859, %v855
    %v880 = vpack.c.b16 %v864, %v860
    %v881 = vpack.c.b16 %v865, %v861
    %v882 = vpack.c.b16 %v866, %v862
    %v883 = vpack.c.b16 %v867, %v863
    %v901 = vsel %vm177, %v803, 0
    %903 = vmatprep.subr.bf16.mxu0 %v869
    %904 = vmatpush1.bf16.msra.mxu0 %v868
    %905 = vmatprep.subr.bf16.mxu0 %v873
    %906 = vmatpush1.bf16.msra.mxu0 %v872
    %907 = vmatprep.subr.bf16.mxu0 %v877
    %908 = vmatpush1.bf16.msra.mxu0 %v876
    %909 = vmatprep.subr.bf16.mxu0 %v881
    %910 = vmatpush1.bf16.msra.mxu0 %v880
    %911 = vmatprep.subr.bf16.mxu0 0
    %912 = vmatpush1.bf16.msra.mxu0 0
    %913 = vmatprep.subr.bf16.mxu0 0
    %914 = vmatpush1.bf16.msra.mxu0 0
    %915 = vmatprep.subr.bf16.mxu0 0
    %916 = vmatpush1.bf16.msra.mxu0 0
    %917 = vmatprep.subr.bf16.mxu0 0
    %918 = vmatpush1.bf16.msra.mxu0 0
    %919 = vmatprep.subr.bf16.mxu0 0
    %920 = vmatpush1.bf16.msra.mxu0 0
    %921 = vmatprep.subr.bf16.mxu0 0
    %922 = vmatpush1.bf16.msra.mxu0 0
    %923 = vmatprep.subr.bf16.mxu0 0
    %924 = vmatpush1.bf16.msra.mxu0 0
    %925 = vmatprep.subr.bf16.mxu0 0
    %926 = vmatpush1.bf16.msra.mxu0 0
    %927 = vmatprep.subr.bf16.mxu0 0
    %928 = vmatpush1.bf16.msra.mxu0 0
    %929 = vmatprep.subr.bf16.mxu0 0
    %930 = vmatpush1.bf16.msra.mxu0 0
    %931 = vmatprep.subr.bf16.mxu0 0
    %932 = vmatpush1.bf16.msra.mxu0 0
    %933 = vmatprep.subr.bf16.mxu0 0
    %934 = vmatpush1.bf16.msra.mxu0 0
    %935 = vmatprep.mubr.bf16.mxu0 0
    %936 = vmatmul.mubr.bf16.gmra.mrb[0].mxu0 %v901
    %v937 = vpop.f32.mrb[0].mxu0
    %v938 = vadd.f32 0.0, %v937
    %v939 = vpop.f32.mrb[0].mxu0
    %v940 = vadd.f32 0.0, %v939
    %v941 = vpop.f32.mrb[0].mxu0
    %v942 = vpop.f32.mrb[0].mxu0
    %943 = vdwg.mxu0
    %944 = vmatprep.subr.bf16.mxu0 %v871
    %945 = vmatpush1.bf16.msra.mxu0 %v870
    %946 = vmatprep.subr.bf16.mxu0 %v875
    %947 = vmatpush1.bf16.msra.mxu0 %v874
    %948 = vmatprep.subr.bf16.mxu0 %v879
    %949 = vmatpush1.bf16.msra.mxu0 %v878
    %950 = vmatprep.subr.bf16.mxu0 %v883
    %951 = vmatpush1.bf16.msra.mxu0 %v882
    %952 = vmatprep.subr.bf16.mxu0 0
    %953 = vmatpush1.bf16.msra.mxu0 0
    %954 = vmatprep.subr.bf16.mxu0 0
    %955 = vmatpush1.bf16.msra.mxu0 0
    %956 = vmatprep.subr.bf16.mxu0 0
    %957 = vmatpush1.bf16.msra.mxu0 0
    %958 = vmatprep.subr.bf16.mxu0 0
    %959 = vmatpush1.bf16.msra.mxu0 0
    %960 = vmatprep.subr.bf16.mxu0 0
    %961 = vmatpush1.bf16.msra.mxu0 0
    %962 = vmatprep.subr.bf16.mxu0 0
    %963 = vmatpush1.bf16.msra.mxu0 0
    %964 = vmatprep.subr.bf16.mxu0 0
    %965 = vmatpush1.bf16.msra.mxu0 0
    %966 = vmatprep.subr.bf16.mxu0 0
    %967 = vmatpush1.bf16.msra.mxu0 0
    %968 = vmatprep.subr.bf16.mxu0 0
    %969 = vmatpush1.bf16.msra.mxu0 0
    %970 = vmatprep.subr.bf16.mxu0 0
    %971 = vmatpush1.bf16.msra.mxu0 0
    %972 = vmatprep.subr.bf16.mxu0 0
    %973 = vmatpush1.bf16.msra.mxu0 0
    %974 = vmatprep.subr.bf16.mxu0 0
    %975 = vmatpush1.bf16.msra.mxu0 0
    %976 = vmatprep.mubr.bf16.mxu0 0
    %977 = vmatmul.mubr.bf16.gmra.mrb[0].mxu0 %v901
    %v978 = vpop.f32.mrb[0].mxu0
    %v979 = vadd.f32 0.0, %v978
    %v980 = vpop.f32.mrb[0].mxu0
    %v981 = vadd.f32 0.0, %v980
    %v982 = vpop.f32.mrb[0].mxu0
    %v983 = vpop.f32.mrb[0].mxu0
    %984 = vdwg.mxu0
    %vm985 = vcmask 1041408
    %v986 = vsel %vm985, %v938, 0.0
    %v987 = vrot.slane %v986, 4
    %v988 = vadd.f32 %v986, %v987
    %v989 = vrot.slane %v988, 2
    %v990 = vadd.f32 %v988, %v989
    %v991 = vrot.slane %v990, 1
    %v992 = vadd.f32 %v990, %v991
    %v993 = vsel %vm985, %v940, 0.0
    %v994 = vrot.slane %v993, 4
    %v995 = vadd.f32 %v993, %v994
    %v996 = vrot.slane %v995, 2
    %v997 = vadd.f32 %v995, %v996
    %v998 = vrot.slane %v997, 1
    %v999 = vadd.f32 %v997, %v998
    %v1000 = vsel %vm985, %v979, 0.0
    %v1001 = vrot.slane %v1000, 4
    %v1002 = vadd.f32 %v1000, %v1001
    %v1003 = vrot.slane %v1002, 2
    %v1004 = vadd.f32 %v1002, %v1003
    %v1005 = vrot.slane %v1004, 1
    %v1006 = vadd.f32 %v1004, %v1005
    %v1007 = vsel %vm985, %v981, 0.0
    %v1008 = vrot.slane %v1007, 4
    %v1009 = vadd.f32 %v1007, %v1008
    %v1010 = vrot.slane %v1009, 2
    %v1011 = vadd.f32 %v1009, %v1010
    %v1012 = vrot.slane %v1011, 1
    %v1013 = vadd.f32 %v1011, %v1012
    %v1014 = vmul.f32 %v938, %v938
    %v1015 = vmul.f32 %v940, %v940
    %v1016 = vmul.f32 %v979, %v979
    %v1017 = vmul.f32 %v981, %v981
    %v1018 = vsel %vm985, %v1014, 0.0
    %v1019 = vrot.slane %v1018, 4
    %v1020 = vadd.f32 %v1018, %v1019
    %v1021 = vrot.slane %v1020, 2
    %v1022 = vadd.f32 %v1020, %v1021
    %v1023 = vrot.slane %v1022, 1
    %v1024 = vadd.f32 %v1022, %v1023
    %v1025 = vsel %vm985, %v1015, 0.0
    %v1026 = vrot.slane %v1025, 4
    %v1027 = vadd.f32 %v1025, %v1026
    %v1028 = vrot.slane %v1027, 2
    %v1029 = vadd.f32 %v1027, %v1028
    %v1030 = vrot.slane %v1029, 1
    %v1031 = vadd.f32 %v1029, %v1030
    %v1032 = vsel %vm985, %v1016, 0.0
    %v1033 = vrot.slane %v1032, 4
    %v1034 = vadd.f32 %v1032, %v1033
    %v1035 = vrot.slane %v1034, 2
    %v1036 = vadd.f32 %v1034, %v1035
    %v1037 = vrot.slane %v1036, 1
    %v1038 = vadd.f32 %v1036, %v1037
    %v1039 = vsel %vm985, %v1017, 0.0
    %v1040 = vrot.slane %v1039, 4
    %v1041 = vadd.f32 %v1039, %v1040
    %v1042 = vrot.slane %v1041, 2
    %v1043 = vadd.f32 %v1041, %v1042
    %v1044 = vrot.slane %v1043, 1
    %v1045 = vadd.f32 %v1043, %v1044
    %v1046 = vld [vmem:[%s5] sm:$0xff]
    %v1047 = vld [vmem:[%s5 + $0x8] sm:$0xff]
    %v1048 = vld [vmem:[%s5 + $0x10] sm:$0xff]
    %v1049 = vld [vmem:[%s5 + $0x18] sm:$0xff]
    %v1050 = vld [vmem:[%s5 + $0x20] sm:$0xff]
    %v1051 = vld [vmem:[%s5 + $0x28] sm:$0xff]
    %v1052 = vld [vmem:[%s5 + $0x30] sm:$0xff]
    %v1053 = vld [vmem:[%s5 + $0x38] sm:$0xff]
    %v1054 = vld [vmem:[%s5 + $0x40] sm:$0xff]
    %v1055 = vld [vmem:[%s5 + $0x48] sm:$0xff]
    %v1056 = vld [vmem:[%s5 + $0x50] sm:$0xff]
    %v1057 = vld [vmem:[%s5 + $0x58] sm:$0xff]
    %v1058 = vld [vmem:[%s5 + $0x60] sm:$0xff]
    %v1059 = vld [vmem:[%s5 + $0x68] sm:$0xff]
    %v1060 = vld [vmem:[%s5 + $0x70] sm:$0xff]
    %v1061 = vld [vmem:[%s5 + $0x78] sm:$0xff]
    %v1062 = vld [vmem:[%s5 + $0x80] sm:$0xff]
    %v1063 = vld [vmem:[%s5 + $0x88] sm:$0xff]
    %v1064 = vld [vmem:[%s5 + $0x90] sm:$0xff]
    %v1065 = vld [vmem:[%s5 + $0x98] sm:$0xff]
    %v1066 = vld [vmem:[%s5 + $0xa0] sm:$0xff]
    %v1067 = vld [vmem:[%s5 + $0xa8] sm:$0xff]
    %v1068 = vld [vmem:[%s5 + $0xb0] sm:$0xff]
    %v1069 = vld [vmem:[%s5 + $0xb8] sm:$0xff]
    %v1070 = vld [vmem:[%s5 + $0xc0] sm:$0xff]
    %v1071 = vld [vmem:[%s5 + $0xc8] sm:$0xff]
    %v1072 = vld [vmem:[%s5 + $0xd0] sm:$0xff]
    %v1073 = vld [vmem:[%s5 + $0xd8] sm:$0xff]
    %v1074 = vld [vmem:[%s5 + $0xe0] sm:$0xff]
    %v1075 = vld [vmem:[%s5 + $0xe8] sm:$0xff]
    %v1076 = vld [vmem:[%s5 + $0xf0] sm:$0xff]
    %v1077 = vld [vmem:[%s5 + $0xf8] sm:$0xff]
    %v1078 = vld [vmem:[%s5 + $0x100] sm:$0xff]
    %v1079 = vld [vmem:[%s5 + $0x108] sm:$0xff]
    %v1080 = vld [vmem:[%s5 + $0x110] sm:$0xff]
    %v1081 = vld [vmem:[%s5 + $0x118] sm:$0xff]
    %v1082 = vld [vmem:[%s5 + $0x120] sm:$0xff]
    %v1083 = vld [vmem:[%s5 + $0x128] sm:$0xff]
    %v1084 = vld [vmem:[%s5 + $0x130] sm:$0xff]
    %v1085 = vld [vmem:[%s5 + $0x138] sm:$0xff]
    %v1086 = vld [vmem:[%s5 + $0x140] sm:$0xff]
    %v1087 = vld [vmem:[%s5 + $0x148] sm:$0xff]
    %v1088 = vld [vmem:[%s5 + $0x150] sm:$0xff]
    %v1089 = vld [vmem:[%s5 + $0x158] sm:$0xff]
    %v1090 = vld [vmem:[%s5 + $0x160] sm:$0xff]
    %v1091 = vld [vmem:[%s5 + $0x168] sm:$0xff]
    %v1092 = vld [vmem:[%s5 + $0x170] sm:$0xff]
    %v1093 = vld [vmem:[%s5 + $0x178] sm:$0xff]
    %v1094 = vld [vmem:[%s5 + $0x180] sm:$0xff]
    %v1095 = vld [vmem:[%s5 + $0x188] sm:$0xff]
    %v1096 = vld [vmem:[%s5 + $0x190] sm:$0xff]
    %v1097 = vld [vmem:[%s5 + $0x198] sm:$0xff]
    %v1098 = vld [vmem:[%s5 + $0x1a0] sm:$0xff]
    %v1099 = vld [vmem:[%s5 + $0x1a8] sm:$0xff]
    %v1100 = vld [vmem:[%s5 + $0x1b0] sm:$0xff]
    %v1101 = vld [vmem:[%s5 + $0x1b8] sm:$0xff]
    %v1102 = vld [vmem:[%s5 + $0x1c0] sm:$0xff]
    %v1103 = vld [vmem:[%s5 + $0x1c8] sm:$0xff]
    %v1104 = vld [vmem:[%s5 + $0x1d0] sm:$0xff]
    %v1105 = vld [vmem:[%s5 + $0x1d8] sm:$0xff]
    %v1106 = vld [vmem:[%s5 + $0x1e0] sm:$0xff]
    %v1107 = vld [vmem:[%s5 + $0x1e8] sm:$0xff]
    %v1108 = vld [vmem:[%s5 + $0x1f0] sm:$0xff]
    %v1109 = vld [vmem:[%s5 + $0x1f8] sm:$0xff]
    %1110 = vmatprep.subr.mxu0 0.0
    %1111 = vmatpush1.msra.mxu0 %v1046
    %1112 = vmatprep.subr.mxu0 0.0
    %1113 = vmatpush1.msra.mxu0 %v1047
    %1114 = vmatprep.subr.mxu0 0.0
    %1115 = vmatpush1.msra.mxu0 %v1048
    %1116 = vmatprep.subr.mxu0 0.0
    %1117 = vmatpush1.msra.mxu0 %v1049
    %1118 = vmatprep.subr.mxu0 0.0
    %1119 = vmatpush1.msra.mxu0 %v1050
    %1120 = vmatprep.subr.mxu0 0.0
    %1121 = vmatpush1.msra.mxu0 %v1051
    %1122 = vmatprep.subr.mxu0 0.0
    %1123 = vmatpush1.msra.mxu0 %v1052
    %1124 = vmatprep.subr.mxu0 0.0
    %1125 = vmatpush1.msra.mxu0 %v1053
    %1126 = vmatprep.subr.mxu0 0.0
    %1127 = vmatpush1.msra.mxu0 %v1054
    %1128 = vmatprep.subr.mxu0 0.0
    %1129 = vmatpush1.msra.mxu0 %v1055
    %1130 = vmatprep.subr.mxu0 0.0
    %1131 = vmatpush1.msra.mxu0 %v1056
    %1132 = vmatprep.subr.mxu0 0.0
    %1133 = vmatpush1.msra.mxu0 %v1057
    %1134 = vmatprep.subr.mxu0 0.0
    %1135 = vmatpush1.msra.mxu0 %v1058
    %1136 = vmatprep.subr.mxu0 0.0
    %1137 = vmatpush1.msra.mxu0 %v1059
    %1138 = vmatprep.subr.mxu0 0.0
    %1139 = vmatpush1.msra.mxu0 %v1060
    %1140 = vmatprep.subr.mxu0 0.0
    %1141 = vmatpush1.msra.mxu0 %v1061
    %1142 = vmatprep.subr.mxu0 0.0
    %1143 = vmatpush1.msra.mxu0 %v1062
    %1144 = vmatprep.subr.mxu0 0.0
    %1145 = vmatpush1.msra.mxu0 %v1063
    %1146 = vmatprep.subr.mxu0 0.0
    %1147 = vmatpush1.msra.mxu0 %v1064
    %1148 = vmatprep.subr.mxu0 0.0
    %1149 = vmatpush1.msra.mxu0 %v1065
    %1150 = vmatprep.subr.mxu0 0.0
    %1151 = vmatpush1.msra.mxu0 %v1066
    %1152 = vmatprep.subr.mxu0 0.0
    %1153 = vmatpush1.msra.mxu0 %v1067
    %1154 = vmatprep.subr.mxu0 0.0
    %1155 = vmatpush1.msra.mxu0 %v1068
    %1156 = vmatprep.subr.mxu0 0.0
    %1157 = vmatpush1.msra.mxu0 %v1069
    %1158 = vmatprep.subr.mxu0 0.0
    %1159 = vmatpush1.msra.mxu0 %v1070
    %1160 = vmatprep.subr.mxu0 0.0
    %1161 = vmatpush1.msra.mxu0 %v1071
    %1162 = vmatprep.subr.mxu0 0.0
    %1163 = vmatpush1.msra.mxu0 %v1072
    %1164 = vmatprep.subr.mxu0 0.0
    %1165 = vmatpush1.msra.mxu0 %v1073
    %1166 = vmatprep.subr.mxu0 0.0
    %1167 = vmatpush1.msra.mxu0 %v1074
    %1168 = vmatprep.subr.mxu0 0.0
    %1169 = vmatpush1.msra.mxu0 %v1075
    %1170 = vmatprep.subr.mxu0 0.0
    %1171 = vmatpush1.msra.mxu0 %v1076
    %1172 = vmatprep.subr.mxu0 0.0
    %1173 = vmatpush1.msra.mxu0 %v1077
    %1174 = vmatprep.mubr.f32.mxu0 %v999
    %1175 = vmatmul.mubr.f32.gmra.mrb[0].mxu0 %v992
    %v1176 = vpop.f32.mrb[0].mxu0
    %v1177 = vadd.f32 0.0, %v1176
    %v1178 = vpop.f32.mrb[0].mxu0
    %1179 = vdwg.mxu0
    %1180 = vmatprep.subr.mxu0 0.0
    %1181 = vmatpush1.msra.mxu0 %v1078
    %1182 = vmatprep.subr.mxu0 0.0
    %1183 = vmatpush1.msra.mxu0 %v1079
    %1184 = vmatprep.subr.mxu0 0.0
    %1185 = vmatpush1.msra.mxu0 %v1080
    %1186 = vmatprep.subr.mxu0 0.0
    %1187 = vmatpush1.msra.mxu0 %v1081
    %1188 = vmatprep.subr.mxu0 0.0
    %1189 = vmatpush1.msra.mxu0 %v1082
    %1190 = vmatprep.subr.mxu0 0.0
    %1191 = vmatpush1.msra.mxu0 %v1083
    %1192 = vmatprep.subr.mxu0 0.0
    %1193 = vmatpush1.msra.mxu0 %v1084
    %1194 = vmatprep.subr.mxu0 0.0
    %1195 = vmatpush1.msra.mxu0 %v1085
    %1196 = vmatprep.subr.mxu0 0.0
    %1197 = vmatpush1.msra.mxu0 %v1086
    %1198 = vmatprep.subr.mxu0 0.0
    %1199 = vmatpush1.msra.mxu0 %v1087
    %1200 = vmatprep.subr.mxu0 0.0
    %1201 = vmatpush1.msra.mxu0 %v1088
    %1202 = vmatprep.subr.mxu0 0.0
    %1203 = vmatpush1.msra.mxu0 %v1089
    %1204 = vmatprep.subr.mxu0 0.0
    %1205 = vmatpush1.msra.mxu0 %v1090
    %1206 = vmatprep.subr.mxu0 0.0
    %1207 = vmatpush1.msra.mxu0 %v1091
    %1208 = vmatprep.subr.mxu0 0.0
    %1209 = vmatpush1.msra.mxu0 %v1092
    %1210 = vmatprep.subr.mxu0 0.0
    %1211 = vmatpush1.msra.mxu0 %v1093
    %1212 = vmatprep.subr.mxu0 0.0
    %1213 = vmatpush1.msra.mxu0 %v1094
    %1214 = vmatprep.subr.mxu0 0.0
    %1215 = vmatpush1.msra.mxu0 %v1095
    %1216 = vmatprep.subr.mxu0 0.0
    %1217 = vmatpush1.msra.mxu0 %v1096
    %1218 = vmatprep.subr.mxu0 0.0
    %1219 = vmatpush1.msra.mxu0 %v1097
    %1220 = vmatprep.subr.mxu0 0.0
    %1221 = vmatpush1.msra.mxu0 %v1098
    %1222 = vmatprep.subr.mxu0 0.0
    %1223 = vmatpush1.msra.mxu0 %v1099
    %1224 = vmatprep.subr.mxu0 0.0
    %1225 = vmatpush1.msra.mxu0 %v1100
    %1226 = vmatprep.subr.mxu0 0.0
    %1227 = vmatpush1.msra.mxu0 %v1101
    %1228 = vmatprep.subr.mxu0 0.0
    %1229 = vmatpush1.msra.mxu0 %v1102
    %1230 = vmatprep.subr.mxu0 0.0
    %1231 = vmatpush1.msra.mxu0 %v1103
    %1232 = vmatprep.subr.mxu0 0.0
    %1233 = vmatpush1.msra.mxu0 %v1104
    %1234 = vmatprep.subr.mxu0 0.0
    %1235 = vmatpush1.msra.mxu0 %v1105
    %1236 = vmatprep.subr.mxu0 0.0
    %1237 = vmatpush1.msra.mxu0 %v1106
    %1238 = vmatprep.subr.mxu0 0.0
    %1239 = vmatpush1.msra.mxu0 %v1107
    %1240 = vmatprep.subr.mxu0 0.0
    %1241 = vmatpush1.msra.mxu0 %v1108
    %1242 = vmatprep.subr.mxu0 0.0
    %1243 = vmatpush1.msra.mxu0 %v1109
    %1244 = vmatprep.mubr.f32.mxu0 %v1013
    %1245 = vmatmul.mubr.f32.gmra.mrb[0].mxu0 %v1006
    %v1246 = vpop.f32.mrb[0].mxu0
    %v1247 = vadd.f32 %v1177, %v1246
    %v1248 = vpop.f32.mrb[0].mxu0
    %1249 = vdwg.mxu0
    %1250 = vmatprep.subr.mxu0 0.0
    %1251 = vmatpush1.msra.mxu0 %v1046
    %1252 = vmatprep.subr.mxu0 0.0
    %1253 = vmatpush1.msra.mxu0 %v1047
    %1254 = vmatprep.subr.mxu0 0.0
    %1255 = vmatpush1.msra.mxu0 %v1048
    %1256 = vmatprep.subr.mxu0 0.0
    %1257 = vmatpush1.msra.mxu0 %v1049
    %1258 = vmatprep.subr.mxu0 0.0
    %1259 = vmatpush1.msra.mxu0 %v1050
    %1260 = vmatprep.subr.mxu0 0.0
    %1261 = vmatpush1.msra.mxu0 %v1051
    %1262 = vmatprep.subr.mxu0 0.0
    %1263 = vmatpush1.msra.mxu0 %v1052
    %1264 = vmatprep.subr.mxu0 0.0
    %1265 = vmatpush1.msra.mxu0 %v1053
    %1266 = vmatprep.subr.mxu0 0.0
    %1267 = vmatpush1.msra.mxu0 %v1054
    %1268 = vmatprep.subr.mxu0 0.0
    %1269 = vmatpush1.msra.mxu0 %v1055
    %1270 = vmatprep.subr.mxu0 0.0
    %1271 = vmatpush1.msra.mxu0 %v1056
    %1272 = vmatprep.subr.mxu0 0.0
    %1273 = vmatpush1.msra.mxu0 %v1057
    %1274 = vmatprep.subr.mxu0 0.0
    %1275 = vmatpush1.msra.mxu0 %v1058
    %1276 = vmatprep.subr.mxu0 0.0
    %1277 = vmatpush1.msra.mxu0 %v1059
    %1278 = vmatprep.subr.mxu0 0.0
    %1279 = vmatpush1.msra.mxu0 %v1060
    %1280 = vmatprep.subr.mxu0 0.0
    %1281 = vmatpush1.msra.mxu0 %v1061
    %1282 = vmatprep.subr.mxu0 0.0
    %1283 = vmatpush1.msra.mxu0 %v1062
    %1284 = vmatprep.subr.mxu0 0.0
    %1285 = vmatpush1.msra.mxu0 %v1063
    %1286 = vmatprep.subr.mxu0 0.0
    %1287 = vmatpush1.msra.mxu0 %v1064
    %1288 = vmatprep.subr.mxu0 0.0
    %1289 = vmatpush1.msra.mxu0 %v1065
    %1290 = vmatprep.subr.mxu0 0.0
    %1291 = vmatpush1.msra.mxu0 %v1066
    %1292 = vmatprep.subr.mxu0 0.0
    %1293 = vmatpush1.msra.mxu0 %v1067
    %1294 = vmatprep.subr.mxu0 0.0
    %1295 = vmatpush1.msra.mxu0 %v1068
    %1296 = vmatprep.subr.mxu0 0.0
    %1297 = vmatpush1.msra.mxu0 %v1069
    %1298 = vmatprep.subr.mxu0 0.0
    %1299 = vmatpush1.msra.mxu0 %v1070
    %1300 = vmatprep.subr.mxu0 0.0
    %1301 = vmatpush1.msra.mxu0 %v1071
    %1302 = vmatprep.subr.mxu0 0.0
    %1303 = vmatpush1.msra.mxu0 %v1072
    %1304 = vmatprep.subr.mxu0 0.0
    %1305 = vmatpush1.msra.mxu0 %v1073
    %1306 = vmatprep.subr.mxu0 0.0
    %1307 = vmatpush1.msra.mxu0 %v1074
    %1308 = vmatprep.subr.mxu0 0.0
    %1309 = vmatpush1.msra.mxu0 %v1075
    %1310 = vmatprep.subr.mxu0 0.0
    %1311 = vmatpush1.msra.mxu0 %v1076
    %1312 = vmatprep.subr.mxu0 0.0
    %1313 = vmatpush1.msra.mxu0 %v1077
    %1314 = vmatprep.mubr.f32.mxu0 %v1031
    %1315 = vmatmul.mubr.f32.gmra.mrb[0].mxu0 %v1024
    %v1316 = vpop.f32.mrb[0].mxu0
    %v1317 = vadd.f32 0.0, %v1316
    %v1318 = vpop.f32.mrb[0].mxu0
    %1319 = vdwg.mxu0
    %1320 = vmatprep.subr.mxu0 0.0
    %1321 = vmatpush1.msra.mxu0 %v1078
    %1322 = vmatprep.subr.mxu0 0.0
    %1323 = vmatpush1.msra.mxu0 %v1079
    %1324 = vmatprep.subr.mxu0 0.0
    %1325 = vmatpush1.msra.mxu0 %v1080
    %1326 = vmatprep.subr.mxu0 0.0
    %1327 = vmatpush1.msra.mxu0 %v1081
    %1328 = vmatprep.subr.mxu0 0.0
    %1329 = vmatpush1.msra.mxu0 %v1082
    %1330 = vmatprep.subr.mxu0 0.0
    %1331 = vmatpush1.msra.mxu0 %v1083
    %1332 = vmatprep.subr.mxu0 0.0
    %1333 = vmatpush1.msra.mxu0 %v1084
    %1334 = vmatprep.subr.mxu0 0.0
    %1335 = vmatpush1.msra.mxu0 %v1085
    %1336 = vmatprep.subr.mxu0 0.0
    %1337 = vmatpush1.msra.mxu0 %v1086
    %1338 = vmatprep.subr.mxu0 0.0
    %1339 = vmatpush1.msra.mxu0 %v1087
    %1340 = vmatprep.subr.mxu0 0.0
    %1341 = vmatpush1.msra.mxu0 %v1088
    %1342 = vmatprep.subr.mxu0 0.0
    %1343 = vmatpush1.msra.mxu0 %v1089
    %1344 = vmatprep.subr.mxu0 0.0
    %1345 = vmatpush1.msra.mxu0 %v1090
    %1346 = vmatprep.subr.mxu0 0.0
    %1347 = vmatpush1.msra.mxu0 %v1091
    %1348 = vmatprep.subr.mxu0 0.0
    %1349 = vmatpush1.msra.mxu0 %v1092
    %1350 = vmatprep.subr.mxu0 0.0
    %1351 = vmatpush1.msra.mxu0 %v1093
    %1352 = vmatprep.subr.mxu0 0.0
    %1353 = vmatpush1.msra.mxu0 %v1094
    %1354 = vmatprep.subr.mxu0 0.0
    %1355 = vmatpush1.msra.mxu0 %v1095
    %1356 = vmatprep.subr.mxu0 0.0
    %1357 = vmatpush1.msra.mxu0 %v1096
    %1358 = vmatprep.subr.mxu0 0.0
    %1359 = vmatpush1.msra.mxu0 %v1097
    %1360 = vmatprep.subr.mxu0 0.0
    %1361 = vmatpush1.msra.mxu0 %v1098
    %1362 = vmatprep.subr.mxu0 0.0
    %1363 = vmatpush1.msra.mxu0 %v1099
    %1364 = vmatprep.subr.mxu0 0.0
    %1365 = vmatpush1.msra.mxu0 %v1100
    %1366 = vmatprep.subr.mxu0 0.0
    %1367 = vmatpush1.msra.mxu0 %v1101
    %1368 = vmatprep.subr.mxu0 0.0
    %1369 = vmatpush1.msra.mxu0 %v1102
    %1370 = vmatprep.subr.mxu0 0.0
    %1371 = vmatpush1.msra.mxu0 %v1103
    %1372 = vmatprep.subr.mxu0 0.0
    %1373 = vmatpush1.msra.mxu0 %v1104
    %1374 = vmatprep.subr.mxu0 0.0
    %1375 = vmatpush1.msra.mxu0 %v1105
    %1376 = vmatprep.subr.mxu0 0.0
    %1377 = vmatpush1.msra.mxu0 %v1106
    %1378 = vmatprep.subr.mxu0 0.0
    %1379 = vmatpush1.msra.mxu0 %v1107
    %1380 = vmatprep.subr.mxu0 0.0
    %1381 = vmatpush1.msra.mxu0 %v1108
    %1382 = vmatprep.subr.mxu0 0.0
    %1383 = vmatpush1.msra.mxu0 %v1109
    %1384 = vmatprep.mubr.f32.mxu0 %v1045
    %1385 = vmatmul.mubr.f32.gmra.mrb[0].mxu0 %v1038
    %v1386 = vpop.f32.mrb[0].mxu0
    %v1387 = vadd.f32 %v1317, %v1386
    %v1388 = vpop.f32.mrb[0].mxu0
    %1389 = vdwg.mxu0
    %v1390 = vmul.f32 %v1247, 0.03125
    %v1391 = vmul.f32 %v1387, 0.03125
    %v1392 = vmul.f32 %v1390, %v1390
    %v1393 = vsub.f32 %v1391, %v1392
    %v1394 = vmax.f32 %v1393, 0.0
    %v1395 = vld [vmem:[%s7] sm:$0x1]
    %v1396 = vadd.f32 %v1394, 1e-05
    %v1397 = vrsqrt.pop %v1396
    %v1398 = vmul.f32 %v1395, %v1397
    %v1399 = vld [vmem:[%s8] sm:$0x1]
    %v1400 = vmul.f32 %v1390, %v1398
    %v1401 = vsub.f32 %v1399, %v1400
    %v1402 = vld [vmem:[%s6] sm:$0xff]
    %v1403 = vld [vmem:[%s6 + $0x8] sm:$0xff]
    %v1404 = vld [vmem:[%s6 + $0x10] sm:$0xff]
    %v1405 = vld [vmem:[%s6 + $0x18] sm:$0xff]
    %v1406 = vld [vmem:[%s6 + $0x20] sm:$0xff]
    %v1407 = vld [vmem:[%s6 + $0x28] sm:$0xff]
    %v1408 = vld [vmem:[%s6 + $0x30] sm:$0xff]
    %v1409 = vld [vmem:[%s6 + $0x38] sm:$0xff]
    %v1410 = vld [vmem:[%s6 + $0x40] sm:$0xff]
    %v1411 = vld [vmem:[%s6 + $0x48] sm:$0xff]
    %v1412 = vld [vmem:[%s6 + $0x50] sm:$0xff]
    %v1413 = vld [vmem:[%s6 + $0x58] sm:$0xff]
    %v1414 = vld [vmem:[%s6 + $0x60] sm:$0xff]
    %v1415 = vld [vmem:[%s6 + $0x68] sm:$0xff]
    %v1416 = vld [vmem:[%s6 + $0x70] sm:$0xff]
    %v1417 = vld [vmem:[%s6 + $0x78] sm:$0xff]
    %vm1418 = vcmask 261120
    %v1420 = vsel %vm1418, %v1398, 0
    %1422 = vmatprep.subr.mxu0 %v1403
    %1423 = vmatpush1.msra.mxu0 %v1402
    %1424 = vmatprep.subr.mxu0 %v1407
    %1425 = vmatpush1.msra.mxu0 %v1406
    %1426 = vmatprep.subr.mxu0 %v1411
    %1427 = vmatpush1.msra.mxu0 %v1410
    %1428 = vmatprep.subr.mxu0 %v1415
    %1429 = vmatpush1.msra.mxu0 %v1414
    %1430 = vmatprep.subr.mxu0 0.0
    %1431 = vmatpush1.msra.mxu0 0.0
    %1432 = vmatprep.subr.mxu0 0.0
    %1433 = vmatpush1.msra.mxu0 0.0
    %1434 = vmatprep.subr.mxu0 0.0
    %1435 = vmatpush1.msra.mxu0 0.0
    %1436 = vmatprep.subr.mxu0 0.0
    %1437 = vmatpush1.msra.mxu0 0.0
    %1438 = vmatprep.subr.mxu0 0.0
    %1439 = vmatpush1.msra.mxu0 0.0
    %1440 = vmatprep.subr.mxu0 0.0
    %1441 = vmatpush1.msra.mxu0 0.0
    %1442 = vmatprep.subr.mxu0 0.0
    %1443 = vmatpush1.msra.mxu0 0.0
    %1444 = vmatprep.subr.mxu0 0.0
    %1445 = vmatpush1.msra.mxu0 0.0
    %1446 = vmatprep.subr.mxu0 0.0
    %1447 = vmatpush1.msra.mxu0 0.0
    %1448 = vmatprep.subr.mxu0 0.0
    %1449 = vmatpush1.msra.mxu0 0.0
    %1450 = vmatprep.subr.mxu0 0.0
    %1451 = vmatpush1.msra.mxu0 0.0
    %1452 = vmatprep.subr.mxu0 0.0
    %1453 = vmatpush1.msra.mxu0 0.0
    %1454 = vmatprep.subr.mxu0 0.0
    %1455 = vmatpush1.msra.mxu0 0.0
    %1456 = vmatprep.subr.mxu0 0.0
    %1457 = vmatpush1.msra.mxu0 0.0
    %1458 = vmatprep.subr.mxu0 0.0
    %1459 = vmatpush1.msra.mxu0 0.0
    %1460 = vmatprep.subr.mxu0 0.0
    %1461 = vmatpush1.msra.mxu0 0.0
    %1462 = vmatprep.subr.mxu0 0.0
    %1463 = vmatpush1.msra.mxu0 0.0
    %1464 = vmatprep.subr.mxu0 0.0
    %1465 = vmatpush1.msra.mxu0 0.0
    %1466 = vmatprep.subr.mxu0 0.0
    %1467 = vmatpush1.msra.mxu0 0.0
    %1468 = vmatprep.subr.mxu0 0.0
    %1469 = vmatpush1.msra.mxu0 0.0
    %1470 = vmatprep.subr.mxu0 0.0
    %1471 = vmatpush1.msra.mxu0 0.0
    %1472 = vmatprep.subr.mxu0 0.0
    %1473 = vmatpush1.msra.mxu0 0.0
    %1474 = vmatprep.subr.mxu0 0.0
    %1475 = vmatpush1.msra.mxu0 0.0
    %1476 = vmatprep.subr.mxu0 0.0
    %1477 = vmatpush1.msra.mxu0 0.0
    %1478 = vmatprep.subr.mxu0 0.0
    %1479 = vmatpush1.msra.mxu0 0.0
    %1480 = vmatprep.subr.mxu0 0.0
    %1481 = vmatpush1.msra.mxu0 0.0
    %1482 = vmatprep.subr.mxu0 0.0
    %1483 = vmatpush1.msra.mxu0 0.0
    %1484 = vmatprep.subr.mxu0 0.0
    %1485 = vmatpush1.msra.mxu0 0.0
    %1486 = vmatprep.mubr.f32.mxu0 0.0
    %1487 = vmatmul.mubr.f32.gmra.mrb[0].mxu0 %v1420
    %v1488 = vpop.f32.mrb[0].mxu0
    %v1489 = vadd.f32 0.0, %v1488
    %v1490 = vpop.f32.mrb[0].mxu0
    %v1491 = vadd.f32 0.0, %v1490
    %1492 = vdwg.mxu0
    %1493 = vmatprep.subr.mxu0 %v1405
    %1494 = vmatpush1.msra.mxu0 %v1404
    %1495 = vmatprep.subr.mxu0 %v1409
    %1496 = vmatpush1.msra.mxu0 %v1408
    %1497 = vmatprep.subr.mxu0 %v1413
    %1498 = vmatpush1.msra.mxu0 %v1412
    %1499 = vmatprep.subr.mxu0 %v1417
    %1500 = vmatpush1.msra.mxu0 %v1416
    %1501 = vmatprep.subr.mxu0 0.0
    %1502 = vmatpush1.msra.mxu0 0.0
    %1503 = vmatprep.subr.mxu0 0.0
    %1504 = vmatpush1.msra.mxu0 0.0
    %1505 = vmatprep.subr.mxu0 0.0
    %1506 = vmatpush1.msra.mxu0 0.0
    %1507 = vmatprep.subr.mxu0 0.0
    %1508 = vmatpush1.msra.mxu0 0.0
    %1509 = vmatprep.subr.mxu0 0.0
    %1510 = vmatpush1.msra.mxu0 0.0
    %1511 = vmatprep.subr.mxu0 0.0
    %1512 = vmatpush1.msra.mxu0 0.0
    %1513 = vmatprep.subr.mxu0 0.0
    %1514 = vmatpush1.msra.mxu0 0.0
    %1515 = vmatprep.subr.mxu0 0.0
    %1516 = vmatpush1.msra.mxu0 0.0
    %1517 = vmatprep.subr.mxu0 0.0
    %1518 = vmatpush1.msra.mxu0 0.0
    %1519 = vmatprep.subr.mxu0 0.0
    %1520 = vmatpush1.msra.mxu0 0.0
    %1521 = vmatprep.subr.mxu0 0.0
    %1522 = vmatpush1.msra.mxu0 0.0
    %1523 = vmatprep.subr.mxu0 0.0
    %1524 = vmatpush1.msra.mxu0 0.0
    %1525 = vmatprep.subr.mxu0 0.0
    %1526 = vmatpush1.msra.mxu0 0.0
    %1527 = vmatprep.subr.mxu0 0.0
    %1528 = vmatpush1.msra.mxu0 0.0
    %1529 = vmatprep.subr.mxu0 0.0
    %1530 = vmatpush1.msra.mxu0 0.0
    %1531 = vmatprep.subr.mxu0 0.0
    %1532 = vmatpush1.msra.mxu0 0.0
    %1533 = vmatprep.subr.mxu0 0.0
    %1534 = vmatpush1.msra.mxu0 0.0
    %1535 = vmatprep.subr.mxu0 0.0
    %1536 = vmatpush1.msra.mxu0 0.0
    %1537 = vmatprep.subr.mxu0 0.0
    %1538 = vmatpush1.msra.mxu0 0.0
    %1539 = vmatprep.subr.mxu0 0.0
    %1540 = vmatpush1.msra.mxu0 0.0
    %1541 = vmatprep.subr.mxu0 0.0
    %1542 = vmatpush1.msra.mxu0 0.0
    %1543 = vmatprep.subr.mxu0 0.0
    %1544 = vmatpush1.msra.mxu0 0.0
    %1545 = vmatprep.subr.mxu0 0.0
    %1546 = vmatpush1.msra.mxu0 0.0
    %1547 = vmatprep.subr.mxu0 0.0
    %1548 = vmatpush1.msra.mxu0 0.0
    %1549 = vmatprep.subr.mxu0 0.0
    %1550 = vmatpush1.msra.mxu0 0.0
    %1551 = vmatprep.subr.mxu0 0.0
    %1552 = vmatpush1.msra.mxu0 0.0
    %1553 = vmatprep.subr.mxu0 0.0
    %1554 = vmatpush1.msra.mxu0 0.0
    %1555 = vmatprep.subr.mxu0 0.0
    %1556 = vmatpush1.msra.mxu0 0.0
    %1557 = vmatprep.mubr.f32.mxu0 0.0
    %1558 = vmatmul.mubr.f32.gmra.mrb[0].mxu0 %v1420
    %v1559 = vpop.f32.mrb[0].mxu0
    %v1560 = vadd.f32 0.0, %v1559
    %v1561 = vpop.f32.mrb[0].mxu0
    %v1562 = vadd.f32 0.0, %v1561
    %1563 = vdwg.mxu0
    %v1565 = vsel %vm1418, %v1401, 0
    %1567 = vmatprep.subr.mxu0 %v1403
    %1568 = vmatpush1.msra.mxu0 %v1402
    %1569 = vmatprep.subr.mxu0 %v1407
    %1570 = vmatpush1.msra.mxu0 %v1406
    %1571 = vmatprep.subr.mxu0 %v1411
    %1572 = vmatpush1.msra.mxu0 %v1410
    %1573 = vmatprep.subr.mxu0 %v1415
    %1574 = vmatpush1.msra.mxu0 %v1414
    %1575 = vmatprep.subr.mxu0 0.0
    %1576 = vmatpush1.msra.mxu0 0.0
    %1577 = vmatprep.subr.mxu0 0.0
    %1578 = vmatpush1.msra.mxu0 0.0
    %1579 = vmatprep.subr.mxu0 0.0
    %1580 = vmatpush1.msra.mxu0 0.0
    %1581 = vmatprep.subr.mxu0 0.0
    %1582 = vmatpush1.msra.mxu0 0.0
    %1583 = vmatprep.subr.mxu0 0.0
    %1584 = vmatpush1.msra.mxu0 0.0
    %1585 = vmatprep.subr.mxu0 0.0
    %1586 = vmatpush1.msra.mxu0 0.0
    %1587 = vmatprep.subr.mxu0 0.0
    %1588 = vmatpush1.msra.mxu0 0.0
    %1589 = vmatprep.subr.mxu0 0.0
    %1590 = vmatpush1.msra.mxu0 0.0
    %1591 = vmatprep.subr.mxu0 0.0
    %1592 = vmatpush1.msra.mxu0 0.0
    %1593 = vmatprep.subr.mxu0 0.0
    %1594 = vmatpush1.msra.mxu0 0.0
    %1595 = vmatprep.subr.mxu0 0.0
    %1596 = vmatpush1.msra.mxu0 0.0
    %1597 = vmatprep.subr.mxu0 0.0
    %1598 = vmatpush1.msra.mxu0 0.0
    %1599 = vmatprep.subr.mxu0 0.0
    %1600 = vmatpush1.msra.mxu0 0.0
    %1601 = vmatprep.subr.mxu0 0.0
    %1602 = vmatpush1.msra.mxu0 0.0
    %1603 = vmatprep.subr.mxu0 0.0
    %1604 = vmatpush1.msra.mxu0 0.0
    %1605 = vmatprep.subr.mxu0 0.0
    %1606 = vmatpush1.msra.mxu0 0.0
    %1607 = vmatprep.subr.mxu0 0.0
    %1608 = vmatpush1.msra.mxu0 0.0
    %1609 = vmatprep.subr.mxu0 0.0
    %1610 = vmatpush1.msra.mxu0 0.0
    %1611 = vmatprep.subr.mxu0 0.0
    %1612 = vmatpush1.msra.mxu0 0.0
    %1613 = vmatprep.subr.mxu0 0.0
    %1614 = vmatpush1.msra.mxu0 0.0
    %1615 = vmatprep.subr.mxu0 0.0
    %1616 = vmatpush1.msra.mxu0 0.0
    %1617 = vmatprep.subr.mxu0 0.0
    %1618 = vmatpush1.msra.mxu0 0.0
    %1619 = vmatprep.subr.mxu0 0.0
    %1620 = vmatpush1.msra.mxu0 0.0
    %1621 = vmatprep.subr.mxu0 0.0
    %1622 = vmatpush1.msra.mxu0 0.0
    %1623 = vmatprep.subr.mxu0 0.0
    %1624 = vmatpush1.msra.mxu0 0.0
    %1625 = vmatprep.subr.mxu0 0.0
    %1626 = vmatpush1.msra.mxu0 0.0
    %1627 = vmatprep.subr.mxu0 0.0
    %1628 = vmatpush1.msra.mxu0 0.0
    %1629 = vmatprep.subr.mxu0 0.0
    %1630 = vmatpush1.msra.mxu0 0.0
    %1631 = vmatprep.mubr.f32.mxu0 0.0
    %1632 = vmatmul.mubr.f32.gmra.mrb[0].mxu0 %v1565
    %v1633 = vpop.f32.mrb[0].mxu0
    %v1634 = vadd.f32 0.0, %v1633
    %v1635 = vpop.f32.mrb[0].mxu0
    %v1636 = vadd.f32 0.0, %v1635
    %1637 = vdwg.mxu0
    %1638 = vmatprep.subr.mxu0 %v1405
    %1639 = vmatpush1.msra.mxu0 %v1404
    %1640 = vmatprep.subr.mxu0 %v1409
    %1641 = vmatpush1.msra.mxu0 %v1408
    %1642 = vmatprep.subr.mxu0 %v1413
    %1643 = vmatpush1.msra.mxu0 %v1412
    %1644 = vmatprep.subr.mxu0 %v1417
    %1645 = vmatpush1.msra.mxu0 %v1416
    %1646 = vmatprep.subr.mxu0 0.0
    %1647 = vmatpush1.msra.mxu0 0.0
    %1648 = vmatprep.subr.mxu0 0.0
    %1649 = vmatpush1.msra.mxu0 0.0
    %1650 = vmatprep.subr.mxu0 0.0
    %1651 = vmatpush1.msra.mxu0 0.0
    %1652 = vmatprep.subr.mxu0 0.0
    %1653 = vmatpush1.msra.mxu0 0.0
    %1654 = vmatprep.subr.mxu0 0.0
    %1655 = vmatpush1.msra.mxu0 0.0
    %1656 = vmatprep.subr.mxu0 0.0
    %1657 = vmatpush1.msra.mxu0 0.0
    %1658 = vmatprep.subr.mxu0 0.0
    %1659 = vmatpush1.msra.mxu0 0.0
    %1660 = vmatprep.subr.mxu0 0.0
    %1661 = vmatpush1.msra.mxu0 0.0
    %1662 = vmatprep.subr.mxu0 0.0
    %1663 = vmatpush1.msra.mxu0 0.0
    %1664 = vmatprep.subr.mxu0 0.0
    %1665 = vmatpush1.msra.mxu0 0.0
    %1666 = vmatprep.subr.mxu0 0.0
    %1667 = vmatpush1.msra.mxu0 0.0
    %1668 = vmatprep.subr.mxu0 0.0
    %1669 = vmatpush1.msra.mxu0 0.0
    %1670 = vmatprep.subr.mxu0 0.0
    %1671 = vmatpush1.msra.mxu0 0.0
    %1672 = vmatprep.subr.mxu0 0.0
    %1673 = vmatpush1.msra.mxu0 0.0
    %1674 = vmatprep.subr.mxu0 0.0
    %1675 = vmatpush1.msra.mxu0 0.0
    %1676 = vmatprep.subr.mxu0 0.0
    %1677 = vmatpush1.msra.mxu0 0.0
    %1678 = vmatprep.subr.mxu0 0.0
    %1679 = vmatpush1.msra.mxu0 0.0
    %1680 = vmatprep.subr.mxu0 0.0
    %1681 = vmatpush1.msra.mxu0 0.0
    %1682 = vmatprep.subr.mxu0 0.0
    %1683 = vmatpush1.msra.mxu0 0.0
    %1684 = vmatprep.subr.mxu0 0.0
    %1685 = vmatpush1.msra.mxu0 0.0
    %1686 = vmatprep.subr.mxu0 0.0
    %1687 = vmatpush1.msra.mxu0 0.0
    %1688 = vmatprep.subr.mxu0 0.0
    %1689 = vmatpush1.msra.mxu0 0.0
    %1690 = vmatprep.subr.mxu0 0.0
    %1691 = vmatpush1.msra.mxu0 0.0
    %1692 = vmatprep.subr.mxu0 0.0
    %1693 = vmatpush1.msra.mxu0 0.0
    %1694 = vmatprep.subr.mxu0 0.0
    %1695 = vmatpush1.msra.mxu0 0.0
    %1696 = vmatprep.subr.mxu0 0.0
    %1697 = vmatpush1.msra.mxu0 0.0
    %1698 = vmatprep.subr.mxu0 0.0
    %1699 = vmatpush1.msra.mxu0 0.0
    %1700 = vmatprep.subr.mxu0 0.0
    %1701 = vmatpush1.msra.mxu0 0.0
    %1702 = vmatprep.mubr.f32.mxu0 0.0
    %1703 = vmatmul.mubr.f32.gmra.mrb[0].mxu0 %v1565
    %v1704 = vpop.f32.mrb[0].mxu0
    %v1705 = vadd.f32 0.0, %v1704
    %v1706 = vpop.f32.mrb[0].mxu0
    %v1707 = vadd.f32 0.0, %v1706
    %1708 = vdwg.mxu0
    %v1709 = vlaneseq
    %v1710 = vshrl.u32 %v1709, 7
    %v1711 = vsub.s32 0, %v1710
    %v1712 = vrot.slane %v1489, %v1711
    %v1713 = vlaneseq
    %v1714 = vshrl.u32 %v1713, 7
    %v1715 = vsub.s32 0, %v1714
    %v1716 = vrot.slane %v1491, %v1715
    %v1717 = vlaneseq
    %v1718 = vshrl.u32 %v1717, 7
    %v1719 = vsub.s32 0, %v1718
    %v1720 = vrot.slane %v1560, %v1719
    %v1721 = vlaneseq
    %v1722 = vshrl.u32 %v1721, 7
    %v1723 = vsub.s32 0, %v1722
    %v1724 = vrot.slane %v1562, %v1723
    %v1725 = vmul.f32 %v938, %v1712
    %v1726 = vmul.f32 %v940, %v1716
    %v1727 = vmul.f32 %v979, %v1720
    %v1728 = vmul.f32 %v981, %v1724
    %v1729 = vlaneseq
    %v1730 = vshrl.u32 %v1729, 7
    %v1731 = vsub.s32 0, %v1730
    %v1732 = vrot.slane %v1634, %v1731
    %v1733 = vlaneseq
    %v1734 = vshrl.u32 %v1733, 7
    %v1735 = vsub.s32 0, %v1734
    %v1736 = vrot.slane %v1636, %v1735
    %v1737 = vlaneseq
    %v1738 = vshrl.u32 %v1737, 7
    %v1739 = vsub.s32 0, %v1738
    %v1740 = vrot.slane %v1705, %v1739
    %v1741 = vlaneseq
    %v1742 = vshrl.u32 %v1741, 7
    %v1743 = vsub.s32 0, %v1742
    %v1744 = vrot.slane %v1707, %v1743
    %v1745 = vadd.f32 %v1725, %v1732
    %v1746 = vadd.f32 %v1726, %v1736
    %v1747 = vadd.f32 %v1727, %v1740
    %v1748 = vadd.f32 %v1728, %v1744
    %v1749 = vmax.f32 %v1745, 0.0
    %v1750 = vmax.f32 %v1746, 0.0
    %v1751 = vmax.f32 %v1747, 0.0
    %v1752 = vmax.f32 %v1748, 0.0
    %v1754 = vrot.slane %v1749, 7
    %v1757 = vrot.slane %v1750, 6
    %v1760 = vrot.slane %v1751, 5
    %v1763 = vrot.slane %v1752, 4
    %vm1765 = vcmask 1040384
    %v1766 = vsel %vm1765, 0.0, %v1754
    %v1767 = vsel %vm985, %v1766, %v1757
    %vm1768 = vcmask 1042432
    %v1769 = vsel %vm1768, %v1767, %v1760
    %vm1770 = vcmask 1043456
    %v1771 = vsel %vm1770, %v1769, %v1763
    %vm1772 = vcmask 1044480
    %v1773 = vsel %vm1772, %v1771, 0.0
    %v1774 = vrot.slane %v1750, 7
    %v1776 = vrot.slane %v1751, 6
    %v1778 = vrot.slane %v1752, 5
    %v1780 = vsel %vm1765, 0.0, %v1749
    %v1781 = vsel %vm985, %v1780, %v1774
    %v1782 = vsel %vm1768, %v1781, %v1776
    %v1783 = vsel %vm1770, %v1782, %v1778
    %v1784 = vsel %vm1772, %v1783, 0.0
    %v1785 = vpack.c.bf16 %v1773, %v1773
    %v1786 = vld [vmem:[%s9] sm:$0xff]
    %v1787 = vld [vmem:[%s9 + $0x8] sm:$0xff]
    %v1788 = vld [vmem:[%s9 + $0x10] sm:$0xff]
    %v1789 = vld [vmem:[%s9 + $0x18] sm:$0xff]
    %v1790 = vld [vmem:[%s9 + $0x20] sm:$0xff]
    %v1791 = vld [vmem:[%s9 + $0x28] sm:$0xff]
    %v1792 = vld [vmem:[%s9 + $0x30] sm:$0xff]
    %v1793 = vld [vmem:[%s9 + $0x38] sm:$0xff]
    %v1794 = vld [vmem:[%s9 + $0x40] sm:$0xff]
    %v1795 = vld [vmem:[%s9 + $0x48] sm:$0xff]
    %v1796 = vld [vmem:[%s9 + $0x50] sm:$0xff]
    %v1797 = vld [vmem:[%s9 + $0x58] sm:$0xff]
    %v1798 = vld [vmem:[%s9 + $0x60] sm:$0xff]
    %v1799 = vld [vmem:[%s9 + $0x68] sm:$0xff]
    %v1800 = vld [vmem:[%s9 + $0x70] sm:$0xff]
    %v1801 = vld [vmem:[%s9 + $0x78] sm:$0xff]
    %v1818 = vunpack.c.l.b16 %v1786
    %v1819 = vunpack.c.h.b16 %v1786
    %v1820 = vunpack.c.l.b16 %v1787
    %v1821 = vunpack.c.h.b16 %v1787
    %v1822 = vunpack.c.l.b16 %v1788
    %v1823 = vunpack.c.h.b16 %v1788
    %v1824 = vunpack.c.l.b16 %v1789
    %v1825 = vunpack.c.h.b16 %v1789
    %v1826 = vunpack.c.l.b16 %v1790
    %v1827 = vunpack.c.h.b16 %v1790
    %v1828 = vunpack.c.l.b16 %v1791
    %v1829 = vunpack.c.h.b16 %v1791
    %v1830 = vunpack.c.l.b16 %v1792
    %v1831 = vunpack.c.h.b16 %v1792
    %v1832 = vunpack.c.l.b16 %v1793
    %v1833 = vunpack.c.h.b16 %v1793
    %v1834 = vunpack.c.l.b16 %v1794
    %v1835 = vunpack.c.h.b16 %v1794
    %v1836 = vunpack.c.l.b16 %v1795
    %v1837 = vunpack.c.h.b16 %v1795
    %v1838 = vunpack.c.l.b16 %v1796
    %v1839 = vunpack.c.h.b16 %v1796
    %v1840 = vunpack.c.l.b16 %v1797
    %v1841 = vunpack.c.h.b16 %v1797
    %v1842 = vunpack.c.l.b16 %v1798
    %v1843 = vunpack.c.h.b16 %v1798
    %v1844 = vunpack.c.l.b16 %v1799
    %v1845 = vunpack.c.h.b16 %v1799
    %v1846 = vunpack.c.l.b16 %v1800
    %v1847 = vunpack.c.h.b16 %v1800
    %v1848 = vunpack.c.l.b16 %v1801
    %v1849 = vunpack.c.h.b16 %v1801
    %v1850 = vpack.c.b16 %v1820, %v1818
    %v1851 = vpack.c.b16 %v1821, %v1819
    %v1852 = vpack.c.b16 %v1824, %v1822
    %v1853 = vpack.c.b16 %v1825, %v1823
    %v1854 = vpack.c.b16 %v1828, %v1826
    %v1855 = vpack.c.b16 %v1829, %v1827
    %v1856 = vpack.c.b16 %v1832, %v1830
    %v1857 = vpack.c.b16 %v1833, %v1831
    %v1858 = vpack.c.b16 %v1836, %v1834
    %v1859 = vpack.c.b16 %v1837, %v1835
    %v1860 = vpack.c.b16 %v1840, %v1838
    %v1861 = vpack.c.b16 %v1841, %v1839
    %v1862 = vpack.c.b16 %v1844, %v1842
    %v1863 = vpack.c.b16 %v1845, %v1843
    %v1864 = vpack.c.b16 %v1848, %v1846
    %v1865 = vpack.c.b16 %v1849, %v1847
    %1882 = vmatprep.subr.bf16.mxu0 %v1851
    %1883 = vmatpush1.bf16.msra.mxu0 %v1850
    %1884 = vmatprep.subr.bf16.mxu0 %v1853
    %1885 = vmatpush1.bf16.msra.mxu0 %v1852
    %1886 = vmatprep.subr.bf16.mxu0 %v1855
    %1887 = vmatpush1.bf16.msra.mxu0 %v1854
    %1888 = vmatprep.subr.bf16.mxu0 %v1857
    %1889 = vmatpush1.bf16.msra.mxu0 %v1856
    %1890 = vmatprep.subr.bf16.mxu0 %v1859
    %1891 = vmatpush1.bf16.msra.mxu0 %v1858
    %1892 = vmatprep.subr.bf16.mxu0 %v1861
    %1893 = vmatpush1.bf16.msra.mxu0 %v1860
    %1894 = vmatprep.subr.bf16.mxu0 %v1863
    %1895 = vmatpush1.bf16.msra.mxu0 %v1862
    %1896 = vmatprep.subr.bf16.mxu0 %v1865
    %1897 = vmatpush1.bf16.msra.mxu0 %v1864
    %1898 = vmatprep.subr.bf16.mxu0 0
    %1899 = vmatpush1.bf16.msra.mxu0 0
    %1900 = vmatprep.subr.bf16.mxu0 0
    %1901 = vmatpush1.bf16.msra.mxu0 0
    %1902 = vmatprep.subr.bf16.mxu0 0
    %1903 = vmatpush1.bf16.msra.mxu0 0
    %1904 = vmatprep.subr.bf16.mxu0 0
    %1905 = vmatpush1.bf16.msra.mxu0 0
    %1906 = vmatprep.subr.bf16.mxu0 0
    %1907 = vmatpush1.bf16.msra.mxu0 0
    %1908 = vmatprep.subr.bf16.mxu0 0
    %1909 = vmatpush1.bf16.msra.mxu0 0
    %1910 = vmatprep.subr.bf16.mxu0 0
    %1911 = vmatpush1.bf16.msra.mxu0 0
    %1912 = vmatprep.subr.bf16.mxu0 0
    %1913 = vmatpush1.bf16.msra.mxu0 0
    %1914 = vmatprep.mubr.bf16.mxu0 0
    %1915 = vmatmul.mubr.bf16.gmra.mrb[0].mxu0 %v1785
    %v1916 = vpop.f32.mrb[0].mxu0
    %v1917 = vadd.f32 0.0, %v1916
    %v1918 = vpop.f32.mrb[0].mxu0
    %v1919 = vadd.f32 0.0, %v1918
    %v1920 = vpop.f32.mrb[0].mxu0
    %v1921 = vpop.f32.mrb[0].mxu0
    %1922 = vdwg.mxu0
    %s1923 = scalar_lea.vmem %s9, 128
    %v1924 = vld [vmem:[%s1923] sm:$0xff]
    %v1925 = vld [vmem:[%s1923 + $0x8] sm:$0xff]
    %v1926 = vld [vmem:[%s1923 + $0x10] sm:$0xff]
    %v1927 = vld [vmem:[%s1923 + $0x18] sm:$0xff]
    %v1928 = vld [vmem:[%s1923 + $0x20] sm:$0xff]
    %v1929 = vld [vmem:[%s1923 + $0x28] sm:$0xff]
    %v1930 = vld [vmem:[%s1923 + $0x30] sm:$0xff]
    %v1931 = vld [vmem:[%s1923 + $0x38] sm:$0xff]
    %v1932 = vld [vmem:[%s1923 + $0x40] sm:$0xff]
    %v1933 = vld [vmem:[%s1923 + $0x48] sm:$0xff]
    %v1934 = vld [vmem:[%s1923 + $0x50] sm:$0xff]
    %v1935 = vld [vmem:[%s1923 + $0x58] sm:$0xff]
    %v1936 = vld [vmem:[%s1923 + $0x60] sm:$0xff]
    %v1937 = vld [vmem:[%s1923 + $0x68] sm:$0xff]
    %v1938 = vld [vmem:[%s1923 + $0x70] sm:$0xff]
    %v1939 = vld [vmem:[%s1923 + $0x78] sm:$0xff]
    %v1956 = vunpack.c.l.b16 %v1924
    %v1957 = vunpack.c.h.b16 %v1924
    %v1958 = vunpack.c.l.b16 %v1925
    %v1959 = vunpack.c.h.b16 %v1925
    %v1960 = vunpack.c.l.b16 %v1926
    %v1961 = vunpack.c.h.b16 %v1926
    %v1962 = vunpack.c.l.b16 %v1927
    %v1963 = vunpack.c.h.b16 %v1927
    %v1964 = vunpack.c.l.b16 %v1928
    %v1965 = vunpack.c.h.b16 %v1928
    %v1966 = vunpack.c.l.b16 %v1929
    %v1967 = vunpack.c.h.b16 %v1929
    %v1968 = vunpack.c.l.b16 %v1930
    %v1969 = vunpack.c.h.b16 %v1930
    %v1970 = vunpack.c.l.b16 %v1931
    %v1971 = vunpack.c.h.b16 %v1931
    %v1972 = vunpack.c.l.b16 %v1932
    %v1973 = vunpack.c.h.b16 %v1932
    %v1974 = vunpack.c.l.b16 %v1933
    %v1975 = vunpack.c.h.b16 %v1933
    %v1976 = vunpack.c.l.b16 %v1934
    %v1977 = vunpack.c.h.b16 %v1934
    %v1978 = vunpack.c.l.b16 %v1935
    %v1979 = vunpack.c.h.b16 %v1935
    %v1980 = vunpack.c.l.b16 %v1936
    %v1981 = vunpack.c.h.b16 %v1936
    %v1982 = vunpack.c.l.b16 %v1937
    %v1983 = vunpack.c.h.b16 %v1937
    %v1984 = vunpack.c.l.b16 %v1938
    %v1985 = vunpack.c.h.b16 %v1938
    %v1986 = vunpack.c.l.b16 %v1939
    %v1987 = vunpack.c.h.b16 %v1939
    %v1988 = vpack.c.b16 %v1958, %v1956
    %v1989 = vpack.c.b16 %v1959, %v1957
    %v1990 = vpack.c.b16 %v1962, %v1960
    %v1991 = vpack.c.b16 %v1963, %v1961
    %v1992 = vpack.c.b16 %v1966, %v1964
    %v1993 = vpack.c.b16 %v1967, %v1965
    %v1994 = vpack.c.b16 %v1970, %v1968
    %v1995 = vpack.c.b16 %v1971, %v1969
    %v1996 = vpack.c.b16 %v1974, %v1972
    %v1997 = vpack.c.b16 %v1975, %v1973
    %v1998 = vpack.c.b16 %v1978, %v1976
    %v1999 = vpack.c.b16 %v1979, %v1977
    %v2000 = vpack.c.b16 %v1982, %v1980
    %v2001 = vpack.c.b16 %v1983, %v1981
    %v2002 = vpack.c.b16 %v1986, %v1984
    %v2003 = vpack.c.b16 %v1987, %v1985
    %2020 = vmatprep.subr.bf16.mxu0 %v1989
    %2021 = vmatpush1.bf16.msra.mxu0 %v1988
    %2022 = vmatprep.subr.bf16.mxu0 %v1991
    %2023 = vmatpush1.bf16.msra.mxu0 %v1990
    %2024 = vmatprep.subr.bf16.mxu0 %v1993
    %2025 = vmatpush1.bf16.msra.mxu0 %v1992
    %2026 = vmatprep.subr.bf16.mxu0 %v1995
    %2027 = vmatpush1.bf16.msra.mxu0 %v1994
    %2028 = vmatprep.subr.bf16.mxu0 %v1997
    %2029 = vmatpush1.bf16.msra.mxu0 %v1996
    %2030 = vmatprep.subr.bf16.mxu0 %v1999
    %2031 = vmatpush1.bf16.msra.mxu0 %v1998
    %2032 = vmatprep.subr.bf16.mxu0 %v2001
    %2033 = vmatpush1.bf16.msra.mxu0 %v2000
    %2034 = vmatprep.subr.bf16.mxu0 %v2003
    %2035 = vmatpush1.bf16.msra.mxu0 %v2002
    %2036 = vmatprep.subr.bf16.mxu0 0
    %2037 = vmatpush1.bf16.msra.mxu0 0
    %2038 = vmatprep.subr.bf16.mxu0 0
    %2039 = vmatpush1.bf16.msra.mxu0 0
    %2040 = vmatprep.subr.bf16.mxu0 0
    %2041 = vmatpush1.bf16.msra.mxu0 0
    %2042 = vmatprep.subr.bf16.mxu0 0
    %2043 = vmatpush1.bf16.msra.mxu0 0
    %2044 = vmatprep.subr.bf16.mxu0 0
    %2045 = vmatpush1.bf16.msra.mxu0 0
    %2046 = vmatprep.subr.bf16.mxu0 0
    %2047 = vmatpush1.bf16.msra.mxu0 0
    %2048 = vmatprep.subr.bf16.mxu0 0
    %2049 = vmatpush1.bf16.msra.mxu0 0
    %2050 = vmatprep.subr.bf16.mxu0 0
    %2051 = vmatpush1.bf16.msra.mxu0 0
    %2052 = vmatprep.mubr.bf16.mxu0 0
    %2053 = vmatmul.mubr.bf16.gmra.mrb[0].mxu0 %v1785
    %v2054 = vpop.f32.mrb[0].mxu0
    %v2055 = vadd.f32 0.0, %v2054
    %v2056 = vpop.f32.mrb[0].mxu0
    %v2057 = vadd.f32 0.0, %v2056
    %v2058 = vpop.f32.mrb[0].mxu0
    %v2059 = vpop.f32.mrb[0].mxu0
    %2060 = vdwg.mxu0
    %s2061 = scalar_lea.vmem %s9, 256
    %v2062 = vld [vmem:[%s2061] sm:$0xff]
    %v2063 = vld [vmem:[%s2061 + $0x8] sm:$0xff]
    %v2064 = vld [vmem:[%s2061 + $0x10] sm:$0xff]
    %v2065 = vld [vmem:[%s2061 + $0x18] sm:$0xff]
    %v2066 = vld [vmem:[%s2061 + $0x20] sm:$0xff]
    %v2067 = vld [vmem:[%s2061 + $0x28] sm:$0xff]
    %v2068 = vld [vmem:[%s2061 + $0x30] sm:$0xff]
    %v2069 = vld [vmem:[%s2061 + $0x38] sm:$0xff]
    %v2070 = vld [vmem:[%s2061 + $0x40] sm:$0xff]
    %v2071 = vld [vmem:[%s2061 + $0x48] sm:$0xff]
    %v2072 = vld [vmem:[%s2061 + $0x50] sm:$0xff]
    %v2073 = vld [vmem:[%s2061 + $0x58] sm:$0xff]
    %v2074 = vld [vmem:[%s2061 + $0x60] sm:$0xff]
    %v2075 = vld [vmem:[%s2061 + $0x68] sm:$0xff]
    %v2076 = vld [vmem:[%s2061 + $0x70] sm:$0xff]
    %v2077 = vld [vmem:[%s2061 + $0x78] sm:$0xff]
    %v2094 = vunpack.c.l.b16 %v2062
    %v2095 = vunpack.c.h.b16 %v2062
    %v2096 = vunpack.c.l.b16 %v2063
    %v2097 = vunpack.c.h.b16 %v2063
    %v2098 = vunpack.c.l.b16 %v2064
    %v2099 = vunpack.c.h.b16 %v2064
    %v2100 = vunpack.c.l.b16 %v2065
    %v2101 = vunpack.c.h.b16 %v2065
    %v2102 = vunpack.c.l.b16 %v2066
    %v2103 = vunpack.c.h.b16 %v2066
    %v2104 = vunpack.c.l.b16 %v2067
    %v2105 = vunpack.c.h.b16 %v2067
    %v2106 = vunpack.c.l.b16 %v2068
    %v2107 = vunpack.c.h.b16 %v2068
    %v2108 = vunpack.c.l.b16 %v2069
    %v2109 = vunpack.c.h.b16 %v2069
    %v2110 = vunpack.c.l.b16 %v2070
    %v2111 = vunpack.c.h.b16 %v2070
    %v2112 = vunpack.c.l.b16 %v2071
    %v2113 = vunpack.c.h.b16 %v2071
    %v2114 = vunpack.c.l.b16 %v2072
    %v2115 = vunpack.c.h.b16 %v2072
    %v2116 = vunpack.c.l.b16 %v2073
    %v2117 = vunpack.c.h.b16 %v2073
    %v2118 = vunpack.c.l.b16 %v2074
    %v2119 = vunpack.c.h.b16 %v2074
    %v2120 = vunpack.c.l.b16 %v2075
    %v2121 = vunpack.c.h.b16 %v2075
    %v2122 = vunpack.c.l.b16 %v2076
    %v2123 = vunpack.c.h.b16 %v2076
    %v2124 = vunpack.c.l.b16 %v2077
    %v2125 = vunpack.c.h.b16 %v2077
    %v2126 = vpack.c.b16 %v2096, %v2094
    %v2127 = vpack.c.b16 %v2097, %v2095
    %v2128 = vpack.c.b16 %v2100, %v2098
    %v2129 = vpack.c.b16 %v2101, %v2099
    %v2130 = vpack.c.b16 %v2104, %v2102
    %v2131 = vpack.c.b16 %v2105, %v2103
    %v2132 = vpack.c.b16 %v2108, %v2106
    %v2133 = vpack.c.b16 %v2109, %v2107
    %v2134 = vpack.c.b16 %v2112, %v2110
    %v2135 = vpack.c.b16 %v2113, %v2111
    %v2136 = vpack.c.b16 %v2116, %v2114
    %v2137 = vpack.c.b16 %v2117, %v2115
    %v2138 = vpack.c.b16 %v2120, %v2118
    %v2139 = vpack.c.b16 %v2121, %v2119
    %v2140 = vpack.c.b16 %v2124, %v2122
    %v2141 = vpack.c.b16 %v2125, %v2123
    %2158 = vmatprep.subr.bf16.mxu0 %v2127
    %2159 = vmatpush1.bf16.msra.mxu0 %v2126
    %2160 = vmatprep.subr.bf16.mxu0 %v2129
    %2161 = vmatpush1.bf16.msra.mxu0 %v2128
    %2162 = vmatprep.subr.bf16.mxu0 %v2131
    %2163 = vmatpush1.bf16.msra.mxu0 %v2130
    %2164 = vmatprep.subr.bf16.mxu0 %v2133
    %2165 = vmatpush1.bf16.msra.mxu0 %v2132
    %2166 = vmatprep.subr.bf16.mxu0 %v2135
    %2167 = vmatpush1.bf16.msra.mxu0 %v2134
    %2168 = vmatprep.subr.bf16.mxu0 %v2137
    %2169 = vmatpush1.bf16.msra.mxu0 %v2136
    %2170 = vmatprep.subr.bf16.mxu0 %v2139
    %2171 = vmatpush1.bf16.msra.mxu0 %v2138
    %2172 = vmatprep.subr.bf16.mxu0 %v2141
    %2173 = vmatpush1.bf16.msra.mxu0 %v2140
    %2174 = vmatprep.subr.bf16.mxu0 0
    %2175 = vmatpush1.bf16.msra.mxu0 0
    %2176 = vmatprep.subr.bf16.mxu0 0
    %2177 = vmatpush1.bf16.msra.mxu0 0
    %2178 = vmatprep.subr.bf16.mxu0 0
    %2179 = vmatpush1.bf16.msra.mxu0 0
    %2180 = vmatprep.subr.bf16.mxu0 0
    %2181 = vmatpush1.bf16.msra.mxu0 0
    %2182 = vmatprep.subr.bf16.mxu0 0
    %2183 = vmatpush1.bf16.msra.mxu0 0
    %2184 = vmatprep.subr.bf16.mxu0 0
    %2185 = vmatpush1.bf16.msra.mxu0 0
    %2186 = vmatprep.subr.bf16.mxu0 0
    %2187 = vmatpush1.bf16.msra.mxu0 0
    %2188 = vmatprep.subr.bf16.mxu0 0
    %2189 = vmatpush1.bf16.msra.mxu0 0
    %2190 = vmatprep.mubr.bf16.mxu0 0
    %2191 = vmatmul.mubr.bf16.gmra.mrb[0].mxu0 %v1785
    %v2192 = vpop.f32.mrb[0].mxu0
    %v2193 = vadd.f32 0.0, %v2192
    %v2194 = vpop.f32.mrb[0].mxu0
    %v2195 = vadd.f32 0.0, %v2194
    %v2196 = vpop.f32.mrb[0].mxu0
    %v2197 = vpop.f32.mrb[0].mxu0
    %2198 = vdwg.mxu0
    %s2199 = scalar_lea.vmem %s9, 384
    %v2200 = vld [vmem:[%s2199] sm:$0xff]
    %v2201 = vld [vmem:[%s2199 + $0x8] sm:$0xff]
    %v2202 = vld [vmem:[%s2199 + $0x10] sm:$0xff]
    %v2203 = vld [vmem:[%s2199 + $0x18] sm:$0xff]
    %v2204 = vld [vmem:[%s2199 + $0x20] sm:$0xff]
    %v2205 = vld [vmem:[%s2199 + $0x28] sm:$0xff]
    %v2206 = vld [vmem:[%s2199 + $0x30] sm:$0xff]
    %v2207 = vld [vmem:[%s2199 + $0x38] sm:$0xff]
    %v2208 = vld [vmem:[%s2199 + $0x40] sm:$0xff]
    %v2209 = vld [vmem:[%s2199 + $0x48] sm:$0xff]
    %v2210 = vld [vmem:[%s2199 + $0x50] sm:$0xff]
    %v2211 = vld [vmem:[%s2199 + $0x58] sm:$0xff]
    %v2212 = vld [vmem:[%s2199 + $0x60] sm:$0xff]
    %v2213 = vld [vmem:[%s2199 + $0x68] sm:$0xff]
    %v2214 = vld [vmem:[%s2199 + $0x70] sm:$0xff]
    %v2215 = vld [vmem:[%s2199 + $0x78] sm:$0xff]
    %v2232 = vunpack.c.l.b16 %v2200
    %v2233 = vunpack.c.h.b16 %v2200
    %v2234 = vunpack.c.l.b16 %v2201
    %v2235 = vunpack.c.h.b16 %v2201
    %v2236 = vunpack.c.l.b16 %v2202
    %v2237 = vunpack.c.h.b16 %v2202
    %v2238 = vunpack.c.l.b16 %v2203
    %v2239 = vunpack.c.h.b16 %v2203
    %v2240 = vunpack.c.l.b16 %v2204
    %v2241 = vunpack.c.h.b16 %v2204
    %v2242 = vunpack.c.l.b16 %v2205
    %v2243 = vunpack.c.h.b16 %v2205
    %v2244 = vunpack.c.l.b16 %v2206
    %v2245 = vunpack.c.h.b16 %v2206
    %v2246 = vunpack.c.l.b16 %v2207
    %v2247 = vunpack.c.h.b16 %v2207
    %v2248 = vunpack.c.l.b16 %v2208
    %v2249 = vunpack.c.h.b16 %v2208
    %v2250 = vunpack.c.l.b16 %v2209
    %v2251 = vunpack.c.h.b16 %v2209
    %v2252 = vunpack.c.l.b16 %v2210
    %v2253 = vunpack.c.h.b16 %v2210
    %v2254 = vunpack.c.l.b16 %v2211
    %v2255 = vunpack.c.h.b16 %v2211
    %v2256 = vunpack.c.l.b16 %v2212
    %v2257 = vunpack.c.h.b16 %v2212
    %v2258 = vunpack.c.l.b16 %v2213
    %v2259 = vunpack.c.h.b16 %v2213
    %v2260 = vunpack.c.l.b16 %v2214
    %v2261 = vunpack.c.h.b16 %v2214
    %v2262 = vunpack.c.l.b16 %v2215
    %v2263 = vunpack.c.h.b16 %v2215
    %v2264 = vpack.c.b16 %v2234, %v2232
    %v2265 = vpack.c.b16 %v2235, %v2233
    %v2266 = vpack.c.b16 %v2238, %v2236
    %v2267 = vpack.c.b16 %v2239, %v2237
    %v2268 = vpack.c.b16 %v2242, %v2240
    %v2269 = vpack.c.b16 %v2243, %v2241
    %v2270 = vpack.c.b16 %v2246, %v2244
    %v2271 = vpack.c.b16 %v2247, %v2245
    %v2272 = vpack.c.b16 %v2250, %v2248
    %v2273 = vpack.c.b16 %v2251, %v2249
    %v2274 = vpack.c.b16 %v2254, %v2252
    %v2275 = vpack.c.b16 %v2255, %v2253
    %v2276 = vpack.c.b16 %v2258, %v2256
    %v2277 = vpack.c.b16 %v2259, %v2257
    %v2278 = vpack.c.b16 %v2262, %v2260
    %v2279 = vpack.c.b16 %v2263, %v2261
    %2296 = vmatprep.subr.bf16.mxu0 %v2265
    %2297 = vmatpush1.bf16.msra.mxu0 %v2264
    %2298 = vmatprep.subr.bf16.mxu0 %v2267
    %2299 = vmatpush1.bf16.msra.mxu0 %v2266
    %2300 = vmatprep.subr.bf16.mxu0 %v2269
    %2301 = vmatpush1.bf16.msra.mxu0 %v2268
    %2302 = vmatprep.subr.bf16.mxu0 %v2271
    %2303 = vmatpush1.bf16.msra.mxu0 %v2270
    %2304 = vmatprep.subr.bf16.mxu0 %v2273
    %2305 = vmatpush1.bf16.msra.mxu0 %v2272
    %2306 = vmatprep.subr.bf16.mxu0 %v2275
    %2307 = vmatpush1.bf16.msra.mxu0 %v2274
    %2308 = vmatprep.subr.bf16.mxu0 %v2277
    %2309 = vmatpush1.bf16.msra.mxu0 %v2276
    %2310 = vmatprep.subr.bf16.mxu0 %v2279
    %2311 = vmatpush1.bf16.msra.mxu0 %v2278
    %2312 = vmatprep.subr.bf16.mxu0 0
    %2313 = vmatpush1.bf16.msra.mxu0 0
    %2314 = vmatprep.subr.bf16.mxu0 0
    %2315 = vmatpush1.bf16.msra.mxu0 0
    %2316 = vmatprep.subr.bf16.mxu0 0
    %2317 = vmatpush1.bf16.msra.mxu0 0
    %2318 = vmatprep.subr.bf16.mxu0 0
    %2319 = vmatpush1.bf16.msra.mxu0 0
    %2320 = vmatprep.subr.bf16.mxu0 0
    %2321 = vmatpush1.bf16.msra.mxu0 0
    %2322 = vmatprep.subr.bf16.mxu0 0
    %2323 = vmatpush1.bf16.msra.mxu0 0
    %2324 = vmatprep.subr.bf16.mxu0 0
    %2325 = vmatpush1.bf16.msra.mxu0 0
    %2326 = vmatprep.subr.bf16.mxu0 0
    %2327 = vmatpush1.bf16.msra.mxu0 0
    %2328 = vmatprep.mubr.bf16.mxu0 0
    %2329 = vmatmul.mubr.bf16.gmra.mrb[0].mxu0 %v1785
    %v2330 = vpop.f32.mrb[0].mxu0
    %v2331 = vadd.f32 0.0, %v2330
    %v2332 = vpop.f32.mrb[0].mxu0
    %v2333 = vadd.f32 0.0, %v2332
    %v2334 = vpop.f32.mrb[0].mxu0
    %v2335 = vpop.f32.mrb[0].mxu0
    %2336 = vdwg.mxu0
    %v2339 = vrot.slane %v2193, 7
    %v2340 = vrot.slane %v2195, 7
    %v2343 = vadd.f32 %v1917, %v2339
    %v2344 = vadd.f32 %v1919, %v2340
    %v2347 = vrot.slane %v2331, 7
    %v2348 = vrot.slane %v2333, 7
    %v2351 = vadd.f32 %v2055, %v2347
    %v2352 = vadd.f32 %v2057, %v2348
    %v2353 = vld [vmem:[%s10] sm:$0xff]
    %v2354 = vld [vmem:[%s10 + $0x8] sm:$0x3]
    %s2355 = scalar_lea.vmem %s10, 16
    %v2356 = vld [vmem:[%s2355] sm:$0xff]
    %v2357 = vld [vmem:[%s2355 + $0x8] sm:$0x3]
    %v2360 = vrot.slane %v2351, 1
    %v2361 = vrot.slane %v2352, 1
    %vm2362 = vcmask 39936
    %v2364 = vsel %vm2362, %v2356, 0
    %v2367 = vsel %vm2362, %v2357, 0
    %v2369 = vsel %vm1772, %v2360, 0
    %v2371 = vsel %vm1772, %v2361, 0
    %2373 = vmatprep.subr.mxu0 %v2371
    %2374 = vmatpush1.msra.mxu0 %v2369
    %2375 = vmatprep.subr.mxu0 0.0
    %2376 = vmatpush1.msra.mxu0 0.0
    %2377 = vmatprep.subr.mxu0 0.0
    %2378 = vmatpush1.msra.mxu0 0.0
    %2379 = vmatprep.subr.mxu0 0.0
    %2380 = vmatpush1.msra.mxu0 0.0
    %2381 = vmatprep.subr.mxu0 0.0
    %2382 = vmatpush1.msra.mxu0 0.0
    %2383 = vmatprep.subr.mxu0 0.0
    %2384 = vmatpush1.msra.mxu0 0.0
    %2385 = vmatprep.subr.mxu0 0.0
    %2386 = vmatpush1.msra.mxu0 0.0
    %2387 = vmatprep.subr.mxu0 0.0
    %2388 = vmatpush1.msra.mxu0 0.0
    %2389 = vmatprep.subr.mxu0 0.0
    %2390 = vmatpush1.msra.mxu0 0.0
    %2391 = vmatprep.subr.mxu0 0.0
    %2392 = vmatpush1.msra.mxu0 0.0
    %2393 = vmatprep.subr.mxu0 0.0
    %2394 = vmatpush1.msra.mxu0 0.0
    %2395 = vmatprep.subr.mxu0 0.0
    %2396 = vmatpush1.msra.mxu0 0.0
    %2397 = vmatprep.subr.mxu0 0.0
    %2398 = vmatpush1.msra.mxu0 0.0
    %2399 = vmatprep.subr.mxu0 0.0
    %2400 = vmatpush1.msra.mxu0 0.0
    %2401 = vmatprep.subr.mxu0 0.0
    %2402 = vmatpush1.msra.mxu0 0.0
    %2403 = vmatprep.subr.mxu0 0.0
    %2404 = vmatpush1.msra.mxu0 0.0
    %2405 = vmatprep.subr.mxu0 0.0
    %2406 = vmatpush1.msra.mxu0 0.0
    %2407 = vmatprep.subr.mxu0 0.0
    %2408 = vmatpush1.msra.mxu0 0.0
    %2409 = vmatprep.subr.mxu0 0.0
    %2410 = vmatpush1.msra.mxu0 0.0
    %2411 = vmatprep.subr.mxu0 0.0
    %2412 = vmatpush1.msra.mxu0 0.0
    %2413 = vmatprep.subr.mxu0 0.0
    %2414 = vmatpush1.msra.mxu0 0.0
    %2415 = vmatprep.subr.mxu0 0.0
    %2416 = vmatpush1.msra.mxu0 0.0
    %2417 = vmatprep.subr.mxu0 0.0
    %2418 = vmatpush1.msra.mxu0 0.0
    %2419 = vmatprep.subr.mxu0 0.0
    %2420 = vmatpush1.msra.mxu0 0.0
    %2421 = vmatprep.subr.mxu0 0.0
    %2422 = vmatpush1.msra.mxu0 0.0
    %2423 = vmatprep.subr.mxu0 0.0
    %2424 = vmatpush1.msra.mxu0 0.0
    %2425 = vmatprep.subr.mxu0 0.0
    %2426 = vmatpush1.msra.mxu0 0.0
    %2427 = vmatprep.subr.mxu0 0.0
    %2428 = vmatpush1.msra.mxu0 0.0
    %2429 = vmatprep.subr.mxu0 0.0
    %2430 = vmatpush1.msra.mxu0 0.0
    %2431 = vmatprep.subr.mxu0 0.0
    %2432 = vmatpush1.msra.mxu0 0.0
    %2433 = vmatprep.subr.mxu0 0.0
    %2434 = vmatpush1.msra.mxu0 0.0
    %2435 = vmatprep.subr.mxu0 0.0
    %2436 = vmatpush1.msra.mxu0 0.0
    %2437 = vmatprep.mubr.f32.mxu0 0.0
    %2438 = vmatmul.mubr.f32.gmra.mrb[0].mxu0 %v2364
    %v2439 = vpop.f32.mrb[0].mxu0
    %v2440 = vadd.f32 0.0, %v2439
    %v2441 = vpop.f32.mrb[0].mxu0
    %v2442 = vadd.f32 0.0, %v2441
    %2443 = vmatprep.mubr.f32.mxu0 0.0
    %2444 = vmatmul.mubr.f32.gmra.mrb[0].mxu0 %v2367
    %v2445 = vpop.f32.mrb[0].mxu0
    %v2446 = vadd.f32 0.0, %v2445
    %v2447 = vpop.f32.mrb[0].mxu0
    %v2448 = vadd.f32 0.0, %v2447
    %2449 = vdwg.mxu0
    %v2452 = vrot.slane %v2343, 1
    %v2453 = vrot.slane %v2344, 1
    %v2455 = vsel %vm2362, %v2353, 0
    %v2458 = vsel %vm2362, %v2354, 0
    %v2460 = vsel %vm1772, %v2452, 0
    %v2462 = vsel %vm1772, %v2453, 0
    %2464 = vmatprep.subr.mxu0 %v2462
    %2465 = vmatpush1.msra.mxu0 %v2460
    %2466 = vmatprep.subr.mxu0 0.0
    %2467 = vmatpush1.msra.mxu0 0.0
    %2468 = vmatprep.subr.mxu0 0.0
    %2469 = vmatpush1.msra.mxu0 0.0
    %2470 = vmatprep.subr.mxu0 0.0
    %2471 = vmatpush1.msra.mxu0 0.0
    %2472 = vmatprep.subr.mxu0 0.0
    %2473 = vmatpush1.msra.mxu0 0.0
    %2474 = vmatprep.subr.mxu0 0.0
    %2475 = vmatpush1.msra.mxu0 0.0
    %2476 = vmatprep.subr.mxu0 0.0
    %2477 = vmatpush1.msra.mxu0 0.0
    %2478 = vmatprep.subr.mxu0 0.0
    %2479 = vmatpush1.msra.mxu0 0.0
    %2480 = vmatprep.subr.mxu0 0.0
    %2481 = vmatpush1.msra.mxu0 0.0
    %2482 = vmatprep.subr.mxu0 0.0
    %2483 = vmatpush1.msra.mxu0 0.0
    %2484 = vmatprep.subr.mxu0 0.0
    %2485 = vmatpush1.msra.mxu0 0.0
    %2486 = vmatprep.subr.mxu0 0.0
    %2487 = vmatpush1.msra.mxu0 0.0
    %2488 = vmatprep.subr.mxu0 0.0
    %2489 = vmatpush1.msra.mxu0 0.0
    %2490 = vmatprep.subr.mxu0 0.0
    %2491 = vmatpush1.msra.mxu0 0.0
    %2492 = vmatprep.subr.mxu0 0.0
    %2493 = vmatpush1.msra.mxu0 0.0
    %2494 = vmatprep.subr.mxu0 0.0
    %2495 = vmatpush1.msra.mxu0 0.0
    %2496 = vmatprep.subr.mxu0 0.0
    %2497 = vmatpush1.msra.mxu0 0.0
    %2498 = vmatprep.subr.mxu0 0.0
    %2499 = vmatpush1.msra.mxu0 0.0
    %2500 = vmatprep.subr.mxu0 0.0
    %2501 = vmatpush1.msra.mxu0 0.0
    %2502 = vmatprep.subr.mxu0 0.0
    %2503 = vmatpush1.msra.mxu0 0.0
    %2504 = vmatprep.subr.mxu0 0.0
    %2505 = vmatpush1.msra.mxu0 0.0
    %2506 = vmatprep.subr.mxu0 0.0
    %2507 = vmatpush1.msra.mxu0 0.0
    %2508 = vmatprep.subr.mxu0 0.0
    %2509 = vmatpush1.msra.mxu0 0.0
    %2510 = vmatprep.subr.mxu0 0.0
    %2511 = vmatpush1.msra.mxu0 0.0
    %2512 = vmatprep.subr.mxu0 0.0
    %2513 = vmatpush1.msra.mxu0 0.0
    %2514 = vmatprep.subr.mxu0 0.0
    %2515 = vmatpush1.msra.mxu0 0.0
    %2516 = vmatprep.subr.mxu0 0.0
    %2517 = vmatpush1.msra.mxu0 0.0
    %2518 = vmatprep.subr.mxu0 0.0
    %2519 = vmatpush1.msra.mxu0 0.0
    %2520 = vmatprep.subr.mxu0 0.0
    %2521 = vmatpush1.msra.mxu0 0.0
    %2522 = vmatprep.subr.mxu0 0.0
    %2523 = vmatpush1.msra.mxu0 0.0
    %2524 = vmatprep.subr.mxu0 0.0
    %2525 = vmatpush1.msra.mxu0 0.0
    %2526 = vmatprep.subr.mxu0 0.0
    %2527 = vmatpush1.msra.mxu0 0.0
    %2528 = vmatprep.mubr.f32.mxu0 0.0
    %2529 = vmatmul.mubr.f32.gmra.mrb[0].mxu0 %v2455
    %v2530 = vpop.f32.mrb[0].mxu0
    %v2531 = vadd.f32 %v2440, %v2530
    %v2532 = vpop.f32.mrb[0].mxu0
    %v2533 = vadd.f32 %v2442, %v2532
    %2534 = vmatprep.mubr.f32.mxu0 0.0
    %2535 = vmatmul.mubr.f32.gmra.mrb[0].mxu0 %v2458
    %v2536 = vpop.f32.mrb[0].mxu0
    %v2537 = vadd.f32 %v2446, %v2536
    %v2538 = vpop.f32.mrb[0].mxu0
    %v2539 = vadd.f32 %v2448, %v2538
    %2540 = vdwg.mxu0
    %v2541 = vpack.c.bf16 %v1784, %v1784
    %2542 = vmatprep.subr.bf16.mxu0 %v1851
    %2543 = vmatpush1.bf16.msra.mxu0 %v1850
    %2544 = vmatprep.subr.bf16.mxu0 %v1853
    %2545 = vmatpush1.bf16.msra.mxu0 %v1852
    %2546 = vmatprep.subr.bf16.mxu0 %v1855
    %2547 = vmatpush1.bf16.msra.mxu0 %v1854
    %2548 = vmatprep.subr.bf16.mxu0 %v1857
    %2549 = vmatpush1.bf16.msra.mxu0 %v1856
    %2550 = vmatprep.subr.bf16.mxu0 %v1859
    %2551 = vmatpush1.bf16.msra.mxu0 %v1858
    %2552 = vmatprep.subr.bf16.mxu0 %v1861
    %2553 = vmatpush1.bf16.msra.mxu0 %v1860
    %2554 = vmatprep.subr.bf16.mxu0 %v1863
    %2555 = vmatpush1.bf16.msra.mxu0 %v1862
    %2556 = vmatprep.subr.bf16.mxu0 %v1865
    %2557 = vmatpush1.bf16.msra.mxu0 %v1864
    %2558 = vmatprep.subr.bf16.mxu0 0
    %2559 = vmatpush1.bf16.msra.mxu0 0
    %2560 = vmatprep.subr.bf16.mxu0 0
    %2561 = vmatpush1.bf16.msra.mxu0 0
    %2562 = vmatprep.subr.bf16.mxu0 0
    %2563 = vmatpush1.bf16.msra.mxu0 0
    %2564 = vmatprep.subr.bf16.mxu0 0
    %2565 = vmatpush1.bf16.msra.mxu0 0
    %2566 = vmatprep.subr.bf16.mxu0 0
    %2567 = vmatpush1.bf16.msra.mxu0 0
    %2568 = vmatprep.subr.bf16.mxu0 0
    %2569 = vmatpush1.bf16.msra.mxu0 0
    %2570 = vmatprep.subr.bf16.mxu0 0
    %2571 = vmatpush1.bf16.msra.mxu0 0
    %2572 = vmatprep.subr.bf16.mxu0 0
    %2573 = vmatpush1.bf16.msra.mxu0 0
    %2574 = vmatprep.mubr.bf16.mxu0 0
    %2575 = vmatmul.mubr.bf16.gmra.mrb[0].mxu0 %v2541
    %v2576 = vpop.f32.mrb[0].mxu0
    %v2577 = vadd.f32 0.0, %v2576
    %v2578 = vpop.f32.mrb[0].mxu0
    %v2579 = vadd.f32 0.0, %v2578
    %v2580 = vpop.f32.mrb[0].mxu0
    %v2581 = vpop.f32.mrb[0].mxu0
    %2582 = vdwg.mxu0
    %2583 = vmatprep.subr.bf16.mxu0 %v1989
    %2584 = vmatpush1.bf16.msra.mxu0 %v1988
    %2585 = vmatprep.subr.bf16.mxu0 %v1991
    %2586 = vmatpush1.bf16.msra.mxu0 %v1990
    %2587 = vmatprep.subr.bf16.mxu0 %v1993
    %2588 = vmatpush1.bf16.msra.mxu0 %v1992
    %2589 = vmatprep.subr.bf16.mxu0 %v1995
    %2590 = vmatpush1.bf16.msra.mxu0 %v1994
    %2591 = vmatprep.subr.bf16.mxu0 %v1997
    %2592 = vmatpush1.bf16.msra.mxu0 %v1996
    %2593 = vmatprep.subr.bf16.mxu0 %v1999
    %2594 = vmatpush1.bf16.msra.mxu0 %v1998
    %2595 = vmatprep.subr.bf16.mxu0 %v2001
    %2596 = vmatpush1.bf16.msra.mxu0 %v2000
    %2597 = vmatprep.subr.bf16.mxu0 %v2003
    %2598 = vmatpush1.bf16.msra.mxu0 %v2002
    %2599 = vmatprep.subr.bf16.mxu0 0
    %2600 = vmatpush1.bf16.msra.mxu0 0
    %2601 = vmatprep.subr.bf16.mxu0 0
    %2602 = vmatpush1.bf16.msra.mxu0 0
    %2603 = vmatprep.subr.bf16.mxu0 0
    %2604 = vmatpush1.bf16.msra.mxu0 0
    %2605 = vmatprep.subr.bf16.mxu0 0
    %2606 = vmatpush1.bf16.msra.mxu0 0
    %2607 = vmatprep.subr.bf16.mxu0 0
    %2608 = vmatpush1.bf16.msra.mxu0 0
    %2609 = vmatprep.subr.bf16.mxu0 0
    %2610 = vmatpush1.bf16.msra.mxu0 0
    %2611 = vmatprep.subr.bf16.mxu0 0
    %2612 = vmatpush1.bf16.msra.mxu0 0
    %2613 = vmatprep.subr.bf16.mxu0 0
    %2614 = vmatpush1.bf16.msra.mxu0 0
    %2615 = vmatprep.mubr.bf16.mxu0 0
    %2616 = vmatmul.mubr.bf16.gmra.mrb[0].mxu0 %v2541
    %v2617 = vpop.f32.mrb[0].mxu0
    %v2618 = vadd.f32 0.0, %v2617
    %v2619 = vpop.f32.mrb[0].mxu0
    %v2620 = vadd.f32 0.0, %v2619
    %v2621 = vpop.f32.mrb[0].mxu0
    %v2622 = vpop.f32.mrb[0].mxu0
    %2623 = vdwg.mxu0
    %2624 = vmatprep.subr.bf16.mxu0 %v2127
    %2625 = vmatpush1.bf16.msra.mxu0 %v2126
    %2626 = vmatprep.subr.bf16.mxu0 %v2129
    %2627 = vmatpush1.bf16.msra.mxu0 %v2128
    %2628 = vmatprep.subr.bf16.mxu0 %v2131
    %2629 = vmatpush1.bf16.msra.mxu0 %v2130
    %2630 = vmatprep.subr.bf16.mxu0 %v2133
    %2631 = vmatpush1.bf16.msra.mxu0 %v2132
    %2632 = vmatprep.subr.bf16.mxu0 %v2135
    %2633 = vmatpush1.bf16.msra.mxu0 %v2134
    %2634 = vmatprep.subr.bf16.mxu0 %v2137
    %2635 = vmatpush1.bf16.msra.mxu0 %v2136
    %2636 = vmatprep.subr.bf16.mxu0 %v2139
    %2637 = vmatpush1.bf16.msra.mxu0 %v2138
    %2638 = vmatprep.subr.bf16.mxu0 %v2141
    %2639 = vmatpush1.bf16.msra.mxu0 %v2140
    %2640 = vmatprep.subr.bf16.mxu0 0
    %2641 = vmatpush1.bf16.msra.mxu0 0
    %2642 = vmatprep.subr.bf16.mxu0 0
    %2643 = vmatpush1.bf16.msra.mxu0 0
    %2644 = vmatprep.subr.bf16.mxu0 0
    %2645 = vmatpush1.bf16.msra.mxu0 0
    %2646 = vmatprep.subr.bf16.mxu0 0
    %2647 = vmatpush1.bf16.msra.mxu0 0
    %2648 = vmatprep.subr.bf16.mxu0 0
    %2649 = vmatpush1.bf16.msra.mxu0 0
    %2650 = vmatprep.subr.bf16.mxu0 0
    %2651 = vmatpush1.bf16.msra.mxu0 0
    %2652 = vmatprep.subr.bf16.mxu0 0
    %2653 = vmatpush1.bf16.msra.mxu0 0
    %2654 = vmatprep.subr.bf16.mxu0 0
    %2655 = vmatpush1.bf16.msra.mxu0 0
    %2656 = vmatprep.mubr.bf16.mxu0 0
    %2657 = vmatmul.mubr.bf16.gmra.mrb[0].mxu0 %v2541
    %v2658 = vpop.f32.mrb[0].mxu0
    %v2659 = vadd.f32 0.0, %v2658
    %v2660 = vpop.f32.mrb[0].mxu0
    %v2661 = vadd.f32 0.0, %v2660
    %v2662 = vpop.f32.mrb[0].mxu0
    %v2663 = vpop.f32.mrb[0].mxu0
    %2664 = vdwg.mxu0
    %2665 = vmatprep.subr.bf16.mxu0 %v2265
    %2666 = vmatpush1.bf16.msra.mxu0 %v2264
    %2667 = vmatprep.subr.bf16.mxu0 %v2267
    %2668 = vmatpush1.bf16.msra.mxu0 %v2266
    %2669 = vmatprep.subr.bf16.mxu0 %v2269
    %2670 = vmatpush1.bf16.msra.mxu0 %v2268
    %2671 = vmatprep.subr.bf16.mxu0 %v2271
    %2672 = vmatpush1.bf16.msra.mxu0 %v2270
    %2673 = vmatprep.subr.bf16.mxu0 %v2273
    %2674 = vmatpush1.bf16.msra.mxu0 %v2272
    %2675 = vmatprep.subr.bf16.mxu0 %v2275
    %2676 = vmatpush1.bf16.msra.mxu0 %v2274
    %2677 = vmatprep.subr.bf16.mxu0 %v2277
    %2678 = vmatpush1.bf16.msra.mxu0 %v2276
    %2679 = vmatprep.subr.bf16.mxu0 %v2279
    %2680 = vmatpush1.bf16.msra.mxu0 %v2278
    %2681 = vmatprep.subr.bf16.mxu0 0
    %2682 = vmatpush1.bf16.msra.mxu0 0
    %2683 = vmatprep.subr.bf16.mxu0 0
    %2684 = vmatpush1.bf16.msra.mxu0 0
    %2685 = vmatprep.subr.bf16.mxu0 0
    %2686 = vmatpush1.bf16.msra.mxu0 0
    %2687 = vmatprep.subr.bf16.mxu0 0
    %2688 = vmatpush1.bf16.msra.mxu0 0
    %2689 = vmatprep.subr.bf16.mxu0 0
    %2690 = vmatpush1.bf16.msra.mxu0 0
    %2691 = vmatprep.subr.bf16.mxu0 0
    %2692 = vmatpush1.bf16.msra.mxu0 0
    %2693 = vmatprep.subr.bf16.mxu0 0
    %2694 = vmatpush1.bf16.msra.mxu0 0
    %2695 = vmatprep.subr.bf16.mxu0 0
    %2696 = vmatpush1.bf16.msra.mxu0 0
    %2697 = vmatprep.mubr.bf16.mxu0 0
    %2698 = vmatmul.mubr.bf16.gmra.mrb[0].mxu0 %v2541
    %v2699 = vpop.f32.mrb[0].mxu0
    %v2700 = vadd.f32 0.0, %v2699
    %v2701 = vpop.f32.mrb[0].mxu0
    %v2702 = vadd.f32 0.0, %v2701
    %v2703 = vpop.f32.mrb[0].mxu0
    %v2704 = vpop.f32.mrb[0].mxu0
    %2705 = vdwg.mxu0
    %v2708 = vrot.slane %v2659, 7
    %v2709 = vrot.slane %v2661, 7
    %v2712 = vadd.f32 %v2577, %v2708
    %v2713 = vadd.f32 %v2579, %v2709
    %v2716 = vrot.slane %v2700, 7
    %v2717 = vrot.slane %v2702, 7
    %v2720 = vadd.f32 %v2618, %v2716
    %v2721 = vadd.f32 %v2620, %v2717
    %v2724 = vrot.slane %v2720, 1
    %v2725 = vrot.slane %v2721, 1
    %v2726 = vsel %vm1772, %v2724, 0
    %v2728 = vsel %vm1772, %v2725, 0
    %2730 = vmatprep.subr.mxu0 %v2728
    %2731 = vmatpush1.msra.mxu0 %v2726
    %2732 = vmatprep.subr.mxu0 0.0
    %2733 = vmatpush1.msra.mxu0 0.0
    %2734 = vmatprep.subr.mxu0 0.0
    %2735 = vmatpush1.msra.mxu0 0.0
    %2736 = vmatprep.subr.mxu0 0.0
    %2737 = vmatpush1.msra.mxu0 0.0
    %2738 = vmatprep.subr.mxu0 0.0
    %2739 = vmatpush1.msra.mxu0 0.0
    %2740 = vmatprep.subr.mxu0 0.0
    %2741 = vmatpush1.msra.mxu0 0.0
    %2742 = vmatprep.subr.mxu0 0.0
    %2743 = vmatpush1.msra.mxu0 0.0
    %2744 = vmatprep.subr.mxu0 0.0
    %2745 = vmatpush1.msra.mxu0 0.0
    %2746 = vmatprep.subr.mxu0 0.0
    %2747 = vmatpush1.msra.mxu0 0.0
    %2748 = vmatprep.subr.mxu0 0.0
    %2749 = vmatpush1.msra.mxu0 0.0
    %2750 = vmatprep.subr.mxu0 0.0
    %2751 = vmatpush1.msra.mxu0 0.0
    %2752 = vmatprep.subr.mxu0 0.0
    %2753 = vmatpush1.msra.mxu0 0.0
    %2754 = vmatprep.subr.mxu0 0.0
    %2755 = vmatpush1.msra.mxu0 0.0
    %2756 = vmatprep.subr.mxu0 0.0
    %2757 = vmatpush1.msra.mxu0 0.0
    %2758 = vmatprep.subr.mxu0 0.0
    %2759 = vmatpush1.msra.mxu0 0.0
    %2760 = vmatprep.subr.mxu0 0.0
    %2761 = vmatpush1.msra.mxu0 0.0
    %2762 = vmatprep.subr.mxu0 0.0
    %2763 = vmatpush1.msra.mxu0 0.0
    %2764 = vmatprep.subr.mxu0 0.0
    %2765 = vmatpush1.msra.mxu0 0.0
    %2766 = vmatprep.subr.mxu0 0.0
    %2767 = vmatpush1.msra.mxu0 0.0
    %2768 = vmatprep.subr.mxu0 0.0
    %2769 = vmatpush1.msra.mxu0 0.0
    %2770 = vmatprep.subr.mxu0 0.0
    %2771 = vmatpush1.msra.mxu0 0.0
    %2772 = vmatprep.subr.mxu0 0.0
    %2773 = vmatpush1.msra.mxu0 0.0
    %2774 = vmatprep.subr.mxu0 0.0
    %2775 = vmatpush1.msra.mxu0 0.0
    %2776 = vmatprep.subr.mxu0 0.0
    %2777 = vmatpush1.msra.mxu0 0.0
    %2778 = vmatprep.subr.mxu0 0.0
    %2779 = vmatpush1.msra.mxu0 0.0
    %2780 = vmatprep.subr.mxu0 0.0
    %2781 = vmatpush1.msra.mxu0 0.0
    %2782 = vmatprep.subr.mxu0 0.0
    %2783 = vmatpush1.msra.mxu0 0.0
    %2784 = vmatprep.subr.mxu0 0.0
    %2785 = vmatpush1.msra.mxu0 0.0
    %2786 = vmatprep.subr.mxu0 0.0
    %2787 = vmatpush1.msra.mxu0 0.0
    %2788 = vmatprep.subr.mxu0 0.0
    %2789 = vmatpush1.msra.mxu0 0.0
    %2790 = vmatprep.subr.mxu0 0.0
    %2791 = vmatpush1.msra.mxu0 0.0
    %2792 = vmatprep.subr.mxu0 0.0
    %2793 = vmatpush1.msra.mxu0 0.0
    %2794 = vmatprep.mubr.f32.mxu0 0.0
    %2795 = vmatmul.mubr.f32.gmra.mrb[0].mxu0 %v2364
    %v2796 = vpop.f32.mrb[0].mxu0
    %v2797 = vadd.f32 0.0, %v2796
    %v2798 = vpop.f32.mrb[0].mxu0
    %v2799 = vadd.f32 0.0, %v2798
    %2800 = vmatprep.mubr.f32.mxu0 0.0
    %2801 = vmatmul.mubr.f32.gmra.mrb[0].mxu0 %v2367
    %v2802 = vpop.f32.mrb[0].mxu0
    %v2803 = vadd.f32 0.0, %v2802
    %v2804 = vpop.f32.mrb[0].mxu0
    %v2805 = vadd.f32 0.0, %v2804
    %2806 = vdwg.mxu0
    %v2809 = vrot.slane %v2712, 1
    %v2810 = vrot.slane %v2713, 1
    %v2811 = vsel %vm1772, %v2809, 0
    %v2813 = vsel %vm1772, %v2810, 0
    %2815 = vmatprep.subr.mxu0 %v2813
    %2816 = vmatpush1.msra.mxu0 %v2811
    %2817 = vmatprep.subr.mxu0 0.0
    %2818 = vmatpush1.msra.mxu0 0.0
    %2819 = vmatprep.subr.mxu0 0.0
    %2820 = vmatpush1.msra.mxu0 0.0
    %2821 = vmatprep.subr.mxu0 0.0
    %2822 = vmatpush1.msra.mxu0 0.0
    %2823 = vmatprep.subr.mxu0 0.0
    %2824 = vmatpush1.msra.mxu0 0.0
    %2825 = vmatprep.subr.mxu0 0.0
    %2826 = vmatpush1.msra.mxu0 0.0
    %2827 = vmatprep.subr.mxu0 0.0
    %2828 = vmatpush1.msra.mxu0 0.0
    %2829 = vmatprep.subr.mxu0 0.0
    %2830 = vmatpush1.msra.mxu0 0.0
    %2831 = vmatprep.subr.mxu0 0.0
    %2832 = vmatpush1.msra.mxu0 0.0
    %2833 = vmatprep.subr.mxu0 0.0
    %2834 = vmatpush1.msra.mxu0 0.0
    %2835 = vmatprep.subr.mxu0 0.0
    %2836 = vmatpush1.msra.mxu0 0.0
    %2837 = vmatprep.subr.mxu0 0.0
    %2838 = vmatpush1.msra.mxu0 0.0
    %2839 = vmatprep.subr.mxu0 0.0
    %2840 = vmatpush1.msra.mxu0 0.0
    %2841 = vmatprep.subr.mxu0 0.0
    %2842 = vmatpush1.msra.mxu0 0.0
    %2843 = vmatprep.subr.mxu0 0.0
    %2844 = vmatpush1.msra.mxu0 0.0
    %2845 = vmatprep.subr.mxu0 0.0
    %2846 = vmatpush1.msra.mxu0 0.0
    %2847 = vmatprep.subr.mxu0 0.0
    %2848 = vmatpush1.msra.mxu0 0.0
    %2849 = vmatprep.subr.mxu0 0.0
    %2850 = vmatpush1.msra.mxu0 0.0
    %2851 = vmatprep.subr.mxu0 0.0
    %2852 = vmatpush1.msra.mxu0 0.0
    %2853 = vmatprep.subr.mxu0 0.0
    %2854 = vmatpush1.msra.mxu0 0.0
    %2855 = vmatprep.subr.mxu0 0.0
    %2856 = vmatpush1.msra.mxu0 0.0
    %2857 = vmatprep.subr.mxu0 0.0
    %2858 = vmatpush1.msra.mxu0 0.0
    %2859 = vmatprep.subr.mxu0 0.0
    %2860 = vmatpush1.msra.mxu0 0.0
    %2861 = vmatprep.subr.mxu0 0.0
    %2862 = vmatpush1.msra.mxu0 0.0
    %2863 = vmatprep.subr.mxu0 0.0
    %2864 = vmatpush1.msra.mxu0 0.0
    %2865 = vmatprep.subr.mxu0 0.0
    %2866 = vmatpush1.msra.mxu0 0.0
    %2867 = vmatprep.subr.mxu0 0.0
    %2868 = vmatpush1.msra.mxu0 0.0
    %2869 = vmatprep.subr.mxu0 0.0
    %2870 = vmatpush1.msra.mxu0 0.0
    %2871 = vmatprep.subr.mxu0 0.0
    %2872 = vmatpush1.msra.mxu0 0.0
    %2873 = vmatprep.subr.mxu0 0.0
    %2874 = vmatpush1.msra.mxu0 0.0
    %2875 = vmatprep.subr.mxu0 0.0
    %2876 = vmatpush1.msra.mxu0 0.0
    %2877 = vmatprep.subr.mxu0 0.0
    %2878 = vmatpush1.msra.mxu0 0.0
    %2879 = vmatprep.mubr.f32.mxu0 0.0
    %2880 = vmatmul.mubr.f32.gmra.mrb[0].mxu0 %v2455
    %v2881 = vpop.f32.mrb[0].mxu0
    %v2882 = vadd.f32 %v2797, %v2881
    %v2883 = vpop.f32.mrb[0].mxu0
    %v2884 = vadd.f32 %v2799, %v2883
    %2885 = vmatprep.mubr.f32.mxu0 0.0
    %2886 = vmatmul.mubr.f32.gmra.mrb[0].mxu0 %v2458
    %v2887 = vpop.f32.mrb[0].mxu0
    %v2888 = vadd.f32 %v2803, %v2887
    %v2889 = vpop.f32.mrb[0].mxu0
    %v2890 = vadd.f32 %v2805, %v2889
    %2891 = vdwg.mxu0
    %v2892 = vsel %vm985, %v2537, 0.0
    %v2893 = vadd.f32 %v2531, %v2892
    %v2894 = vrot.slane %v2893, 4
    %v2895 = vadd.f32 %v2893, %v2894
    %v2896 = vrot.slane %v2895, 2
    %v2897 = vadd.f32 %v2895, %v2896
    %v2898 = vrot.slane %v2897, 1
    %v2899 = vadd.f32 %v2897, %v2898
    %v2900 = vsel %vm1418, %v2533, 0.0
    %vm2901 = vcmask 254976
    %v2902 = vsel %vm2901, %v2539, 0.0
    %v2903 = vadd.f32 %v2900, %v2902
    %v2904 = vrot.slane %v2903, 4
    %v2905 = vadd.f32 %v2903, %v2904
    %v2906 = vrot.slane %v2905, 2
    %v2907 = vadd.f32 %v2905, %v2906
    %v2908 = vrot.slane %v2907, 1
    %v2909 = vadd.f32 %v2907, %v2908
    %v2910 = vmul.f32 %v2531, %v2531
    %v2911 = vmul.f32 %v2533, %v2533
    %v2912 = vmul.f32 %v2537, %v2537
    %v2913 = vmul.f32 %v2539, %v2539
    %v2914 = vsel %vm985, %v2912, 0.0
    %v2915 = vadd.f32 %v2910, %v2914
    %v2916 = vrot.slane %v2915, 4
    %v2917 = vadd.f32 %v2915, %v2916
    %v2918 = vrot.slane %v2917, 2
    %v2919 = vadd.f32 %v2917, %v2918
    %v2920 = vrot.slane %v2919, 1
    %v2921 = vadd.f32 %v2919, %v2920
    %v2922 = vsel %vm1418, %v2911, 0.0
    %v2923 = vsel %vm2901, %v2913, 0.0
    %v2924 = vadd.f32 %v2922, %v2923
    %v2925 = vrot.slane %v2924, 4
    %v2926 = vadd.f32 %v2924, %v2925
    %v2927 = vrot.slane %v2926, 2
    %v2928 = vadd.f32 %v2926, %v2927
    %v2929 = vrot.slane %v2928, 1
    %v2930 = vadd.f32 %v2928, %v2929
    %v2931 = vsel %vm985, %v2888, 0.0
    %v2932 = vadd.f32 %v2882, %v2931
    %v2933 = vrot.slane %v2932, 4
    %v2934 = vadd.f32 %v2932, %v2933
    %v2935 = vrot.slane %v2934, 2
    %v2936 = vadd.f32 %v2934, %v2935
    %v2937 = vrot.slane %v2936, 1
    %v2938 = vadd.f32 %v2936, %v2937
    %v2939 = vsel %vm1418, %v2884, 0.0
    %v2940 = vsel %vm2901, %v2890, 0.0
    %v2941 = vadd.f32 %v2939, %v2940
    %v2942 = vrot.slane %v2941, 4
    %v2943 = vadd.f32 %v2941, %v2942
    %v2944 = vrot.slane %v2943, 2
    %v2945 = vadd.f32 %v2943, %v2944
    %v2946 = vrot.slane %v2945, 1
    %v2947 = vadd.f32 %v2945, %v2946
    %v2948 = vadd.f32 %v2899, %v2938
    %v2949 = vadd.f32 %v2909, %v2947
    %v2950 = vmul.f32 %v2882, %v2882
    %v2951 = vmul.f32 %v2884, %v2884
    %v2952 = vmul.f32 %v2888, %v2888
    %v2953 = vmul.f32 %v2890, %v2890
    %v2954 = vsel %vm985, %v2952, 0.0
    %v2955 = vadd.f32 %v2950, %v2954
    %v2956 = vrot.slane %v2955, 4
    %v2957 = vadd.f32 %v2955, %v2956
    %v2958 = vrot.slane %v2957, 2
    %v2959 = vadd.f32 %v2957, %v2958
    %v2960 = vrot.slane %v2959, 1
    %v2961 = vadd.f32 %v2959, %v2960
    %v2962 = vsel %vm1418, %v2951, 0.0
    %v2963 = vsel %vm2901, %v2953, 0.0
    %v2964 = vadd.f32 %v2962, %v2963
    %v2965 = vrot.slane %v2964, 4
    %v2966 = vadd.f32 %v2964, %v2965
    %v2967 = vrot.slane %v2966, 2
    %v2968 = vadd.f32 %v2966, %v2967
    %v2969 = vrot.slane %v2968, 1
    %v2970 = vadd.f32 %v2968, %v2969
    %v2971 = vadd.f32 %v2921, %v2961
    %v2972 = vadd.f32 %v2930, %v2970
    %v2973 = vld [vmem:[%s11] sm:$0xff]
    %v2974 = vld [vmem:[%s11 + $0x8] sm:$0xff]
    %v2975 = vld [vmem:[%s11 + $0x10] sm:$0xff]
    %v2976 = vld [vmem:[%s11 + $0x18] sm:$0xff]
    %v2977 = vld [vmem:[%s11 + $0x20] sm:$0xff]
    %v2978 = vld [vmem:[%s11 + $0x28] sm:$0xff]
    %v2979 = vld [vmem:[%s11 + $0x30] sm:$0xff]
    %v2980 = vld [vmem:[%s11 + $0x38] sm:$0xff]
    %v2981 = vld [vmem:[%s11 + $0x40] sm:$0xff]
    %v2982 = vld [vmem:[%s11 + $0x48] sm:$0xff]
    %v2983 = vld [vmem:[%s11 + $0x50] sm:$0xff]
    %v2984 = vld [vmem:[%s11 + $0x58] sm:$0xff]
    %v2985 = vld [vmem:[%s11 + $0x60] sm:$0xff]
    %v2986 = vld [vmem:[%s11 + $0x68] sm:$0xff]
    %v2987 = vld [vmem:[%s11 + $0x70] sm:$0xff]
    %v2988 = vld [vmem:[%s11 + $0x78] sm:$0xff]
    %v2989 = vld [vmem:[%s11 + $0x80] sm:$0xff]
    %v2990 = vld [vmem:[%s11 + $0x88] sm:$0xff]
    %v2991 = vld [vmem:[%s11 + $0x90] sm:$0xff]
    %v2992 = vld [vmem:[%s11 + $0x98] sm:$0xff]
    %v2994 = vsel %vm1418, %v2949, 0
    %2996 = vmatprep.subr.mxu0 0.0
    %2997 = vmatpush1.msra.mxu0 %v2973
    %2998 = vmatprep.subr.mxu0 0.0
    %2999 = vmatpush1.msra.mxu0 %v2974
    %3000 = vmatprep.subr.mxu0 0.0
    %3001 = vmatpush1.msra.mxu0 %v2975
    %3002 = vmatprep.subr.mxu0 0.0
    %3003 = vmatpush1.msra.mxu0 %v2976
    %3004 = vmatprep.subr.mxu0 0.0
    %3005 = vmatpush1.msra.mxu0 %v2977
    %3006 = vmatprep.subr.mxu0 0.0
    %3007 = vmatpush1.msra.mxu0 %v2978
    %3008 = vmatprep.subr.mxu0 0.0
    %3009 = vmatpush1.msra.mxu0 %v2979
    %3010 = vmatprep.subr.mxu0 0.0
    %3011 = vmatpush1.msra.mxu0 %v2980
    %3012 = vmatprep.subr.mxu0 0.0
    %3013 = vmatpush1.msra.mxu0 %v2981
    %3014 = vmatprep.subr.mxu0 0.0
    %3015 = vmatpush1.msra.mxu0 %v2982
    %3016 = vmatprep.subr.mxu0 0.0
    %3017 = vmatpush1.msra.mxu0 %v2983
    %3018 = vmatprep.subr.mxu0 0.0
    %3019 = vmatpush1.msra.mxu0 %v2984
    %3020 = vmatprep.subr.mxu0 0.0
    %3021 = vmatpush1.msra.mxu0 %v2985
    %3022 = vmatprep.subr.mxu0 0.0
    %3023 = vmatpush1.msra.mxu0 %v2986
    %3024 = vmatprep.subr.mxu0 0.0
    %3025 = vmatpush1.msra.mxu0 %v2987
    %3026 = vmatprep.subr.mxu0 0.0
    %3027 = vmatpush1.msra.mxu0 %v2988
    %3028 = vmatprep.subr.mxu0 0.0
    %3029 = vmatpush1.msra.mxu0 %v2989
    %3030 = vmatprep.subr.mxu0 0.0
    %3031 = vmatpush1.msra.mxu0 %v2990
    %3032 = vmatprep.subr.mxu0 0.0
    %3033 = vmatpush1.msra.mxu0 %v2991
    %3034 = vmatprep.subr.mxu0 0.0
    %3035 = vmatpush1.msra.mxu0 %v2992
    %3036 = vmatprep.subr.mxu0 0.0
    %3037 = vmatpush1.msra.mxu0 0.0
    %3038 = vmatprep.subr.mxu0 0.0
    %3039 = vmatpush1.msra.mxu0 0.0
    %3040 = vmatprep.subr.mxu0 0.0
    %3041 = vmatpush1.msra.mxu0 0.0
    %3042 = vmatprep.subr.mxu0 0.0
    %3043 = vmatpush1.msra.mxu0 0.0
    %3044 = vmatprep.subr.mxu0 0.0
    %3045 = vmatpush1.msra.mxu0 0.0
    %3046 = vmatprep.subr.mxu0 0.0
    %3047 = vmatpush1.msra.mxu0 0.0
    %3048 = vmatprep.subr.mxu0 0.0
    %3049 = vmatpush1.msra.mxu0 0.0
    %3050 = vmatprep.subr.mxu0 0.0
    %3051 = vmatpush1.msra.mxu0 0.0
    %3052 = vmatprep.subr.mxu0 0.0
    %3053 = vmatpush1.msra.mxu0 0.0
    %3054 = vmatprep.subr.mxu0 0.0
    %3055 = vmatpush1.msra.mxu0 0.0
    %3056 = vmatprep.subr.mxu0 0.0
    %3057 = vmatpush1.msra.mxu0 0.0
    %3058 = vmatprep.subr.mxu0 0.0
    %3059 = vmatpush1.msra.mxu0 0.0
    %3060 = vmatprep.mubr.f32.mxu0 %v2994
    %3061 = vmatmul.mubr.f32.gmra.mrb[0].mxu0 %v2948
    %v3062 = vpop.f32.mrb[0].mxu0
    %v3063 = vadd.f32 0.0, %v3062
    %v3064 = vpop.f32.mrb[0].mxu0
    %3065 = vdwg.mxu0
    %v3067 = vsel %vm1418, %v2972, 0
    %3069 = vmatprep.subr.mxu0 0.0
    %3070 = vmatpush1.msra.mxu0 %v2973
    %3071 = vmatprep.subr.mxu0 0.0
    %3072 = vmatpush1.msra.mxu0 %v2974
    %3073 = vmatprep.subr.mxu0 0.0
    %3074 = vmatpush1.msra.mxu0 %v2975
    %3075 = vmatprep.subr.mxu0 0.0
    %3076 = vmatpush1.msra.mxu0 %v2976
    %3077 = vmatprep.subr.mxu0 0.0
    %3078 = vmatpush1.msra.mxu0 %v2977
    %3079 = vmatprep.subr.mxu0 0.0
    %3080 = vmatpush1.msra.mxu0 %v2978
    %3081 = vmatprep.subr.mxu0 0.0
    %3082 = vmatpush1.msra.mxu0 %v2979
    %3083 = vmatprep.subr.mxu0 0.0
    %3084 = vmatpush1.msra.mxu0 %v2980
    %3085 = vmatprep.subr.mxu0 0.0
    %3086 = vmatpush1.msra.mxu0 %v2981
    %3087 = vmatprep.subr.mxu0 0.0
    %3088 = vmatpush1.msra.mxu0 %v2982
    %3089 = vmatprep.subr.mxu0 0.0
    %3090 = vmatpush1.msra.mxu0 %v2983
    %3091 = vmatprep.subr.mxu0 0.0
    %3092 = vmatpush1.msra.mxu0 %v2984
    %3093 = vmatprep.subr.mxu0 0.0
    %3094 = vmatpush1.msra.mxu0 %v2985
    %3095 = vmatprep.subr.mxu0 0.0
    %3096 = vmatpush1.msra.mxu0 %v2986
    %3097 = vmatprep.subr.mxu0 0.0
    %3098 = vmatpush1.msra.mxu0 %v2987
    %3099 = vmatprep.subr.mxu0 0.0
    %3100 = vmatpush1.msra.mxu0 %v2988
    %3101 = vmatprep.subr.mxu0 0.0
    %3102 = vmatpush1.msra.mxu0 %v2989
    %3103 = vmatprep.subr.mxu0 0.0
    %3104 = vmatpush1.msra.mxu0 %v2990
    %3105 = vmatprep.subr.mxu0 0.0
    %3106 = vmatpush1.msra.mxu0 %v2991
    %3107 = vmatprep.subr.mxu0 0.0
    %3108 = vmatpush1.msra.mxu0 %v2992
    %3109 = vmatprep.subr.mxu0 0.0
    %3110 = vmatpush1.msra.mxu0 0.0
    %3111 = vmatprep.subr.mxu0 0.0
    %3112 = vmatpush1.msra.mxu0 0.0
    %3113 = vmatprep.subr.mxu0 0.0
    %3114 = vmatpush1.msra.mxu0 0.0
    %3115 = vmatprep.subr.mxu0 0.0
    %3116 = vmatpush1.msra.mxu0 0.0
    %3117 = vmatprep.subr.mxu0 0.0
    %3118 = vmatpush1.msra.mxu0 0.0
    %3119 = vmatprep.subr.mxu0 0.0
    %3120 = vmatpush1.msra.mxu0 0.0
    %3121 = vmatprep.subr.mxu0 0.0
    %3122 = vmatpush1.msra.mxu0 0.0
    %3123 = vmatprep.subr.mxu0 0.0
    %3124 = vmatpush1.msra.mxu0 0.0
    %3125 = vmatprep.subr.mxu0 0.0
    %3126 = vmatpush1.msra.mxu0 0.0
    %3127 = vmatprep.subr.mxu0 0.0
    %3128 = vmatpush1.msra.mxu0 0.0
    %3129 = vmatprep.subr.mxu0 0.0
    %3130 = vmatpush1.msra.mxu0 0.0
    %3131 = vmatprep.subr.mxu0 0.0
    %3132 = vmatpush1.msra.mxu0 0.0
    %3133 = vmatprep.mubr.f32.mxu0 %v3067
    %3134 = vmatmul.mubr.f32.gmra.mrb[0].mxu0 %v2971
    %v3135 = vpop.f32.mrb[0].mxu0
    %v3136 = vadd.f32 0.0, %v3135
    %v3137 = vpop.f32.mrb[0].mxu0
    %3138 = vdwg.mxu0
    %v3139 = vmul.f32 %v3063, 0.005
    %v3140 = vmul.f32 %v3136, 0.005
    %v3141 = vmul.f32 %v3139, %v3139
    %v3142 = vsub.f32 %v3140, %v3141
    %v3143 = vmax.f32 %v3142, 0.0
    %v3144 = vld [vmem:[%s13] sm:$0x1]
    %v3145 = vadd.f32 %v3143, 1e-05
    %v3146 = vrsqrt.pop %v3145
    %v3147 = vmul.f32 %v3144, %v3146
    %v3148 = vld [vmem:[%s14] sm:$0x1]
    %v3149 = vmul.f32 %v3139, %v3147
    %v3150 = vsub.f32 %v3148, %v3149
    %v3151 = vld [vmem:[%s12] sm:$0xff]
    %v3152 = vld [vmem:[%s12 + $0x8] sm:$0xff]
    %v3153 = vld [vmem:[%s12 + $0x10] sm:$0xff]
    %v3154 = vld [vmem:[%s12 + $0x18] sm:$0xff]
    %v3156 = vsel %vm94, %v3147, 0
    %3158 = vmatprep.subr.mxu0 %v3152
    %3159 = vmatpush1.msra.mxu0 %v3151
    %3160 = vmatprep.subr.mxu0 %v3154
    %3161 = vmatpush1.msra.mxu0 %v3153
    %3162 = vmatprep.subr.mxu0 0.0
    %3163 = vmatpush1.msra.mxu0 0.0
    %3164 = vmatprep.subr.mxu0 0.0
    %3165 = vmatpush1.msra.mxu0 0.0
    %3166 = vmatprep.subr.mxu0 0.0
    %3167 = vmatpush1.msra.mxu0 0.0
    %3168 = vmatprep.subr.mxu0 0.0
    %3169 = vmatpush1.msra.mxu0 0.0
    %3170 = vmatprep.subr.mxu0 0.0
    %3171 = vmatpush1.msra.mxu0 0.0
    %3172 = vmatprep.subr.mxu0 0.0
    %3173 = vmatpush1.msra.mxu0 0.0
    %3174 = vmatprep.subr.mxu0 0.0
    %3175 = vmatpush1.msra.mxu0 0.0
    %3176 = vmatprep.subr.mxu0 0.0
    %3177 = vmatpush1.msra.mxu0 0.0
    %3178 = vmatprep.subr.mxu0 0.0
    %3179 = vmatpush1.msra.mxu0 0.0
    %3180 = vmatprep.subr.mxu0 0.0
    %3181 = vmatpush1.msra.mxu0 0.0
    %3182 = vmatprep.subr.mxu0 0.0
    %3183 = vmatpush1.msra.mxu0 0.0
    %3184 = vmatprep.subr.mxu0 0.0
    %3185 = vmatpush1.msra.mxu0 0.0
    %3186 = vmatprep.subr.mxu0 0.0
    %3187 = vmatpush1.msra.mxu0 0.0
    %3188 = vmatprep.subr.mxu0 0.0
    %3189 = vmatpush1.msra.mxu0 0.0
    %3190 = vmatprep.subr.mxu0 0.0
    %3191 = vmatpush1.msra.mxu0 0.0
    %3192 = vmatprep.subr.mxu0 0.0
    %3193 = vmatpush1.msra.mxu0 0.0
    %3194 = vmatprep.subr.mxu0 0.0
    %3195 = vmatpush1.msra.mxu0 0.0
    %3196 = vmatprep.subr.mxu0 0.0
    %3197 = vmatpush1.msra.mxu0 0.0
    %3198 = vmatprep.subr.mxu0 0.0
    %3199 = vmatpush1.msra.mxu0 0.0
    %3200 = vmatprep.subr.mxu0 0.0
    %3201 = vmatpush1.msra.mxu0 0.0
    %3202 = vmatprep.subr.mxu0 0.0
    %3203 = vmatpush1.msra.mxu0 0.0
    %3204 = vmatprep.subr.mxu0 0.0
    %3205 = vmatpush1.msra.mxu0 0.0
    %3206 = vmatprep.subr.mxu0 0.0
    %3207 = vmatpush1.msra.mxu0 0.0
    %3208 = vmatprep.subr.mxu0 0.0
    %3209 = vmatpush1.msra.mxu0 0.0
    %3210 = vmatprep.subr.mxu0 0.0
    %3211 = vmatpush1.msra.mxu0 0.0
    %3212 = vmatprep.subr.mxu0 0.0
    %3213 = vmatpush1.msra.mxu0 0.0
    %3214 = vmatprep.subr.mxu0 0.0
    %3215 = vmatpush1.msra.mxu0 0.0
    %3216 = vmatprep.subr.mxu0 0.0
    %3217 = vmatpush1.msra.mxu0 0.0
    %3218 = vmatprep.subr.mxu0 0.0
    %3219 = vmatpush1.msra.mxu0 0.0
    %3220 = vmatprep.subr.mxu0 0.0
    %3221 = vmatpush1.msra.mxu0 0.0
    %3222 = vmatprep.mubr.f32.mxu0 0.0
    %3223 = vmatmul.mubr.f32.gmra.mrb[0].mxu0 %v3156
    %v3224 = vpop.f32.mrb[0].mxu0
    %v3225 = vadd.f32 0.0, %v3224
    %v3226 = vpop.f32.mrb[0].mxu0
    %v3227 = vadd.f32 0.0, %v3226
    %3228 = vdwg.mxu0
    %v3230 = vsel %vm94, %v3150, 0
    %3232 = vmatprep.subr.mxu0 %v3152
    %3233 = vmatpush1.msra.mxu0 %v3151
    %3234 = vmatprep.subr.mxu0 %v3154
    %3235 = vmatpush1.msra.mxu0 %v3153
    %3236 = vmatprep.subr.mxu0 0.0
    %3237 = vmatpush1.msra.mxu0 0.0
    %3238 = vmatprep.subr.mxu0 0.0
    %3239 = vmatpush1.msra.mxu0 0.0
    %3240 = vmatprep.subr.mxu0 0.0
    %3241 = vmatpush1.msra.mxu0 0.0
    %3242 = vmatprep.subr.mxu0 0.0
    %3243 = vmatpush1.msra.mxu0 0.0
    %3244 = vmatprep.subr.mxu0 0.0
    %3245 = vmatpush1.msra.mxu0 0.0
    %3246 = vmatprep.subr.mxu0 0.0
    %3247 = vmatpush1.msra.mxu0 0.0
    %3248 = vmatprep.subr.mxu0 0.0
    %3249 = vmatpush1.msra.mxu0 0.0
    %3250 = vmatprep.subr.mxu0 0.0
    %3251 = vmatpush1.msra.mxu0 0.0
    %3252 = vmatprep.subr.mxu0 0.0
    %3253 = vmatpush1.msra.mxu0 0.0
    %3254 = vmatprep.subr.mxu0 0.0
    %3255 = vmatpush1.msra.mxu0 0.0
    %3256 = vmatprep.subr.mxu0 0.0
    %3257 = vmatpush1.msra.mxu0 0.0
    %3258 = vmatprep.subr.mxu0 0.0
    %3259 = vmatpush1.msra.mxu0 0.0
    %3260 = vmatprep.subr.mxu0 0.0
    %3261 = vmatpush1.msra.mxu0 0.0
    %3262 = vmatprep.subr.mxu0 0.0
    %3263 = vmatpush1.msra.mxu0 0.0
    %3264 = vmatprep.subr.mxu0 0.0
    %3265 = vmatpush1.msra.mxu0 0.0
    %3266 = vmatprep.subr.mxu0 0.0
    %3267 = vmatpush1.msra.mxu0 0.0
    %3268 = vmatprep.subr.mxu0 0.0
    %3269 = vmatpush1.msra.mxu0 0.0
    %3270 = vmatprep.subr.mxu0 0.0
    %3271 = vmatpush1.msra.mxu0 0.0
    %3272 = vmatprep.subr.mxu0 0.0
    %3273 = vmatpush1.msra.mxu0 0.0
    %3274 = vmatprep.subr.mxu0 0.0
    %3275 = vmatpush1.msra.mxu0 0.0
    %3276 = vmatprep.subr.mxu0 0.0
    %3277 = vmatpush1.msra.mxu0 0.0
    %3278 = vmatprep.subr.mxu0 0.0
    %3279 = vmatpush1.msra.mxu0 0.0
    %3280 = vmatprep.subr.mxu0 0.0
    %3281 = vmatpush1.msra.mxu0 0.0
    %3282 = vmatprep.subr.mxu0 0.0
    %3283 = vmatpush1.msra.mxu0 0.0
    %3284 = vmatprep.subr.mxu0 0.0
    %3285 = vmatpush1.msra.mxu0 0.0
    %3286 = vmatprep.subr.mxu0 0.0
    %3287 = vmatpush1.msra.mxu0 0.0
    %3288 = vmatprep.subr.mxu0 0.0
    %3289 = vmatpush1.msra.mxu0 0.0
    %3290 = vmatprep.subr.mxu0 0.0
    %3291 = vmatpush1.msra.mxu0 0.0
    %3292 = vmatprep.subr.mxu0 0.0
    %3293 = vmatpush1.msra.mxu0 0.0
    %3294 = vmatprep.subr.mxu0 0.0
    %3295 = vmatpush1.msra.mxu0 0.0
    %3296 = vmatprep.mubr.f32.mxu0 0.0
    %3297 = vmatmul.mubr.f32.gmra.mrb[0].mxu0 %v3230
    %v3298 = vpop.f32.mrb[0].mxu0
    %v3299 = vadd.f32 0.0, %v3298
    %v3300 = vpop.f32.mrb[0].mxu0
    %v3301 = vadd.f32 0.0, %v3300
    %3302 = vdwg.mxu0
    %v3303 = vlaneseq
    %v3304 = vshrl.u32 %v3303, 7
    %v3305 = vsub.s32 0, %v3304
    %v3306 = vrot.slane %v3225, %v3305
    %v3307 = vlaneseq
    %v3308 = vshrl.u32 %v3307, 7
    %v3309 = vsub.s32 0, %v3308
    %v3310 = vrot.slane %v3227, %v3309
    %v3311 = vmul.f32 %v2531, %v3306
    %v3312 = vmul.f32 %v2533, %v3310
    %v3313 = vmul.f32 %v2537, %v3306
    %v3314 = vmul.f32 %v2539, %v3310
    %v3315 = vlaneseq
    %v3316 = vshrl.u32 %v3315, 7
    %v3317 = vsub.s32 0, %v3316
    %v3318 = vrot.slane %v3299, %v3317
    %v3319 = vlaneseq
    %v3320 = vshrl.u32 %v3319, 7
    %v3321 = vsub.s32 0, %v3320
    %v3322 = vrot.slane %v3301, %v3321
    %v3323 = vadd.f32 %v3311, %v3318
    %v3324 = vadd.f32 %v3312, %v3322
    %v3325 = vadd.f32 %v3313, %v3318
    %v3326 = vadd.f32 %v3314, %v3322
    %v3327 = vmax.f32 %v3323, 0.0
    %v3328 = vmax.f32 %v3324, 0.0
    %v3329 = vmax.f32 %v3325, 0.0
    %v3330 = vmax.f32 %v3326, 0.0
    %v3331 = vmul.f32 %v2882, %v3306
    %v3332 = vmul.f32 %v2884, %v3310
    %v3333 = vmul.f32 %v2888, %v3306
    %v3334 = vmul.f32 %v2890, %v3310
    %v3335 = vadd.f32 %v3331, %v3318
    %v3336 = vadd.f32 %v3332, %v3322
    %v3337 = vadd.f32 %v3333, %v3318
    %v3338 = vadd.f32 %v3334, %v3322
    %v3339 = vmax.f32 %v3335, 0.0
    %v3340 = vmax.f32 %v3336, 0.0
    %v3341 = vmax.f32 %v3337, 0.0
    %v3342 = vmax.f32 %v3338, 0.0
    %v3347 = vrot.slane %v3327, 7
    %v3348 = vrot.slane %v3328, 7
    %v3349 = vrot.slane %v3329, 7
    %v3350 = vsel %vm1765, %v3347, %v3349
    %v3351 = vrot.slane %v3330, 7
    %v3352 = vsel %vm1765, %v3348, %v3351
    %v3357 = vsel %vm1765, 0.0, %v3347
    %v3358 = vsel %vm1765, 0.0, %v3348
    %v3359 = vsel %vm1768, %v3350, 0.0
    %v3360 = vsel %vm1768, %v3352, 0.0
    %v3365 = vrot.slane %v3339, 7
    %v3366 = vrot.slane %v3340, 7
    %v3367 = vrot.slane %v3341, 7
    %v3368 = vsel %vm1765, %v3365, %v3367
    %v3369 = vrot.slane %v3342, 7
    %v3370 = vsel %vm1765, %v3366, %v3369
    %v3375 = vsel %vm1765, 0.0, %v3365
    %v3376 = vsel %vm1765, 0.0, %v3366
    %v3377 = vsel %vm1768, %v3368, 0.0
    %v3378 = vsel %vm1768, %v3370, 0.0
    %v3379 = vpack.c.bf16 %v3359, %v3357
    %v3380 = vpack.c.bf16 %v3360, %v3358
    %v3381 = vld [vmem:[%s15] sm:$0xff]
    %v3382 = vld [vmem:[%s15 + $0x8] sm:$0xff]
    %v3383 = vld [vmem:[%s15 + $0x10] sm:$0xff]
    %v3384 = vld [vmem:[%s15 + $0x18] sm:$0xff]
    %v3385 = vld [vmem:[%s15 + $0x20] sm:$0xff]
    %v3386 = vld [vmem:[%s15 + $0x28] sm:$0xff]
    %v3387 = vld [vmem:[%s15 + $0x30] sm:$0xff]
    %v3388 = vld [vmem:[%s15 + $0x38] sm:$0xff]
    %v3389 = vld [vmem:[%s15 + $0x40] sm:$0xff]
    %v3390 = vld [vmem:[%s15 + $0x48] sm:$0xff]
    %v3391 = vld [vmem:[%s15 + $0x50] sm:$0xff]
    %v3392 = vld [vmem:[%s15 + $0x58] sm:$0xff]
    %v3393 = vld [vmem:[%s15 + $0x60] sm:$0xff]
    %v3394 = vld [vmem:[%s15 + $0x68] sm:$0xff]
    %v3395 = vld [vmem:[%s15 + $0x70] sm:$0xff]
    %v3396 = vld [vmem:[%s15 + $0x78] sm:$0xff]
    %v3397 = vld [vmem:[%s15 + $0x80] sm:$0xff]
    %v3398 = vld [vmem:[%s15 + $0x88] sm:$0xff]
    %v3399 = vld [vmem:[%s15 + $0x90] sm:$0xff]
    %v3400 = vld [vmem:[%s15 + $0x98] sm:$0xff]
    %v3421 = vunpack.c.l.b16 %v3381
    %v3422 = vunpack.c.h.b16 %v3381
    %v3423 = vunpack.c.l.b16 %v3382
    %v3424 = vunpack.c.h.b16 %v3382
    %v3425 = vunpack.c.l.b16 %v3383
    %v3426 = vunpack.c.h.b16 %v3383
    %v3427 = vunpack.c.l.b16 %v3384
    %v3428 = vunpack.c.h.b16 %v3384
    %v3429 = vunpack.c.l.b16 %v3385
    %v3430 = vunpack.c.h.b16 %v3385
    %v3431 = vunpack.c.l.b16 %v3386
    %v3432 = vunpack.c.h.b16 %v3386
    %v3433 = vunpack.c.l.b16 %v3387
    %v3434 = vunpack.c.h.b16 %v3387
    %v3435 = vunpack.c.l.b16 %v3388
    %v3436 = vunpack.c.h.b16 %v3388
    %v3437 = vunpack.c.l.b16 %v3389
    %v3438 = vunpack.c.h.b16 %v3389
    %v3439 = vunpack.c.l.b16 %v3390
    %v3440 = vunpack.c.h.b16 %v3390
    %v3441 = vunpack.c.l.b16 %v3391
    %v3442 = vunpack.c.h.b16 %v3391
    %v3443 = vunpack.c.l.b16 %v3392
    %v3444 = vunpack.c.h.b16 %v3392
    %v3445 = vunpack.c.l.b16 %v3393
    %v3446 = vunpack.c.h.b16 %v3393
    %v3447 = vunpack.c.l.b16 %v3394
    %v3448 = vunpack.c.h.b16 %v3394
    %v3449 = vunpack.c.l.b16 %v3395
    %v3450 = vunpack.c.h.b16 %v3395
    %v3451 = vunpack.c.l.b16 %v3396
    %v3452 = vunpack.c.h.b16 %v3396
    %v3453 = vunpack.c.l.b16 %v3397
    %v3454 = vunpack.c.h.b16 %v3397
    %v3455 = vunpack.c.l.b16 %v3398
    %v3456 = vunpack.c.h.b16 %v3398
    %v3457 = vunpack.c.l.b16 %v3399
    %v3458 = vunpack.c.h.b16 %v3399
    %v3459 = vunpack.c.l.b16 %v3400
    %v3460 = vunpack.c.h.b16 %v3400
    %v3461 = vpack.c.b16 %v3423, %v3421
    %v3462 = vpack.c.b16 %v3424, %v3422
    %v3463 = vpack.c.b16 %v3427, %v3425
    %v3464 = vpack.c.b16 %v3428, %v3426
    %v3465 = vpack.c.b16 %v3431, %v3429
    %v3466 = vpack.c.b16 %v3432, %v3430
    %v3467 = vpack.c.b16 %v3435, %v3433
    %v3468 = vpack.c.b16 %v3436, %v3434
    %v3469 = vpack.c.b16 %v3439, %v3437
    %v3470 = vpack.c.b16 %v3440, %v3438
    %v3471 = vpack.c.b16 %v3443, %v3441
    %v3472 = vpack.c.b16 %v3444, %v3442
    %v3473 = vpack.c.b16 %v3447, %v3445
    %v3474 = vpack.c.b16 %v3448, %v3446
    %v3475 = vpack.c.b16 %v3451, %v3449
    %v3476 = vpack.c.b16 %v3452, %v3450
    %v3477 = vpack.c.b16 %v3455, %v3453
    %v3478 = vpack.c.b16 %v3456, %v3454
    %v3479 = vpack.c.b16 %v3459, %v3457
    %v3480 = vpack.c.b16 %v3460, %v3458
    %v3502 = vsel %vm1418, %v3380, 0
    %3504 = vmatprep.subr.bf16.mxu0 %v3462
    %3505 = vmatpush1.bf16.msra.mxu0 %v3461
    %3506 = vmatprep.subr.bf16.mxu0 %v3464
    %3507 = vmatpush1.bf16.msra.mxu0 %v3463
    %3508 = vmatprep.subr.bf16.mxu0 %v3466
    %3509 = vmatpush1.bf16.msra.mxu0 %v3465
    %3510 = vmatprep.subr.bf16.mxu0 %v3468
    %3511 = vmatpush1.bf16.msra.mxu0 %v3467
    %3512 = vmatprep.subr.bf16.mxu0 %v3470
    %3513 = vmatpush1.bf16.msra.mxu0 %v3469
    %3514 = vmatprep.subr.bf16.mxu0 %v3472
    %3515 = vmatpush1.bf16.msra.mxu0 %v3471
    %3516 = vmatprep.subr.bf16.mxu0 %v3474
    %3517 = vmatpush1.bf16.msra.mxu0 %v3473
    %3518 = vmatprep.subr.bf16.mxu0 %v3476
    %3519 = vmatpush1.bf16.msra.mxu0 %v3475
    %3520 = vmatprep.subr.bf16.mxu0 %v3478
    %3521 = vmatpush1.bf16.msra.mxu0 %v3477
    %3522 = vmatprep.subr.bf16.mxu0 %v3480
    %3523 = vmatpush1.bf16.msra.mxu0 %v3479
    %3524 = vmatprep.subr.bf16.mxu0 0
    %3525 = vmatpush1.bf16.msra.mxu0 0
    %3526 = vmatprep.subr.bf16.mxu0 0
    %3527 = vmatpush1.bf16.msra.mxu0 0
    %3528 = vmatprep.subr.bf16.mxu0 0
    %3529 = vmatpush1.bf16.msra.mxu0 0
    %3530 = vmatprep.subr.bf16.mxu0 0
    %3531 = vmatpush1.bf16.msra.mxu0 0
    %3532 = vmatprep.subr.bf16.mxu0 0
    %3533 = vmatpush1.bf16.msra.mxu0 0
    %3534 = vmatprep.subr.bf16.mxu0 0
    %3535 = vmatpush1.bf16.msra.mxu0 0
    %3536 = vmatprep.mubr.bf16.mxu0 %v3502
    %3537 = vmatmul.mubr.bf16.gmra.mrb[0].mxu0 %v3379
    %v3538 = vpop.f32.mrb[0].mxu0
    %v3539 = vadd.f32 0.0, %v3538
    %v3540 = vpop.f32.mrb[0].mxu0
    %v3541 = vadd.f32 0.0, %v3540
    %v3542 = vpop.f32.mrb[0].mxu0
    %v3543 = vadd.f32 0.0, %v3542
    %v3544 = vpop.f32.mrb[0].mxu0
    %v3545 = vadd.f32 0.0, %v3544
    %3546 = vdwg.mxu0
    %s3547 = scalar_lea.vmem %s15, 160
    %v3548 = vld [vmem:[%s3547] sm:$0xff]
    %v3549 = vld [vmem:[%s3547 + $0x8] sm:$0xff]
    %v3550 = vld [vmem:[%s3547 + $0x10] sm:$0xff]
    %v3551 = vld [vmem:[%s3547 + $0x18] sm:$0xff]
    %v3552 = vld [vmem:[%s3547 + $0x20] sm:$0xff]
    %v3553 = vld [vmem:[%s3547 + $0x28] sm:$0xff]
    %v3554 = vld [vmem:[%s3547 + $0x30] sm:$0xff]
    %v3555 = vld [vmem:[%s3547 + $0x38] sm:$0xff]
    %v3556 = vld [vmem:[%s3547 + $0x40] sm:$0xff]
    %v3557 = vld [vmem:[%s3547 + $0x48] sm:$0xff]
    %v3558 = vld [vmem:[%s3547 + $0x50] sm:$0xff]
    %v3559 = vld [vmem:[%s3547 + $0x58] sm:$0xff]
    %v3560 = vld [vmem:[%s3547 + $0x60] sm:$0xff]
    %v3561 = vld [vmem:[%s3547 + $0x68] sm:$0xff]
    %v3562 = vld [vmem:[%s3547 + $0x70] sm:$0xff]
    %v3563 = vld [vmem:[%s3547 + $0x78] sm:$0xff]
    %v3564 = vld [vmem:[%s3547 + $0x80] sm:$0xff]
    %v3565 = vld [vmem:[%s3547 + $0x88] sm:$0xff]
    %v3566 = vld [vmem:[%s3547 + $0x90] sm:$0xff]
    %v3567 = vld [vmem:[%s3547 + $0x98] sm:$0xff]
    %v3588 = vunpack.c.l.b16 %v3548
    %v3589 = vunpack.c.h.b16 %v3548
    %v3590 = vunpack.c.l.b16 %v3549
    %v3591 = vunpack.c.h.b16 %v3549
    %v3592 = vunpack.c.l.b16 %v3550
    %v3593 = vunpack.c.h.b16 %v3550
    %v3594 = vunpack.c.l.b16 %v3551
    %v3595 = vunpack.c.h.b16 %v3551
    %v3596 = vunpack.c.l.b16 %v3552
    %v3597 = vunpack.c.h.b16 %v3552
    %v3598 = vunpack.c.l.b16 %v3553
    %v3599 = vunpack.c.h.b16 %v3553
    %v3600 = vunpack.c.l.b16 %v3554
    %v3601 = vunpack.c.h.b16 %v3554
    %v3602 = vunpack.c.l.b16 %v3555
    %v3603 = vunpack.c.h.b16 %v3555
    %v3604 = vunpack.c.l.b16 %v3556
    %v3605 = vunpack.c.h.b16 %v3556
    %v3606 = vunpack.c.l.b16 %v3557
    %v3607 = vunpack.c.h.b16 %v3557
    %v3608 = vunpack.c.l.b16 %v3558
    %v3609 = vunpack.c.h.b16 %v3558
    %v3610 = vunpack.c.l.b16 %v3559
    %v3611 = vunpack.c.h.b16 %v3559
    %v3612 = vunpack.c.l.b16 %v3560
    %v3613 = vunpack.c.h.b16 %v3560
    %v3614 = vunpack.c.l.b16 %v3561
    %v3615 = vunpack.c.h.b16 %v3561
    %v3616 = vunpack.c.l.b16 %v3562
    %v3617 = vunpack.c.h.b16 %v3562
    %v3618 = vunpack.c.l.b16 %v3563
    %v3619 = vunpack.c.h.b16 %v3563
    %v3620 = vunpack.c.l.b16 %v3564
    %v3621 = vunpack.c.h.b16 %v3564
    %v3622 = vunpack.c.l.b16 %v3565
    %v3623 = vunpack.c.h.b16 %v3565
    %v3624 = vunpack.c.l.b16 %v3566
    %v3625 = vunpack.c.h.b16 %v3566
    %v3626 = vunpack.c.l.b16 %v3567
    %v3627 = vunpack.c.h.b16 %v3567
    %v3628 = vpack.c.b16 %v3590, %v3588
    %v3629 = vpack.c.b16 %v3591, %v3589
    %v3630 = vpack.c.b16 %v3594, %v3592
    %v3631 = vpack.c.b16 %v3595, %v3593
    %v3632 = vpack.c.b16 %v3598, %v3596
    %v3633 = vpack.c.b16 %v3599, %v3597
    %v3634 = vpack.c.b16 %v3602, %v3600
    %v3635 = vpack.c.b16 %v3603, %v3601
    %v3636 = vpack.c.b16 %v3606, %v3604
    %v3637 = vpack.c.b16 %v3607, %v3605
    %v3638 = vpack.c.b16 %v3610, %v3608
    %v3639 = vpack.c.b16 %v3611, %v3609
    %v3640 = vpack.c.b16 %v3614, %v3612
    %v3641 = vpack.c.b16 %v3615, %v3613
    %v3642 = vpack.c.b16 %v3618, %v3616
    %v3643 = vpack.c.b16 %v3619, %v3617
    %v3644 = vpack.c.b16 %v3622, %v3620
    %v3645 = vpack.c.b16 %v3623, %v3621
    %v3646 = vpack.c.b16 %v3626, %v3624
    %v3647 = vpack.c.b16 %v3627, %v3625
    %3668 = vmatprep.subr.bf16.mxu0 %v3629
    %3669 = vmatpush1.bf16.msra.mxu0 %v3628
    %3670 = vmatprep.subr.bf16.mxu0 %v3631
    %3671 = vmatpush1.bf16.msra.mxu0 %v3630
    %3672 = vmatprep.subr.bf16.mxu0 %v3633
    %3673 = vmatpush1.bf16.msra.mxu0 %v3632
    %3674 = vmatprep.subr.bf16.mxu0 %v3635
    %3675 = vmatpush1.bf16.msra.mxu0 %v3634
    %3676 = vmatprep.subr.bf16.mxu0 %v3637
    %3677 = vmatpush1.bf16.msra.mxu0 %v3636
    %3678 = vmatprep.subr.bf16.mxu0 %v3639
    %3679 = vmatpush1.bf16.msra.mxu0 %v3638
    %3680 = vmatprep.subr.bf16.mxu0 %v3641
    %3681 = vmatpush1.bf16.msra.mxu0 %v3640
    %3682 = vmatprep.subr.bf16.mxu0 %v3643
    %3683 = vmatpush1.bf16.msra.mxu0 %v3642
    %3684 = vmatprep.subr.bf16.mxu0 %v3645
    %3685 = vmatpush1.bf16.msra.mxu0 %v3644
    %3686 = vmatprep.subr.bf16.mxu0 %v3647
    %3687 = vmatpush1.bf16.msra.mxu0 %v3646
    %3688 = vmatprep.subr.bf16.mxu0 0
    %3689 = vmatpush1.bf16.msra.mxu0 0
    %3690 = vmatprep.subr.bf16.mxu0 0
    %3691 = vmatpush1.bf16.msra.mxu0 0
    %3692 = vmatprep.subr.bf16.mxu0 0
    %3693 = vmatpush1.bf16.msra.mxu0 0
    %3694 = vmatprep.subr.bf16.mxu0 0
    %3695 = vmatpush1.bf16.msra.mxu0 0
    %3696 = vmatprep.subr.bf16.mxu0 0
    %3697 = vmatpush1.bf16.msra.mxu0 0
    %3698 = vmatprep.subr.bf16.mxu0 0
    %3699 = vmatpush1.bf16.msra.mxu0 0
    %3700 = vmatprep.mubr.bf16.mxu0 %v3502
    %3701 = vmatmul.mubr.bf16.gmra.mrb[0].mxu0 %v3379
    %v3702 = vpop.f32.mrb[0].mxu0
    %v3703 = vadd.f32 0.0, %v3702
    %v3704 = vpop.f32.mrb[0].mxu0
    %v3705 = vadd.f32 0.0, %v3704
    %v3706 = vpop.f32.mrb[0].mxu0
    %v3707 = vadd.f32 0.0, %v3706
    %v3708 = vpop.f32.mrb[0].mxu0
    %v3709 = vadd.f32 0.0, %v3708
    %3710 = vdwg.mxu0
    %s3711 = scalar_lea.vmem %s15, 320
    %v3712 = vld [vmem:[%s3711] sm:$0xff]
    %v3713 = vld [vmem:[%s3711 + $0x8] sm:$0xff]
    %v3714 = vld [vmem:[%s3711 + $0x10] sm:$0xff]
    %v3715 = vld [vmem:[%s3711 + $0x18] sm:$0xff]
    %v3716 = vld [vmem:[%s3711 + $0x20] sm:$0xff]
    %v3717 = vld [vmem:[%s3711 + $0x28] sm:$0xff]
    %v3718 = vld [vmem:[%s3711 + $0x30] sm:$0xff]
    %v3719 = vld [vmem:[%s3711 + $0x38] sm:$0xff]
    %v3720 = vld [vmem:[%s3711 + $0x40] sm:$0xff]
    %v3721 = vld [vmem:[%s3711 + $0x48] sm:$0xff]
    %v3722 = vld [vmem:[%s3711 + $0x50] sm:$0xff]
    %v3723 = vld [vmem:[%s3711 + $0x58] sm:$0xff]
    %v3724 = vld [vmem:[%s3711 + $0x60] sm:$0xff]
    %v3725 = vld [vmem:[%s3711 + $0x68] sm:$0xff]
    %v3726 = vld [vmem:[%s3711 + $0x70] sm:$0xff]
    %v3727 = vld [vmem:[%s3711 + $0x78] sm:$0xff]
    %v3728 = vld [vmem:[%s3711 + $0x80] sm:$0xff]
    %v3729 = vld [vmem:[%s3711 + $0x88] sm:$0xff]
    %v3730 = vld [vmem:[%s3711 + $0x90] sm:$0xff]
    %v3731 = vld [vmem:[%s3711 + $0x98] sm:$0xff]
    %v3752 = vunpack.c.l.b16 %v3712
    %v3753 = vunpack.c.h.b16 %v3712
    %v3754 = vunpack.c.l.b16 %v3713
    %v3755 = vunpack.c.h.b16 %v3713
    %v3756 = vunpack.c.l.b16 %v3714
    %v3757 = vunpack.c.h.b16 %v3714
    %v3758 = vunpack.c.l.b16 %v3715
    %v3759 = vunpack.c.h.b16 %v3715
    %v3760 = vunpack.c.l.b16 %v3716
    %v3761 = vunpack.c.h.b16 %v3716
    %v3762 = vunpack.c.l.b16 %v3717
    %v3763 = vunpack.c.h.b16 %v3717
    %v3764 = vunpack.c.l.b16 %v3718
    %v3765 = vunpack.c.h.b16 %v3718
    %v3766 = vunpack.c.l.b16 %v3719
    %v3767 = vunpack.c.h.b16 %v3719
    %v3768 = vunpack.c.l.b16 %v3720
    %v3769 = vunpack.c.h.b16 %v3720
    %v3770 = vunpack.c.l.b16 %v3721
    %v3771 = vunpack.c.h.b16 %v3721
    %v3772 = vunpack.c.l.b16 %v3722
    %v3773 = vunpack.c.h.b16 %v3722
    %v3774 = vunpack.c.l.b16 %v3723
    %v3775 = vunpack.c.h.b16 %v3723
    %v3776 = vunpack.c.l.b16 %v3724
    %v3777 = vunpack.c.h.b16 %v3724
    %v3778 = vunpack.c.l.b16 %v3725
    %v3779 = vunpack.c.h.b16 %v3725
    %v3780 = vunpack.c.l.b16 %v3726
    %v3781 = vunpack.c.h.b16 %v3726
    %v3782 = vunpack.c.l.b16 %v3727
    %v3783 = vunpack.c.h.b16 %v3727
    %v3784 = vunpack.c.l.b16 %v3728
    %v3785 = vunpack.c.h.b16 %v3728
    %v3786 = vunpack.c.l.b16 %v3729
    %v3787 = vunpack.c.h.b16 %v3729
    %v3788 = vunpack.c.l.b16 %v3730
    %v3789 = vunpack.c.h.b16 %v3730
    %v3790 = vunpack.c.l.b16 %v3731
    %v3791 = vunpack.c.h.b16 %v3731
    %v3792 = vpack.c.b16 %v3754, %v3752
    %v3793 = vpack.c.b16 %v3755, %v3753
    %v3794 = vpack.c.b16 %v3758, %v3756
    %v3795 = vpack.c.b16 %v3759, %v3757
    %v3796 = vpack.c.b16 %v3762, %v3760
    %v3797 = vpack.c.b16 %v3763, %v3761
    %v3798 = vpack.c.b16 %v3766, %v3764
    %v3799 = vpack.c.b16 %v3767, %v3765
    %v3800 = vpack.c.b16 %v3770, %v3768
    %v3801 = vpack.c.b16 %v3771, %v3769
    %v3802 = vpack.c.b16 %v3774, %v3772
    %v3803 = vpack.c.b16 %v3775, %v3773
    %v3804 = vpack.c.b16 %v3778, %v3776
    %v3805 = vpack.c.b16 %v3779, %v3777
    %v3806 = vpack.c.b16 %v3782, %v3780
    %v3807 = vpack.c.b16 %v3783, %v3781
    %v3808 = vpack.c.b16 %v3786, %v3784
    %v3809 = vpack.c.b16 %v3787, %v3785
    %v3810 = vpack.c.b16 %v3790, %v3788
    %v3811 = vpack.c.b16 %v3791, %v3789
    %3832 = vmatprep.subr.bf16.mxu0 %v3793
    %3833 = vmatpush1.bf16.msra.mxu0 %v3792
    %3834 = vmatprep.subr.bf16.mxu0 %v3795
    %3835 = vmatpush1.bf16.msra.mxu0 %v3794
    %3836 = vmatprep.subr.bf16.mxu0 %v3797
    %3837 = vmatpush1.bf16.msra.mxu0 %v3796
    %3838 = vmatprep.subr.bf16.mxu0 %v3799
    %3839 = vmatpush1.bf16.msra.mxu0 %v3798
    %3840 = vmatprep.subr.bf16.mxu0 %v3801
    %3841 = vmatpush1.bf16.msra.mxu0 %v3800
    %3842 = vmatprep.subr.bf16.mxu0 %v3803
    %3843 = vmatpush1.bf16.msra.mxu0 %v3802
    %3844 = vmatprep.subr.bf16.mxu0 %v3805
    %3845 = vmatpush1.bf16.msra.mxu0 %v3804
    %3846 = vmatprep.subr.bf16.mxu0 %v3807
    %3847 = vmatpush1.bf16.msra.mxu0 %v3806
    %3848 = vmatprep.subr.bf16.mxu0 %v3809
    %3849 = vmatpush1.bf16.msra.mxu0 %v3808
    %3850 = vmatprep.subr.bf16.mxu0 %v3811
    %3851 = vmatpush1.bf16.msra.mxu0 %v3810
    %3852 = vmatprep.subr.bf16.mxu0 0
    %3853 = vmatpush1.bf16.msra.mxu0 0
    %3854 = vmatprep.subr.bf16.mxu0 0
    %3855 = vmatpush1.bf16.msra.mxu0 0
    %3856 = vmatprep.subr.bf16.mxu0 0
    %3857 = vmatpush1.bf16.msra.mxu0 0
    %3858 = vmatprep.subr.bf16.mxu0 0
    %3859 = vmatpush1.bf16.msra.mxu0 0
    %3860 = vmatprep.subr.bf16.mxu0 0
    %3861 = vmatpush1.bf16.msra.mxu0 0
    %3862 = vmatprep.subr.bf16.mxu0 0
    %3863 = vmatpush1.bf16.msra.mxu0 0
    %3864 = vmatprep.mubr.bf16.mxu0 %v3502
    %3865 = vmatmul.mubr.bf16.gmra.mrb[0].mxu0 %v3379
    %v3866 = vpop.f32.mrb[0].mxu0
    %v3867 = vadd.f32 0.0, %v3866
    %v3868 = vpop.f32.mrb[0].mxu0
    %v3869 = vadd.f32 0.0, %v3868
    %v3870 = vpop.f32.mrb[0].mxu0
    %v3871 = vadd.f32 0.0, %v3870
    %v3872 = vpop.f32.mrb[0].mxu0
    %v3873 = vadd.f32 0.0, %v3872
    %3874 = vdwg.mxu0
    %s3875 = scalar_lea.vmem %s15, 480
    %v3876 = vld [vmem:[%s3875] sm:$0xff]
    %v3877 = vld [vmem:[%s3875 + $0x8] sm:$0xff]
    %v3878 = vld [vmem:[%s3875 + $0x10] sm:$0xff]
    %v3879 = vld [vmem:[%s3875 + $0x18] sm:$0xff]
    %v3880 = vld [vmem:[%s3875 + $0x20] sm:$0xff]
    %v3881 = vld [vmem:[%s3875 + $0x28] sm:$0xff]
    %v3882 = vld [vmem:[%s3875 + $0x30] sm:$0xff]
    %v3883 = vld [vmem:[%s3875 + $0x38] sm:$0xff]
    %v3884 = vld [vmem:[%s3875 + $0x40] sm:$0xff]
    %v3885 = vld [vmem:[%s3875 + $0x48] sm:$0xff]
    %v3886 = vld [vmem:[%s3875 + $0x50] sm:$0xff]
    %v3887 = vld [vmem:[%s3875 + $0x58] sm:$0xff]
    %v3888 = vld [vmem:[%s3875 + $0x60] sm:$0xff]
    %v3889 = vld [vmem:[%s3875 + $0x68] sm:$0xff]
    %v3890 = vld [vmem:[%s3875 + $0x70] sm:$0xff]
    %v3891 = vld [vmem:[%s3875 + $0x78] sm:$0xff]
    %v3892 = vld [vmem:[%s3875 + $0x80] sm:$0xff]
    %v3893 = vld [vmem:[%s3875 + $0x88] sm:$0xff]
    %v3894 = vld [vmem:[%s3875 + $0x90] sm:$0xff]
    %v3895 = vld [vmem:[%s3875 + $0x98] sm:$0xff]
    %v3916 = vunpack.c.l.b16 %v3876
    %v3917 = vunpack.c.h.b16 %v3876
    %v3918 = vunpack.c.l.b16 %v3877
    %v3919 = vunpack.c.h.b16 %v3877
    %v3920 = vunpack.c.l.b16 %v3878
    %v3921 = vunpack.c.h.b16 %v3878
    %v3922 = vunpack.c.l.b16 %v3879
    %v3923 = vunpack.c.h.b16 %v3879
    %v3924 = vunpack.c.l.b16 %v3880
    %v3925 = vunpack.c.h.b16 %v3880
    %v3926 = vunpack.c.l.b16 %v3881
    %v3927 = vunpack.c.h.b16 %v3881
    %v3928 = vunpack.c.l.b16 %v3882
    %v3929 = vunpack.c.h.b16 %v3882
    %v3930 = vunpack.c.l.b16 %v3883
    %v3931 = vunpack.c.h.b16 %v3883
    %v3932 = vunpack.c.l.b16 %v3884
    %v3933 = vunpack.c.h.b16 %v3884
    %v3934 = vunpack.c.l.b16 %v3885
    %v3935 = vunpack.c.h.b16 %v3885
    %v3936 = vunpack.c.l.b16 %v3886
    %v3937 = vunpack.c.h.b16 %v3886
    %v3938 = vunpack.c.l.b16 %v3887
    %v3939 = vunpack.c.h.b16 %v3887
    %v3940 = vunpack.c.l.b16 %v3888
    %v3941 = vunpack.c.h.b16 %v3888
    %v3942 = vunpack.c.l.b16 %v3889
    %v3943 = vunpack.c.h.b16 %v3889
    %v3944 = vunpack.c.l.b16 %v3890
    %v3945 = vunpack.c.h.b16 %v3890
    %v3946 = vunpack.c.l.b16 %v3891
    %v3947 = vunpack.c.h.b16 %v3891
    %v3948 = vunpack.c.l.b16 %v3892
    %v3949 = vunpack.c.h.b16 %v3892
    %v3950 = vunpack.c.l.b16 %v3893
    %v3951 = vunpack.c.h.b16 %v3893
    %v3952 = vunpack.c.l.b16 %v3894
    %v3953 = vunpack.c.h.b16 %v3894
    %v3954 = vunpack.c.l.b16 %v3895
    %v3955 = vunpack.c.h.b16 %v3895
    %v3956 = vpack.c.b16 %v3918, %v3916
    %v3957 = vpack.c.b16 %v3919, %v3917
    %v3958 = vpack.c.b16 %v3922, %v3920
    %v3959 = vpack.c.b16 %v3923, %v3921
    %v3960 = vpack.c.b16 %v3926, %v3924
    %v3961 = vpack.c.b16 %v3927, %v3925
    %v3962 = vpack.c.b16 %v3930, %v3928
    %v3963 = vpack.c.b16 %v3931, %v3929
    %v3964 = vpack.c.b16 %v3934, %v3932
    %v3965 = vpack.c.b16 %v3935, %v3933
    %v3966 = vpack.c.b16 %v3938, %v3936
    %v3967 = vpack.c.b16 %v3939, %v3937
    %v3968 = vpack.c.b16 %v3942, %v3940
    %v3969 = vpack.c.b16 %v3943, %v3941
    %v3970 = vpack.c.b16 %v3946, %v3944
    %v3971 = vpack.c.b16 %v3947, %v3945
    %v3972 = vpack.c.b16 %v3950, %v3948
    %v3973 = vpack.c.b16 %v3951, %v3949
    %v3974 = vpack.c.b16 %v3954, %v3952
    %v3975 = vpack.c.b16 %v3955, %v3953
    %3996 = vmatprep.subr.bf16.mxu0 %v3957
    %3997 = vmatpush1.bf16.msra.mxu0 %v3956
    %3998 = vmatprep.subr.bf16.mxu0 %v3959
    %3999 = vmatpush1.bf16.msra.mxu0 %v3958
    %4000 = vmatprep.subr.bf16.mxu0 %v3961
    %4001 = vmatpush1.bf16.msra.mxu0 %v3960
    %4002 = vmatprep.subr.bf16.mxu0 %v3963
    %4003 = vmatpush1.bf16.msra.mxu0 %v3962
    %4004 = vmatprep.subr.bf16.mxu0 %v3965
    %4005 = vmatpush1.bf16.msra.mxu0 %v3964
    %4006 = vmatprep.subr.bf16.mxu0 %v3967
    %4007 = vmatpush1.bf16.msra.mxu0 %v3966
    %4008 = vmatprep.subr.bf16.mxu0 %v3969
    %4009 = vmatpush1.bf16.msra.mxu0 %v3968
    %4010 = vmatprep.subr.bf16.mxu0 %v3971
    %4011 = vmatpush1.bf16.msra.mxu0 %v3970
    %4012 = vmatprep.subr.bf16.mxu0 %v3973
    %4013 = vmatpush1.bf16.msra.mxu0 %v3972
    %4014 = vmatprep.subr.bf16.mxu0 %v3975
    %4015 = vmatpush1.bf16.msra.mxu0 %v3974
    %4016 = vmatprep.subr.bf16.mxu0 0
    %4017 = vmatpush1.bf16.msra.mxu0 0
    %4018 = vmatprep.subr.bf16.mxu0 0
    %4019 = vmatpush1.bf16.msra.mxu0 0
    %4020 = vmatprep.subr.bf16.mxu0 0
    %4021 = vmatpush1.bf16.msra.mxu0 0
    %4022 = vmatprep.subr.bf16.mxu0 0
    %4023 = vmatpush1.bf16.msra.mxu0 0
    %4024 = vmatprep.subr.bf16.mxu0 0
    %4025 = vmatpush1.bf16.msra.mxu0 0
    %4026 = vmatprep.subr.bf16.mxu0 0
    %4027 = vmatpush1.bf16.msra.mxu0 0
    %4028 = vmatprep.mubr.bf16.mxu0 %v3502
    %4029 = vmatmul.mubr.bf16.gmra.mrb[0].mxu0 %v3379
    %v4030 = vpop.f32.mrb[0].mxu0
    %v4031 = vadd.f32 0.0, %v4030
    %v4032 = vpop.f32.mrb[0].mxu0
    %v4033 = vadd.f32 0.0, %v4032
    %v4034 = vpop.f32.mrb[0].mxu0
    %v4035 = vadd.f32 0.0, %v4034
    %v4036 = vpop.f32.mrb[0].mxu0
    %v4037 = vadd.f32 0.0, %v4036
    %4038 = vdwg.mxu0
    %v4043 = vrot.slane %v4031, 7
    %v4044 = vrot.slane %v4033, 7
    %v4045 = vrot.slane %v4035, 7
    %v4046 = vsel %vm1765, %v4043, %v4045
    %v4047 = vrot.slane %v4037, 7
    %v4048 = vsel %vm1765, %v4044, %v4047
    %v4053 = vadd.f32 %v3703, %v4043
    %v4054 = vadd.f32 %v3705, %v4044
    %v4055 = vadd.f32 %v3707, %v4046
    %v4056 = vadd.f32 %v3709, %v4048
    %v4061 = vrot.slane %v3867, 7
    %v4062 = vrot.slane %v3869, 7
    %v4063 = vrot.slane %v3871, 7
    %v4064 = vsel %vm1765, %v4061, %v4063
    %v4065 = vrot.slane %v3873, 7
    %v4066 = vsel %vm1765, %v4062, %v4065
    %v4071 = vadd.f32 %v3539, %v4061
    %v4072 = vadd.f32 %v3541, %v4062
    %v4073 = vadd.f32 %v3543, %v4064
    %v4074 = vadd.f32 %v3545, %v4066
    %v4075 = vld [vmem:[%s16] sm:$0xff]
    %v4076 = vld [vmem:[%s16 + $0x8] sm:$0xff]
    %v4077 = vld [vmem:[%s16 + $0x10] sm:$0xf]
    %s4078 = scalar_lea.vmem %s16, 24
    %v4079 = vld [vmem:[%s4078] sm:$0xff]
    %v4080 = vld [vmem:[%s4078 + $0x8] sm:$0xff]
    %v4081 = vld [vmem:[%s4078 + $0x10] sm:$0xf]
    %vm4086 = vcmask 1045504
    %v4087 = vrot.slane %v4071, 2
    %v4088 = vrot.slane %v4073, 2
    %v4089 = vsel %vm4086, %v4087, %v4088
    %v4090 = vrot.slane %v4072, 2
    %v4091 = vrot.slane %v4074, 2
    %v4092 = vsel %vm4086, %v4090, %v4091
    %vm4095 = vcmask 80896
    %v4097 = vsel %vm4095, %v4079, 0
    %v4100 = vsel %vm4095, %v4080, 0
    %v4103 = vsel %vm4095, %v4081, 0
    %v4105 = vsel %vm985, %v4088, 0
    %v4107 = vsel %vm985, %v4091, 0
    %4109 = vmatprep.subr.mxu0 %v4092
    %4110 = vmatpush1.msra.mxu0 %v4089
    %4111 = vmatprep.subr.mxu0 %v4107
    %4112 = vmatpush1.msra.mxu0 %v4105
    %4113 = vmatprep.subr.mxu0 0.0
    %4114 = vmatpush1.msra.mxu0 0.0
    %4115 = vmatprep.subr.mxu0 0.0
    %4116 = vmatpush1.msra.mxu0 0.0
    %4117 = vmatprep.subr.mxu0 0.0
    %4118 = vmatpush1.msra.mxu0 0.0
    %4119 = vmatprep.subr.mxu0 0.0
    %4120 = vmatpush1.msra.mxu0 0.0
    %4121 = vmatprep.subr.mxu0 0.0
    %4122 = vmatpush1.msra.mxu0 0.0
    %4123 = vmatprep.subr.mxu0 0.0
    %4124 = vmatpush1.msra.mxu0 0.0
    %4125 = vmatprep.subr.mxu0 0.0
    %4126 = vmatpush1.msra.mxu0 0.0
    %4127 = vmatprep.subr.mxu0 0.0
    %4128 = vmatpush1.msra.mxu0 0.0
    %4129 = vmatprep.subr.mxu0 0.0
    %4130 = vmatpush1.msra.mxu0 0.0
    %4131 = vmatprep.subr.mxu0 0.0
    %4132 = vmatpush1.msra.mxu0 0.0
    %4133 = vmatprep.subr.mxu0 0.0
    %4134 = vmatpush1.msra.mxu0 0.0
    %4135 = vmatprep.subr.mxu0 0.0
    %4136 = vmatpush1.msra.mxu0 0.0
    %4137 = vmatprep.subr.mxu0 0.0
    %4138 = vmatpush1.msra.mxu0 0.0
    %4139 = vmatprep.subr.mxu0 0.0
    %4140 = vmatpush1.msra.mxu0 0.0
    %4141 = vmatprep.subr.mxu0 0.0
    %4142 = vmatpush1.msra.mxu0 0.0
    %4143 = vmatprep.subr.mxu0 0.0
    %4144 = vmatpush1.msra.mxu0 0.0
    %4145 = vmatprep.subr.mxu0 0.0
    %4146 = vmatpush1.msra.mxu0 0.0
    %4147 = vmatprep.subr.mxu0 0.0
    %4148 = vmatpush1.msra.mxu0 0.0
    %4149 = vmatprep.subr.mxu0 0.0
    %4150 = vmatpush1.msra.mxu0 0.0
    %4151 = vmatprep.subr.mxu0 0.0
    %4152 = vmatpush1.msra.mxu0 0.0
    %4153 = vmatprep.subr.mxu0 0.0
    %4154 = vmatpush1.msra.mxu0 0.0
    %4155 = vmatprep.subr.mxu0 0.0
    %4156 = vmatpush1.msra.mxu0 0.0
    %4157 = vmatprep.subr.mxu0 0.0
    %4158 = vmatpush1.msra.mxu0 0.0
    %4159 = vmatprep.subr.mxu0 0.0
    %4160 = vmatpush1.msra.mxu0 0.0
    %4161 = vmatprep.subr.mxu0 0.0
    %4162 = vmatpush1.msra.mxu0 0.0
    %4163 = vmatprep.subr.mxu0 0.0
    %4164 = vmatpush1.msra.mxu0 0.0
    %4165 = vmatprep.subr.mxu0 0.0
    %4166 = vmatpush1.msra.mxu0 0.0
    %4167 = vmatprep.subr.mxu0 0.0
    %4168 = vmatpush1.msra.mxu0 0.0
    %4169 = vmatprep.subr.mxu0 0.0
    %4170 = vmatpush1.msra.mxu0 0.0
    %4171 = vmatprep.subr.mxu0 0.0
    %4172 = vmatpush1.msra.mxu0 0.0
    %4173 = vmatprep.mubr.f32.mxu0 0.0
    %4174 = vmatmul.mubr.f32.gmra.mrb[0].mxu0 %v4097
    %v4175 = vpop.f32.mrb[0].mxu0
    %v4176 = vadd.f32 0.0, %v4175
    %v4177 = vpop.f32.mrb[0].mxu0
    %v4178 = vadd.f32 0.0, %v4177
    %4179 = vmatprep.mubr.f32.mxu0 0.0
    %4180 = vmatmul.mubr.f32.gmra.mrb[0].mxu0 %v4100
    %v4181 = vpop.f32.mrb[0].mxu0
    %v4182 = vadd.f32 0.0, %v4181
    %v4183 = vpop.f32.mrb[0].mxu0
    %v4184 = vadd.f32 0.0, %v4183
    %4185 = vmatprep.mubr.f32.mxu0 0.0
    %4186 = vmatmul.mubr.f32.gmra.mrb[0].mxu0 %v4103
    %v4187 = vpop.f32.mrb[0].mxu0
    %v4188 = vadd.f32 0.0, %v4187
    %v4189 = vpop.f32.mrb[0].mxu0
    %v4190 = vadd.f32 0.0, %v4189
    %4191 = vdwg.mxu0
    %vm4196 = vcmask 1046528
    %v4197 = vrot.slane %v4053, 1
    %v4198 = vrot.slane %v4055, 1
    %v4199 = vsel %vm4196, %v4197, %v4198
    %v4200 = vrot.slane %v4054, 1
    %v4201 = vrot.slane %v4056, 1
    %v4202 = vsel %vm4196, %v4200, %v4201
    %v4206 = vsel %vm4095, %v4075, 0
    %v4209 = vsel %vm4095, %v4076, 0
    %v4212 = vsel %vm4095, %v4077, 0
    %v4214 = vsel %vm985, %v4198, 0
    %v4216 = vsel %vm985, %v4201, 0
    %4218 = vmatprep.subr.mxu0 %v4202
    %4219 = vmatpush1.msra.mxu0 %v4199
    %4220 = vmatprep.subr.mxu0 %v4216
    %4221 = vmatpush1.msra.mxu0 %v4214
    %4222 = vmatprep.subr.mxu0 0.0
    %4223 = vmatpush1.msra.mxu0 0.0
    %4224 = vmatprep.subr.mxu0 0.0
    %4225 = vmatpush1.msra.mxu0 0.0
    %4226 = vmatprep.subr.mxu0 0.0
    %4227 = vmatpush1.msra.mxu0 0.0
    %4228 = vmatprep.subr.mxu0 0.0
    %4229 = vmatpush1.msra.mxu0 0.0
    %4230 = vmatprep.subr.mxu0 0.0
    %4231 = vmatpush1.msra.mxu0 0.0
    %4232 = vmatprep.subr.mxu0 0.0
    %4233 = vmatpush1.msra.mxu0 0.0
    %4234 = vmatprep.subr.mxu0 0.0
    %4235 = vmatpush1.msra.mxu0 0.0
    %4236 = vmatprep.subr.mxu0 0.0
    %4237 = vmatpush1.msra.mxu0 0.0
    %4238 = vmatprep.subr.mxu0 0.0
    %4239 = vmatpush1.msra.mxu0 0.0
    %4240 = vmatprep.subr.mxu0 0.0
    %4241 = vmatpush1.msra.mxu0 0.0
    %4242 = vmatprep.subr.mxu0 0.0
    %4243 = vmatpush1.msra.mxu0 0.0
    %4244 = vmatprep.subr.mxu0 0.0
    %4245 = vmatpush1.msra.mxu0 0.0
    %4246 = vmatprep.subr.mxu0 0.0
    %4247 = vmatpush1.msra.mxu0 0.0
    %4248 = vmatprep.subr.mxu0 0.0
    %4249 = vmatpush1.msra.mxu0 0.0
    %4250 = vmatprep.subr.mxu0 0.0
    %4251 = vmatpush1.msra.mxu0 0.0
    %4252 = vmatprep.subr.mxu0 0.0
    %4253 = vmatpush1.msra.mxu0 0.0
    %4254 = vmatprep.subr.mxu0 0.0
    %4255 = vmatpush1.msra.mxu0 0.0
    %4256 = vmatprep.subr.mxu0 0.0
    %4257 = vmatpush1.msra.mxu0 0.0
    %4258 = vmatprep.subr.mxu0 0.0
    %4259 = vmatpush1.msra.mxu0 0.0
    %4260 = vmatprep.subr.mxu0 0.0
    %4261 = vmatpush1.msra.mxu0 0.0
    %4262 = vmatprep.subr.mxu0 0.0
    %4263 = vmatpush1.msra.mxu0 0.0
    %4264 = vmatprep.subr.mxu0 0.0
    %4265 = vmatpush1.msra.mxu0 0.0
    %4266 = vmatprep.subr.mxu0 0.0
    %4267 = vmatpush1.msra.mxu0 0.0
    %4268 = vmatprep.subr.mxu0 0.0
    %4269 = vmatpush1.msra.mxu0 0.0
    %4270 = vmatprep.subr.mxu0 0.0
    %4271 = vmatpush1.msra.mxu0 0.0
    %4272 = vmatprep.subr.mxu0 0.0
    %4273 = vmatpush1.msra.mxu0 0.0
    %4274 = vmatprep.subr.mxu0 0.0
    %4275 = vmatpush1.msra.mxu0 0.0
    %4276 = vmatprep.subr.mxu0 0.0
    %4277 = vmatpush1.msra.mxu0 0.0
    %4278 = vmatprep.subr.mxu0 0.0
    %4279 = vmatpush1.msra.mxu0 0.0
    %4280 = vmatprep.subr.mxu0 0.0
    %4281 = vmatpush1.msra.mxu0 0.0
    %4282 = vmatprep.mubr.f32.mxu0 0.0
    %4283 = vmatmul.mubr.f32.gmra.mrb[0].mxu0 %v4206
    %v4284 = vpop.f32.mrb[0].mxu0
    %v4285 = vadd.f32 %v4176, %v4284
    %v4286 = vpop.f32.mrb[0].mxu0
    %v4287 = vadd.f32 %v4178, %v4286
    %4288 = vmatprep.mubr.f32.mxu0 0.0
    %4289 = vmatmul.mubr.f32.gmra.mrb[0].mxu0 %v4209
    %v4290 = vpop.f32.mrb[0].mxu0
    %v4291 = vadd.f32 %v4182, %v4290
    %v4292 = vpop.f32.mrb[0].mxu0
    %v4293 = vadd.f32 %v4184, %v4292
    %4294 = vmatprep.mubr.f32.mxu0 0.0
    %4295 = vmatmul.mubr.f32.gmra.mrb[0].mxu0 %v4212
    %v4296 = vpop.f32.mrb[0].mxu0
    %v4297 = vadd.f32 %v4188, %v4296
    %v4298 = vpop.f32.mrb[0].mxu0
    %v4299 = vadd.f32 %v4190, %v4298
    %4300 = vdwg.mxu0
    %v4301 = vpack.c.bf16 %v3377, %v3375
    %v4302 = vpack.c.bf16 %v3378, %v3376
    %v4304 = vsel %vm1418, %v4302, 0
    %4306 = vmatprep.subr.bf16.mxu0 %v3462
    %4307 = vmatpush1.bf16.msra.mxu0 %v3461
    %4308 = vmatprep.subr.bf16.mxu0 %v3464
    %4309 = vmatpush1.bf16.msra.mxu0 %v3463
    %4310 = vmatprep.subr.bf16.mxu0 %v3466
    %4311 = vmatpush1.bf16.msra.mxu0 %v3465
    %4312 = vmatprep.subr.bf16.mxu0 %v3468
    %4313 = vmatpush1.bf16.msra.mxu0 %v3467
    %4314 = vmatprep.subr.bf16.mxu0 %v3470
    %4315 = vmatpush1.bf16.msra.mxu0 %v3469
    %4316 = vmatprep.subr.bf16.mxu0 %v3472
    %4317 = vmatpush1.bf16.msra.mxu0 %v3471
    %4318 = vmatprep.subr.bf16.mxu0 %v3474
    %4319 = vmatpush1.bf16.msra.mxu0 %v3473
    %4320 = vmatprep.subr.bf16.mxu0 %v3476
    %4321 = vmatpush1.bf16.msra.mxu0 %v3475
    %4322 = vmatprep.subr.bf16.mxu0 %v3478
    %4323 = vmatpush1.bf16.msra.mxu0 %v3477
    %4324 = vmatprep.subr.bf16.mxu0 %v3480
    %4325 = vmatpush1.bf16.msra.mxu0 %v3479
    %4326 = vmatprep.subr.bf16.mxu0 0
    %4327 = vmatpush1.bf16.msra.mxu0 0
    %4328 = vmatprep.subr.bf16.mxu0 0
    %4329 = vmatpush1.bf16.msra.mxu0 0
    %4330 = vmatprep.subr.bf16.mxu0 0
    %4331 = vmatpush1.bf16.msra.mxu0 0
    %4332 = vmatprep.subr.bf16.mxu0 0
    %4333 = vmatpush1.bf16.msra.mxu0 0
    %4334 = vmatprep.subr.bf16.mxu0 0
    %4335 = vmatpush1.bf16.msra.mxu0 0
    %4336 = vmatprep.subr.bf16.mxu0 0
    %4337 = vmatpush1.bf16.msra.mxu0 0
    %4338 = vmatprep.mubr.bf16.mxu0 %v4304
    %4339 = vmatmul.mubr.bf16.gmra.mrb[0].mxu0 %v4301
    %v4340 = vpop.f32.mrb[0].mxu0
    %v4341 = vadd.f32 0.0, %v4340
    %v4342 = vpop.f32.mrb[0].mxu0
    %v4343 = vadd.f32 0.0, %v4342
    %v4344 = vpop.f32.mrb[0].mxu0
    %v4345 = vadd.f32 0.0, %v4344
    %v4346 = vpop.f32.mrb[0].mxu0
    %v4347 = vadd.f32 0.0, %v4346
    %4348 = vdwg.mxu0
    %4349 = vmatprep.subr.bf16.mxu0 %v3629
    %4350 = vmatpush1.bf16.msra.mxu0 %v3628
    %4351 = vmatprep.subr.bf16.mxu0 %v3631
    %4352 = vmatpush1.bf16.msra.mxu0 %v3630
    %4353 = vmatprep.subr.bf16.mxu0 %v3633
    %4354 = vmatpush1.bf16.msra.mxu0 %v3632
    %4355 = vmatprep.subr.bf16.mxu0 %v3635
    %4356 = vmatpush1.bf16.msra.mxu0 %v3634
    %4357 = vmatprep.subr.bf16.mxu0 %v3637
    %4358 = vmatpush1.bf16.msra.mxu0 %v3636
    %4359 = vmatprep.subr.bf16.mxu0 %v3639
    %4360 = vmatpush1.bf16.msra.mxu0 %v3638
    %4361 = vmatprep.subr.bf16.mxu0 %v3641
    %4362 = vmatpush1.bf16.msra.mxu0 %v3640
    %4363 = vmatprep.subr.bf16.mxu0 %v3643
    %4364 = vmatpush1.bf16.msra.mxu0 %v3642
    %4365 = vmatprep.subr.bf16.mxu0 %v3645
    %4366 = vmatpush1.bf16.msra.mxu0 %v3644
    %4367 = vmatprep.subr.bf16.mxu0 %v3647
    %4368 = vmatpush1.bf16.msra.mxu0 %v3646
    %4369 = vmatprep.subr.bf16.mxu0 0
    %4370 = vmatpush1.bf16.msra.mxu0 0
    %4371 = vmatprep.subr.bf16.mxu0 0
    %4372 = vmatpush1.bf16.msra.mxu0 0
    %4373 = vmatprep.subr.bf16.mxu0 0
    %4374 = vmatpush1.bf16.msra.mxu0 0
    %4375 = vmatprep.subr.bf16.mxu0 0
    %4376 = vmatpush1.bf16.msra.mxu0 0
    %4377 = vmatprep.subr.bf16.mxu0 0
    %4378 = vmatpush1.bf16.msra.mxu0 0
    %4379 = vmatprep.subr.bf16.mxu0 0
    %4380 = vmatpush1.bf16.msra.mxu0 0
    %4381 = vmatprep.mubr.bf16.mxu0 %v4304
    %4382 = vmatmul.mubr.bf16.gmra.mrb[0].mxu0 %v4301
    %v4383 = vpop.f32.mrb[0].mxu0
    %v4384 = vadd.f32 0.0, %v4383
    %v4385 = vpop.f32.mrb[0].mxu0
    %v4386 = vadd.f32 0.0, %v4385
    %v4387 = vpop.f32.mrb[0].mxu0
    %v4388 = vadd.f32 0.0, %v4387
    %v4389 = vpop.f32.mrb[0].mxu0
    %v4390 = vadd.f32 0.0, %v4389
    %4391 = vdwg.mxu0
    %4392 = vmatprep.subr.bf16.mxu0 %v3793
    %4393 = vmatpush1.bf16.msra.mxu0 %v3792
    %4394 = vmatprep.subr.bf16.mxu0 %v3795
    %4395 = vmatpush1.bf16.msra.mxu0 %v3794
    %4396 = vmatprep.subr.bf16.mxu0 %v3797
    %4397 = vmatpush1.bf16.msra.mxu0 %v3796
    %4398 = vmatprep.subr.bf16.mxu0 %v3799
    %4399 = vmatpush1.bf16.msra.mxu0 %v3798
    %4400 = vmatprep.subr.bf16.mxu0 %v3801
    %4401 = vmatpush1.bf16.msra.mxu0 %v3800
    %4402 = vmatprep.subr.bf16.mxu0 %v3803
    %4403 = vmatpush1.bf16.msra.mxu0 %v3802
    %4404 = vmatprep.subr.bf16.mxu0 %v3805
    %4405 = vmatpush1.bf16.msra.mxu0 %v3804
    %4406 = vmatprep.subr.bf16.mxu0 %v3807
    %4407 = vmatpush1.bf16.msra.mxu0 %v3806
    %4408 = vmatprep.subr.bf16.mxu0 %v3809
    %4409 = vmatpush1.bf16.msra.mxu0 %v3808
    %4410 = vmatprep.subr.bf16.mxu0 %v3811
    %4411 = vmatpush1.bf16.msra.mxu0 %v3810
    %4412 = vmatprep.subr.bf16.mxu0 0
    %4413 = vmatpush1.bf16.msra.mxu0 0
    %4414 = vmatprep.subr.bf16.mxu0 0
    %4415 = vmatpush1.bf16.msra.mxu0 0
    %4416 = vmatprep.subr.bf16.mxu0 0
    %4417 = vmatpush1.bf16.msra.mxu0 0
    %4418 = vmatprep.subr.bf16.mxu0 0
    %4419 = vmatpush1.bf16.msra.mxu0 0
    %4420 = vmatprep.subr.bf16.mxu0 0
    %4421 = vmatpush1.bf16.msra.mxu0 0
    %4422 = vmatprep.subr.bf16.mxu0 0
    %4423 = vmatpush1.bf16.msra.mxu0 0
    %4424 = vmatprep.mubr.bf16.mxu0 %v4304
    %4425 = vmatmul.mubr.bf16.gmra.mrb[0].mxu0 %v4301
    %v4426 = vpop.f32.mrb[0].mxu0
    %v4427 = vadd.f32 0.0, %v4426
    %v4428 = vpop.f32.mrb[0].mxu0
    %v4429 = vadd.f32 0.0, %v4428
    %v4430 = vpop.f32.mrb[0].mxu0
    %v4431 = vadd.f32 0.0, %v4430
    %v4432 = vpop.f32.mrb[0].mxu0
    %v4433 = vadd.f32 0.0, %v4432
    %4434 = vdwg.mxu0
    %4435 = vmatprep.subr.bf16.mxu0 %v3957
    %4436 = vmatpush1.bf16.msra.mxu0 %v3956
    %4437 = vmatprep.subr.bf16.mxu0 %v3959
    %4438 = vmatpush1.bf16.msra.mxu0 %v3958
    %4439 = vmatprep.subr.bf16.mxu0 %v3961
    %4440 = vmatpush1.bf16.msra.mxu0 %v3960
    %4441 = vmatprep.subr.bf16.mxu0 %v3963
    %4442 = vmatpush1.bf16.msra.mxu0 %v3962
    %4443 = vmatprep.subr.bf16.mxu0 %v3965
    %4444 = vmatpush1.bf16.msra.mxu0 %v3964
    %4445 = vmatprep.subr.bf16.mxu0 %v3967
    %4446 = vmatpush1.bf16.msra.mxu0 %v3966
    %4447 = vmatprep.subr.bf16.mxu0 %v3969
    %4448 = vmatpush1.bf16.msra.mxu0 %v3968
    %4449 = vmatprep.subr.bf16.mxu0 %v3971
    %4450 = vmatpush1.bf16.msra.mxu0 %v3970
    %4451 = vmatprep.subr.bf16.mxu0 %v3973
    %4452 = vmatpush1.bf16.msra.mxu0 %v3972
    %4453 = vmatprep.subr.bf16.mxu0 %v3975
    %4454 = vmatpush1.bf16.msra.mxu0 %v3974
    %4455 = vmatprep.subr.bf16.mxu0 0
    %4456 = vmatpush1.bf16.msra.mxu0 0
    %4457 = vmatprep.subr.bf16.mxu0 0
    %4458 = vmatpush1.bf16.msra.mxu0 0
    %4459 = vmatprep.subr.bf16.mxu0 0
    %4460 = vmatpush1.bf16.msra.mxu0 0
    %4461 = vmatprep.subr.bf16.mxu0 0
    %4462 = vmatpush1.bf16.msra.mxu0 0
    %4463 = vmatprep.subr.bf16.mxu0 0
    %4464 = vmatpush1.bf16.msra.mxu0 0
    %4465 = vmatprep.subr.bf16.mxu0 0
    %4466 = vmatpush1.bf16.msra.mxu0 0
    %4467 = vmatprep.mubr.bf16.mxu0 %v4304
    %4468 = vmatmul.mubr.bf16.gmra.mrb[0].mxu0 %v4301
    %v4469 = vpop.f32.mrb[0].mxu0
    %v4470 = vadd.f32 0.0, %v4469
    %v4471 = vpop.f32.mrb[0].mxu0
    %v4472 = vadd.f32 0.0, %v4471
    %v4473 = vpop.f32.mrb[0].mxu0
    %v4474 = vadd.f32 0.0, %v4473
    %v4475 = vpop.f32.mrb[0].mxu0
    %v4476 = vadd.f32 0.0, %v4475
    %4477 = vdwg.mxu0
    %v4482 = vrot.slane %v4470, 7
    %v4483 = vrot.slane %v4472, 7
    %v4484 = vrot.slane %v4474, 7
    %v4485 = vsel %vm1765, %v4482, %v4484
    %v4486 = vrot.slane %v4476, 7
    %v4487 = vsel %vm1765, %v4483, %v4486
    %v4492 = vadd.f32 %v4384, %v4482
    %v4493 = vadd.f32 %v4386, %v4483
    %v4494 = vadd.f32 %v4388, %v4485
    %v4495 = vadd.f32 %v4390, %v4487
    %v4500 = vrot.slane %v4427, 7
    %v4501 = vrot.slane %v4429, 7
    %v4502 = vrot.slane %v4431, 7
    %v4503 = vsel %vm1765, %v4500, %v4502
    %v4504 = vrot.slane %v4433, 7
    %v4505 = vsel %vm1765, %v4501, %v4504
    %v4510 = vadd.f32 %v4341, %v4500
    %v4511 = vadd.f32 %v4343, %v4501
    %v4512 = vadd.f32 %v4345, %v4503
    %v4513 = vadd.f32 %v4347, %v4505
    %v4518 = vrot.slane %v4510, 2
    %v4519 = vrot.slane %v4512, 2
    %v4520 = vsel %vm4086, %v4518, %v4519
    %v4521 = vrot.slane %v4511, 2
    %v4522 = vrot.slane %v4513, 2
    %v4523 = vsel %vm4086, %v4521, %v4522
    %v4526 = vsel %vm985, %v4519, 0
    %v4528 = vsel %vm985, %v4522, 0
    %4530 = vmatprep.subr.mxu0 %v4523
    %4531 = vmatpush1.msra.mxu0 %v4520
    %4532 = vmatprep.subr.mxu0 %v4528
    %4533 = vmatpush1.msra.mxu0 %v4526
    %4534 = vmatprep.subr.mxu0 0.0
    %4535 = vmatpush1.msra.mxu0 0.0
    %4536 = vmatprep.subr.mxu0 0.0
    %4537 = vmatpush1.msra.mxu0 0.0
    %4538 = vmatprep.subr.mxu0 0.0
    %4539 = vmatpush1.msra.mxu0 0.0
    %4540 = vmatprep.subr.mxu0 0.0
    %4541 = vmatpush1.msra.mxu0 0.0
    %4542 = vmatprep.subr.mxu0 0.0
    %4543 = vmatpush1.msra.mxu0 0.0
    %4544 = vmatprep.subr.mxu0 0.0
    %4545 = vmatpush1.msra.mxu0 0.0
    %4546 = vmatprep.subr.mxu0 0.0
    %4547 = vmatpush1.msra.mxu0 0.0
    %4548 = vmatprep.subr.mxu0 0.0
    %4549 = vmatpush1.msra.mxu0 0.0
    %4550 = vmatprep.subr.mxu0 0.0
    %4551 = vmatpush1.msra.mxu0 0.0
    %4552 = vmatprep.subr.mxu0 0.0
    %4553 = vmatpush1.msra.mxu0 0.0
    %4554 = vmatprep.subr.mxu0 0.0
    %4555 = vmatpush1.msra.mxu0 0.0
    %4556 = vmatprep.subr.mxu0 0.0
    %4557 = vmatpush1.msra.mxu0 0.0
    %4558 = vmatprep.subr.mxu0 0.0
    %4559 = vmatpush1.msra.mxu0 0.0
    %4560 = vmatprep.subr.mxu0 0.0
    %4561 = vmatpush1.msra.mxu0 0.0
    %4562 = vmatprep.subr.mxu0 0.0
    %4563 = vmatpush1.msra.mxu0 0.0
    %4564 = vmatprep.subr.mxu0 0.0
    %4565 = vmatpush1.msra.mxu0 0.0
    %4566 = vmatprep.subr.mxu0 0.0
    %4567 = vmatpush1.msra.mxu0 0.0
    %4568 = vmatprep.subr.mxu0 0.0
    %4569 = vmatpush1.msra.mxu0 0.0
    %4570 = vmatprep.subr.mxu0 0.0
    %4571 = vmatpush1.msra.mxu0 0.0
    %4572 = vmatprep.subr.mxu0 0.0
    %4573 = vmatpush1.msra.mxu0 0.0
    %4574 = vmatprep.subr.mxu0 0.0
    %4575 = vmatpush1.msra.mxu0 0.0
    %4576 = vmatprep.subr.mxu0 0.0
    %4577 = vmatpush1.msra.mxu0 0.0
    %4578 = vmatprep.subr.mxu0 0.0
    %4579 = vmatpush1.msra.mxu0 0.0
    %4580 = vmatprep.subr.mxu0 0.0
    %4581 = vmatpush1.msra.mxu0 0.0
    %4582 = vmatprep.subr.mxu0 0.0
    %4583 = vmatpush1.msra.mxu0 0.0
    %4584 = vmatprep.subr.mxu0 0.0
    %4585 = vmatpush1.msra.mxu0 0.0
    %4586 = vmatprep.subr.mxu0 0.0
    %4587 = vmatpush1.msra.mxu0 0.0
    %4588 = vmatprep.subr.mxu0 0.0
    %4589 = vmatpush1.msra.mxu0 0.0
    %4590 = vmatprep.subr.mxu0 0.0
    %4591 = vmatpush1.msra.mxu0 0.0
    %4592 = vmatprep.subr.mxu0 0.0
    %4593 = vmatpush1.msra.mxu0 0.0
    %4594 = vmatprep.mubr.f32.mxu0 0.0
    %4595 = vmatmul.mubr.f32.gmra.mrb[0].mxu0 %v4097
    %v4596 = vpop.f32.mrb[0].mxu0
    %v4597 = vadd.f32 0.0, %v4596
    %v4598 = vpop.f32.mrb[0].mxu0
    %v4599 = vadd.f32 0.0, %v4598
    %4600 = vmatprep.mubr.f32.mxu0 0.0
    %4601 = vmatmul.mubr.f32.gmra.mrb[0].mxu0 %v4100
    %v4602 = vpop.f32.mrb[0].mxu0
    %v4603 = vadd.f32 0.0, %v4602
    %v4604 = vpop.f32.mrb[0].mxu0
    %v4605 = vadd.f32 0.0, %v4604
    %4606 = vmatprep.mubr.f32.mxu0 0.0
    %4607 = vmatmul.mubr.f32.gmra.mrb[0].mxu0 %v4103
    %v4608 = vpop.f32.mrb[0].mxu0
    %v4609 = vadd.f32 0.0, %v4608
    %v4610 = vpop.f32.mrb[0].mxu0
    %v4611 = vadd.f32 0.0, %v4610
    %4612 = vdwg.mxu0
    %v4617 = vrot.slane %v4492, 1
    %v4618 = vrot.slane %v4494, 1
    %v4619 = vsel %vm4196, %v4617, %v4618
    %v4620 = vrot.slane %v4493, 1
    %v4621 = vrot.slane %v4495, 1
    %v4622 = vsel %vm4196, %v4620, %v4621
    %v4625 = vsel %vm985, %v4618, 0
    %v4627 = vsel %vm985, %v4621, 0
    %4629 = vmatprep.subr.mxu0 %v4622
    %4630 = vmatpush1.msra.mxu0 %v4619
    %4631 = vmatprep.subr.mxu0 %v4627
    %4632 = vmatpush1.msra.mxu0 %v4625
    %4633 = vmatprep.subr.mxu0 0.0
    %4634 = vmatpush1.msra.mxu0 0.0
    %4635 = vmatprep.subr.mxu0 0.0
    %4636 = vmatpush1.msra.mxu0 0.0
    %4637 = vmatprep.subr.mxu0 0.0
    %4638 = vmatpush1.msra.mxu0 0.0
    %4639 = vmatprep.subr.mxu0 0.0
    %4640 = vmatpush1.msra.mxu0 0.0
    %4641 = vmatprep.subr.mxu0 0.0
    %4642 = vmatpush1.msra.mxu0 0.0
    %4643 = vmatprep.subr.mxu0 0.0
    %4644 = vmatpush1.msra.mxu0 0.0
    %4645 = vmatprep.subr.mxu0 0.0
    %4646 = vmatpush1.msra.mxu0 0.0
    %4647 = vmatprep.subr.mxu0 0.0
    %4648 = vmatpush1.msra.mxu0 0.0
    %4649 = vmatprep.subr.mxu0 0.0
    %4650 = vmatpush1.msra.mxu0 0.0
    %4651 = vmatprep.subr.mxu0 0.0
    %4652 = vmatpush1.msra.mxu0 0.0
    %4653 = vmatprep.subr.mxu0 0.0
    %4654 = vmatpush1.msra.mxu0 0.0
    %4655 = vmatprep.subr.mxu0 0.0
    %4656 = vmatpush1.msra.mxu0 0.0
    %4657 = vmatprep.subr.mxu0 0.0
    %4658 = vmatpush1.msra.mxu0 0.0
    %4659 = vmatprep.subr.mxu0 0.0
    %4660 = vmatpush1.msra.mxu0 0.0
    %4661 = vmatprep.subr.mxu0 0.0
    %4662 = vmatpush1.msra.mxu0 0.0
    %4663 = vmatprep.subr.mxu0 0.0
    %4664 = vmatpush1.msra.mxu0 0.0
    %4665 = vmatprep.subr.mxu0 0.0
    %4666 = vmatpush1.msra.mxu0 0.0
    %4667 = vmatprep.subr.mxu0 0.0
    %4668 = vmatpush1.msra.mxu0 0.0
    %4669 = vmatprep.subr.mxu0 0.0
    %4670 = vmatpush1.msra.mxu0 0.0
    %4671 = vmatprep.subr.mxu0 0.0
    %4672 = vmatpush1.msra.mxu0 0.0
    %4673 = vmatprep.subr.mxu0 0.0
    %4674 = vmatpush1.msra.mxu0 0.0
    %4675 = vmatprep.subr.mxu0 0.0
    %4676 = vmatpush1.msra.mxu0 0.0
    %4677 = vmatprep.subr.mxu0 0.0
    %4678 = vmatpush1.msra.mxu0 0.0
    %4679 = vmatprep.subr.mxu0 0.0
    %4680 = vmatpush1.msra.mxu0 0.0
    %4681 = vmatprep.subr.mxu0 0.0
    %4682 = vmatpush1.msra.mxu0 0.0
    %4683 = vmatprep.subr.mxu0 0.0
    %4684 = vmatpush1.msra.mxu0 0.0
    %4685 = vmatprep.subr.mxu0 0.0
    %4686 = vmatpush1.msra.mxu0 0.0
    %4687 = vmatprep.subr.mxu0 0.0
    %4688 = vmatpush1.msra.mxu0 0.0
    %4689 = vmatprep.subr.mxu0 0.0
    %4690 = vmatpush1.msra.mxu0 0.0
    %4691 = vmatprep.subr.mxu0 0.0
    %4692 = vmatpush1.msra.mxu0 0.0
    %4693 = vmatprep.mubr.f32.mxu0 0.0
    %4694 = vmatmul.mubr.f32.gmra.mrb[0].mxu0 %v4206
    %v4695 = vpop.f32.mrb[0].mxu0
    %v4696 = vadd.f32 %v4597, %v4695
    %v4697 = vpop.f32.mrb[0].mxu0
    %v4698 = vadd.f32 %v4599, %v4697
    %4699 = vmatprep.mubr.f32.mxu0 0.0
    %4700 = vmatmul.mubr.f32.gmra.mrb[0].mxu0 %v4209
    %v4701 = vpop.f32.mrb[0].mxu0
    %v4702 = vadd.f32 %v4603, %v4701
    %v4703 = vpop.f32.mrb[0].mxu0
    %v4704 = vadd.f32 %v4605, %v4703
    %4705 = vmatprep.mubr.f32.mxu0 0.0
    %4706 = vmatmul.mubr.f32.gmra.mrb[0].mxu0 %v4212
    %v4707 = vpop.f32.mrb[0].mxu0
    %v4708 = vadd.f32 %v4609, %v4707
    %v4709 = vpop.f32.mrb[0].mxu0
    %v4710 = vadd.f32 %v4611, %v4709
    %4711 = vdwg.mxu0
    %v4712 = vadd.f32 %v4285, %v4291
    %v4713 = vsel %vm1770, %v4297, 0.0
    %v4714 = vadd.f32 %v4712, %v4713
    %v4715 = vrot.slane %v4714, 4
    %v4716 = vadd.f32 %v4714, %v4715
    %v4717 = vrot.slane %v4716, 2
    %v4718 = vadd.f32 %v4716, %v4717
    %v4719 = vrot.slane %v4718, 1
    %v4720 = vadd.f32 %v4718, %v4719
    %v4721 = vsel %vm1418, %v4287, 0.0
    %v4722 = vsel %vm1418, %v4293, 0.0
    %v4723 = vadd.f32 %v4721, %v4722
    %vm4724 = vcmask 257024
    %v4725 = vsel %vm4724, %v4299, 0.0
    %v4726 = vadd.f32 %v4723, %v4725
    %v4727 = vrot.slane %v4726, 4
    %v4728 = vadd.f32 %v4726, %v4727
    %v4729 = vrot.slane %v4728, 2
    %v4730 = vadd.f32 %v4728, %v4729
    %v4731 = vrot.slane %v4730, 1
    %v4732 = vadd.f32 %v4730, %v4731
    %v4733 = vmul.f32 %v4285, %v4285
    %v4734 = vmul.f32 %v4287, %v4287
    %v4735 = vmul.f32 %v4291, %v4291
    %v4736 = vmul.f32 %v4293, %v4293
    %v4737 = vmul.f32 %v4297, %v4297
    %v4738 = vmul.f32 %v4299, %v4299
    %v4739 = vadd.f32 %v4733, %v4735
    %v4740 = vsel %vm1770, %v4737, 0.0
    %v4741 = vadd.f32 %v4739, %v4740
    %v4742 = vrot.slane %v4741, 4
    %v4743 = vadd.f32 %v4741, %v4742
    %v4744 = vrot.slane %v4743, 2
    %v4745 = vadd.f32 %v4743, %v4744
    %v4746 = vrot.slane %v4745, 1
    %v4747 = vadd.f32 %v4745, %v4746
    %v4748 = vsel %vm1418, %v4734, 0.0
    %v4749 = vsel %vm1418, %v4736, 0.0
    %v4750 = vadd.f32 %v4748, %v4749
    %v4751 = vsel %vm4724, %v4738, 0.0
    %v4752 = vadd.f32 %v4750, %v4751
    %v4753 = vrot.slane %v4752, 4
    %v4754 = vadd.f32 %v4752, %v4753
    %v4755 = vrot.slane %v4754, 2
    %v4756 = vadd.f32 %v4754, %v4755
    %v4757 = vrot.slane %v4756, 1
    %v4758 = vadd.f32 %v4756, %v4757
    %v4759 = vadd.f32 %v4696, %v4702
    %v4760 = vsel %vm1770, %v4708, 0.0
    %v4761 = vadd.f32 %v4759, %v4760
    %v4762 = vrot.slane %v4761, 4
    %v4763 = vadd.f32 %v4761, %v4762
    %v4764 = vrot.slane %v4763, 2
    %v4765 = vadd.f32 %v4763, %v4764
    %v4766 = vrot.slane %v4765, 1
    %v4767 = vadd.f32 %v4765, %v4766
    %v4768 = vsel %vm1418, %v4698, 0.0
    %v4769 = vsel %vm1418, %v4704, 0.0
    %v4770 = vadd.f32 %v4768, %v4769
    %v4771 = vsel %vm4724, %v4710, 0.0
    %v4772 = vadd.f32 %v4770, %v4771
    %v4773 = vrot.slane %v4772, 4
    %v4774 = vadd.f32 %v4772, %v4773
    %v4775 = vrot.slane %v4774, 2
    %v4776 = vadd.f32 %v4774, %v4775
    %v4777 = vrot.slane %v4776, 1
    %v4778 = vadd.f32 %v4776, %v4777
    %v4779 = vadd.f32 %v4720, %v4767
    %v4780 = vadd.f32 %v4732, %v4778
    %v4781 = vmul.f32 %v4696, %v4696
    %v4782 = vmul.f32 %v4698, %v4698
    %v4783 = vmul.f32 %v4702, %v4702
    %v4784 = vmul.f32 %v4704, %v4704
    %v4785 = vmul.f32 %v4708, %v4708
    %v4786 = vmul.f32 %v4710, %v4710
    %v4787 = vadd.f32 %v4781, %v4783
    %v4788 = vsel %vm1770, %v4785, 0.0
    %v4789 = vadd.f32 %v4787, %v4788
    %v4790 = vrot.slane %v4789, 4
    %v4791 = vadd.f32 %v4789, %v4790
    %v4792 = vrot.slane %v4791, 2
    %v4793 = vadd.f32 %v4791, %v4792
    %v4794 = vrot.slane %v4793, 1
    %v4795 = vadd.f32 %v4793, %v4794
    %v4796 = vsel %vm1418, %v4782, 0.0
    %v4797 = vsel %vm1418, %v4784, 0.0
    %v4798 = vadd.f32 %v4796, %v4797
    %v4799 = vsel %vm4724, %v4786, 0.0
    %v4800 = vadd.f32 %v4798, %v4799
    %v4801 = vrot.slane %v4800, 4
    %v4802 = vadd.f32 %v4800, %v4801
    %v4803 = vrot.slane %v4802, 2
    %v4804 = vadd.f32 %v4802, %v4803
    %v4805 = vrot.slane %v4804, 1
    %v4806 = vadd.f32 %v4804, %v4805
    %v4807 = vadd.f32 %v4747, %v4795
    %v4808 = vadd.f32 %v4758, %v4806
    %v4809 = vld [vmem:[%s17] sm:$0xff]
    %v4810 = vld [vmem:[%s17 + $0x8] sm:$0xff]
    %v4811 = vld [vmem:[%s17 + $0x10] sm:$0xff]
    %v4812 = vld [vmem:[%s17 + $0x18] sm:$0xff]
    %v4813 = vld [vmem:[%s17 + $0x20] sm:$0xff]
    %v4814 = vld [vmem:[%s17 + $0x28] sm:$0xff]
    %v4815 = vld [vmem:[%s17 + $0x30] sm:$0xff]
    %v4816 = vld [vmem:[%s17 + $0x38] sm:$0xff]
    %v4817 = vld [vmem:[%s17 + $0x40] sm:$0xff]
    %v4818 = vld [vmem:[%s17 + $0x48] sm:$0xff]
    %v4819 = vld [vmem:[%s17 + $0x50] sm:$0xff]
    %v4820 = vld [vmem:[%s17 + $0x58] sm:$0xff]
    %v4821 = vld [vmem:[%s17 + $0x60] sm:$0xff]
    %v4822 = vld [vmem:[%s17 + $0x68] sm:$0xff]
    %v4823 = vld [vmem:[%s17 + $0x70] sm:$0xff]
    %v4824 = vld [vmem:[%s17 + $0x78] sm:$0xff]
    %v4825 = vld [vmem:[%s17 + $0x80] sm:$0xff]
    %v4826 = vld [vmem:[%s17 + $0x88] sm:$0xff]
    %v4827 = vld [vmem:[%s17 + $0x90] sm:$0xff]
    %v4828 = vld [vmem:[%s17 + $0x98] sm:$0xff]
    %v4830 = vsel %vm1418, %v4780, 0
    %4832 = vmatprep.subr.mxu0 0.0
    %4833 = vmatpush1.msra.mxu0 %v4809
    %4834 = vmatprep.subr.mxu0 0.0
    %4835 = vmatpush1.msra.mxu0 %v4810
    %4836 = vmatprep.subr.mxu0 0.0
    %4837 = vmatpush1.msra.mxu0 %v4811
    %4838 = vmatprep.subr.mxu0 0.0
    %4839 = vmatpush1.msra.mxu0 %v4812
    %4840 = vmatprep.subr.mxu0 0.0
    %4841 = vmatpush1.msra.mxu0 %v4813
    %4842 = vmatprep.subr.mxu0 0.0
    %4843 = vmatpush1.msra.mxu0 %v4814
    %4844 = vmatprep.subr.mxu0 0.0
    %4845 = vmatpush1.msra.mxu0 %v4815
    %4846 = vmatprep.subr.mxu0 0.0
    %4847 = vmatpush1.msra.mxu0 %v4816
    %4848 = vmatprep.subr.mxu0 0.0
    %4849 = vmatpush1.msra.mxu0 %v4817
    %4850 = vmatprep.subr.mxu0 0.0
    %4851 = vmatpush1.msra.mxu0 %v4818
    %4852 = vmatprep.subr.mxu0 0.0
    %4853 = vmatpush1.msra.mxu0 %v4819
    %4854 = vmatprep.subr.mxu0 0.0
    %4855 = vmatpush1.msra.mxu0 %v4820
    %4856 = vmatprep.subr.mxu0 0.0
    %4857 = vmatpush1.msra.mxu0 %v4821
    %4858 = vmatprep.subr.mxu0 0.0
    %4859 = vmatpush1.msra.mxu0 %v4822
    %4860 = vmatprep.subr.mxu0 0.0
    %4861 = vmatpush1.msra.mxu0 %v4823
    %4862 = vmatprep.subr.mxu0 0.0
    %4863 = vmatpush1.msra.mxu0 %v4824
    %4864 = vmatprep.subr.mxu0 0.0
    %4865 = vmatpush1.msra.mxu0 %v4825
    %4866 = vmatprep.subr.mxu0 0.0
    %4867 = vmatpush1.msra.mxu0 %v4826
    %4868 = vmatprep.subr.mxu0 0.0
    %4869 = vmatpush1.msra.mxu0 %v4827
    %4870 = vmatprep.subr.mxu0 0.0
    %4871 = vmatpush1.msra.mxu0 %v4828
    %4872 = vmatprep.subr.mxu0 0.0
    %4873 = vmatpush1.msra.mxu0 0.0
    %4874 = vmatprep.subr.mxu0 0.0
    %4875 = vmatpush1.msra.mxu0 0.0
    %4876 = vmatprep.subr.mxu0 0.0
    %4877 = vmatpush1.msra.mxu0 0.0
    %4878 = vmatprep.subr.mxu0 0.0
    %4879 = vmatpush1.msra.mxu0 0.0
    %4880 = vmatprep.subr.mxu0 0.0
    %4881 = vmatpush1.msra.mxu0 0.0
    %4882 = vmatprep.subr.mxu0 0.0
    %4883 = vmatpush1.msra.mxu0 0.0
    %4884 = vmatprep.subr.mxu0 0.0
    %4885 = vmatpush1.msra.mxu0 0.0
    %4886 = vmatprep.subr.mxu0 0.0
    %4887 = vmatpush1.msra.mxu0 0.0
    %4888 = vmatprep.subr.mxu0 0.0
    %4889 = vmatpush1.msra.mxu0 0.0
    %4890 = vmatprep.subr.mxu0 0.0
    %4891 = vmatpush1.msra.mxu0 0.0
    %4892 = vmatprep.subr.mxu0 0.0
    %4893 = vmatpush1.msra.mxu0 0.0
    %4894 = vmatprep.subr.mxu0 0.0
    %4895 = vmatpush1.msra.mxu0 0.0
    %4896 = vmatprep.mubr.f32.mxu0 %v4830
    %4897 = vmatmul.mubr.f32.gmra.mrb[0].mxu0 %v4779
    %v4898 = vpop.f32.mrb[0].mxu0
    %v4899 = vadd.f32 0.0, %v4898
    %v4900 = vpop.f32.mrb[0].mxu0
    %4901 = vdwg.mxu0
    %v4903 = vsel %vm1418, %v4808, 0
    %4905 = vmatprep.subr.mxu0 0.0
    %4906 = vmatpush1.msra.mxu0 %v4809
    %4907 = vmatprep.subr.mxu0 0.0
    %4908 = vmatpush1.msra.mxu0 %v4810
    %4909 = vmatprep.subr.mxu0 0.0
    %4910 = vmatpush1.msra.mxu0 %v4811
    %4911 = vmatprep.subr.mxu0 0.0
    %4912 = vmatpush1.msra.mxu0 %v4812
    %4913 = vmatprep.subr.mxu0 0.0
    %4914 = vmatpush1.msra.mxu0 %v4813
    %4915 = vmatprep.subr.mxu0 0.0
    %4916 = vmatpush1.msra.mxu0 %v4814
    %4917 = vmatprep.subr.mxu0 0.0
    %4918 = vmatpush1.msra.mxu0 %v4815
    %4919 = vmatprep.subr.mxu0 0.0
    %4920 = vmatpush1.msra.mxu0 %v4816
    %4921 = vmatprep.subr.mxu0 0.0
    %4922 = vmatpush1.msra.mxu0 %v4817
    %4923 = vmatprep.subr.mxu0 0.0
    %4924 = vmatpush1.msra.mxu0 %v4818
    %4925 = vmatprep.subr.mxu0 0.0
    %4926 = vmatpush1.msra.mxu0 %v4819
    %4927 = vmatprep.subr.mxu0 0.0
    %4928 = vmatpush1.msra.mxu0 %v4820
    %4929 = vmatprep.subr.mxu0 0.0
    %4930 = vmatpush1.msra.mxu0 %v4821
    %4931 = vmatprep.subr.mxu0 0.0
    %4932 = vmatpush1.msra.mxu0 %v4822
    %4933 = vmatprep.subr.mxu0 0.0
    %4934 = vmatpush1.msra.mxu0 %v4823
    %4935 = vmatprep.subr.mxu0 0.0
    %4936 = vmatpush1.msra.mxu0 %v4824
    %4937 = vmatprep.subr.mxu0 0.0
    %4938 = vmatpush1.msra.mxu0 %v4825
    %4939 = vmatprep.subr.mxu0 0.0
    %4940 = vmatpush1.msra.mxu0 %v4826
    %4941 = vmatprep.subr.mxu0 0.0
    %4942 = vmatpush1.msra.mxu0 %v4827
    %4943 = vmatprep.subr.mxu0 0.0
    %4944 = vmatpush1.msra.mxu0 %v4828
    %4945 = vmatprep.subr.mxu0 0.0
    %4946 = vmatpush1.msra.mxu0 0.0
    %4947 = vmatprep.subr.mxu0 0.0
    %4948 = vmatpush1.msra.mxu0 0.0
    %4949 = vmatprep.subr.mxu0 0.0
    %4950 = vmatpush1.msra.mxu0 0.0
    %4951 = vmatprep.subr.mxu0 0.0
    %4952 = vmatpush1.msra.mxu0 0.0
    %4953 = vmatprep.subr.mxu0 0.0
    %4954 = vmatpush1.msra.mxu0 0.0
    %4955 = vmatprep.subr.mxu0 0.0
    %4956 = vmatpush1.msra.mxu0 0.0
    %4957 = vmatprep.subr.mxu0 0.0
    %4958 = vmatpush1.msra.mxu0 0.0
    %4959 = vmatprep.subr.mxu0 0.0
    %4960 = vmatpush1.msra.mxu0 0.0
    %4961 = vmatprep.subr.mxu0 0.0
    %4962 = vmatpush1.msra.mxu0 0.0
    %4963 = vmatprep.subr.mxu0 0.0
    %4964 = vmatpush1.msra.mxu0 0.0
    %4965 = vmatprep.subr.mxu0 0.0
    %4966 = vmatpush1.msra.mxu0 0.0
    %4967 = vmatprep.subr.mxu0 0.0
    %4968 = vmatpush1.msra.mxu0 0.0
    %4969 = vmatprep.mubr.f32.mxu0 %v4903
    %4970 = vmatmul.mubr.f32.gmra.mrb[0].mxu0 %v4807
    %v4971 = vpop.f32.mrb[0].mxu0
    %v4972 = vadd.f32 0.0, %v4971
    %v4973 = vpop.f32.mrb[0].mxu0
    %4974 = vdwg.mxu0
    %v4975 = vmul.f32 %v4899, 0.00125
    %v4976 = vmul.f32 %v4972, 0.00125
    %v4977 = vmul.f32 %v4975, %v4975
    %v4978 = vsub.f32 %v4976, %v4977
    %v4979 = vmax.f32 %v4978, 0.0
    %v4980 = vld [vmem:[%s19] sm:$0x1]
    %v4981 = vadd.f32 %v4979, 1e-05
    %v4982 = vrsqrt.pop %v4981
    %v4983 = vmul.f32 %v4980, %v4982
    %v4984 = vld [vmem:[%s20] sm:$0x1]
    %v4985 = vmul.f32 %v4975, %v4983
    %v4986 = vsub.f32 %v4984, %v4985
    %v4987 = vld [vmem:[%s18] sm:$0xff]
    %v4988 = vld [vmem:[%s18 + $0x8] sm:$0xff]
    %vm4989 = vcmask 64512
    %v4991 = vsel %vm4989, %v4983, 0
    %4993 = vmatprep.subr.mxu0 %v4988
    %4994 = vmatpush1.msra.mxu0 %v4987
    %4995 = vmatprep.subr.mxu0 0.0
    %4996 = vmatpush1.msra.mxu0 0.0
    %4997 = vmatprep.subr.mxu0 0.0
    %4998 = vmatpush1.msra.mxu0 0.0
    %4999 = vmatprep.subr.mxu0 0.0
    %5000 = vmatpush1.msra.mxu0 0.0
    %5001 = vmatprep.subr.mxu0 0.0
    %5002 = vmatpush1.msra.mxu0 0.0
    %5003 = vmatprep.subr.mxu0 0.0
    %5004 = vmatpush1.msra.mxu0 0.0
    %5005 = vmatprep.subr.mxu0 0.0
    %5006 = vmatpush1.msra.mxu0 0.0
    %5007 = vmatprep.subr.mxu0 0.0
    %5008 = vmatpush1.msra.mxu0 0.0
    %5009 = vmatprep.subr.mxu0 0.0
    %5010 = vmatpush1.msra.mxu0 0.0
    %5011 = vmatprep.subr.mxu0 0.0
    %5012 = vmatpush1.msra.mxu0 0.0
    %5013 = vmatprep.subr.mxu0 0.0
    %5014 = vmatpush1.msra.mxu0 0.0
    %5015 = vmatprep.subr.mxu0 0.0
    %5016 = vmatpush1.msra.mxu0 0.0
    %5017 = vmatprep.subr.mxu0 0.0
    %5018 = vmatpush1.msra.mxu0 0.0
    %5019 = vmatprep.subr.mxu0 0.0
    %5020 = vmatpush1.msra.mxu0 0.0
    %5021 = vmatprep.subr.mxu0 0.0
    %5022 = vmatpush1.msra.mxu0 0.0
    %5023 = vmatprep.subr.mxu0 0.0
    %5024 = vmatpush1.msra.mxu0 0.0
    %5025 = vmatprep.subr.mxu0 0.0
    %5026 = vmatpush1.msra.mxu0 0.0
    %5027 = vmatprep.subr.mxu0 0.0
    %5028 = vmatpush1.msra.mxu0 0.0
    %5029 = vmatprep.subr.mxu0 0.0
    %5030 = vmatpush1.msra.mxu0 0.0
    %5031 = vmatprep.subr.mxu0 0.0
    %5032 = vmatpush1.msra.mxu0 0.0
    %5033 = vmatprep.subr.mxu0 0.0
    %5034 = vmatpush1.msra.mxu0 0.0
    %5035 = vmatprep.subr.mxu0 0.0
    %5036 = vmatpush1.msra.mxu0 0.0
    %5037 = vmatprep.subr.mxu0 0.0
    %5038 = vmatpush1.msra.mxu0 0.0
    %5039 = vmatprep.subr.mxu0 0.0
    %5040 = vmatpush1.msra.mxu0 0.0
    %5041 = vmatprep.subr.mxu0 0.0
    %5042 = vmatpush1.msra.mxu0 0.0
    %5043 = vmatprep.subr.mxu0 0.0
    %5044 = vmatpush1.msra.mxu0 0.0
    %5045 = vmatprep.subr.mxu0 0.0
    %5046 = vmatpush1.msra.mxu0 0.0
    %5047 = vmatprep.subr.mxu0 0.0
    %5048 = vmatpush1.msra.mxu0 0.0
    %5049 = vmatprep.subr.mxu0 0.0
    %5050 = vmatpush1.msra.mxu0 0.0
    %5051 = vmatprep.subr.mxu0 0.0
    %5052 = vmatpush1.msra.mxu0 0.0
    %5053 = vmatprep.subr.mxu0 0.0
    %5054 = vmatpush1.msra.mxu0 0.0
    %5055 = vmatprep.subr.mxu0 0.0
    %5056 = vmatpush1.msra.mxu0 0.0
    %5057 = vmatprep.mubr.f32.mxu0 0.0
    %5058 = vmatmul.mubr.f32.gmra.mrb[0].mxu0 %v4991
    %v5059 = vpop.f32.mrb[0].mxu0
    %v5060 = vadd.f32 0.0, %v5059
    %v5061 = vpop.f32.mrb[0].mxu0
    %v5062 = vadd.f32 0.0, %v5061
    %5063 = vdwg.mxu0
    %v5065 = vsel %vm4989, %v4986, 0
    %5067 = vmatprep.subr.mxu0 %v4988
    %5068 = vmatpush1.msra.mxu0 %v4987
    %5069 = vmatprep.subr.mxu0 0.0
    %5070 = vmatpush1.msra.mxu0 0.0
    %5071 = vmatprep.subr.mxu0 0.0
    %5072 = vmatpush1.msra.mxu0 0.0
    %5073 = vmatprep.subr.mxu0 0.0
    %5074 = vmatpush1.msra.mxu0 0.0
    %5075 = vmatprep.subr.mxu0 0.0
    %5076 = vmatpush1.msra.mxu0 0.0
    %5077 = vmatprep.subr.mxu0 0.0
    %5078 = vmatpush1.msra.mxu0 0.0
    %5079 = vmatprep.subr.mxu0 0.0
    %5080 = vmatpush1.msra.mxu0 0.0
    %5081 = vmatprep.subr.mxu0 0.0
    %5082 = vmatpush1.msra.mxu0 0.0
    %5083 = vmatprep.subr.mxu0 0.0
    %5084 = vmatpush1.msra.mxu0 0.0
    %5085 = vmatprep.subr.mxu0 0.0
    %5086 = vmatpush1.msra.mxu0 0.0
    %5087 = vmatprep.subr.mxu0 0.0
    %5088 = vmatpush1.msra.mxu0 0.0
    %5089 = vmatprep.subr.mxu0 0.0
    %5090 = vmatpush1.msra.mxu0 0.0
    %5091 = vmatprep.subr.mxu0 0.0
    %5092 = vmatpush1.msra.mxu0 0.0
    %5093 = vmatprep.subr.mxu0 0.0
    %5094 = vmatpush1.msra.mxu0 0.0
    %5095 = vmatprep.subr.mxu0 0.0
    %5096 = vmatpush1.msra.mxu0 0.0
    %5097 = vmatprep.subr.mxu0 0.0
    %5098 = vmatpush1.msra.mxu0 0.0
    %5099 = vmatprep.subr.mxu0 0.0
    %5100 = vmatpush1.msra.mxu0 0.0
    %5101 = vmatprep.subr.mxu0 0.0
    %5102 = vmatpush1.msra.mxu0 0.0
    %5103 = vmatprep.subr.mxu0 0.0
    %5104 = vmatpush1.msra.mxu0 0.0
    %5105 = vmatprep.subr.mxu0 0.0
    %5106 = vmatpush1.msra.mxu0 0.0
    %5107 = vmatprep.subr.mxu0 0.0
    %5108 = vmatpush1.msra.mxu0 0.0
    %5109 = vmatprep.subr.mxu0 0.0
    %5110 = vmatpush1.msra.mxu0 0.0
    %5111 = vmatprep.subr.mxu0 0.0
    %5112 = vmatpush1.msra.mxu0 0.0
    %5113 = vmatprep.subr.mxu0 0.0
    %5114 = vmatpush1.msra.mxu0 0.0
    %5115 = vmatprep.subr.mxu0 0.0
    %5116 = vmatpush1.msra.mxu0 0.0
    %5117 = vmatprep.subr.mxu0 0.0
    %5118 = vmatpush1.msra.mxu0 0.0
    %5119 = vmatprep.subr.mxu0 0.0
    %5120 = vmatpush1.msra.mxu0 0.0
    %5121 = vmatprep.subr.mxu0 0.0
    %5122 = vmatpush1.msra.mxu0 0.0
    %5123 = vmatprep.subr.mxu0 0.0
    %5124 = vmatpush1.msra.mxu0 0.0
    %5125 = vmatprep.subr.mxu0 0.0
    %5126 = vmatpush1.msra.mxu0 0.0
    %5127 = vmatprep.subr.mxu0 0.0
    %5128 = vmatpush1.msra.mxu0 0.0
    %5129 = vmatprep.subr.mxu0 0.0
    %5130 = vmatpush1.msra.mxu0 0.0
    %5131 = vmatprep.mubr.f32.mxu0 0.0
    %5132 = vmatmul.mubr.f32.gmra.mrb[0].mxu0 %v5065
    %v5133 = vpop.f32.mrb[0].mxu0
    %v5134 = vadd.f32 0.0, %v5133
    %v5135 = vpop.f32.mrb[0].mxu0
    %v5136 = vadd.f32 0.0, %v5135
    %5137 = vdwg.mxu0
    %v5138 = vlaneseq
    %v5139 = vshrl.u32 %v5138, 7
    %v5140 = vsub.s32 0, %v5139
    %v5141 = vrot.slane %v5060, %v5140
    %v5142 = vlaneseq
    %v5143 = vshrl.u32 %v5142, 7
    %v5144 = vsub.s32 0, %v5143
    %v5145 = vrot.slane %v5062, %v5144
    %v5146 = vmul.f32 %v4285, %v5141
    %v5147 = vmul.f32 %v4287, %v5145
    %v5148 = vmul.f32 %v4291, %v5141
    %v5149 = vmul.f32 %v4293, %v5145
    %v5150 = vmul.f32 %v4297, %v5141
    %v5151 = vmul.f32 %v4299, %v5145
    %v5152 = vlaneseq
    %v5153 = vshrl.u32 %v5152, 7
    %v5154 = vsub.s32 0, %v5153
    %v5155 = vrot.slane %v5134, %v5154
    %v5156 = vlaneseq
    %v5157 = vshrl.u32 %v5156, 7
    %v5158 = vsub.s32 0, %v5157
    %v5159 = vrot.slane %v5136, %v5158
    %v5160 = vadd.f32 %v5146, %v5155
    %v5161 = vadd.f32 %v5147, %v5159
    %v5162 = vadd.f32 %v5148, %v5155
    %v5163 = vadd.f32 %v5149, %v5159
    %v5164 = vadd.f32 %v5150, %v5155
    %v5165 = vadd.f32 %v5151, %v5159
    %v5166 = vmax.f32 %v5160, 0.0
    %v5167 = vmax.f32 %v5161, 0.0
    %v5168 = vmax.f32 %v5162, 0.0
    %v5169 = vmax.f32 %v5163, 0.0
    %v5170 = vmax.f32 %v5164, 0.0
    %v5171 = vmax.f32 %v5165, 0.0
    %v5172 = vmul.f32 %v4696, %v5141
    %v5173 = vmul.f32 %v4698, %v5145
    %v5174 = vmul.f32 %v4702, %v5141
    %v5175 = vmul.f32 %v4704, %v5145
    %v5176 = vmul.f32 %v4708, %v5141
    %v5177 = vmul.f32 %v4710, %v5145
    %v5178 = vadd.f32 %v5172, %v5155
    %v5179 = vadd.f32 %v5173, %v5159
    %v5180 = vadd.f32 %v5174, %v5155
    %v5181 = vadd.f32 %v5175, %v5159
    %v5182 = vadd.f32 %v5176, %v5155
    %v5183 = vadd.f32 %v5177, %v5159
    %v5184 = vmax.f32 %v5178, 0.0
    %v5185 = vmax.f32 %v5179, 0.0
    %v5186 = vmax.f32 %v5180, 0.0
    %v5187 = vmax.f32 %v5181, 0.0
    %v5188 = vmax.f32 %v5182, 0.0
    %v5189 = vmax.f32 %v5183, 0.0
    %v5196 = vrot.slane %v5166, 7
    %v5197 = vrot.slane %v5167, 7
    %v5198 = vrot.slane %v5168, 7
    %v5199 = vsel %vm1765, %v5196, %v5198
    %v5200 = vrot.slane %v5169, 7
    %v5201 = vsel %vm1765, %v5197, %v5200
    %v5202 = vrot.slane %v5170, 7
    %v5203 = vsel %vm1765, %v5198, %v5202
    %v5204 = vrot.slane %v5171, 7
    %v5205 = vsel %vm1765, %v5200, %v5204
    %v5212 = vsel %vm1765, 0.0, %v5196
    %v5213 = vsel %vm1765, 0.0, %v5197
    %v5214 = vsel %vm1772, %v5203, 0.0
    %v5215 = vsel %vm1772, %v5205, 0.0
    %v5222 = vrot.slane %v5184, 7
    %v5223 = vrot.slane %v5185, 7
    %v5224 = vrot.slane %v5186, 7
    %v5225 = vsel %vm1765, %v5222, %v5224
    %v5226 = vrot.slane %v5187, 7
    %v5227 = vsel %vm1765, %v5223, %v5226
    %v5228 = vrot.slane %v5188, 7
    %v5229 = vsel %vm1765, %v5224, %v5228
    %v5230 = vrot.slane %v5189, 7
    %v5231 = vsel %vm1765, %v5226, %v5230
    %v5238 = vsel %vm1765, 0.0, %v5222
    %v5239 = vsel %vm1765, 0.0, %v5223
    %v5240 = vsel %vm1772, %v5229, 0.0
    %v5241 = vsel %vm1772, %v5231, 0.0
    %v5242 = vpack.c.bf16 %v5199, %v5212
    %v5243 = vpack.c.bf16 %v5201, %v5213
    %v5244 = vpack.c.bf16 %v5214, %v5214
    %v5245 = vpack.c.bf16 %v5215, %v5215
    %v5246 = vld [vmem:[%s21] sm:$0xf]
    %v5247 = vld [vmem:[%s21 + $0x4] sm:$0xf]
    %v5248 = vld [vmem:[%s21 + $0x8] sm:$0xf]
    %v5249 = vld [vmem:[%s21 + $0xc] sm:$0xf]
    %v5250 = vld [vmem:[%s21 + $0x10] sm:$0xf]
    %v5251 = vld [vmem:[%s21 + $0x14] sm:$0xf]
    %v5252 = vld [vmem:[%s21 + $0x18] sm:$0xf]
    %v5253 = vld [vmem:[%s21 + $0x1c] sm:$0xf]
    %v5254 = vld [vmem:[%s21 + $0x20] sm:$0xf]
    %v5255 = vld [vmem:[%s21 + $0x24] sm:$0xf]
    %v5256 = vld [vmem:[%s21 + $0x28] sm:$0xf]
    %v5257 = vld [vmem:[%s21 + $0x2c] sm:$0xf]
    %v5258 = vld [vmem:[%s21 + $0x30] sm:$0xf]
    %v5259 = vld [vmem:[%s21 + $0x34] sm:$0xf]
    %v5260 = vld [vmem:[%s21 + $0x38] sm:$0xf]
    %v5261 = vld [vmem:[%s21 + $0x3c] sm:$0xf]
    %v5262 = vld [vmem:[%s21 + $0x40] sm:$0xf]
    %v5263 = vld [vmem:[%s21 + $0x44] sm:$0xf]
    %v5264 = vld [vmem:[%s21 + $0x48] sm:$0xf]
    %v5265 = vld [vmem:[%s21 + $0x4c] sm:$0xf]
    %v5286 = vunpack.c.l.b16 %v5246
    %v5287 = vunpack.c.l.b16 %v5247
    %v5288 = vunpack.c.l.b16 %v5248
    %v5289 = vunpack.c.l.b16 %v5249
    %v5290 = vunpack.c.l.b16 %v5250
    %v5291 = vunpack.c.l.b16 %v5251
    %v5292 = vunpack.c.l.b16 %v5252
    %v5293 = vunpack.c.l.b16 %v5253
    %v5294 = vunpack.c.l.b16 %v5254
    %v5295 = vunpack.c.l.b16 %v5255
    %v5296 = vunpack.c.l.b16 %v5256
    %v5297 = vunpack.c.l.b16 %v5257
    %v5298 = vunpack.c.l.b16 %v5258
    %v5299 = vunpack.c.l.b16 %v5259
    %v5300 = vunpack.c.l.b16 %v5260
    %v5301 = vunpack.c.l.b16 %v5261
    %v5302 = vunpack.c.l.b16 %v5262
    %v5303 = vunpack.c.l.b16 %v5263
    %v5304 = vunpack.c.l.b16 %v5264
    %v5305 = vunpack.c.l.b16 %v5265
    %v5306 = vpack.c.b16 %v5287, %v5286
    %v5307 = vpack.c.b16 %v5289, %v5288
    %v5308 = vpack.c.b16 %v5291, %v5290
    %v5309 = vpack.c.b16 %v5293, %v5292
    %v5310 = vpack.c.b16 %v5295, %v5294
    %v5311 = vpack.c.b16 %v5297, %v5296
    %v5312 = vpack.c.b16 %v5299, %v5298
    %v5313 = vpack.c.b16 %v5301, %v5300
    %v5314 = vpack.c.b16 %v5303, %v5302
    %v5315 = vpack.c.b16 %v5305, %v5304
    %v5327 = vsel %vm1418, %v5243, 0
    %v5330 = vsel %vm1418, %v5245, 0
    %5332 = vmatprep.subr.bf16.mxu0 0
    %5333 = vmatpush1.bf16.msra.mxu0 %v5306
    %5334 = vmatprep.subr.bf16.mxu0 0
    %5335 = vmatpush1.bf16.msra.mxu0 %v5307
    %5336 = vmatprep.subr.bf16.mxu0 0
    %5337 = vmatpush1.bf16.msra.mxu0 %v5308
    %5338 = vmatprep.subr.bf16.mxu0 0
    %5339 = vmatpush1.bf16.msra.mxu0 %v5309
    %5340 = vmatprep.subr.bf16.mxu0 0
    %5341 = vmatpush1.bf16.msra.mxu0 %v5310
    %5342 = vmatprep.subr.bf16.mxu0 0
    %5343 = vmatpush1.bf16.msra.mxu0 %v5311
    %5344 = vmatprep.subr.bf16.mxu0 0
    %5345 = vmatpush1.bf16.msra.mxu0 %v5312
    %5346 = vmatprep.subr.bf16.mxu0 0
    %5347 = vmatpush1.bf16.msra.mxu0 %v5313
    %5348 = vmatprep.subr.bf16.mxu0 0
    %5349 = vmatpush1.bf16.msra.mxu0 %v5314
    %5350 = vmatprep.subr.bf16.mxu0 0
    %5351 = vmatpush1.bf16.msra.mxu0 %v5315
    %5352 = vmatprep.subr.bf16.mxu0 0
    %5353 = vmatpush1.bf16.msra.mxu0 0
    %5354 = vmatprep.subr.bf16.mxu0 0
    %5355 = vmatpush1.bf16.msra.mxu0 0
    %5356 = vmatprep.subr.bf16.mxu0 0
    %5357 = vmatpush1.bf16.msra.mxu0 0
    %5358 = vmatprep.subr.bf16.mxu0 0
    %5359 = vmatpush1.bf16.msra.mxu0 0
    %5360 = vmatprep.subr.bf16.mxu0 0
    %5361 = vmatpush1.bf16.msra.mxu0 0
    %5362 = vmatprep.subr.bf16.mxu0 0
    %5363 = vmatpush1.bf16.msra.mxu0 0
    %5364 = vmatprep.mubr.bf16.mxu0 %v5327
    %5365 = vmatmul.mubr.bf16.gmra.mrb[0].mxu0 %v5242
    %v5366 = vpop.f32.mrb[0].mxu0
    %v5367 = vadd.f32 0.0, %v5366
    %v5368 = vpop.f32.mrb[0].mxu0
    %v5369 = vpop.f32.mrb[0].mxu0
    %v5370 = vadd.f32 0.0, %v5369
    %v5371 = vpop.f32.mrb[0].mxu0
    %5372 = vmatprep.mubr.bf16.mxu0 %v5330
    %5373 = vmatmul.mubr.bf16.gmra.mrb[0].mxu0 %v5244
    %v5374 = vpop.f32.mrb[0].mxu0
    %v5375 = vadd.f32 0.0, %v5374
    %v5376 = vpop.f32.mrb[0].mxu0
    %v5377 = vpop.f32.mrb[0].mxu0
    %v5378 = vpop.f32.mrb[0].mxu0
    %5379 = vdwg.mxu0
    %s5380 = scalar_lea.vmem %s21, 80
    %v5381 = vld [vmem:[%s5380] sm:$0xf]
    %v5382 = vld [vmem:[%s5380 + $0x4] sm:$0xf]
    %v5383 = vld [vmem:[%s5380 + $0x8] sm:$0xf]
    %v5384 = vld [vmem:[%s5380 + $0xc] sm:$0xf]
    %v5385 = vld [vmem:[%s5380 + $0x10] sm:$0xf]
    %v5386 = vld [vmem:[%s5380 + $0x14] sm:$0xf]
    %v5387 = vld [vmem:[%s5380 + $0x18] sm:$0xf]
    %v5388 = vld [vmem:[%s5380 + $0x1c] sm:$0xf]
    %v5389 = vld [vmem:[%s5380 + $0x20] sm:$0xf]
    %v5390 = vld [vmem:[%s5380 + $0x24] sm:$0xf]
    %v5391 = vld [vmem:[%s5380 + $0x28] sm:$0xf]
    %v5392 = vld [vmem:[%s5380 + $0x2c] sm:$0xf]
    %v5393 = vld [vmem:[%s5380 + $0x30] sm:$0xf]
    %v5394 = vld [vmem:[%s5380 + $0x34] sm:$0xf]
    %v5395 = vld [vmem:[%s5380 + $0x38] sm:$0xf]
    %v5396 = vld [vmem:[%s5380 + $0x3c] sm:$0xf]
    %v5397 = vld [vmem:[%s5380 + $0x40] sm:$0xf]
    %v5398 = vld [vmem:[%s5380 + $0x44] sm:$0xf]
    %v5399 = vld [vmem:[%s5380 + $0x48] sm:$0xf]
    %v5400 = vld [vmem:[%s5380 + $0x4c] sm:$0xf]
    %v5421 = vunpack.c.l.b16 %v5381
    %v5422 = vunpack.c.l.b16 %v5382
    %v5423 = vunpack.c.l.b16 %v5383
    %v5424 = vunpack.c.l.b16 %v5384
    %v5425 = vunpack.c.l.b16 %v5385
    %v5426 = vunpack.c.l.b16 %v5386
    %v5427 = vunpack.c.l.b16 %v5387
    %v5428 = vunpack.c.l.b16 %v5388
    %v5429 = vunpack.c.l.b16 %v5389
    %v5430 = vunpack.c.l.b16 %v5390
    %v5431 = vunpack.c.l.b16 %v5391
    %v5432 = vunpack.c.l.b16 %v5392
    %v5433 = vunpack.c.l.b16 %v5393
    %v5434 = vunpack.c.l.b16 %v5394
    %v5435 = vunpack.c.l.b16 %v5395
    %v5436 = vunpack.c.l.b16 %v5396
    %v5437 = vunpack.c.l.b16 %v5397
    %v5438 = vunpack.c.l.b16 %v5398
    %v5439 = vunpack.c.l.b16 %v5399
    %v5440 = vunpack.c.l.b16 %v5400
    %v5441 = vpack.c.b16 %v5422, %v5421
    %v5442 = vpack.c.b16 %v5424, %v5423
    %v5443 = vpack.c.b16 %v5426, %v5425
    %v5444 = vpack.c.b16 %v5428, %v5427
    %v5445 = vpack.c.b16 %v5430, %v5429
    %v5446 = vpack.c.b16 %v5432, %v5431
    %v5447 = vpack.c.b16 %v5434, %v5433
    %v5448 = vpack.c.b16 %v5436, %v5435
    %v5449 = vpack.c.b16 %v5438, %v5437
    %v5450 = vpack.c.b16 %v5440, %v5439
    %5461 = vmatprep.subr.bf16.mxu0 0
    %5462 = vmatpush1.bf16.msra.mxu0 %v5441
    %5463 = vmatprep.subr.bf16.mxu0 0
    %5464 = vmatpush1.bf16.msra.mxu0 %v5442
    %5465 = vmatprep.subr.bf16.mxu0 0
    %5466 = vmatpush1.bf16.msra.mxu0 %v5443
    %5467 = vmatprep.subr.bf16.mxu0 0
    %5468 = vmatpush1.bf16.msra.mxu0 %v5444
    %5469 = vmatprep.subr.bf16.mxu0 0
    %5470 = vmatpush1.bf16.msra.mxu0 %v5445
    %5471 = vmatprep.subr.bf16.mxu0 0
    %5472 = vmatpush1.bf16.msra.mxu0 %v5446
    %5473 = vmatprep.subr.bf16.mxu0 0
    %5474 = vmatpush1.bf16.msra.mxu0 %v5447
    %5475 = vmatprep.subr.bf16.mxu0 0
    %5476 = vmatpush1.bf16.msra.mxu0 %v5448
    %5477 = vmatprep.subr.bf16.mxu0 0
    %5478 = vmatpush1.bf16.msra.mxu0 %v5449
    %5479 = vmatprep.subr.bf16.mxu0 0
    %5480 = vmatpush1.bf16.msra.mxu0 %v5450
    %5481 = vmatprep.subr.bf16.mxu0 0
    %5482 = vmatpush1.bf16.msra.mxu0 0
    %5483 = vmatprep.subr.bf16.mxu0 0
    %5484 = vmatpush1.bf16.msra.mxu0 0
    %5485 = vmatprep.subr.bf16.mxu0 0
    %5486 = vmatpush1.bf16.msra.mxu0 0
    %5487 = vmatprep.subr.bf16.mxu0 0
    %5488 = vmatpush1.bf16.msra.mxu0 0
    %5489 = vmatprep.subr.bf16.mxu0 0
    %5490 = vmatpush1.bf16.msra.mxu0 0
    %5491 = vmatprep.subr.bf16.mxu0 0
    %5492 = vmatpush1.bf16.msra.mxu0 0
    %5493 = vmatprep.mubr.bf16.mxu0 %v5327
    %5494 = vmatmul.mubr.bf16.gmra.mrb[0].mxu0 %v5242
    %v5495 = vpop.f32.mrb[0].mxu0
    %v5496 = vadd.f32 0.0, %v5495
    %v5497 = vpop.f32.mrb[0].mxu0
    %v5498 = vpop.f32.mrb[0].mxu0
    %v5499 = vadd.f32 0.0, %v5498
    %v5500 = vpop.f32.mrb[0].mxu0
    %5501 = vmatprep.mubr.bf16.mxu0 %v5330
    %5502 = vmatmul.mubr.bf16.gmra.mrb[0].mxu0 %v5244
    %v5503 = vpop.f32.mrb[0].mxu0
    %v5504 = vadd.f32 0.0, %v5503
    %v5505 = vpop.f32.mrb[0].mxu0
    %v5506 = vpop.f32.mrb[0].mxu0
    %v5507 = vpop.f32.mrb[0].mxu0
    %5508 = vdwg.mxu0
    %s5509 = scalar_lea.vmem %s21, 160
    %v5510 = vld [vmem:[%s5509] sm:$0xf]
    %v5511 = vld [vmem:[%s5509 + $0x4] sm:$0xf]
    %v5512 = vld [vmem:[%s5509 + $0x8] sm:$0xf]
    %v5513 = vld [vmem:[%s5509 + $0xc] sm:$0xf]
    %v5514 = vld [vmem:[%s5509 + $0x10] sm:$0xf]
    %v5515 = vld [vmem:[%s5509 + $0x14] sm:$0xf]
    %v5516 = vld [vmem:[%s5509 + $0x18] sm:$0xf]
    %v5517 = vld [vmem:[%s5509 + $0x1c] sm:$0xf]
    %v5518 = vld [vmem:[%s5509 + $0x20] sm:$0xf]
    %v5519 = vld [vmem:[%s5509 + $0x24] sm:$0xf]
    %v5520 = vld [vmem:[%s5509 + $0x28] sm:$0xf]
    %v5521 = vld [vmem:[%s5509 + $0x2c] sm:$0xf]
    %v5522 = vld [vmem:[%s5509 + $0x30] sm:$0xf]
    %v5523 = vld [vmem:[%s5509 + $0x34] sm:$0xf]
    %v5524 = vld [vmem:[%s5509 + $0x38] sm:$0xf]
    %v5525 = vld [vmem:[%s5509 + $0x3c] sm:$0xf]
    %v5526 = vld [vmem:[%s5509 + $0x40] sm:$0xf]
    %v5527 = vld [vmem:[%s5509 + $0x44] sm:$0xf]
    %v5528 = vld [vmem:[%s5509 + $0x48] sm:$0xf]
    %v5529 = vld [vmem:[%s5509 + $0x4c] sm:$0xf]
    %v5550 = vunpack.c.l.b16 %v5510
    %v5551 = vunpack.c.l.b16 %v5511
    %v5552 = vunpack.c.l.b16 %v5512
    %v5553 = vunpack.c.l.b16 %v5513
    %v5554 = vunpack.c.l.b16 %v5514
    %v5555 = vunpack.c.l.b16 %v5515
    %v5556 = vunpack.c.l.b16 %v5516
    %v5557 = vunpack.c.l.b16 %v5517
    %v5558 = vunpack.c.l.b16 %v5518
    %v5559 = vunpack.c.l.b16 %v5519
    %v5560 = vunpack.c.l.b16 %v5520
    %v5561 = vunpack.c.l.b16 %v5521
    %v5562 = vunpack.c.l.b16 %v5522
    %v5563 = vunpack.c.l.b16 %v5523
    %v5564 = vunpack.c.l.b16 %v5524
    %v5565 = vunpack.c.l.b16 %v5525
    %v5566 = vunpack.c.l.b16 %v5526
    %v5567 = vunpack.c.l.b16 %v5527
    %v5568 = vunpack.c.l.b16 %v5528
    %v5569 = vunpack.c.l.b16 %v5529
    %v5570 = vpack.c.b16 %v5551, %v5550
    %v5571 = vpack.c.b16 %v5553, %v5552
    %v5572 = vpack.c.b16 %v5555, %v5554
    %v5573 = vpack.c.b16 %v5557, %v5556
    %v5574 = vpack.c.b16 %v5559, %v5558
    %v5575 = vpack.c.b16 %v5561, %v5560
    %v5576 = vpack.c.b16 %v5563, %v5562
    %v5577 = vpack.c.b16 %v5565, %v5564
    %v5578 = vpack.c.b16 %v5567, %v5566
    %v5579 = vpack.c.b16 %v5569, %v5568
    %5590 = vmatprep.subr.bf16.mxu0 0
    %5591 = vmatpush1.bf16.msra.mxu0 %v5570
    %5592 = vmatprep.subr.bf16.mxu0 0
    %5593 = vmatpush1.bf16.msra.mxu0 %v5571
    %5594 = vmatprep.subr.bf16.mxu0 0
    %5595 = vmatpush1.bf16.msra.mxu0 %v5572
    %5596 = vmatprep.subr.bf16.mxu0 0
    %5597 = vmatpush1.bf16.msra.mxu0 %v5573
    %5598 = vmatprep.subr.bf16.mxu0 0
    %5599 = vmatpush1.bf16.msra.mxu0 %v5574
    %5600 = vmatprep.subr.bf16.mxu0 0
    %5601 = vmatpush1.bf16.msra.mxu0 %v5575
    %5602 = vmatprep.subr.bf16.mxu0 0
    %5603 = vmatpush1.bf16.msra.mxu0 %v5576
    %5604 = vmatprep.subr.bf16.mxu0 0
    %5605 = vmatpush1.bf16.msra.mxu0 %v5577
    %5606 = vmatprep.subr.bf16.mxu0 0
    %5607 = vmatpush1.bf16.msra.mxu0 %v5578
    %5608 = vmatprep.subr.bf16.mxu0 0
    %5609 = vmatpush1.bf16.msra.mxu0 %v5579
    %5610 = vmatprep.subr.bf16.mxu0 0
    %5611 = vmatpush1.bf16.msra.mxu0 0
    %5612 = vmatprep.subr.bf16.mxu0 0
    %5613 = vmatpush1.bf16.msra.mxu0 0
    %5614 = vmatprep.subr.bf16.mxu0 0
    %5615 = vmatpush1.bf16.msra.mxu0 0
    %5616 = vmatprep.subr.bf16.mxu0 0
    %5617 = vmatpush1.bf16.msra.mxu0 0
    %5618 = vmatprep.subr.bf16.mxu0 0
    %5619 = vmatpush1.bf16.msra.mxu0 0
    %5620 = vmatprep.subr.bf16.mxu0 0
    %5621 = vmatpush1.bf16.msra.mxu0 0
    %5622 = vmatprep.mubr.bf16.mxu0 %v5327
    %5623 = vmatmul.mubr.bf16.gmra.mrb[0].mxu0 %v5242
    %v5624 = vpop.f32.mrb[0].mxu0
    %v5625 = vadd.f32 0.0, %v5624
    %v5626 = vpop.f32.mrb[0].mxu0
    %v5627 = vpop.f32.mrb[0].mxu0
    %v5628 = vadd.f32 0.0, %v5627
    %v5629 = vpop.f32.mrb[0].mxu0
    %5630 = vmatprep.mubr.bf16.mxu0 %v5330
    %5631 = vmatmul.mubr.bf16.gmra.mrb[0].mxu0 %v5244
    %v5632 = vpop.f32.mrb[0].mxu0
    %v5633 = vadd.f32 0.0, %v5632
    %v5634 = vpop.f32.mrb[0].mxu0
    %v5635 = vpop.f32.mrb[0].mxu0
    %v5636 = vpop.f32.mrb[0].mxu0
    %5637 = vdwg.mxu0
    %s5638 = scalar_lea.vmem %s21, 240
    %v5639 = vld [vmem:[%s5638] sm:$0xf]
    %v5640 = vld [vmem:[%s5638 + $0x4] sm:$0xf]
    %v5641 = vld [vmem:[%s5638 + $0x8] sm:$0xf]
    %v5642 = vld [vmem:[%s5638 + $0xc] sm:$0xf]
    %v5643 = vld [vmem:[%s5638 + $0x10] sm:$0xf]
    %v5644 = vld [vmem:[%s5638 + $0x14] sm:$0xf]
    %v5645 = vld [vmem:[%s5638 + $0x18] sm:$0xf]
    %v5646 = vld [vmem:[%s5638 + $0x1c] sm:$0xf]
    %v5647 = vld [vmem:[%s5638 + $0x20] sm:$0xf]
    %v5648 = vld [vmem:[%s5638 + $0x24] sm:$0xf]
    %v5649 = vld [vmem:[%s5638 + $0x28] sm:$0xf]
    %v5650 = vld [vmem:[%s5638 + $0x2c] sm:$0xf]
    %v5651 = vld [vmem:[%s5638 + $0x30] sm:$0xf]
    %v5652 = vld [vmem:[%s5638 + $0x34] sm:$0xf]
    %v5653 = vld [vmem:[%s5638 + $0x38] sm:$0xf]
    %v5654 = vld [vmem:[%s5638 + $0x3c] sm:$0xf]
    %v5655 = vld [vmem:[%s5638 + $0x40] sm:$0xf]
    %v5656 = vld [vmem:[%s5638 + $0x44] sm:$0xf]
    %v5657 = vld [vmem:[%s5638 + $0x48] sm:$0xf]
    %v5658 = vld [vmem:[%s5638 + $0x4c] sm:$0xf]
    %v5679 = vunpack.c.l.b16 %v5639
    %v5680 = vunpack.c.l.b16 %v5640
    %v5681 = vunpack.c.l.b16 %v5641
    %v5682 = vunpack.c.l.b16 %v5642
    %v5683 = vunpack.c.l.b16 %v5643
    %v5684 = vunpack.c.l.b16 %v5644
    %v5685 = vunpack.c.l.b16 %v5645
    %v5686 = vunpack.c.l.b16 %v5646
    %v5687 = vunpack.c.l.b16 %v5647
    %v5688 = vunpack.c.l.b16 %v5648
    %v5689 = vunpack.c.l.b16 %v5649
    %v5690 = vunpack.c.l.b16 %v5650
    %v5691 = vunpack.c.l.b16 %v5651
    %v5692 = vunpack.c.l.b16 %v5652
    %v5693 = vunpack.c.l.b16 %v5653
    %v5694 = vunpack.c.l.b16 %v5654
    %v5695 = vunpack.c.l.b16 %v5655
    %v5696 = vunpack.c.l.b16 %v5656
    %v5697 = vunpack.c.l.b16 %v5657
    %v5698 = vunpack.c.l.b16 %v5658
    %v5699 = vpack.c.b16 %v5680, %v5679
    %v5700 = vpack.c.b16 %v5682, %v5681
    %v5701 = vpack.c.b16 %v5684, %v5683
    %v5702 = vpack.c.b16 %v5686, %v5685
    %v5703 = vpack.c.b16 %v5688, %v5687
    %v5704 = vpack.c.b16 %v5690, %v5689
    %v5705 = vpack.c.b16 %v5692, %v5691
    %v5706 = vpack.c.b16 %v5694, %v5693
    %v5707 = vpack.c.b16 %v5696, %v5695
    %v5708 = vpack.c.b16 %v5698, %v5697
    %5719 = vmatprep.subr.bf16.mxu0 0
    %5720 = vmatpush1.bf16.msra.mxu0 %v5699
    %5721 = vmatprep.subr.bf16.mxu0 0
    %5722 = vmatpush1.bf16.msra.mxu0 %v5700
    %5723 = vmatprep.subr.bf16.mxu0 0
    %5724 = vmatpush1.bf16.msra.mxu0 %v5701
    %5725 = vmatprep.subr.bf16.mxu0 0
    %5726 = vmatpush1.bf16.msra.mxu0 %v5702
    %5727 = vmatprep.subr.bf16.mxu0 0
    %5728 = vmatpush1.bf16.msra.mxu0 %v5703
    %5729 = vmatprep.subr.bf16.mxu0 0
    %5730 = vmatpush1.bf16.msra.mxu0 %v5704
    %5731 = vmatprep.subr.bf16.mxu0 0
    %5732 = vmatpush1.bf16.msra.mxu0 %v5705
    %5733 = vmatprep.subr.bf16.mxu0 0
    %5734 = vmatpush1.bf16.msra.mxu0 %v5706
    %5735 = vmatprep.subr.bf16.mxu0 0
    %5736 = vmatpush1.bf16.msra.mxu0 %v5707
    %5737 = vmatprep.subr.bf16.mxu0 0
    %5738 = vmatpush1.bf16.msra.mxu0 %v5708
    %5739 = vmatprep.subr.bf16.mxu0 0
    %5740 = vmatpush1.bf16.msra.mxu0 0
    %5741 = vmatprep.subr.bf16.mxu0 0
    %5742 = vmatpush1.bf16.msra.mxu0 0
    %5743 = vmatprep.subr.bf16.mxu0 0
    %5744 = vmatpush1.bf16.msra.mxu0 0
    %5745 = vmatprep.subr.bf16.mxu0 0
    %5746 = vmatpush1.bf16.msra.mxu0 0
    %5747 = vmatprep.subr.bf16.mxu0 0
    %5748 = vmatpush1.bf16.msra.mxu0 0
    %5749 = vmatprep.subr.bf16.mxu0 0
    %5750 = vmatpush1.bf16.msra.mxu0 0
    %5751 = vmatprep.mubr.bf16.mxu0 %v5327
    %5752 = vmatmul.mubr.bf16.gmra.mrb[0].mxu0 %v5242
    %v5753 = vpop.f32.mrb[0].mxu0
    %v5754 = vadd.f32 0.0, %v5753
    %v5755 = vpop.f32.mrb[0].mxu0
    %v5756 = vpop.f32.mrb[0].mxu0
    %v5757 = vadd.f32 0.0, %v5756
    %v5758 = vpop.f32.mrb[0].mxu0
    %5759 = vmatprep.mubr.bf16.mxu0 %v5330
    %5760 = vmatmul.mubr.bf16.gmra.mrb[0].mxu0 %v5244
    %v5761 = vpop.f32.mrb[0].mxu0
    %v5762 = vadd.f32 0.0, %v5761
    %v5763 = vpop.f32.mrb[0].mxu0
    %v5764 = vpop.f32.mrb[0].mxu0
    %v5765 = vpop.f32.mrb[0].mxu0
    %5766 = vdwg.mxu0
    %v5770 = vrot.slane %v5754, 7
    %v5771 = vrot.slane %v5757, 7
    %v5772 = vsel %vm1765, %v5770, %v5771
    %v5773 = vrot.slane %v5762, 7
    %v5774 = vsel %vm1765, %v5771, %v5773
    %v5778 = vadd.f32 %v5496, %v5770
    %v5779 = vadd.f32 %v5499, %v5772
    %v5780 = vadd.f32 %v5504, %v5774
    %v5784 = vrot.slane %v5625, 7
    %v5785 = vrot.slane %v5628, 7
    %v5786 = vsel %vm1765, %v5784, %v5785
    %v5787 = vrot.slane %v5633, 7
    %v5788 = vsel %vm1765, %v5785, %v5787
    %v5792 = vadd.f32 %v5367, %v5784
    %v5793 = vadd.f32 %v5370, %v5786
    %v5794 = vadd.f32 %v5375, %v5788
    %v5795 = vld [vmem:[%s22] sm:$0xff]
    %v5796 = vld [vmem:[%s22 + $0x8] sm:$0xff]
    %v5797 = vld [vmem:[%s22 + $0x10] sm:$0xff]
    %v5798 = vld [vmem:[%s22 + $0x18] sm:$0xff]
    %v5799 = vld [vmem:[%s22 + $0x20] sm:$0xff]
    %s5800 = scalar_lea.vmem %s22, 40
    %v5801 = vld [vmem:[%s5800] sm:$0xff]
    %v5802 = vld [vmem:[%s5800 + $0x8] sm:$0xff]
    %v5803 = vld [vmem:[%s5800 + $0x10] sm:$0xff]
    %v5804 = vld [vmem:[%s5800 + $0x18] sm:$0xff]
    %v5805 = vld [vmem:[%s5800 + $0x20] sm:$0xff]
    %v5809 = vrot.slane %v5792, 2
    %v5810 = vrot.slane %v5793, 2
    %v5811 = vsel %vm4086, %v5809, %v5810
    %v5812 = vrot.slane %v5794, 2
    %v5813 = vsel %vm4086, %v5810, %v5812
    %vm5816 = vcmask 162816
    %v5818 = vsel %vm5816, %v5801, 0
    %v5821 = vsel %vm5816, %v5802, 0
    %v5824 = vsel %vm5816, %v5803, 0
    %v5827 = vsel %vm5816, %v5804, 0
    %v5830 = vsel %vm5816, %v5805, 0
    %v5832 = vsel %vm1770, %v5812, 0
    %5834 = vmatprep.subr.mxu0 0.0
    %5835 = vmatpush1.msra.mxu0 %v5811
    %5836 = vmatprep.subr.mxu0 0.0
    %5837 = vmatpush1.msra.mxu0 %v5813
    %5838 = vmatprep.subr.mxu0 0.0
    %5839 = vmatpush1.msra.mxu0 %v5832
    %5840 = vmatprep.subr.mxu0 0.0
    %5841 = vmatpush1.msra.mxu0 0.0
    %5842 = vmatprep.subr.mxu0 0.0
    %5843 = vmatpush1.msra.mxu0 0.0
    %5844 = vmatprep.subr.mxu0 0.0
    %5845 = vmatpush1.msra.mxu0 0.0
    %5846 = vmatprep.subr.mxu0 0.0
    %5847 = vmatpush1.msra.mxu0 0.0
    %5848 = vmatprep.subr.mxu0 0.0
    %5849 = vmatpush1.msra.mxu0 0.0
    %5850 = vmatprep.subr.mxu0 0.0
    %5851 = vmatpush1.msra.mxu0 0.0
    %5852 = vmatprep.subr.mxu0 0.0
    %5853 = vmatpush1.msra.mxu0 0.0
    %5854 = vmatprep.subr.mxu0 0.0
    %5855 = vmatpush1.msra.mxu0 0.0
    %5856 = vmatprep.subr.mxu0 0.0
    %5857 = vmatpush1.msra.mxu0 0.0
    %5858 = vmatprep.subr.mxu0 0.0
    %5859 = vmatpush1.msra.mxu0 0.0
    %5860 = vmatprep.subr.mxu0 0.0
    %5861 = vmatpush1.msra.mxu0 0.0
    %5862 = vmatprep.subr.mxu0 0.0
    %5863 = vmatpush1.msra.mxu0 0.0
    %5864 = vmatprep.subr.mxu0 0.0
    %5865 = vmatpush1.msra.mxu0 0.0
    %5866 = vmatprep.subr.mxu0 0.0
    %5867 = vmatpush1.msra.mxu0 0.0
    %5868 = vmatprep.subr.mxu0 0.0
    %5869 = vmatpush1.msra.mxu0 0.0
    %5870 = vmatprep.subr.mxu0 0.0
    %5871 = vmatpush1.msra.mxu0 0.0
    %5872 = vmatprep.subr.mxu0 0.0
    %5873 = vmatpush1.msra.mxu0 0.0
    %5874 = vmatprep.subr.mxu0 0.0
    %5875 = vmatpush1.msra.mxu0 0.0
    %5876 = vmatprep.subr.mxu0 0.0
    %5877 = vmatpush1.msra.mxu0 0.0
    %5878 = vmatprep.subr.mxu0 0.0
    %5879 = vmatpush1.msra.mxu0 0.0
    %5880 = vmatprep.subr.mxu0 0.0
    %5881 = vmatpush1.msra.mxu0 0.0
    %5882 = vmatprep.subr.mxu0 0.0
    %5883 = vmatpush1.msra.mxu0 0.0
    %5884 = vmatprep.subr.mxu0 0.0
    %5885 = vmatpush1.msra.mxu0 0.0
    %5886 = vmatprep.subr.mxu0 0.0
    %5887 = vmatpush1.msra.mxu0 0.0
    %5888 = vmatprep.subr.mxu0 0.0
    %5889 = vmatpush1.msra.mxu0 0.0
    %5890 = vmatprep.subr.mxu0 0.0
    %5891 = vmatpush1.msra.mxu0 0.0
    %5892 = vmatprep.subr.mxu0 0.0
    %5893 = vmatpush1.msra.mxu0 0.0
    %5894 = vmatprep.subr.mxu0 0.0
    %5895 = vmatpush1.msra.mxu0 0.0
    %5896 = vmatprep.subr.mxu0 0.0
    %5897 = vmatpush1.msra.mxu0 0.0
    %5898 = vmatprep.mubr.f32.mxu0 0.0
    %5899 = vmatmul.mubr.f32.gmra.mrb[0].mxu0 %v5818
    %v5900 = vpop.f32.mrb[0].mxu0
    %v5901 = vadd.f32 0.0, %v5900
    %v5902 = vpop.f32.mrb[0].mxu0
    %5903 = vmatprep.mubr.f32.mxu0 0.0
    %5904 = vmatmul.mubr.f32.gmra.mrb[0].mxu0 %v5821
    %v5905 = vpop.f32.mrb[0].mxu0
    %v5906 = vadd.f32 0.0, %v5905
    %v5907 = vpop.f32.mrb[0].mxu0
    %5908 = vmatprep.mubr.f32.mxu0 0.0
    %5909 = vmatmul.mubr.f32.gmra.mrb[0].mxu0 %v5824
    %v5910 = vpop.f32.mrb[0].mxu0
    %v5911 = vadd.f32 0.0, %v5910
    %v5912 = vpop.f32.mrb[0].mxu0
    %5913 = vmatprep.mubr.f32.mxu0 0.0
    %5914 = vmatmul.mubr.f32.gmra.mrb[0].mxu0 %v5827
    %v5915 = vpop.f32.mrb[0].mxu0
    %v5916 = vadd.f32 0.0, %v5915
    %v5917 = vpop.f32.mrb[0].mxu0
    %5918 = vmatprep.mubr.f32.mxu0 0.0
    %5919 = vmatmul.mubr.f32.gmra.mrb[0].mxu0 %v5830
    %v5920 = vpop.f32.mrb[0].mxu0
    %v5921 = vadd.f32 0.0, %v5920
    %v5922 = vpop.f32.mrb[0].mxu0
    %5923 = vdwg.mxu0
    %v5927 = vrot.slane %v5778, 1
    %v5928 = vrot.slane %v5779, 1
    %v5929 = vsel %vm4196, %v5927, %v5928
    %v5930 = vrot.slane %v5780, 1
    %v5931 = vsel %vm4196, %v5928, %v5930
    %v5935 = vsel %vm5816, %v5795, 0
    %v5938 = vsel %vm5816, %v5796, 0
    %v5941 = vsel %vm5816, %v5797, 0
    %v5944 = vsel %vm5816, %v5798, 0
    %v5947 = vsel %vm5816, %v5799, 0
    %v5949 = vsel %vm1770, %v5930, 0
    %5951 = vmatprep.subr.mxu0 0.0
    %5952 = vmatpush1.msra.mxu0 %v5929
    %5953 = vmatprep.subr.mxu0 0.0
    %5954 = vmatpush1.msra.mxu0 %v5931
    %5955 = vmatprep.subr.mxu0 0.0
    %5956 = vmatpush1.msra.mxu0 %v5949
    %5957 = vmatprep.subr.mxu0 0.0
    %5958 = vmatpush1.msra.mxu0 0.0
    %5959 = vmatprep.subr.mxu0 0.0
    %5960 = vmatpush1.msra.mxu0 0.0
    %5961 = vmatprep.subr.mxu0 0.0
    %5962 = vmatpush1.msra.mxu0 0.0
    %5963 = vmatprep.subr.mxu0 0.0
    %5964 = vmatpush1.msra.mxu0 0.0
    %5965 = vmatprep.subr.mxu0 0.0
    %5966 = vmatpush1.msra.mxu0 0.0
    %5967 = vmatprep.subr.mxu0 0.0
    %5968 = vmatpush1.msra.mxu0 0.0
    %5969 = vmatprep.subr.mxu0 0.0
    %5970 = vmatpush1.msra.mxu0 0.0
    %5971 = vmatprep.subr.mxu0 0.0
    %5972 = vmatpush1.msra.mxu0 0.0
    %5973 = vmatprep.subr.mxu0 0.0
    %5974 = vmatpush1.msra.mxu0 0.0
    %5975 = vmatprep.subr.mxu0 0.0
    %5976 = vmatpush1.msra.mxu0 0.0
    %5977 = vmatprep.subr.mxu0 0.0
    %5978 = vmatpush1.msra.mxu0 0.0
    %5979 = vmatprep.subr.mxu0 0.0
    %5980 = vmatpush1.msra.mxu0 0.0
    %5981 = vmatprep.subr.mxu0 0.0
    %5982 = vmatpush1.msra.mxu0 0.0
    %5983 = vmatprep.subr.mxu0 0.0
    %5984 = vmatpush1.msra.mxu0 0.0
    %5985 = vmatprep.subr.mxu0 0.0
    %5986 = vmatpush1.msra.mxu0 0.0
    %5987 = vmatprep.subr.mxu0 0.0
    %5988 = vmatpush1.msra.mxu0 0.0
    %5989 = vmatprep.subr.mxu0 0.0
    %5990 = vmatpush1.msra.mxu0 0.0
    %5991 = vmatprep.subr.mxu0 0.0
    %5992 = vmatpush1.msra.mxu0 0.0
    %5993 = vmatprep.subr.mxu0 0.0
    %5994 = vmatpush1.msra.mxu0 0.0
    %5995 = vmatprep.subr.mxu0 0.0
    %5996 = vmatpush1.msra.mxu0 0.0
    %5997 = vmatprep.subr.mxu0 0.0
    %5998 = vmatpush1.msra.mxu0 0.0
    %5999 = vmatprep.subr.mxu0 0.0
    %6000 = vmatpush1.msra.mxu0 0.0
    %6001 = vmatprep.subr.mxu0 0.0
    %6002 = vmatpush1.msra.mxu0 0.0
    %6003 = vmatprep.subr.mxu0 0.0
    %6004 = vmatpush1.msra.mxu0 0.0
    %6005 = vmatprep.subr.mxu0 0.0
    %6006 = vmatpush1.msra.mxu0 0.0
    %6007 = vmatprep.subr.mxu0 0.0
    %6008 = vmatpush1.msra.mxu0 0.0
    %6009 = vmatprep.subr.mxu0 0.0
    %6010 = vmatpush1.msra.mxu0 0.0
    %6011 = vmatprep.subr.mxu0 0.0
    %6012 = vmatpush1.msra.mxu0 0.0
    %6013 = vmatprep.subr.mxu0 0.0
    %6014 = vmatpush1.msra.mxu0 0.0
    %6015 = vmatprep.mubr.f32.mxu0 0.0
    %6016 = vmatmul.mubr.f32.gmra.mrb[0].mxu0 %v5935
    %v6017 = vpop.f32.mrb[0].mxu0
    %v6018 = vadd.f32 %v5901, %v6017
    %v6019 = vpop.f32.mrb[0].mxu0
    %6020 = vmatprep.mubr.f32.mxu0 0.0
    %6021 = vmatmul.mubr.f32.gmra.mrb[0].mxu0 %v5938
    %v6022 = vpop.f32.mrb[0].mxu0
    %v6023 = vadd.f32 %v5906, %v6022
    %v6024 = vpop.f32.mrb[0].mxu0
    %6025 = vmatprep.mubr.f32.mxu0 0.0
    %6026 = vmatmul.mubr.f32.gmra.mrb[0].mxu0 %v5941
    %v6027 = vpop.f32.mrb[0].mxu0
    %v6028 = vadd.f32 %v5911, %v6027
    %v6029 = vpop.f32.mrb[0].mxu0
    %6030 = vmatprep.mubr.f32.mxu0 0.0
    %6031 = vmatmul.mubr.f32.gmra.mrb[0].mxu0 %v5944
    %v6032 = vpop.f32.mrb[0].mxu0
    %v6033 = vadd.f32 %v5916, %v6032
    %v6034 = vpop.f32.mrb[0].mxu0
    %6035 = vmatprep.mubr.f32.mxu0 0.0
    %6036 = vmatmul.mubr.f32.gmra.mrb[0].mxu0 %v5947
    %v6037 = vpop.f32.mrb[0].mxu0
    %v6038 = vadd.f32 %v5921, %v6037
    %v6039 = vpop.f32.mrb[0].mxu0
    %6040 = vdwg.mxu0
    %v6041 = vpack.c.bf16 %v5225, %v5238
    %v6042 = vpack.c.bf16 %v5227, %v5239
    %v6043 = vpack.c.bf16 %v5240, %v5240
    %v6044 = vpack.c.bf16 %v5241, %v5241
    %v6046 = vsel %vm1418, %v6042, 0
    %v6049 = vsel %vm1418, %v6044, 0
    %6051 = vmatprep.subr.bf16.mxu0 0
    %6052 = vmatpush1.bf16.msra.mxu0 %v5306
    %6053 = vmatprep.subr.bf16.mxu0 0
    %6054 = vmatpush1.bf16.msra.mxu0 %v5307
    %6055 = vmatprep.subr.bf16.mxu0 0
    %6056 = vmatpush1.bf16.msra.mxu0 %v5308
    %6057 = vmatprep.subr.bf16.mxu0 0
    %6058 = vmatpush1.bf16.msra.mxu0 %v5309
    %6059 = vmatprep.subr.bf16.mxu0 0
    %6060 = vmatpush1.bf16.msra.mxu0 %v5310
    %6061 = vmatprep.subr.bf16.mxu0 0
    %6062 = vmatpush1.bf16.msra.mxu0 %v5311
    %6063 = vmatprep.subr.bf16.mxu0 0
    %6064 = vmatpush1.bf16.msra.mxu0 %v5312
    %6065 = vmatprep.subr.bf16.mxu0 0
    %6066 = vmatpush1.bf16.msra.mxu0 %v5313
    %6067 = vmatprep.subr.bf16.mxu0 0
    %6068 = vmatpush1.bf16.msra.mxu0 %v5314
    %6069 = vmatprep.subr.bf16.mxu0 0
    %6070 = vmatpush1.bf16.msra.mxu0 %v5315
    %6071 = vmatprep.subr.bf16.mxu0 0
    %6072 = vmatpush1.bf16.msra.mxu0 0
    %6073 = vmatprep.subr.bf16.mxu0 0
    %6074 = vmatpush1.bf16.msra.mxu0 0
    %6075 = vmatprep.subr.bf16.mxu0 0
    %6076 = vmatpush1.bf16.msra.mxu0 0
    %6077 = vmatprep.subr.bf16.mxu0 0
    %6078 = vmatpush1.bf16.msra.mxu0 0
    %6079 = vmatprep.subr.bf16.mxu0 0
    %6080 = vmatpush1.bf16.msra.mxu0 0
    %6081 = vmatprep.subr.bf16.mxu0 0
    %6082 = vmatpush1.bf16.msra.mxu0 0
    %6083 = vmatprep.mubr.bf16.mxu0 %v6046
    %6084 = vmatmul.mubr.bf16.gmra.mrb[0].mxu0 %v6041
    %v6085 = vpop.f32.mrb[0].mxu0
    %v6086 = vadd.f32 0.0, %v6085
    %v6087 = vpop.f32.mrb[0].mxu0
    %v6088 = vpop.f32.mrb[0].mxu0
    %v6089 = vadd.f32 0.0, %v6088
    %v6090 = vpop.f32.mrb[0].mxu0
    %6091 = vmatprep.mubr.bf16.mxu0 %v6049
    %6092 = vmatmul.mubr.bf16.gmra.mrb[0].mxu0 %v6043
    %v6093 = vpop.f32.mrb[0].mxu0
    %v6094 = vadd.f32 0.0, %v6093
    %v6095 = vpop.f32.mrb[0].mxu0
    %v6096 = vpop.f32.mrb[0].mxu0
    %v6097 = vpop.f32.mrb[0].mxu0
    %6098 = vdwg.mxu0
    %6099 = vmatprep.subr.bf16.mxu0 0
    %6100 = vmatpush1.bf16.msra.mxu0 %v5441
    %6101 = vmatprep.subr.bf16.mxu0 0
    %6102 = vmatpush1.bf16.msra.mxu0 %v5442
    %6103 = vmatprep.subr.bf16.mxu0 0
    %6104 = vmatpush1.bf16.msra.mxu0 %v5443
    %6105 = vmatprep.subr.bf16.mxu0 0
    %6106 = vmatpush1.bf16.msra.mxu0 %v5444
    %6107 = vmatprep.subr.bf16.mxu0 0
    %6108 = vmatpush1.bf16.msra.mxu0 %v5445
    %6109 = vmatprep.subr.bf16.mxu0 0
    %6110 = vmatpush1.bf16.msra.mxu0 %v5446
    %6111 = vmatprep.subr.bf16.mxu0 0
    %6112 = vmatpush1.bf16.msra.mxu0 %v5447
    %6113 = vmatprep.subr.bf16.mxu0 0
    %6114 = vmatpush1.bf16.msra.mxu0 %v5448
    %6115 = vmatprep.subr.bf16.mxu0 0
    %6116 = vmatpush1.bf16.msra.mxu0 %v5449
    %6117 = vmatprep.subr.bf16.mxu0 0
    %6118 = vmatpush1.bf16.msra.mxu0 %v5450
    %6119 = vmatprep.subr.bf16.mxu0 0
    %6120 = vmatpush1.bf16.msra.mxu0 0
    %6121 = vmatprep.subr.bf16.mxu0 0
    %6122 = vmatpush1.bf16.msra.mxu0 0
    %6123 = vmatprep.subr.bf16.mxu0 0
    %6124 = vmatpush1.bf16.msra.mxu0 0
    %6125 = vmatprep.subr.bf16.mxu0 0
    %6126 = vmatpush1.bf16.msra.mxu0 0
    %6127 = vmatprep.subr.bf16.mxu0 0
    %6128 = vmatpush1.bf16.msra.mxu0 0
    %6129 = vmatprep.subr.bf16.mxu0 0
    %6130 = vmatpush1.bf16.msra.mxu0 0
    %6131 = vmatprep.mubr.bf16.mxu0 %v6046
    %6132 = vmatmul.mubr.bf16.gmra.mrb[0].mxu0 %v6041
    %v6133 = vpop.f32.mrb[0].mxu0
    %v6134 = vadd.f32 0.0, %v6133
    %v6135 = vpop.f32.mrb[0].mxu0
    %v6136 = vpop.f32.mrb[0].mxu0
    %v6137 = vadd.f32 0.0, %v6136
    %v6138 = vpop.f32.mrb[0].mxu0
    %6139 = vmatprep.mubr.bf16.mxu0 %v6049
    %6140 = vmatmul.mubr.bf16.gmra.mrb[0].mxu0 %v6043
    %v6141 = vpop.f32.mrb[0].mxu0
    %v6142 = vadd.f32 0.0, %v6141
    %v6143 = vpop.f32.mrb[0].mxu0
    %v6144 = vpop.f32.mrb[0].mxu0
    %v6145 = vpop.f32.mrb[0].mxu0
    %6146 = vdwg.mxu0
    %6147 = vmatprep.subr.bf16.mxu0 0
    %6148 = vmatpush1.bf16.msra.mxu0 %v5570
    %6149 = vmatprep.subr.bf16.mxu0 0
    %6150 = vmatpush1.bf16.msra.mxu0 %v5571
    %6151 = vmatprep.subr.bf16.mxu0 0
    %6152 = vmatpush1.bf16.msra.mxu0 %v5572
    %6153 = vmatprep.subr.bf16.mxu0 0
    %6154 = vmatpush1.bf16.msra.mxu0 %v5573
    %6155 = vmatprep.subr.bf16.mxu0 0
    %6156 = vmatpush1.bf16.msra.mxu0 %v5574
    %6157 = vmatprep.subr.bf16.mxu0 0
    %6158 = vmatpush1.bf16.msra.mxu0 %v5575
    %6159 = vmatprep.subr.bf16.mxu0 0
    %6160 = vmatpush1.bf16.msra.mxu0 %v5576
    %6161 = vmatprep.subr.bf16.mxu0 0
    %6162 = vmatpush1.bf16.msra.mxu0 %v5577
    %6163 = vmatprep.subr.bf16.mxu0 0
    %6164 = vmatpush1.bf16.msra.mxu0 %v5578
    %6165 = vmatprep.subr.bf16.mxu0 0
    %6166 = vmatpush1.bf16.msra.mxu0 %v5579
    %6167 = vmatprep.subr.bf16.mxu0 0
    %6168 = vmatpush1.bf16.msra.mxu0 0
    %6169 = vmatprep.subr.bf16.mxu0 0
    %6170 = vmatpush1.bf16.msra.mxu0 0
    %6171 = vmatprep.subr.bf16.mxu0 0
    %6172 = vmatpush1.bf16.msra.mxu0 0
    %6173 = vmatprep.subr.bf16.mxu0 0
    %6174 = vmatpush1.bf16.msra.mxu0 0
    %6175 = vmatprep.subr.bf16.mxu0 0
    %6176 = vmatpush1.bf16.msra.mxu0 0
    %6177 = vmatprep.subr.bf16.mxu0 0
    %6178 = vmatpush1.bf16.msra.mxu0 0
    %6179 = vmatprep.mubr.bf16.mxu0 %v6046
    %6180 = vmatmul.mubr.bf16.gmra.mrb[0].mxu0 %v6041
    %v6181 = vpop.f32.mrb[0].mxu0
    %v6182 = vadd.f32 0.0, %v6181
    %v6183 = vpop.f32.mrb[0].mxu0
    %v6184 = vpop.f32.mrb[0].mxu0
    %v6185 = vadd.f32 0.0, %v6184
    %v6186 = vpop.f32.mrb[0].mxu0
    %6187 = vmatprep.mubr.bf16.mxu0 %v6049
    %6188 = vmatmul.mubr.bf16.gmra.mrb[0].mxu0 %v6043
    %v6189 = vpop.f32.mrb[0].mxu0
    %v6190 = vadd.f32 0.0, %v6189
    %v6191 = vpop.f32.mrb[0].mxu0
    %v6192 = vpop.f32.mrb[0].mxu0
    %v6193 = vpop.f32.mrb[0].mxu0
    %6194 = vdwg.mxu0
    %6195 = vmatprep.subr.bf16.mxu0 0
    %6196 = vmatpush1.bf16.msra.mxu0 %v5699
    %6197 = vmatprep.subr.bf16.mxu0 0
    %6198 = vmatpush1.bf16.msra.mxu0 %v5700
    %6199 = vmatprep.subr.bf16.mxu0 0
    %6200 = vmatpush1.bf16.msra.mxu0 %v5701
    %6201 = vmatprep.subr.bf16.mxu0 0
    %6202 = vmatpush1.bf16.msra.mxu0 %v5702
    %6203 = vmatprep.subr.bf16.mxu0 0
    %6204 = vmatpush1.bf16.msra.mxu0 %v5703
    %6205 = vmatprep.subr.bf16.mxu0 0
    %6206 = vmatpush1.bf16.msra.mxu0 %v5704
    %6207 = vmatprep.subr.bf16.mxu0 0
    %6208 = vmatpush1.bf16.msra.mxu0 %v5705
    %6209 = vmatprep.subr.bf16.mxu0 0
    %6210 = vmatpush1.bf16.msra.mxu0 %v5706
    %6211 = vmatprep.subr.bf16.mxu0 0
    %6212 = vmatpush1.bf16.msra.mxu0 %v5707
    %6213 = vmatprep.subr.bf16.mxu0 0
    %6214 = vmatpush1.bf16.msra.mxu0 %v5708
    %6215 = vmatprep.subr.bf16.mxu0 0
    %6216 = vmatpush1.bf16.msra.mxu0 0
    %6217 = vmatprep.subr.bf16.mxu0 0
    %6218 = vmatpush1.bf16.msra.mxu0 0
    %6219 = vmatprep.subr.bf16.mxu0 0
    %6220 = vmatpush1.bf16.msra.mxu0 0
    %6221 = vmatprep.subr.bf16.mxu0 0
    %6222 = vmatpush1.bf16.msra.mxu0 0
    %6223 = vmatprep.subr.bf16.mxu0 0
    %6224 = vmatpush1.bf16.msra.mxu0 0
    %6225 = vmatprep.subr.bf16.mxu0 0
    %6226 = vmatpush1.bf16.msra.mxu0 0
    %6227 = vmatprep.mubr.bf16.mxu0 %v6046
    %6228 = vmatmul.mubr.bf16.gmra.mrb[0].mxu0 %v6041
    %v6229 = vpop.f32.mrb[0].mxu0
    %v6230 = vadd.f32 0.0, %v6229
    %v6231 = vpop.f32.mrb[0].mxu0
    %v6232 = vpop.f32.mrb[0].mxu0
    %v6233 = vadd.f32 0.0, %v6232
    %v6234 = vpop.f32.mrb[0].mxu0
    %6235 = vmatprep.mubr.bf16.mxu0 %v6049
    %6236 = vmatmul.mubr.bf16.gmra.mrb[0].mxu0 %v6043
    %v6237 = vpop.f32.mrb[0].mxu0
    %v6238 = vadd.f32 0.0, %v6237
    %v6239 = vpop.f32.mrb[0].mxu0
    %v6240 = vpop.f32.mrb[0].mxu0
    %v6241 = vpop.f32.mrb[0].mxu0
    %6242 = vdwg.mxu0
    %v6246 = vrot.slane %v6230, 7
    %v6247 = vrot.slane %v6233, 7
    %v6248 = vsel %vm1765, %v6246, %v6247
    %v6249 = vrot.slane %v6238, 7
    %v6250 = vsel %vm1765, %v6247, %v6249
    %v6254 = vadd.f32 %v6134, %v6246
    %v6255 = vadd.f32 %v6137, %v6248
    %v6256 = vadd.f32 %v6142, %v6250
    %v6260 = vrot.slane %v6182, 7
    %v6261 = vrot.slane %v6185, 7
    %v6262 = vsel %vm1765, %v6260, %v6261
    %v6263 = vrot.slane %v6190, 7
    %v6264 = vsel %vm1765, %v6261, %v6263
    %v6268 = vadd.f32 %v6086, %v6260
    %v6269 = vadd.f32 %v6089, %v6262
    %v6270 = vadd.f32 %v6094, %v6264
    %v6274 = vrot.slane %v6268, 2
    %v6275 = vrot.slane %v6269, 2
    %v6276 = vsel %vm4086, %v6274, %v6275
    %v6277 = vrot.slane %v6270, 2
    %v6278 = vsel %vm4086, %v6275, %v6277
    %v6281 = vsel %vm1770, %v6277, 0
    %6283 = vmatprep.subr.mxu0 0.0
    %6284 = vmatpush1.msra.mxu0 %v6276
    %6285 = vmatprep.subr.mxu0 0.0
    %6286 = vmatpush1.msra.mxu0 %v6278
    %6287 = vmatprep.subr.mxu0 0.0
    %6288 = vmatpush1.msra.mxu0 %v6281
    %6289 = vmatprep.subr.mxu0 0.0
    %6290 = vmatpush1.msra.mxu0 0.0
    %6291 = vmatprep.subr.mxu0 0.0
    %6292 = vmatpush1.msra.mxu0 0.0
    %6293 = vmatprep.subr.mxu0 0.0
    %6294 = vmatpush1.msra.mxu0 0.0
    %6295 = vmatprep.subr.mxu0 0.0
    %6296 = vmatpush1.msra.mxu0 0.0
    %6297 = vmatprep.subr.mxu0 0.0
    %6298 = vmatpush1.msra.mxu0 0.0
    %6299 = vmatprep.subr.mxu0 0.0
    %6300 = vmatpush1.msra.mxu0 0.0
    %6301 = vmatprep.subr.mxu0 0.0
    %6302 = vmatpush1.msra.mxu0 0.0
    %6303 = vmatprep.subr.mxu0 0.0
    %6304 = vmatpush1.msra.mxu0 0.0
    %6305 = vmatprep.subr.mxu0 0.0
    %6306 = vmatpush1.msra.mxu0 0.0
    %6307 = vmatprep.subr.mxu0 0.0
    %6308 = vmatpush1.msra.mxu0 0.0
    %6309 = vmatprep.subr.mxu0 0.0
    %6310 = vmatpush1.msra.mxu0 0.0
    %6311 = vmatprep.subr.mxu0 0.0
    %6312 = vmatpush1.msra.mxu0 0.0
    %6313 = vmatprep.subr.mxu0 0.0
    %6314 = vmatpush1.msra.mxu0 0.0
    %6315 = vmatprep.subr.mxu0 0.0
    %6316 = vmatpush1.msra.mxu0 0.0
    %6317 = vmatprep.subr.mxu0 0.0
    %6318 = vmatpush1.msra.mxu0 0.0
    %6319 = vmatprep.subr.mxu0 0.0
    %6320 = vmatpush1.msra.mxu0 0.0
    %6321 = vmatprep.subr.mxu0 0.0
    %6322 = vmatpush1.msra.mxu0 0.0
    %6323 = vmatprep.subr.mxu0 0.0
    %6324 = vmatpush1.msra.mxu0 0.0
    %6325 = vmatprep.subr.mxu0 0.0
    %6326 = vmatpush1.msra.mxu0 0.0
    %6327 = vmatprep.subr.mxu0 0.0
    %6328 = vmatpush1.msra.mxu0 0.0
    %6329 = vmatprep.subr.mxu0 0.0
    %6330 = vmatpush1.msra.mxu0 0.0
    %6331 = vmatprep.subr.mxu0 0.0
    %6332 = vmatpush1.msra.mxu0 0.0
    %6333 = vmatprep.subr.mxu0 0.0
    %6334 = vmatpush1.msra.mxu0 0.0
    %6335 = vmatprep.subr.mxu0 0.0
    %6336 = vmatpush1.msra.mxu0 0.0
    %6337 = vmatprep.subr.mxu0 0.0
    %6338 = vmatpush1.msra.mxu0 0.0
    %6339 = vmatprep.subr.mxu0 0.0
    %6340 = vmatpush1.msra.mxu0 0.0
    %6341 = vmatprep.subr.mxu0 0.0
    %6342 = vmatpush1.msra.mxu0 0.0
    %6343 = vmatprep.subr.mxu0 0.0
    %6344 = vmatpush1.msra.mxu0 0.0
    %6345 = vmatprep.subr.mxu0 0.0
    %6346 = vmatpush1.msra.mxu0 0.0
    %6347 = vmatprep.mubr.f32.mxu0 0.0
    %6348 = vmatmul.mubr.f32.gmra.mrb[0].mxu0 %v5818
    %v6349 = vpop.f32.mrb[0].mxu0
    %v6350 = vadd.f32 0.0, %v6349
    %v6351 = vpop.f32.mrb[0].mxu0
    %6352 = vmatprep.mubr.f32.mxu0 0.0
    %6353 = vmatmul.mubr.f32.gmra.mrb[0].mxu0 %v5821
    %v6354 = vpop.f32.mrb[0].mxu0
    %v6355 = vadd.f32 0.0, %v6354
    %v6356 = vpop.f32.mrb[0].mxu0
    %6357 = vmatprep.mubr.f32.mxu0 0.0
    %6358 = vmatmul.mubr.f32.gmra.mrb[0].mxu0 %v5824
    %v6359 = vpop.f32.mrb[0].mxu0
    %v6360 = vadd.f32 0.0, %v6359
    %v6361 = vpop.f32.mrb[0].mxu0
    %6362 = vmatprep.mubr.f32.mxu0 0.0
    %6363 = vmatmul.mubr.f32.gmra.mrb[0].mxu0 %v5827
    %v6364 = vpop.f32.mrb[0].mxu0
    %v6365 = vadd.f32 0.0, %v6364
    %v6366 = vpop.f32.mrb[0].mxu0
    %6367 = vmatprep.mubr.f32.mxu0 0.0
    %6368 = vmatmul.mubr.f32.gmra.mrb[0].mxu0 %v5830
    %v6369 = vpop.f32.mrb[0].mxu0
    %v6370 = vadd.f32 0.0, %v6369
    %v6371 = vpop.f32.mrb[0].mxu0
    %6372 = vdwg.mxu0
    %v6376 = vrot.slane %v6254, 1
    %v6377 = vrot.slane %v6255, 1
    %v6378 = vsel %vm4196, %v6376, %v6377
    %v6379 = vrot.slane %v6256, 1
    %v6380 = vsel %vm4196, %v6377, %v6379
    %v6383 = vsel %vm1770, %v6379, 0
    %6385 = vmatprep.subr.mxu0 0.0
    %6386 = vmatpush1.msra.mxu0 %v6378
    %6387 = vmatprep.subr.mxu0 0.0
    %6388 = vmatpush1.msra.mxu0 %v6380
    %6389 = vmatprep.subr.mxu0 0.0
    %6390 = vmatpush1.msra.mxu0 %v6383
    %6391 = vmatprep.subr.mxu0 0.0
    %6392 = vmatpush1.msra.mxu0 0.0
    %6393 = vmatprep.subr.mxu0 0.0
    %6394 = vmatpush1.msra.mxu0 0.0
    %6395 = vmatprep.subr.mxu0 0.0
    %6396 = vmatpush1.msra.mxu0 0.0
    %6397 = vmatprep.subr.mxu0 0.0
    %6398 = vmatpush1.msra.mxu0 0.0
    %6399 = vmatprep.subr.mxu0 0.0
    %6400 = vmatpush1.msra.mxu0 0.0
    %6401 = vmatprep.subr.mxu0 0.0
    %6402 = vmatpush1.msra.mxu0 0.0
    %6403 = vmatprep.subr.mxu0 0.0
    %6404 = vmatpush1.msra.mxu0 0.0
    %6405 = vmatprep.subr.mxu0 0.0
    %6406 = vmatpush1.msra.mxu0 0.0
    %6407 = vmatprep.subr.mxu0 0.0
    %6408 = vmatpush1.msra.mxu0 0.0
    %6409 = vmatprep.subr.mxu0 0.0
    %6410 = vmatpush1.msra.mxu0 0.0
    %6411 = vmatprep.subr.mxu0 0.0
    %6412 = vmatpush1.msra.mxu0 0.0
    %6413 = vmatprep.subr.mxu0 0.0
    %6414 = vmatpush1.msra.mxu0 0.0
    %6415 = vmatprep.subr.mxu0 0.0
    %6416 = vmatpush1.msra.mxu0 0.0
    %6417 = vmatprep.subr.mxu0 0.0
    %6418 = vmatpush1.msra.mxu0 0.0
    %6419 = vmatprep.subr.mxu0 0.0
    %6420 = vmatpush1.msra.mxu0 0.0
    %6421 = vmatprep.subr.mxu0 0.0
    %6422 = vmatpush1.msra.mxu0 0.0
    %6423 = vmatprep.subr.mxu0 0.0
    %6424 = vmatpush1.msra.mxu0 0.0
    %6425 = vmatprep.subr.mxu0 0.0
    %6426 = vmatpush1.msra.mxu0 0.0
    %6427 = vmatprep.subr.mxu0 0.0
    %6428 = vmatpush1.msra.mxu0 0.0
    %6429 = vmatprep.subr.mxu0 0.0
    %6430 = vmatpush1.msra.mxu0 0.0
    %6431 = vmatprep.subr.mxu0 0.0
    %6432 = vmatpush1.msra.mxu0 0.0
    %6433 = vmatprep.subr.mxu0 0.0
    %6434 = vmatpush1.msra.mxu0 0.0
    %6435 = vmatprep.subr.mxu0 0.0
    %6436 = vmatpush1.msra.mxu0 0.0
    %6437 = vmatprep.subr.mxu0 0.0
    %6438 = vmatpush1.msra.mxu0 0.0
    %6439 = vmatprep.subr.mxu0 0.0
    %6440 = vmatpush1.msra.mxu0 0.0
    %6441 = vmatprep.subr.mxu0 0.0
    %6442 = vmatpush1.msra.mxu0 0.0
    %6443 = vmatprep.subr.mxu0 0.0
    %6444 = vmatpush1.msra.mxu0 0.0
    %6445 = vmatprep.subr.mxu0 0.0
    %6446 = vmatpush1.msra.mxu0 0.0
    %6447 = vmatprep.subr.mxu0 0.0
    %6448 = vmatpush1.msra.mxu0 0.0
    %6449 = vmatprep.mubr.f32.mxu0 0.0
    %6450 = vmatmul.mubr.f32.gmra.mrb[0].mxu0 %v5935
    %v6451 = vpop.f32.mrb[0].mxu0
    %v6452 = vadd.f32 %v6350, %v6451
    %v6453 = vpop.f32.mrb[0].mxu0
    %6454 = vmatprep.mubr.f32.mxu0 0.0
    %6455 = vmatmul.mubr.f32.gmra.mrb[0].mxu0 %v5938
    %v6456 = vpop.f32.mrb[0].mxu0
    %v6457 = vadd.f32 %v6355, %v6456
    %v6458 = vpop.f32.mrb[0].mxu0
    %6459 = vmatprep.mubr.f32.mxu0 0.0
    %6460 = vmatmul.mubr.f32.gmra.mrb[0].mxu0 %v5941
    %v6461 = vpop.f32.mrb[0].mxu0
    %v6462 = vadd.f32 %v6360, %v6461
    %v6463 = vpop.f32.mrb[0].mxu0
    %6464 = vmatprep.mubr.f32.mxu0 0.0
    %6465 = vmatmul.mubr.f32.gmra.mrb[0].mxu0 %v5944
    %v6466 = vpop.f32.mrb[0].mxu0
    %v6467 = vadd.f32 %v6365, %v6466
    %v6468 = vpop.f32.mrb[0].mxu0
    %6469 = vmatprep.mubr.f32.mxu0 0.0
    %6470 = vmatmul.mubr.f32.gmra.mrb[0].mxu0 %v5947
    %v6471 = vpop.f32.mrb[0].mxu0
    %v6472 = vadd.f32 %v6370, %v6471
    %v6473 = vpop.f32.mrb[0].mxu0
    %6474 = vdwg.mxu0
    %v6475 = vtanh.pop %v6018
    %v6476 = vtanh.pop %v6023
    %v6477 = vtanh.pop %v6028
    %v6478 = vtanh.pop %v6033
    %v6479 = vtanh.pop %v6038
    %v6480 = vld [vmem:[%s23] sm:$0xff]
    %v6481 = vld [vmem:[%s23 + $0x8] sm:$0xff]
    %v6482 = vld [vmem:[%s23 + $0x10] sm:$0xff]
    %v6483 = vld [vmem:[%s23 + $0x18] sm:$0xff]
    %v6484 = vld [vmem:[%s23 + $0x20] sm:$0xff]
    %v6485 = vld [vmem:[%s23 + $0x28] sm:$0xff]
    %v6486 = vld [vmem:[%s23 + $0x30] sm:$0xff]
    %v6487 = vld [vmem:[%s23 + $0x38] sm:$0xff]
    %v6488 = vld [vmem:[%s23 + $0x40] sm:$0xff]
    %v6489 = vld [vmem:[%s23 + $0x48] sm:$0xff]
    %v6490 = vld [vmem:[%s23 + $0x50] sm:$0xff]
    %v6491 = vld [vmem:[%s23 + $0x58] sm:$0xff]
    %v6492 = vld [vmem:[%s23 + $0x60] sm:$0xff]
    %v6493 = vld [vmem:[%s23 + $0x68] sm:$0xff]
    %v6494 = vld [vmem:[%s23 + $0x70] sm:$0xff]
    %vm6495 = vcmask 982016
    %v6497 = vsel %vm6495, %v6475, 0
    %v6500 = vsel %vm6495, %v6476, 0
    %v6503 = vsel %vm6495, %v6477, 0
    %v6506 = vsel %vm6495, %v6478, 0
    %v6509 = vsel %vm6495, %v6479, 0
    %6511 = vmatprep.subr.mxu0 0.0
    %6512 = vmatpush1.msra.mxu0 %v6480
    %6513 = vmatprep.subr.mxu0 0.0
    %6514 = vmatpush1.msra.mxu0 %v6481
    %6515 = vmatprep.subr.mxu0 0.0
    %6516 = vmatpush1.msra.mxu0 %v6482
    %6517 = vmatprep.subr.mxu0 0.0
    %6518 = vmatpush1.msra.mxu0 %v6483
    %6519 = vmatprep.subr.mxu0 0.0
    %6520 = vmatpush1.msra.mxu0 %v6484
    %6521 = vmatprep.subr.mxu0 0.0
    %6522 = vmatpush1.msra.mxu0 %v6485
    %6523 = vmatprep.subr.mxu0 0.0
    %6524 = vmatpush1.msra.mxu0 %v6486
    %6525 = vmatprep.subr.mxu0 0.0
    %6526 = vmatpush1.msra.mxu0 %v6487
    %6527 = vmatprep.subr.mxu0 0.0
    %6528 = vmatpush1.msra.mxu0 %v6488
    %6529 = vmatprep.subr.mxu0 0.0
    %6530 = vmatpush1.msra.mxu0 %v6489
    %6531 = vmatprep.subr.mxu0 0.0
    %6532 = vmatpush1.msra.mxu0 %v6490
    %6533 = vmatprep.subr.mxu0 0.0
    %6534 = vmatpush1.msra.mxu0 %v6491
    %6535 = vmatprep.subr.mxu0 0.0
    %6536 = vmatpush1.msra.mxu0 %v6492
    %6537 = vmatprep.subr.mxu0 0.0
    %6538 = vmatpush1.msra.mxu0 %v6493
    %6539 = vmatprep.subr.mxu0 0.0
    %6540 = vmatpush1.msra.mxu0 %v6494
    %6541 = vmatprep.subr.mxu0 0.0
    %6542 = vmatpush1.msra.mxu0 0.0
    %6543 = vmatprep.subr.mxu0 0.0
    %6544 = vmatpush1.msra.mxu0 0.0
    %6545 = vmatprep.subr.mxu0 0.0
    %6546 = vmatpush1.msra.mxu0 0.0
    %6547 = vmatprep.subr.mxu0 0.0
    %6548 = vmatpush1.msra.mxu0 0.0
    %6549 = vmatprep.subr.mxu0 0.0
    %6550 = vmatpush1.msra.mxu0 0.0
    %6551 = vmatprep.subr.mxu0 0.0
    %6552 = vmatpush1.msra.mxu0 0.0
    %6553 = vmatprep.subr.mxu0 0.0
    %6554 = vmatpush1.msra.mxu0 0.0
    %6555 = vmatprep.subr.mxu0 0.0
    %6556 = vmatpush1.msra.mxu0 0.0
    %6557 = vmatprep.subr.mxu0 0.0
    %6558 = vmatpush1.msra.mxu0 0.0
    %6559 = vmatprep.subr.mxu0 0.0
    %6560 = vmatpush1.msra.mxu0 0.0
    %6561 = vmatprep.subr.mxu0 0.0
    %6562 = vmatpush1.msra.mxu0 0.0
    %6563 = vmatprep.subr.mxu0 0.0
    %6564 = vmatpush1.msra.mxu0 0.0
    %6565 = vmatprep.subr.mxu0 0.0
    %6566 = vmatpush1.msra.mxu0 0.0
    %6567 = vmatprep.subr.mxu0 0.0
    %6568 = vmatpush1.msra.mxu0 0.0
    %6569 = vmatprep.subr.mxu0 0.0
    %6570 = vmatpush1.msra.mxu0 0.0
    %6571 = vmatprep.subr.mxu0 0.0
    %6572 = vmatpush1.msra.mxu0 0.0
    %6573 = vmatprep.subr.mxu0 0.0
    %6574 = vmatpush1.msra.mxu0 0.0
    %6575 = vmatprep.mubr.f32.mxu0 0.0
    %6576 = vmatmul.mubr.f32.gmra.mrb[0].mxu0 %v6497
    %v6577 = vpop.f32.mrb[0].mxu0
    %v6578 = vadd.f32 0.0, %v6577
    %v6579 = vpop.f32.mrb[0].mxu0
    %6580 = vmatprep.mubr.f32.mxu0 0.0
    %6581 = vmatmul.mubr.f32.gmra.mrb[0].mxu0 %v6500
    %v6582 = vpop.f32.mrb[0].mxu0
    %v6583 = vadd.f32 0.0, %v6582
    %v6584 = vpop.f32.mrb[0].mxu0
    %6585 = vmatprep.mubr.f32.mxu0 0.0
    %6586 = vmatmul.mubr.f32.gmra.mrb[0].mxu0 %v6503
    %v6587 = vpop.f32.mrb[0].mxu0
    %v6588 = vadd.f32 0.0, %v6587
    %v6589 = vpop.f32.mrb[0].mxu0
    %6590 = vmatprep.mubr.f32.mxu0 0.0
    %6591 = vmatmul.mubr.f32.gmra.mrb[0].mxu0 %v6506
    %v6592 = vpop.f32.mrb[0].mxu0
    %v6593 = vadd.f32 0.0, %v6592
    %v6594 = vpop.f32.mrb[0].mxu0
    %6595 = vmatprep.mubr.f32.mxu0 0.0
    %6596 = vmatmul.mubr.f32.gmra.mrb[0].mxu0 %v6509
    %v6597 = vpop.f32.mrb[0].mxu0
    %v6598 = vadd.f32 0.0, %v6597
    %v6599 = vpop.f32.mrb[0].mxu0
    %6600 = vdwg.mxu0
    %vm6601 = vcmask 326656
    %6602 = vst.msk [vmem:[#allocation2] sm:$0xff] %vm6601, %v6578
    %6603 = vst.msk [vmem:[#allocation2 + $0x8] sm:$0xff] %vm6601, %v6583
    %6604 = vst.msk [vmem:[#allocation2 + $0x10] sm:$0xff] %vm6601, %v6588
    %6605 = vst.msk [vmem:[#allocation2 + $0x18] sm:$0xff] %vm6601, %v6593
    %6606 = vst.msk [vmem:[#allocation2 + $0x20] sm:$0xff] %vm6601, %v6598
    %s6607 = scalar_lea.vmem %s23, 120
    %v6608 = vld [vmem:[%s6607] sm:$0xff]
    %v6609 = vld [vmem:[%s6607 + $0x8] sm:$0xff]
    %v6610 = vld [vmem:[%s6607 + $0x10] sm:$0xff]
    %v6611 = vld [vmem:[%s6607 + $0x18] sm:$0xff]
    %v6612 = vld [vmem:[%s6607 + $0x20] sm:$0xff]
    %v6613 = vld [vmem:[%s6607 + $0x28] sm:$0xff]
    %v6614 = vld [vmem:[%s6607 + $0x30] sm:$0xff]
    %v6615 = vld [vmem:[%s6607 + $0x38] sm:$0xff]
    %v6616 = vld [vmem:[%s6607 + $0x40] sm:$0xff]
    %v6617 = vld [vmem:[%s6607 + $0x48] sm:$0xff]
    %v6618 = vld [vmem:[%s6607 + $0x50] sm:$0xff]
    %v6619 = vld [vmem:[%s6607 + $0x58] sm:$0xff]
    %v6620 = vld [vmem:[%s6607 + $0x60] sm:$0xff]
    %v6621 = vld [vmem:[%s6607 + $0x68] sm:$0xff]
    %v6622 = vld [vmem:[%s6607 + $0x70] sm:$0xff]
    %6623 = vmatprep.subr.mxu0 0.0
    %6624 = vmatpush1.msra.mxu0 %v6608
    %6625 = vmatprep.subr.mxu0 0.0
    %6626 = vmatpush1.msra.mxu0 %v6609
    %6627 = vmatprep.subr.mxu0 0.0
    %6628 = vmatpush1.msra.mxu0 %v6610
    %6629 = vmatprep.subr.mxu0 0.0
    %6630 = vmatpush1.msra.mxu0 %v6611
    %6631 = vmatprep.subr.mxu0 0.0
    %6632 = vmatpush1.msra.mxu0 %v6612
    %6633 = vmatprep.subr.mxu0 0.0
    %6634 = vmatpush1.msra.mxu0 %v6613
    %6635 = vmatprep.subr.mxu0 0.0
    %6636 = vmatpush1.msra.mxu0 %v6614
    %6637 = vmatprep.subr.mxu0 0.0
    %6638 = vmatpush1.msra.mxu0 %v6615
    %6639 = vmatprep.subr.mxu0 0.0
    %6640 = vmatpush1.msra.mxu0 %v6616
    %6641 = vmatprep.subr.mxu0 0.0
    %6642 = vmatpush1.msra.mxu0 %v6617
    %6643 = vmatprep.subr.mxu0 0.0
    %6644 = vmatpush1.msra.mxu0 %v6618
    %6645 = vmatprep.subr.mxu0 0.0
    %6646 = vmatpush1.msra.mxu0 %v6619
    %6647 = vmatprep.subr.mxu0 0.0
    %6648 = vmatpush1.msra.mxu0 %v6620
    %6649 = vmatprep.subr.mxu0 0.0
    %6650 = vmatpush1.msra.mxu0 %v6621
    %6651 = vmatprep.subr.mxu0 0.0
    %6652 = vmatpush1.msra.mxu0 %v6622
    %6653 = vmatprep.subr.mxu0 0.0
    %6654 = vmatpush1.msra.mxu0 0.0
    %6655 = vmatprep.subr.mxu0 0.0
    %6656 = vmatpush1.msra.mxu0 0.0
    %6657 = vmatprep.subr.mxu0 0.0
    %6658 = vmatpush1.msra.mxu0 0.0
    %6659 = vmatprep.subr.mxu0 0.0
    %6660 = vmatpush1.msra.mxu0 0.0
    %6661 = vmatprep.subr.mxu0 0.0
    %6662 = vmatpush1.msra.mxu0 0.0
    %6663 = vmatprep.subr.mxu0 0.0
    %6664 = vmatpush1.msra.mxu0 0.0
    %6665 = vmatprep.subr.mxu0 0.0
    %6666 = vmatpush1.msra.mxu0 0.0
    %6667 = vmatprep.subr.mxu0 0.0
    %6668 = vmatpush1.msra.mxu0 0.0
    %6669 = vmatprep.subr.mxu0 0.0
    %6670 = vmatpush1.msra.mxu0 0.0
    %6671 = vmatprep.subr.mxu0 0.0
    %6672 = vmatpush1.msra.mxu0 0.0
    %6673 = vmatprep.subr.mxu0 0.0
    %6674 = vmatpush1.msra.mxu0 0.0
    %6675 = vmatprep.subr.mxu0 0.0
    %6676 = vmatpush1.msra.mxu0 0.0
    %6677 = vmatprep.subr.mxu0 0.0
    %6678 = vmatpush1.msra.mxu0 0.0
    %6679 = vmatprep.subr.mxu0 0.0
    %6680 = vmatpush1.msra.mxu0 0.0
    %6681 = vmatprep.subr.mxu0 0.0
    %6682 = vmatpush1.msra.mxu0 0.0
    %6683 = vmatprep.subr.mxu0 0.0
    %6684 = vmatpush1.msra.mxu0 0.0
    %6685 = vmatprep.subr.mxu0 0.0
    %6686 = vmatpush1.msra.mxu0 0.0
    %6687 = vmatprep.mubr.f32.mxu0 0.0
    %6688 = vmatmul.mubr.f32.gmra.mrb[0].mxu0 %v6497
    %v6689 = vpop.f32.mrb[0].mxu0
    %v6690 = vadd.f32 0.0, %v6689
    %v6691 = vpop.f32.mrb[0].mxu0
    %6692 = vmatprep.mubr.f32.mxu0 0.0
    %6693 = vmatmul.mubr.f32.gmra.mrb[0].mxu0 %v6500
    %v6694 = vpop.f32.mrb[0].mxu0
    %v6695 = vadd.f32 0.0, %v6694
    %v6696 = vpop.f32.mrb[0].mxu0
    %6697 = vmatprep.mubr.f32.mxu0 0.0
    %6698 = vmatmul.mubr.f32.gmra.mrb[0].mxu0 %v6503
    %v6699 = vpop.f32.mrb[0].mxu0
    %v6700 = vadd.f32 0.0, %v6699
    %v6701 = vpop.f32.mrb[0].mxu0
    %6702 = vmatprep.mubr.f32.mxu0 0.0
    %6703 = vmatmul.mubr.f32.gmra.mrb[0].mxu0 %v6506
    %v6704 = vpop.f32.mrb[0].mxu0
    %v6705 = vadd.f32 0.0, %v6704
    %v6706 = vpop.f32.mrb[0].mxu0
    %6707 = vmatprep.mubr.f32.mxu0 0.0
    %6708 = vmatmul.mubr.f32.gmra.mrb[0].mxu0 %v6509
    %v6709 = vpop.f32.mrb[0].mxu0
    %v6710 = vadd.f32 0.0, %v6709
    %v6711 = vpop.f32.mrb[0].mxu0
    %6712 = vdwg.mxu0
    %s6713 = scalar_lea.vmem [#allocation2], 40
    %6714 = vst.msk [vmem:[%s6713] sm:$0xff] %vm6601, %v6690
    %6715 = vst.msk [vmem:[%s6713 + $0x8] sm:$0xff] %vm6601, %v6695
    %6716 = vst.msk [vmem:[%s6713 + $0x10] sm:$0xff] %vm6601, %v6700
    %6717 = vst.msk [vmem:[%s6713 + $0x18] sm:$0xff] %vm6601, %v6705
    %6718 = vst.msk [vmem:[%s6713 + $0x20] sm:$0xff] %vm6601, %v6710
    %s6719 = scalar_lea.vmem %s23, 240
    %v6720 = vld [vmem:[%s6719] sm:$0xff]
    %v6721 = vld [vmem:[%s6719 + $0x8] sm:$0xff]
    %v6722 = vld [vmem:[%s6719 + $0x10] sm:$0xff]
    %v6723 = vld [vmem:[%s6719 + $0x18] sm:$0xff]
    %v6724 = vld [vmem:[%s6719 + $0x20] sm:$0xff]
    %v6725 = vld [vmem:[%s6719 + $0x28] sm:$0xff]
    %v6726 = vld [vmem:[%s6719 + $0x30] sm:$0xff]
    %v6727 = vld [vmem:[%s6719 + $0x38] sm:$0xff]
    %v6728 = vld [vmem:[%s6719 + $0x40] sm:$0xff]
    %v6729 = vld [vmem:[%s6719 + $0x48] sm:$0xff]
    %v6730 = vld [vmem:[%s6719 + $0x50] sm:$0xff]
    %v6731 = vld [vmem:[%s6719 + $0x58] sm:$0xff]
    %v6732 = vld [vmem:[%s6719 + $0x60] sm:$0xff]
    %v6733 = vld [vmem:[%s6719 + $0x68] sm:$0xff]
    %v6734 = vld [vmem:[%s6719 + $0x70] sm:$0xff]
    %6735 = vmatprep.subr.mxu0 0.0
    %6736 = vmatpush1.msra.mxu0 %v6720
    %6737 = vmatprep.subr.mxu0 0.0
    %6738 = vmatpush1.msra.mxu0 %v6721
    %6739 = vmatprep.subr.mxu0 0.0
    %6740 = vmatpush1.msra.mxu0 %v6722
    %6741 = vmatprep.subr.mxu0 0.0
    %6742 = vmatpush1.msra.mxu0 %v6723
    %6743 = vmatprep.subr.mxu0 0.0
    %6744 = vmatpush1.msra.mxu0 %v6724
    %6745 = vmatprep.subr.mxu0 0.0
    %6746 = vmatpush1.msra.mxu0 %v6725
    %6747 = vmatprep.subr.mxu0 0.0
    %6748 = vmatpush1.msra.mxu0 %v6726
    %6749 = vmatprep.subr.mxu0 0.0
    %6750 = vmatpush1.msra.mxu0 %v6727
    %6751 = vmatprep.subr.mxu0 0.0
    %6752 = vmatpush1.msra.mxu0 %v6728
    %6753 = vmatprep.subr.mxu0 0.0
    %6754 = vmatpush1.msra.mxu0 %v6729
    %6755 = vmatprep.subr.mxu0 0.0
    %6756 = vmatpush1.msra.mxu0 %v6730
    %6757 = vmatprep.subr.mxu0 0.0
    %6758 = vmatpush1.msra.mxu0 %v6731
    %6759 = vmatprep.subr.mxu0 0.0
    %6760 = vmatpush1.msra.mxu0 %v6732
    %6761 = vmatprep.subr.mxu0 0.0
    %6762 = vmatpush1.msra.mxu0 %v6733
    %6763 = vmatprep.subr.mxu0 0.0
    %6764 = vmatpush1.msra.mxu0 %v6734
    %6765 = vmatprep.subr.mxu0 0.0
    %6766 = vmatpush1.msra.mxu0 0.0
    %6767 = vmatprep.subr.mxu0 0.0
    %6768 = vmatpush1.msra.mxu0 0.0
    %6769 = vmatprep.subr.mxu0 0.0
    %6770 = vmatpush1.msra.mxu0 0.0
    %6771 = vmatprep.subr.mxu0 0.0
    %6772 = vmatpush1.msra.mxu0 0.0
    %6773 = vmatprep.subr.mxu0 0.0
    %6774 = vmatpush1.msra.mxu0 0.0
    %6775 = vmatprep.subr.mxu0 0.0
    %6776 = vmatpush1.msra.mxu0 0.0
    %6777 = vmatprep.subr.mxu0 0.0
    %6778 = vmatpush1.msra.mxu0 0.0
    %6779 = vmatprep.subr.mxu0 0.0
    %6780 = vmatpush1.msra.mxu0 0.0
    %6781 = vmatprep.subr.mxu0 0.0
    %6782 = vmatpush1.msra.mxu0 0.0
    %6783 = vmatprep.subr.mxu0 0.0
    %6784 = vmatpush1.msra.mxu0 0.0
    %6785 = vmatprep.subr.mxu0 0.0
    %6786 = vmatpush1.msra.mxu0 0.0
    %6787 = vmatprep.subr.mxu0 0.0
    %6788 = vmatpush1.msra.mxu0 0.0
    %6789 = vmatprep.subr.mxu0 0.0
    %6790 = vmatpush1.msra.mxu0 0.0
    %6791 = vmatprep.subr.mxu0 0.0
    %6792 = vmatpush1.msra.mxu0 0.0
    %6793 = vmatprep.subr.mxu0 0.0
    %6794 = vmatpush1.msra.mxu0 0.0
    %6795 = vmatprep.subr.mxu0 0.0
    %6796 = vmatpush1.msra.mxu0 0.0
    %6797 = vmatprep.subr.mxu0 0.0
    %6798 = vmatpush1.msra.mxu0 0.0
    %6799 = vmatprep.mubr.f32.mxu0 0.0
    %6800 = vmatmul.mubr.f32.gmra.mrb[0].mxu0 %v6497
    %v6801 = vpop.f32.mrb[0].mxu0
    %v6802 = vadd.f32 0.0, %v6801
    %v6803 = vpop.f32.mrb[0].mxu0
    %6804 = vmatprep.mubr.f32.mxu0 0.0
    %6805 = vmatmul.mubr.f32.gmra.mrb[0].mxu0 %v6500
    %v6806 = vpop.f32.mrb[0].mxu0
    %v6807 = vadd.f32 0.0, %v6806
    %v6808 = vpop.f32.mrb[0].mxu0
    %6809 = vmatprep.mubr.f32.mxu0 0.0
    %6810 = vmatmul.mubr.f32.gmra.mrb[0].mxu0 %v6503
    %v6811 = vpop.f32.mrb[0].mxu0
    %v6812 = vadd.f32 0.0, %v6811
    %v6813 = vpop.f32.mrb[0].mxu0
    %6814 = vmatprep.mubr.f32.mxu0 0.0
    %6815 = vmatmul.mubr.f32.gmra.mrb[0].mxu0 %v6506
    %v6816 = vpop.f32.mrb[0].mxu0
    %v6817 = vadd.f32 0.0, %v6816
    %v6818 = vpop.f32.mrb[0].mxu0
    %6819 = vmatprep.mubr.f32.mxu0 0.0
    %6820 = vmatmul.mubr.f32.gmra.mrb[0].mxu0 %v6509
    %v6821 = vpop.f32.mrb[0].mxu0
    %v6822 = vadd.f32 0.0, %v6821
    %v6823 = vpop.f32.mrb[0].mxu0
    %6824 = vdwg.mxu0
    %s6825 = scalar_lea.vmem [#allocation2], 80
    %6826 = vst.msk [vmem:[%s6825] sm:$0xff] %vm6601, %v6802
    %6827 = vst.msk [vmem:[%s6825 + $0x8] sm:$0xff] %vm6601, %v6807
    %6828 = vst.msk [vmem:[%s6825 + $0x10] sm:$0xff] %vm6601, %v6812
    %6829 = vst.msk [vmem:[%s6825 + $0x18] sm:$0xff] %vm6601, %v6817
    %6830 = vst.msk [vmem:[%s6825 + $0x20] sm:$0xff] %vm6601, %v6822
    %v6831 = vtanh.pop %v6452
    %v6832 = vtanh.pop %v6457
    %v6833 = vtanh.pop %v6462
    %v6834 = vtanh.pop %v6467
    %v6835 = vtanh.pop %v6472
    %v6836 = vld [vmem:[%s23] sm:$0xff]
    %v6837 = vld [vmem:[%s23 + $0x8] sm:$0xff]
    %v6838 = vld [vmem:[%s23 + $0x10] sm:$0xff]
    %v6839 = vld [vmem:[%s23 + $0x18] sm:$0xff]
    %v6840 = vld [vmem:[%s23 + $0x20] sm:$0xff]
    %v6841 = vld [vmem:[%s23 + $0x28] sm:$0xff]
    %v6842 = vld [vmem:[%s23 + $0x30] sm:$0xff]
    %v6843 = vld [vmem:[%s23 + $0x38] sm:$0xff]
    %v6844 = vld [vmem:[%s23 + $0x40] sm:$0xff]
    %v6845 = vld [vmem:[%s23 + $0x48] sm:$0xff]
    %v6846 = vld [vmem:[%s23 + $0x50] sm:$0xff]
    %v6847 = vld [vmem:[%s23 + $0x58] sm:$0xff]
    %v6848 = vld [vmem:[%s23 + $0x60] sm:$0xff]
    %v6849 = vld [vmem:[%s23 + $0x68] sm:$0xff]
    %v6850 = vld [vmem:[%s23 + $0x70] sm:$0xff]
    %v6852 = vsel %vm6495, %v6831, 0
    %v6855 = vsel %vm6495, %v6832, 0
    %v6858 = vsel %vm6495, %v6833, 0
    %v6861 = vsel %vm6495, %v6834, 0
    %v6864 = vsel %vm6495, %v6835, 0
    %6866 = vmatprep.subr.mxu0 0.0
    %6867 = vmatpush1.msra.mxu0 %v6836
    %6868 = vmatprep.subr.mxu0 0.0
    %6869 = vmatpush1.msra.mxu0 %v6837
    %6870 = vmatprep.subr.mxu0 0.0
    %6871 = vmatpush1.msra.mxu0 %v6838
    %6872 = vmatprep.subr.mxu0 0.0
    %6873 = vmatpush1.msra.mxu0 %v6839
    %6874 = vmatprep.subr.mxu0 0.0
    %6875 = vmatpush1.msra.mxu0 %v6840
    %6876 = vmatprep.subr.mxu0 0.0
    %6877 = vmatpush1.msra.mxu0 %v6841
    %6878 = vmatprep.subr.mxu0 0.0
    %6879 = vmatpush1.msra.mxu0 %v6842
    %6880 = vmatprep.subr.mxu0 0.0
    %6881 = vmatpush1.msra.mxu0 %v6843
    %6882 = vmatprep.subr.mxu0 0.0
    %6883 = vmatpush1.msra.mxu0 %v6844
    %6884 = vmatprep.subr.mxu0 0.0
    %6885 = vmatpush1.msra.mxu0 %v6845
    %6886 = vmatprep.subr.mxu0 0.0
    %6887 = vmatpush1.msra.mxu0 %v6846
    %6888 = vmatprep.subr.mxu0 0.0
    %6889 = vmatpush1.msra.mxu0 %v6847
    %6890 = vmatprep.subr.mxu0 0.0
    %6891 = vmatpush1.msra.mxu0 %v6848
    %6892 = vmatprep.subr.mxu0 0.0
    %6893 = vmatpush1.msra.mxu0 %v6849
    %6894 = vmatprep.subr.mxu0 0.0
    %6895 = vmatpush1.msra.mxu0 %v6850
    %6896 = vmatprep.subr.mxu0 0.0
    %6897 = vmatpush1.msra.mxu0 0.0
    %6898 = vmatprep.subr.mxu0 0.0
    %6899 = vmatpush1.msra.mxu0 0.0
    %6900 = vmatprep.subr.mxu0 0.0
    %6901 = vmatpush1.msra.mxu0 0.0
    %6902 = vmatprep.subr.mxu0 0.0
    %6903 = vmatpush1.msra.mxu0 0.0
    %6904 = vmatprep.subr.mxu0 0.0
    %6905 = vmatpush1.msra.mxu0 0.0
    %6906 = vmatprep.subr.mxu0 0.0
    %6907 = vmatpush1.msra.mxu0 0.0
    %6908 = vmatprep.subr.mxu0 0.0
    %6909 = vmatpush1.msra.mxu0 0.0
    %6910 = vmatprep.subr.mxu0 0.0
    %6911 = vmatpush1.msra.mxu0 0.0
    %6912 = vmatprep.subr.mxu0 0.0
    %6913 = vmatpush1.msra.mxu0 0.0
    %6914 = vmatprep.subr.mxu0 0.0
    %6915 = vmatpush1.msra.mxu0 0.0
    %6916 = vmatprep.subr.mxu0 0.0
    %6917 = vmatpush1.msra.mxu0 0.0
    %6918 = vmatprep.subr.mxu0 0.0
    %6919 = vmatpush1.msra.mxu0 0.0
    %6920 = vmatprep.subr.mxu0 0.0
    %6921 = vmatpush1.msra.mxu0 0.0
    %6922 = vmatprep.subr.mxu0 0.0
    %6923 = vmatpush1.msra.mxu0 0.0
    %6924 = vmatprep.subr.mxu0 0.0
    %6925 = vmatpush1.msra.mxu0 0.0
    %6926 = vmatprep.subr.mxu0 0.0
    %6927 = vmatpush1.msra.mxu0 0.0
    %6928 = vmatprep.subr.mxu0 0.0
    %6929 = vmatpush1.msra.mxu0 0.0
    %6930 = vmatprep.mubr.f32.mxu0 0.0
    %6931 = vmatmul.mubr.f32.gmra.mrb[0].mxu0 %v6852
    %v6932 = vpop.f32.mrb[0].mxu0
    %v6933 = vadd.f32 0.0, %v6932
    %v6934 = vpop.f32.mrb[0].mxu0
    %6935 = vmatprep.mubr.f32.mxu0 0.0
    %6936 = vmatmul.mubr.f32.gmra.mrb[0].mxu0 %v6855
    %v6937 = vpop.f32.mrb[0].mxu0
    %v6938 = vadd.f32 0.0, %v6937
    %v6939 = vpop.f32.mrb[0].mxu0
    %6940 = vmatprep.mubr.f32.mxu0 0.0
    %6941 = vmatmul.mubr.f32.gmra.mrb[0].mxu0 %v6858
    %v6942 = vpop.f32.mrb[0].mxu0
    %v6943 = vadd.f32 0.0, %v6942
    %v6944 = vpop.f32.mrb[0].mxu0
    %6945 = vmatprep.mubr.f32.mxu0 0.0
    %6946 = vmatmul.mubr.f32.gmra.mrb[0].mxu0 %v6861
    %v6947 = vpop.f32.mrb[0].mxu0
    %v6948 = vadd.f32 0.0, %v6947
    %v6949 = vpop.f32.mrb[0].mxu0
    %6950 = vmatprep.mubr.f32.mxu0 0.0
    %6951 = vmatmul.mubr.f32.gmra.mrb[0].mxu0 %v6864
    %v6952 = vpop.f32.mrb[0].mxu0
    %v6953 = vadd.f32 0.0, %v6952
    %v6954 = vpop.f32.mrb[0].mxu0
    %6955 = vdwg.mxu0
    %s6956 = scalar_lea.vmem [#allocation2], 120
    %6957 = vst.msk [vmem:[%s6956] sm:$0xff] %vm6601, %v6933
    %6958 = vst.msk [vmem:[%s6956 + $0x8] sm:$0xff] %vm6601, %v6938
    %6959 = vst.msk [vmem:[%s6956 + $0x10] sm:$0xff] %vm6601, %v6943
    %6960 = vst.msk [vmem:[%s6956 + $0x18] sm:$0xff] %vm6601, %v6948
    %6961 = vst.msk [vmem:[%s6956 + $0x20] sm:$0xff] %vm6601, %v6953
    %v6962 = vld [vmem:[%s6607] sm:$0xff]
    %v6963 = vld [vmem:[%s6607 + $0x8] sm:$0xff]
    %v6964 = vld [vmem:[%s6607 + $0x10] sm:$0xff]
    %v6965 = vld [vmem:[%s6607 + $0x18] sm:$0xff]
    %v6966 = vld [vmem:[%s6607 + $0x20] sm:$0xff]
    %v6967 = vld [vmem:[%s6607 + $0x28] sm:$0xff]
    %v6968 = vld [vmem:[%s6607 + $0x30] sm:$0xff]
    %v6969 = vld [vmem:[%s6607 + $0x38] sm:$0xff]
    %v6970 = vld [vmem:[%s6607 + $0x40] sm:$0xff]
    %v6971 = vld [vmem:[%s6607 + $0x48] sm:$0xff]
    %v6972 = vld [vmem:[%s6607 + $0x50] sm:$0xff]
    %v6973 = vld [vmem:[%s6607 + $0x58] sm:$0xff]
    %v6974 = vld [vmem:[%s6607 + $0x60] sm:$0xff]
    %v6975 = vld [vmem:[%s6607 + $0x68] sm:$0xff]
    %v6976 = vld [vmem:[%s6607 + $0x70] sm:$0xff]
    %6977 = vmatprep.subr.mxu0 0.0
    %6978 = vmatpush1.msra.mxu0 %v6962
    %6979 = vmatprep.subr.mxu0 0.0
    %6980 = vmatpush1.msra.mxu0 %v6963
    %6981 = vmatprep.subr.mxu0 0.0
    %6982 = vmatpush1.msra.mxu0 %v6964
    %6983 = vmatprep.subr.mxu0 0.0
    %6984 = vmatpush1.msra.mxu0 %v6965
    %6985 = vmatprep.subr.mxu0 0.0
    %6986 = vmatpush1.msra.mxu0 %v6966
    %6987 = vmatprep.subr.mxu0 0.0
    %6988 = vmatpush1.msra.mxu0 %v6967
    %6989 = vmatprep.subr.mxu0 0.0
    %6990 = vmatpush1.msra.mxu0 %v6968
    %6991 = vmatprep.subr.mxu0 0.0
    %6992 = vmatpush1.msra.mxu0 %v6969
    %6993 = vmatprep.subr.mxu0 0.0
    %6994 = vmatpush1.msra.mxu0 %v6970
    %6995 = vmatprep.subr.mxu0 0.0
    %6996 = vmatpush1.msra.mxu0 %v6971
    %6997 = vmatprep.subr.mxu0 0.0
    %6998 = vmatpush1.msra.mxu0 %v6972
    %6999 = vmatprep.subr.mxu0 0.0
    %7000 = vmatpush1.msra.mxu0 %v6973
    %7001 = vmatprep.subr.mxu0 0.0
    %7002 = vmatpush1.msra.mxu0 %v6974
    %7003 = vmatprep.subr.mxu0 0.0
    %7004 = vmatpush1.msra.mxu0 %v6975
    %7005 = vmatprep.subr.mxu0 0.0
    %7006 = vmatpush1.msra.mxu0 %v6976
    %7007 = vmatprep.subr.mxu0 0.0
    %7008 = vmatpush1.msra.mxu0 0.0
    %7009 = vmatprep.subr.mxu0 0.0
    %7010 = vmatpush1.msra.mxu0 0.0
    %7011 = vmatprep.subr.mxu0 0.0
    %7012 = vmatpush1.msra.mxu0 0.0
    %7013 = vmatprep.subr.mxu0 0.0
    %7014 = vmatpush1.msra.mxu0 0.0
    %7015 = vmatprep.subr.mxu0 0.0
    %7016 = vmatpush1.msra.mxu0 0.0
    %7017 = vmatprep.subr.mxu0 0.0
    %7018 = vmatpush1.msra.mxu0 0.0
    %7019 = vmatprep.subr.mxu0 0.0
    %7020 = vmatpush1.msra.mxu0 0.0
    %7021 = vmatprep.subr.mxu0 0.0
    %7022 = vmatpush1.msra.mxu0 0.0
    %7023 = vmatprep.subr.mxu0 0.0
    %7024 = vmatpush1.msra.mxu0 0.0
    %7025 = vmatprep.subr.mxu0 0.0
    %7026 = vmatpush1.msra.mxu0 0.0
    %7027 = vmatprep.subr.mxu0 0.0
    %7028 = vmatpush1.msra.mxu0 0.0
    %7029 = vmatprep.subr.mxu0 0.0
    %7030 = vmatpush1.msra.mxu0 0.0
    %7031 = vmatprep.subr.mxu0 0.0
    %7032 = vmatpush1.msra.mxu0 0.0
    %7033 = vmatprep.subr.mxu0 0.0
    %7034 = vmatpush1.msra.mxu0 0.0
    %7035 = vmatprep.subr.mxu0 0.0
    %7036 = vmatpush1.msra.mxu0 0.0
    %7037 = vmatprep.subr.mxu0 0.0
    %7038 = vmatpush1.msra.mxu0 0.0
    %7039 = vmatprep.subr.mxu0 0.0
    %7040 = vmatpush1.msra.mxu0 0.0
    %7041 = vmatprep.mubr.f32.mxu0 0.0
    %7042 = vmatmul.mubr.f32.gmra.mrb[0].mxu0 %v6852
    %v7043 = vpop.f32.mrb[0].mxu0
    %v7044 = vadd.f32 0.0, %v7043
    %v7045 = vpop.f32.mrb[0].mxu0
    %7046 = vmatprep.mubr.f32.mxu0 0.0
    %7047 = vmatmul.mubr.f32.gmra.mrb[0].mxu0 %v6855
    %v7048 = vpop.f32.mrb[0].mxu0
    %v7049 = vadd.f32 0.0, %v7048
    %v7050 = vpop.f32.mrb[0].mxu0
    %7051 = vmatprep.mubr.f32.mxu0 0.0
    %7052 = vmatmul.mubr.f32.gmra.mrb[0].mxu0 %v6858
    %v7053 = vpop.f32.mrb[0].mxu0
    %v7054 = vadd.f32 0.0, %v7053
    %v7055 = vpop.f32.mrb[0].mxu0
    %7056 = vmatprep.mubr.f32.mxu0 0.0
    %7057 = vmatmul.mubr.f32.gmra.mrb[0].mxu0 %v6861
    %v7058 = vpop.f32.mrb[0].mxu0
    %v7059 = vadd.f32 0.0, %v7058
    %v7060 = vpop.f32.mrb[0].mxu0
    %7061 = vmatprep.mubr.f32.mxu0 0.0
    %7062 = vmatmul.mubr.f32.gmra.mrb[0].mxu0 %v6864
    %v7063 = vpop.f32.mrb[0].mxu0
    %v7064 = vadd.f32 0.0, %v7063
    %v7065 = vpop.f32.mrb[0].mxu0
    %7066 = vdwg.mxu0
    %s7067 = scalar_lea.vmem [#allocation2], 160
    %7068 = vst.msk [vmem:[%s7067] sm:$0xff] %vm6601, %v7044
    %7069 = vst.msk [vmem:[%s7067 + $0x8] sm:$0xff] %vm6601, %v7049
    %7070 = vst.msk [vmem:[%s7067 + $0x10] sm:$0xff] %vm6601, %v7054
    %7071 = vst.msk [vmem:[%s7067 + $0x18] sm:$0xff] %vm6601, %v7059
    %7072 = vst.msk [vmem:[%s7067 + $0x20] sm:$0xff] %vm6601, %v7064
    %v7073 = vld [vmem:[%s6719] sm:$0xff]
    %v7074 = vld [vmem:[%s6719 + $0x8] sm:$0xff]
    %v7075 = vld [vmem:[%s6719 + $0x10] sm:$0xff]
    %v7076 = vld [vmem:[%s6719 + $0x18] sm:$0xff]
    %v7077 = vld [vmem:[%s6719 + $0x20] sm:$0xff]
    %v7078 = vld [vmem:[%s6719 + $0x28] sm:$0xff]
    %v7079 = vld [vmem:[%s6719 + $0x30] sm:$0xff]
    %v7080 = vld [vmem:[%s6719 + $0x38] sm:$0xff]
    %v7081 = vld [vmem:[%s6719 + $0x40] sm:$0xff]
    %v7082 = vld [vmem:[%s6719 + $0x48] sm:$0xff]
    %v7083 = vld [vmem:[%s6719 + $0x50] sm:$0xff]
    %v7084 = vld [vmem:[%s6719 + $0x58] sm:$0xff]
    %v7085 = vld [vmem:[%s6719 + $0x60] sm:$0xff]
    %v7086 = vld [vmem:[%s6719 + $0x68] sm:$0xff]
    %v7087 = vld [vmem:[%s6719 + $0x70] sm:$0xff]
    %7088 = vmatprep.subr.mxu0 0.0
    %7089 = vmatpush1.msra.mxu0 %v7073
    %7090 = vmatprep.subr.mxu0 0.0
    %7091 = vmatpush1.msra.mxu0 %v7074
    %7092 = vmatprep.subr.mxu0 0.0
    %7093 = vmatpush1.msra.mxu0 %v7075
    %7094 = vmatprep.subr.mxu0 0.0
    %7095 = vmatpush1.msra.mxu0 %v7076
    %7096 = vmatprep.subr.mxu0 0.0
    %7097 = vmatpush1.msra.mxu0 %v7077
    %7098 = vmatprep.subr.mxu0 0.0
    %7099 = vmatpush1.msra.mxu0 %v7078
    %7100 = vmatprep.subr.mxu0 0.0
    %7101 = vmatpush1.msra.mxu0 %v7079
    %7102 = vmatprep.subr.mxu0 0.0
    %7103 = vmatpush1.msra.mxu0 %v7080
    %7104 = vmatprep.subr.mxu0 0.0
    %7105 = vmatpush1.msra.mxu0 %v7081
    %7106 = vmatprep.subr.mxu0 0.0
    %7107 = vmatpush1.msra.mxu0 %v7082
    %7108 = vmatprep.subr.mxu0 0.0
    %7109 = vmatpush1.msra.mxu0 %v7083
    %7110 = vmatprep.subr.mxu0 0.0
    %7111 = vmatpush1.msra.mxu0 %v7084
    %7112 = vmatprep.subr.mxu0 0.0
    %7113 = vmatpush1.msra.mxu0 %v7085
    %7114 = vmatprep.subr.mxu0 0.0
    %7115 = vmatpush1.msra.mxu0 %v7086
    %7116 = vmatprep.subr.mxu0 0.0
    %7117 = vmatpush1.msra.mxu0 %v7087
    %7118 = vmatprep.subr.mxu0 0.0
    %7119 = vmatpush1.msra.mxu0 0.0
    %7120 = vmatprep.subr.mxu0 0.0
    %7121 = vmatpush1.msra.mxu0 0.0
    %7122 = vmatprep.subr.mxu0 0.0
    %7123 = vmatpush1.msra.mxu0 0.0
    %7124 = vmatprep.subr.mxu0 0.0
    %7125 = vmatpush1.msra.mxu0 0.0
    %7126 = vmatprep.subr.mxu0 0.0
    %7127 = vmatpush1.msra.mxu0 0.0
    %7128 = vmatprep.subr.mxu0 0.0
    %7129 = vmatpush1.msra.mxu0 0.0
    %7130 = vmatprep.subr.mxu0 0.0
    %7131 = vmatpush1.msra.mxu0 0.0
    %7132 = vmatprep.subr.mxu0 0.0
    %7133 = vmatpush1.msra.mxu0 0.0
    %7134 = vmatprep.subr.mxu0 0.0
    %7135 = vmatpush1.msra.mxu0 0.0
    %7136 = vmatprep.subr.mxu0 0.0
    %7137 = vmatpush1.msra.mxu0 0.0
    %7138 = vmatprep.subr.mxu0 0.0
    %7139 = vmatpush1.msra.mxu0 0.0
    %7140 = vmatprep.subr.mxu0 0.0
    %7141 = vmatpush1.msra.mxu0 0.0
    %7142 = vmatprep.subr.mxu0 0.0
    %7143 = vmatpush1.msra.mxu0 0.0
    %7144 = vmatprep.subr.mxu0 0.0
    %7145 = vmatpush1.msra.mxu0 0.0
    %7146 = vmatprep.subr.mxu0 0.0
    %7147 = vmatpush1.msra.mxu0 0.0
    %7148 = vmatprep.subr.mxu0 0.0
    %7149 = vmatpush1.msra.mxu0 0.0
    %7150 = vmatprep.subr.mxu0 0.0
    %7151 = vmatpush1.msra.mxu0 0.0
    %7152 = vmatprep.mubr.f32.mxu0 0.0
    %7153 = vmatmul.mubr.f32.gmra.mrb[0].mxu0 %v6852
    %v7154 = vpop.f32.mrb[0].mxu0
    %v7155 = vadd.f32 0.0, %v7154
    %v7156 = vpop.f32.mrb[0].mxu0
    %7157 = vmatprep.mubr.f32.mxu0 0.0
    %7158 = vmatmul.mubr.f32.gmra.mrb[0].mxu0 %v6855
    %v7159 = vpop.f32.mrb[0].mxu0
    %v7160 = vadd.f32 0.0, %v7159
    %v7161 = vpop.f32.mrb[0].mxu0
    %7162 = vmatprep.mubr.f32.mxu0 0.0
    %7163 = vmatmul.mubr.f32.gmra.mrb[0].mxu0 %v6858
    %v7164 = vpop.f32.mrb[0].mxu0
    %v7165 = vadd.f32 0.0, %v7164
    %v7166 = vpop.f32.mrb[0].mxu0
    %7167 = vmatprep.mubr.f32.mxu0 0.0
    %7168 = vmatmul.mubr.f32.gmra.mrb[0].mxu0 %v6861
    %v7169 = vpop.f32.mrb[0].mxu0
    %v7170 = vadd.f32 0.0, %v7169
    %v7171 = vpop.f32.mrb[0].mxu0
    %7172 = vmatprep.mubr.f32.mxu0 0.0
    %7173 = vmatmul.mubr.f32.gmra.mrb[0].mxu0 %v6864
    %v7174 = vpop.f32.mrb[0].mxu0
    %v7175 = vadd.f32 0.0, %v7174
    %v7176 = vpop.f32.mrb[0].mxu0
    %7177 = vdwg.mxu0
    %s7178 = scalar_lea.vmem [#allocation2], 200
    %7179 = vst.msk [vmem:[%s7178] sm:$0xff] %vm6601, %v7155
    %7180 = vst.msk [vmem:[%s7178 + $0x8] sm:$0xff] %vm6601, %v7160
    %7181 = vst.msk [vmem:[%s7178 + $0x10] sm:$0xff] %vm6601, %v7165
    %7182 = vst.msk [vmem:[%s7178 + $0x18] sm:$0xff] %vm6601, %v7170
    %7183 = vst.msk [vmem:[%s7178 + $0x20] sm:$0xff] %vm6601, %v7175
    // Predicated region
    $region98: #{_lambda_.1} parent=1 // pred_check
      _
    $region99: #{_lambda_.1} parent=1 // pred_check_branch
      %7185 = sbr.rel (0) target = $region101
    $region100: #{_lambda_.1} parent=1 // pred_region
      %s7187 = ssub.s32 3840, 3840
      %7188 = vsyncadd [#allocation3], %s7187
      %s7189 = sshll.u32 [#allocation2], 4
      %s7190 = int_to_ptr.vmem [resolvable:$true] %s7189
      %7195 = dma.vmem_to_hbm [thread:$0]  %s7190, 3840, %s24, [#allocation3], 128, 128, 8
    $region101: #{_lambda_.1} parent=1 // pred_fallthru
      _
    // Predicated region
    $region102: #{_lambda_.1} parent=1 // pred_check
      _
    $region103: #{_lambda_.1} parent=1 // pred_check_branch
      %7197 = sbr.rel (0) target = $region105
    $region104: #{_lambda_.1} parent=1 // pred_region
      %7198 = dma.done [#allocation3], 3840
    $region105: #{_lambda_.1} parent=1 // pred_fallthru
      _
    %7199 = vsyncpa [#allocation3], 1

</llo_original>
